<compile_context>
chip_gen: v5e
topology: v5e:2x2
jax: 0.10.0
libtpu: 0.0.40
codegen_flags: <defaults>
</compile_context>

<pallas_src>
import jax
import jax.numpy as jnp
import numpy as np
from jax.experimental import pallas as pl
from jax.experimental.pallas import tpu as pltpu


# ----------------------------- static geometry ----------------------------- #
_W = 24              # logical row width (RNet input is 24x24, forced by Linear(576,128))
_XPAD = 584          # input rows stored per image (576 valid + slack for conv1 tap slices)
_M1 = 22 * _W        # conv1 output rows computed (valid 22x22 inside 22x24 rows)
_L1 = 600            # conv1 scratch rows (covers pool1's strided reads)
_MP1 = 272           # pool1 output rows computed (valid 11x11, plus slack for conv2 taps)
_M2 = 9 * _W         # conv2 output rows (valid 9x9)
_L2 = 264            # conv2 scratch rows (covers pool2's strided reads)
_MP2 = 104           # pool2 output rows (valid 4x4, plus slack for conv3 taps)
_M3 = 3 * _W         # conv3 output rows (valid 3x3)


# ------------------------------ fused kernel ------------------------------- #
def _rnet_kernel(x_ref, mask_ref,
                 w1_ref, b1_ref, al1_ref,
                 w2_ref, b2_ref, al2_ref,
                 w3_ref, b3_ref, al3_ref,
                 w4_ref, b4_ref, al4_ref,
                 w56_ref, b56_ref,
                 bbox_ref, prob_ref,
                 c1_scr, c2_scr):
    f32, bf16 = jnp.float32, jnp.bfloat16
    NEG = jnp.float32(-jnp.inf)

    def prelu(y, al_ref):
        a = al_ref[...]
        return jnp.where(y >= 0.0, y, a * y)

    def conv(read, w_ref, k, rows):
        """out[m, :] = sum_{kh,kw} in[m + kh*W + kw, :] @ W[kh, kw]  (bf16 x bf16 -> f32)."""
        acc = None
        for kh in range(k):
            for kw in range(k):
                xs = read(kh * _W + kw, rows).astype(bf16)
                t = jnp.dot(xs, w_ref[kh, kw], preferred_element_type=f32)
                acc = t if acc is None else acc + t
        return acc

    def pool(src_ref, rows):
        """3x3 / stride-2 max pool: 9 sublane-strided reads of the -inf-masked scratch."""
        out = None
        for dh in range(3):
            for dw in range(3):
                v = src_ref[pl.ds(dh * _W + dw, rows, stride=2), :]
                out = v if out is None else jnp.maximum(out, v)
        return out

    # ---- conv1 (3x3, 3->28) + PReLU; mask invalid columns / tail rows to -inf ----
    y1 = conv(lambda off, r: x_ref[0, off:off + r, :], w1_ref, 3, _M1)
    y1 = prelu(y1 + b1_ref[...], al1_ref)
    c1_scr[0:_M1, :] = jnp.where(mask_ref[...] > 0.0, y1, NEG)
    c1_scr[_M1:_L1, :] = jnp.full((_L1 - _M1, c1_scr.shape[1]), NEG, f32)

    # ---- pool1 (22x22 -> 11x11, ceil_mode) then conv2 (3x3, 28->48) + PReLU ----
    p1 = pool(c1_scr, _MP1)                                   # (272, 28) f32
    y2 = conv(lambda off, r: p1[off:off + r, :], w2_ref, 3, _M2)
    y2 = prelu(y2 + b2_ref[...], al2_ref)
    c2_scr[0:_M2, :] = y2                                     # 4x4 pool never reads invalid cols
    c2_scr[_M2:_L2, :] = jnp.full((_L2 - _M2, c2_scr.shape[1]), NEG, f32)

    # ---- pool2 (9x9 -> 4x4) then conv3 (2x2, 48->64) + PReLU ----
    p2 = pool(c2_scr, _MP2)                                   # (104, 48) f32
    y3 = conv(lambda off, r: p2[off:off + r, :], w3_ref, 2, _M3)
    y3 = prelu(y3 + b3_ref[...], al3_ref)                     # (72, 64), valid rows h*24+w, h,w<3

    # ---- fc4 (576->128) + PReLU; PyTorch flatten order folded into w4 stacking ----
    h = None
    for hh in range(3):
        for ww in range(3):
            row = hh * _W + ww
            xrow = y3[row:row + 1, :].astype(bf16)            # (1, 64)
            t = jnp.dot(xrow, w4_ref[hh * 3 + ww], preferred_element_type=f32)
            h = t if h is None else h + t
    h = prelu(h + b4_ref[...], al4_ref)                       # (1, 128)

    # ---- fused heads: [fc5_1 | fc5_2] as one (128, 6) GEMM; softmax on class slice ----
    z = jnp.dot(h.astype(bf16), w56_ref[...], preferred_element_type=f32) + b56_ref[...]
    logits = z[:, 0:2]
    e = jnp.exp(logits - jnp.max(logits, axis=1, keepdims=True))
    prob_ref[0] = e / jnp.sum(e, axis=1, keepdims=True)       # (1, 2)
    bbox_ref[0] = z[:, 2:6]                                   # (1, 4)


# --------------------------------- wrapper --------------------------------- #
def rnet_forward(x_nchw, params):
    """RNet forward. x: [B, 3, 24, 24] float32 -> (b: [B, 4], a: [B, 2])."""
    B, C, H, Wd = x_nchw.shape
    assert (C, H, Wd) == (3, 24, 24), "RNet operates on 3x24x24 crops"
    f32, bf16 = jnp.float32, jnp.bfloat16

    # NCHW -> NHWC -> (B, H*W, 3) row-major flat, padded with 8 extra rows so the
    # last conv1 tap slice (offset 2*24+2, length 528) stays in bounds.
    xf = jnp.transpose(x_nchw.astype(f32), (0, 2, 3, 1)).reshape(B, H * Wd, C)
    xf = jnp.pad(xf, ((0, 0), (0, _XPAD - H * Wd), (0, 0)))

    p = params
    # conv weights: (Cout, Cin, kH, kW) -> (kH, kW, Cin, Cout), bf16 (single-pass MXU)
    w1 = jnp.transpose(p['conv1_w'], (2, 3, 1, 0)).astype(bf16)            # (3,3,3,28)
    w2 = jnp.transpose(p['conv2_w'], (2, 3, 1, 0)).astype(bf16)            # (3,3,28,48)
    w3 = jnp.transpose(p['conv3_w'], (2, 3, 1, 0)).astype(bf16)            # (2,2,48,64)
    # fc4 weight (128, 576); flattened input order is (c, w, h) -> stack as [h*3+w, c, o]
    w4 = jnp.transpose(p['fc4_w'].reshape(128, 64, 3, 3),
                       (3, 2, 1, 0)).reshape(9, 64, 128).astype(bf16)
    # fused heads: (128, 2) | (128, 4) -> (128, 6)
    w56 = jnp.concatenate([p['fc51_w'].T, p['fc52_w'].T], axis=1).astype(bf16)
    b56 = jnp.concatenate([p['fc51_b'], p['fc52_b']]).reshape(1, 6)

    b1, a1 = p['conv1_b'].reshape(1, -1), p['prelu1'].reshape(1, -1)
    b2, a2 = p['conv2_b'].reshape(1, -1), p['prelu2'].reshape(1, -1)
    b3, a3 = p['conv3_b'].reshape(1, -1), p['prelu3'].reshape(1, -1)
    b4, a4 = p['fc4_b'].reshape(1, -1), p['prelu4'].reshape(1, -1)

    # valid-column mask for conv1's 22x22 output living inside 22x24 full-width rows
    mask1 = (jnp.arange(_M1) % _W < 22).astype(f32).reshape(_M1, 1)

    def const_spec(arr):
        nd = arr.ndim
        return pl.BlockSpec(arr.shape, lambda i, _nd=nd: (0,) * _nd)

    consts = (mask1, w1, b1, a1, w2, b2, a2, w3, b3, a3, w4, b4, a4, w56, b56)
    in_specs = [pl.BlockSpec((1, _XPAD, 3), lambda i: (i, 0, 0))] + \
               [const_spec(c) for c in consts]

    bbox, prob = pl.pallas_call(
        _rnet_kernel,
        grid=(B,),
        in_specs=in_specs,
        out_specs=(pl.BlockSpec((1, 1, 4), lambda i: (i, 0, 0)),
                   pl.BlockSpec((1, 1, 2), lambda i: (i, 0, 0))),
        out_shape=(jax.ShapeDtypeStruct((B, 1, 4), f32),
                   jax.ShapeDtypeStruct((B, 1, 2), f32)),
        scratch_shapes=[pltpu.VMEM((_L1, 28), f32),
                        pltpu.VMEM((_L2, 48), f32)],
        compiler_params=pltpu.CompilerParams(
            dimension_semantics=("parallel",),
            vmem_limit_bytes=32 * 1024 * 1024),
    )(xf, *consts)

    return bbox.reshape(B, 4), prob.reshape(B, 2)


# ------------------------------ parameter init ----------------------------- #
def init_params(key):
    ks = jax.random.split(key, 20)
    w = lambda k_, shape, s=0.1: (s * jax.random.normal(k_, shape)).astype(jnp.float32)
    a = lambda k_, n: (0.25 + 0.05 * jax.random.normal(k_, (n,))).astype(jnp.float32)
    return {
        'conv1_w': w(ks[0], (28, 3, 3, 3)),   'conv1_b': w(ks[1], (28,)),  'prelu1': a(ks[2], 28),
        'conv2_w': w(ks[3], (48, 28, 3, 3)),  'conv2_b': w(ks[4], (48,)),  'prelu2': a(ks[5], 48),
        'conv3_w': w(ks[6], (64, 48, 2, 2)),  'conv3_b': w(ks[7], (64,)),  'prelu3': a(ks[8], 64),
        'fc4_w': w(ks[9], (128, 576), 0.05),  'fc4_b': w(ks[10], (128,)),  'prelu4': a(ks[11], 128),
        'fc51_w': w(ks[12], (2, 128)),        'fc51_b': w(ks[13], (2,)),
        'fc52_w': w(ks[14], (4, 128)),        'fc52_b': w(ks[15], (4,)),
    }


# ------------------- pure-JAX reference (same mixed precision) -------------- #
def rnet_reference(x, p):
    """Reference RNet: bf16 matmul/conv operands with f32 accumulation (mirrors kernel)."""
    bf16, f32 = jnp.bfloat16, jnp.float32

    def conv(x, w, b):
        y = jax.lax.conv_general_dilated(
            x.astype(bf16), w.astype(bf16), (1, 1), 'VALID',
            dimension_numbers=('NCHW', 'OIHW', 'NCHW'),
            preferred_element_type=f32)
        return y + b[None, :, None, None]

    def prelu(x, a):
        return jnp.where(x >= 0, x, a[None, :, None, None] * x)

    def pool(x, k=3, s=2):
        H, W = x.shape[2], x.shape[3]
        Ho = -(-(H - k) // s) + 1
        Wo = -(-(W - k) // s) + 1
        padH = max(0, (Ho - 1) * s + k - H)
        padW = max(0, (Wo - 1) * s + k - W)
        return jax.lax.reduce_window(
            x, -jnp.inf, jax.lax.max, (1, 1, k, k), (1, 1, s, s),
            ((0, 0), (0, 0), (0, padH), (0, padW)))

    x = pool(prelu(conv(x, p['conv1_w'], p['conv1_b']), p['prelu1']))
    x = pool(prelu(conv(x, p['conv2_w'], p['conv2_b']), p['prelu2']))
    x = prelu(conv(x, p['conv3_w'], p['conv3_b']), p['prelu3'])
    B = x.shape[0]
    flat = jnp.transpose(x, (0, 1, 3, 2)).reshape(B, -1)        # (C, W, H) flatten order
    h = jnp.dot(flat.astype(bf16), p['fc4_w'].T.astype(bf16),
                preferred_element_type=f32) + p['fc4_b']
    h = jnp.where(h >= 0, h, p['prelu4'][None, :] * h)
    a = jax.nn.softmax(jnp.dot(h.astype(bf16), p['fc51_w'].T.astype(bf16),
                               preferred_element_type=f32) + p['fc51_b'], axis=1)
    b = jnp.dot(h.astype(bf16), p['fc52_w'].T.astype(bf16),
                preferred_element_type=f32) + p['fc52_b']
    return b, a


# ----------------------------------- main ----------------------------------- #
if __name__ == "__main__":
    key = jax.random.PRNGKey(0)
    kx, kp = jax.random.split(key)
    # RNet operates on 24x24 crops (Linear(576, 128) implies 3x3x64 conv3 output).
    x = jax.random.normal(kx, (4, 3, 24, 24), jnp.float32)
    params = init_params(kp)

    fwd = jax.jit(rnet_forward)
    b_out, a_out = fwd(x, params)
    b_out = jax.block_until_ready(b_out)
    a_out = jax.block_until_ready(a_out)

    b_ref, a_ref = rnet_reference(x, params)
    np.testing.assert_allclose(np.asarray(b_out), np.asarray(b_ref), rtol=5e-3, atol=5e-3)
    np.testing.assert_allclose(np.asarray(a_out), np.asarray(a_ref), rtol=5e-3, atol=5e-3)
    assert b_out.shape == (4, 4) and a_out.shape == (4, 2)

    print("KERNEL_OK")
</pallas_src>

<mosaic_0001>
module attributes {stable_mosaic.version = 11 : i64} {
  func.func @_rnet_kernel(%arg0: i32, %arg1: memref<1x584x3xf32, #tpu.memory_space<vmem>>, %arg2: memref<528x1xf32, #tpu.memory_space<vmem>>, %arg3: memref<3x3x3x28xbf16, #tpu.memory_space<vmem>>, %arg4: memref<1x28xf32, #tpu.memory_space<vmem>>, %arg5: memref<1x28xf32, #tpu.memory_space<vmem>>, %arg6: memref<3x3x28x48xbf16, #tpu.memory_space<vmem>>, %arg7: memref<1x48xf32, #tpu.memory_space<vmem>>, %arg8: memref<1x48xf32, #tpu.memory_space<vmem>>, %arg9: memref<2x2x48x64xbf16, #tpu.memory_space<vmem>>, %arg10: memref<1x64xf32, #tpu.memory_space<vmem>>, %arg11: memref<1x64xf32, #tpu.memory_space<vmem>>, %arg12: memref<9x64x128xbf16, #tpu.memory_space<vmem>>, %arg13: memref<1x128xf32, #tpu.memory_space<vmem>>, %arg14: memref<1x128xf32, #tpu.memory_space<vmem>>, %arg15: memref<128x6xbf16, #tpu.memory_space<vmem>>, %arg16: memref<1x6xf32, #tpu.memory_space<vmem>>, %arg17: memref<1x1x4xf32, #tpu.memory_space<vmem>>, %arg18: memref<1x1x2xf32, #tpu.memory_space<vmem>>, %arg19: memref<600x28xf32, #tpu.memory_space<vmem>>, %arg20: memref<264x48xf32, #tpu.memory_space<vmem>>) attributes {dimension_semantics = [#tpu.dimension_semantics<parallel>], iteration_bounds = array<i64: 4>, scalar_prefetch = 0 : i64, scratch_operands = 2 : i64, tpu.core_type = #tpu.core_type<tc>, window_params = [{transform_indices = @transform_0, window_bounds = array<i64: 1, 584, 3>}, {pipeline_mode = #tpu.pipeline_mode<synchronous>, transform_indices = @transform_1, window_bounds = array<i64: 528, 1>}, {pipeline_mode = #tpu.pipeline_mode<synchronous>, transform_indices = @transform_2, window_bounds = array<i64: 3, 3, 3, 28>}, {pipeline_mode = #tpu.pipeline_mode<synchronous>, transform_indices = @transform_3, window_bounds = array<i64: 1, 28>}, {pipeline_mode = #tpu.pipeline_mode<synchronous>, transform_indices = @transform_4, window_bounds = array<i64: 1, 28>}, {pipeline_mode = #tpu.pipeline_mode<synchronous>, transform_indices = @transform_5, window_bounds = array<i64: 3, 3, 28, 48>}, {pipeline_mode = #tpu.pipeline_mode<synchronous>, transform_indices = @transform_6, window_bounds = array<i64: 1, 48>}, {pipeline_mode = #tpu.pipeline_mode<synchronous>, transform_indices = @transform_7, window_bounds = array<i64: 1, 48>}, {pipeline_mode = #tpu.pipeline_mode<synchronous>, transform_indices = @transform_8, window_bounds = array<i64: 2, 2, 48, 64>}, {pipeline_mode = #tpu.pipeline_mode<synchronous>, transform_indices = @transform_9, window_bounds = array<i64: 1, 64>}, {pipeline_mode = #tpu.pipeline_mode<synchronous>, transform_indices = @transform_10, window_bounds = array<i64: 1, 64>}, {pipeline_mode = #tpu.pipeline_mode<synchronous>, transform_indices = @transform_11, window_bounds = array<i64: 9, 64, 128>}, {pipeline_mode = #tpu.pipeline_mode<synchronous>, transform_indices = @transform_12, window_bounds = array<i64: 1, 128>}, {pipeline_mode = #tpu.pipeline_mode<synchronous>, transform_indices = @transform_13, window_bounds = array<i64: 1, 128>}, {pipeline_mode = #tpu.pipeline_mode<synchronous>, transform_indices = @transform_14, window_bounds = array<i64: 128, 6>}, {pipeline_mode = #tpu.pipeline_mode<synchronous>, transform_indices = @transform_15, window_bounds = array<i64: 1, 6>}, {transform_indices = @transform_16, window_bounds = array<i64: 1, 1, 4>}, {transform_indices = @transform_17, window_bounds = array<i64: 1, 1, 2>}]} {
    %c0 = arith.constant 0 : index
    %c0_0 = arith.constant 0 : index
    %c0_1 = arith.constant 0 : index
    %0 = vector.load %arg1[%c0, %c0_0, %c0_1] : memref<1x584x3xf32, #tpu.memory_space<vmem>>, vector<1x528x3xf32>
    %1 = vector.shape_cast %0 : vector<1x528x3xf32> to vector<528x3xf32>
    %2 = arith.truncf %1 : vector<528x3xf32> to vector<528x3xbf16>
    %c0_2 = arith.constant 0 : index
    %c0_3 = arith.constant 0 : index
    %c0_4 = arith.constant 0 : index
    %c0_5 = arith.constant 0 : index
    %3 = vector.load %arg3[%c0_2, %c0_3, %c0_4, %c0_5] : memref<3x3x3x28xbf16, #tpu.memory_space<vmem>>, vector<1x1x3x28xbf16>
    %4 = vector.shape_cast %3 : vector<1x1x3x28xbf16> to vector<3x28xbf16>
    %cst = arith.constant dense<0.000000e+00> : vector<528x28xf32>
    %5 = tpu.matmul %2, %4, %cst {dimension_numbers = #tpu.dot_dimension_numbers<[1], [0], [0], [1], [0, 0, 1, 1], [], []>} : vector<528x3xbf16>, vector<3x28xbf16>, vector<528x28xf32> -> vector<528x28xf32>
    %c0_6 = arith.constant 0 : index
    %c1 = arith.constant 1 : index
    %c0_7 = arith.constant 0 : index
    %6 = vector.load %arg1[%c0_6, %c1, %c0_7] : memref<1x584x3xf32, #tpu.memory_space<vmem>>, vector<1x528x3xf32>
    %7 = vector.shape_cast %6 : vector<1x528x3xf32> to vector<528x3xf32>
    %8 = arith.truncf %7 : vector<528x3xf32> to vector<528x3xbf16>
    %c0_8 = arith.constant 0 : index
    %c1_9 = arith.constant 1 : index
    %c0_10 = arith.constant 0 : index
    %c0_11 = arith.constant 0 : index
    %9 = vector.load %arg3[%c0_8, %c1_9, %c0_10, %c0_11] : memref<3x3x3x28xbf16, #tpu.memory_space<vmem>>, vector<1x1x3x28xbf16>
    %10 = vector.shape_cast %9 : vector<1x1x3x28xbf16> to vector<3x28xbf16>
    %cst_12 = arith.constant dense<0.000000e+00> : vector<528x28xf32>
    %11 = tpu.matmul %8, %10, %cst_12 {dimension_numbers = #tpu.dot_dimension_numbers<[1], [0], [0], [1], [0, 0, 1, 1], [], []>} : vector<528x3xbf16>, vector<3x28xbf16>, vector<528x28xf32> -> vector<528x28xf32>
    %12 = arith.addf %5, %11 : vector<528x28xf32>
    %c0_13 = arith.constant 0 : index
    %c2 = arith.constant 2 : index
    %c0_14 = arith.constant 0 : index
    %13 = vector.load %arg1[%c0_13, %c2, %c0_14] : memref<1x584x3xf32, #tpu.memory_space<vmem>>, vector<1x528x3xf32>
    %14 = vector.shape_cast %13 : vector<1x528x3xf32> to vector<528x3xf32>
    %15 = arith.truncf %14 : vector<528x3xf32> to vector<528x3xbf16>
    %c0_15 = arith.constant 0 : index
    %c2_16 = arith.constant 2 : index
    %c0_17 = arith.constant 0 : index
    %c0_18 = arith.constant 0 : index
    %16 = vector.load %arg3[%c0_15, %c2_16, %c0_17, %c0_18] : memref<3x3x3x28xbf16, #tpu.memory_space<vmem>>, vector<1x1x3x28xbf16>
    %17 = vector.shape_cast %16 : vector<1x1x3x28xbf16> to vector<3x28xbf16>
    %cst_19 = arith.constant dense<0.000000e+00> : vector<528x28xf32>
    %18 = tpu.matmul %15, %17, %cst_19 {dimension_numbers = #tpu.dot_dimension_numbers<[1], [0], [0], [1], [0, 0, 1, 1], [], []>} : vector<528x3xbf16>, vector<3x28xbf16>, vector<528x28xf32> -> vector<528x28xf32>
    %19 = arith.addf %12, %18 : vector<528x28xf32>
    %c0_20 = arith.constant 0 : index
    %c24 = arith.constant 24 : index
    %c0_21 = arith.constant 0 : index
    %20 = vector.load %arg1[%c0_20, %c24, %c0_21] : memref<1x584x3xf32, #tpu.memory_space<vmem>>, vector<1x528x3xf32>
    %21 = vector.shape_cast %20 : vector<1x528x3xf32> to vector<528x3xf32>
    %22 = arith.truncf %21 : vector<528x3xf32> to vector<528x3xbf16>
    %c1_22 = arith.constant 1 : index
    %c0_23 = arith.constant 0 : index
    %c0_24 = arith.constant 0 : index
    %c0_25 = arith.constant 0 : index
    %23 = vector.load %arg3[%c1_22, %c0_23, %c0_24, %c0_25] : memref<3x3x3x28xbf16, #tpu.memory_space<vmem>>, vector<1x1x3x28xbf16>
    %24 = vector.shape_cast %23 : vector<1x1x3x28xbf16> to vector<3x28xbf16>
    %cst_26 = arith.constant dense<0.000000e+00> : vector<528x28xf32>
    %25 = tpu.matmul %22, %24, %cst_26 {dimension_numbers = #tpu.dot_dimension_numbers<[1], [0], [0], [1], [0, 0, 1, 1], [], []>} : vector<528x3xbf16>, vector<3x28xbf16>, vector<528x28xf32> -> vector<528x28xf32>
    %26 = arith.addf %19, %25 : vector<528x28xf32>
    %c0_27 = arith.constant 0 : index
    %c25 = arith.constant 25 : index
    %c0_28 = arith.constant 0 : index
    %27 = vector.load %arg1[%c0_27, %c25, %c0_28] : memref<1x584x3xf32, #tpu.memory_space<vmem>>, vector<1x528x3xf32>
    %28 = vector.shape_cast %27 : vector<1x528x3xf32> to vector<528x3xf32>
    %29 = arith.truncf %28 : vector<528x3xf32> to vector<528x3xbf16>
    %c1_29 = arith.constant 1 : index
    %c1_30 = arith.constant 1 : index
    %c0_31 = arith.constant 0 : index
    %c0_32 = arith.constant 0 : index
    %30 = vector.load %arg3[%c1_29, %c1_30, %c0_31, %c0_32] : memref<3x3x3x28xbf16, #tpu.memory_space<vmem>>, vector<1x1x3x28xbf16>
    %31 = vector.shape_cast %30 : vector<1x1x3x28xbf16> to vector<3x28xbf16>
    %cst_33 = arith.constant dense<0.000000e+00> : vector<528x28xf32>
    %32 = tpu.matmul %29, %31, %cst_33 {dimension_numbers = #tpu.dot_dimension_numbers<[1], [0], [0], [1], [0, 0, 1, 1], [], []>} : vector<528x3xbf16>, vector<3x28xbf16>, vector<528x28xf32> -> vector<528x28xf32>
    %33 = arith.addf %26, %32 : vector<528x28xf32>
    %c0_34 = arith.constant 0 : index
    %c26 = arith.constant 26 : index
    %c0_35 = arith.constant 0 : index
    %34 = vector.load %arg1[%c0_34, %c26, %c0_35] : memref<1x584x3xf32, #tpu.memory_space<vmem>>, vector<1x528x3xf32>
    %35 = vector.shape_cast %34 : vector<1x528x3xf32> to vector<528x3xf32>
    %36 = arith.truncf %35 : vector<528x3xf32> to vector<528x3xbf16>
    %c1_36 = arith.constant 1 : index
    %c2_37 = arith.constant 2 : index
    %c0_38 = arith.constant 0 : index
    %c0_39 = arith.constant 0 : index
    %37 = vector.load %arg3[%c1_36, %c2_37, %c0_38, %c0_39] : memref<3x3x3x28xbf16, #tpu.memory_space<vmem>>, vector<1x1x3x28xbf16>
    %38 = vector.shape_cast %37 : vector<1x1x3x28xbf16> to vector<3x28xbf16>
    %cst_40 = arith.constant dense<0.000000e+00> : vector<528x28xf32>
    %39 = tpu.matmul %36, %38, %cst_40 {dimension_numbers = #tpu.dot_dimension_numbers<[1], [0], [0], [1], [0, 0, 1, 1], [], []>} : vector<528x3xbf16>, vector<3x28xbf16>, vector<528x28xf32> -> vector<528x28xf32>
    %40 = arith.addf %33, %39 : vector<528x28xf32>
    %c0_41 = arith.constant 0 : index
    %c48 = arith.constant 48 : index
    %c0_42 = arith.constant 0 : index
    %41 = vector.load %arg1[%c0_41, %c48, %c0_42] : memref<1x584x3xf32, #tpu.memory_space<vmem>>, vector<1x528x3xf32>
    %42 = vector.shape_cast %41 : vector<1x528x3xf32> to vector<528x3xf32>
    %43 = arith.truncf %42 : vector<528x3xf32> to vector<528x3xbf16>
    %c2_43 = arith.constant 2 : index
    %c0_44 = arith.constant 0 : index
    %c0_45 = arith.constant 0 : index
    %c0_46 = arith.constant 0 : index
    %44 = vector.load %arg3[%c2_43, %c0_44, %c0_45, %c0_46] : memref<3x3x3x28xbf16, #tpu.memory_space<vmem>>, vector<1x1x3x28xbf16>
    %45 = vector.shape_cast %44 : vector<1x1x3x28xbf16> to vector<3x28xbf16>
    %cst_47 = arith.constant dense<0.000000e+00> : vector<528x28xf32>
    %46 = tpu.matmul %43, %45, %cst_47 {dimension_numbers = #tpu.dot_dimension_numbers<[1], [0], [0], [1], [0, 0, 1, 1], [], []>} : vector<528x3xbf16>, vector<3x28xbf16>, vector<528x28xf32> -> vector<528x28xf32>
    %47 = arith.addf %40, %46 : vector<528x28xf32>
    %c0_48 = arith.constant 0 : index
    %c49 = arith.constant 49 : index
    %c0_49 = arith.constant 0 : index
    %48 = vector.load %arg1[%c0_48, %c49, %c0_49] : memref<1x584x3xf32, #tpu.memory_space<vmem>>, vector<1x528x3xf32>
    %49 = vector.shape_cast %48 : vector<1x528x3xf32> to vector<528x3xf32>
    %50 = arith.truncf %49 : vector<528x3xf32> to vector<528x3xbf16>
    %c2_50 = arith.constant 2 : index
    %c1_51 = arith.constant 1 : index
    %c0_52 = arith.constant 0 : index
    %c0_53 = arith.constant 0 : index
    %51 = vector.load %arg3[%c2_50, %c1_51, %c0_52, %c0_53] : memref<3x3x3x28xbf16, #tpu.memory_space<vmem>>, vector<1x1x3x28xbf16>
    %52 = vector.shape_cast %51 : vector<1x1x3x28xbf16> to vector<3x28xbf16>
    %cst_54 = arith.constant dense<0.000000e+00> : vector<528x28xf32>
    %53 = tpu.matmul %50, %52, %cst_54 {dimension_numbers = #tpu.dot_dimension_numbers<[1], [0], [0], [1], [0, 0, 1, 1], [], []>} : vector<528x3xbf16>, vector<3x28xbf16>, vector<528x28xf32> -> vector<528x28xf32>
    %54 = arith.addf %47, %53 : vector<528x28xf32>
    %c0_55 = arith.constant 0 : index
    %c50 = arith.constant 50 : index
    %c0_56 = arith.constant 0 : index
    %55 = vector.load %arg1[%c0_55, %c50, %c0_56] : memref<1x584x3xf32, #tpu.memory_space<vmem>>, vector<1x528x3xf32>
    %56 = vector.shape_cast %55 : vector<1x528x3xf32> to vector<528x3xf32>
    %57 = arith.truncf %56 : vector<528x3xf32> to vector<528x3xbf16>
    %c2_57 = arith.constant 2 : index
    %c2_58 = arith.constant 2 : index
    %c0_59 = arith.constant 0 : index
    %c0_60 = arith.constant 0 : index
    %58 = vector.load %arg3[%c2_57, %c2_58, %c0_59, %c0_60] : memref<3x3x3x28xbf16, #tpu.memory_space<vmem>>, vector<1x1x3x28xbf16>
    %59 = vector.shape_cast %58 : vector<1x1x3x28xbf16> to vector<3x28xbf16>
    %cst_61 = arith.constant dense<0.000000e+00> : vector<528x28xf32>
    %60 = tpu.matmul %57, %59, %cst_61 {dimension_numbers = #tpu.dot_dimension_numbers<[1], [0], [0], [1], [0, 0, 1, 1], [], []>} : vector<528x3xbf16>, vector<3x28xbf16>, vector<528x28xf32> -> vector<528x28xf32>
    %61 = arith.addf %54, %60 : vector<528x28xf32>
    %c0_62 = arith.constant 0 : index
    %c0_63 = arith.constant 0 : index
    %62 = vector.load %arg4[%c0_62, %c0_63] : memref<1x28xf32, #tpu.memory_space<vmem>>, vector<1x28xf32>
    %63 = vector.broadcast %62 : vector<1x28xf32> to vector<528x28xf32>
    %64 = arith.addf %61, %63 : vector<528x28xf32>
    %c0_64 = arith.constant 0 : index
    %c0_65 = arith.constant 0 : index
    %65 = vector.load %arg5[%c0_64, %c0_65] : memref<1x28xf32, #tpu.memory_space<vmem>>, vector<1x28xf32>
    %cst_66 = arith.constant 0.000000e+00 : f32
    %66 = vector.broadcast %cst_66 : f32 to vector<528x28xf32>
    %67 = arith.cmpf oge, %64, %66 : vector<528x28xf32>
    %68 = vector.broadcast %65 : vector<1x28xf32> to vector<528x28xf32>
    %69 = arith.mulf %68, %64 : vector<528x28xf32>
    %70 = arith.select %67, %64, %69 : vector<528x28xi1>, vector<528x28xf32>
    %c0_67 = arith.constant 0 : index
    %c0_68 = arith.constant 0 : index
    %71 = vector.load %arg2[%c0_67, %c0_68] : memref<528x1xf32, #tpu.memory_space<vmem>>, vector<528x1xf32>
    %cst_69 = arith.constant 0.000000e+00 : f32
    %72 = vector.broadcast %cst_69 : f32 to vector<528x1xf32>
    %73 = arith.cmpf ogt, %71, %72 : vector<528x1xf32>
    %cst_70 = arith.constant 0xFF800000 : f32
    %74 = vector.shape_cast %73 : vector<528x1xi1> to vector<528x1xi1>
    %75 = vector.broadcast %74 : vector<528x1xi1> to vector<528x28xi1>
    %76 = vector.broadcast %cst_70 : f32 to vector<528x28xf32>
    %77 = arith.select %75, %70, %76 : vector<528x28xi1>, vector<528x28xf32>
    %c0_71 = arith.constant 0 : index
    %c0_72 = arith.constant 0 : index
    %78 = vector.load %arg19[%c0_71, %c0_72] : memref<600x28xf32, #tpu.memory_space<vmem>>, vector<528x28xf32>
    tpu.vector_store %arg19[%c0_71, %c0_72], %77 {strides = array<i32>} : memref<600x28xf32, #tpu.memory_space<vmem>>, vector<528x28xf32>,
    %cst_73 = arith.constant 0xFF800000 : f32
    %79 = vector.broadcast %cst_73 : f32 to vector<72x28xf32>
    %c528 = arith.constant 528 : index
    %c0_74 = arith.constant 0 : index
    %80 = vector.load %arg19[%c528, %c0_74] : memref<600x28xf32, #tpu.memory_space<vmem>>, vector<72x28xf32>
    tpu.vector_store %arg19[%c528, %c0_74], %79 {strides = array<i32>} : memref<600x28xf32, #tpu.memory_space<vmem>>, vector<72x28xf32>,
    %c0_75 = arith.constant 0 : index
    %c0_76 = arith.constant 0 : index
    %81 = tpu.strided_load %arg19[%c0_75, %c0_76] {strides = array<i32: 2, 1>} : memref<600x28xf32, #tpu.memory_space<vmem>>, vector<272x28xf32>
    %c1_77 = arith.constant 1 : index
    %c0_78 = arith.constant 0 : index
    %82 = tpu.strided_load %arg19[%c1_77, %c0_78] {strides = array<i32: 2, 1>} : memref<600x28xf32, #tpu.memory_space<vmem>>, vector<272x28xf32>
    %83 = arith.maximumf %81, %82 : vector<272x28xf32>
    %c2_79 = arith.constant 2 : index
    %c0_80 = arith.constant 0 : index
    %84 = tpu.strided_load %arg19[%c2_79, %c0_80] {strides = array<i32: 2, 1>} : memref<600x28xf32, #tpu.memory_space<vmem>>, vector<272x28xf32>
    %85 = arith.maximumf %83, %84 : vector<272x28xf32>
    %c24_81 = arith.constant 24 : index
    %c0_82 = arith.constant 0 : index
    %86 = tpu.strided_load %arg19[%c24_81, %c0_82] {strides = array<i32: 2, 1>} : memref<600x28xf32, #tpu.memory_space<vmem>>, vector<272x28xf32>
    %87 = arith.maximumf %85, %86 : vector<272x28xf32>
    %c25_83 = arith.constant 25 : index
    %c0_84 = arith.constant 0 : index
    %88 = tpu.strided_load %arg19[%c25_83, %c0_84] {strides = array<i32: 2, 1>} : memref<600x28xf32, #tpu.memory_space<vmem>>, vector<272x28xf32>
    %89 = arith.maximumf %87, %88 : vector<272x28xf32>
    %c26_85 = arith.constant 26 : index
    %c0_86 = arith.constant 0 : index
    %90 = tpu.strided_load %arg19[%c26_85, %c0_86] {strides = array<i32: 2, 1>} : memref<600x28xf32, #tpu.memory_space<vmem>>, vector<272x28xf32>
    %91 = arith.maximumf %89, %90 : vector<272x28xf32>
    %c48_87 = arith.constant 48 : index
    %c0_88 = arith.constant 0 : index
    %92 = tpu.strided_load %arg19[%c48_87, %c0_88] {strides = array<i32: 2, 1>} : memref<600x28xf32, #tpu.memory_space<vmem>>, vector<272x28xf32>
    %93 = arith.maximumf %91, %92 : vector<272x28xf32>
    %c49_89 = arith.constant 49 : index
    %c0_90 = arith.constant 0 : index
    %94 = tpu.strided_load %arg19[%c49_89, %c0_90] {strides = array<i32: 2, 1>} : memref<600x28xf32, #tpu.memory_space<vmem>>, vector<272x28xf32>
    %95 = arith.maximumf %93, %94 : vector<272x28xf32>
    %c50_91 = arith.constant 50 : index
    %c0_92 = arith.constant 0 : index
    %96 = tpu.strided_load %arg19[%c50_91, %c0_92] {strides = array<i32: 2, 1>} : memref<600x28xf32, #tpu.memory_space<vmem>>, vector<272x28xf32>
    %97 = arith.maximumf %95, %96 : vector<272x28xf32>
    %98 = vector.extract_strided_slice %97 {offsets = [0, 0], sizes = [216, 28], strides = [1, 1]} : vector<272x28xf32> to vector<216x28xf32>
    %99 = arith.truncf %98 : vector<216x28xf32> to vector<216x28xbf16>
    %c0_93 = arith.constant 0 : index
    %c0_94 = arith.constant 0 : index
    %c0_95 = arith.constant 0 : index
    %c0_96 = arith.constant 0 : index
    %100 = vector.load %arg6[%c0_93, %c0_94, %c0_95, %c0_96] : memref<3x3x28x48xbf16, #tpu.memory_space<vmem>>, vector<1x1x28x48xbf16>
    %101 = vector.shape_cast %100 : vector<1x1x28x48xbf16> to vector<28x48xbf16>
    %cst_97 = arith.constant dense<0.000000e+00> : vector<216x48xf32>
    %102 = tpu.matmul %99, %101, %cst_97 {dimension_numbers = #tpu.dot_dimension_numbers<[1], [0], [0], [1], [0, 0, 1, 1], [], []>} : vector<216x28xbf16>, vector<28x48xbf16>, vector<216x48xf32> -> vector<216x48xf32>
    %103 = vector.extract_strided_slice %97 {offsets = [1, 0], sizes = [216, 28], strides = [1, 1]} : vector<272x28xf32> to vector<216x28xf32>
    %104 = arith.truncf %103 : vector<216x28xf32> to vector<216x28xbf16>
    %c0_98 = arith.constant 0 : index
    %c1_99 = arith.constant 1 : index
    %c0_100 = arith.constant 0 : index
    %c0_101 = arith.constant 0 : index
    %105 = vector.load %arg6[%c0_98, %c1_99, %c0_100, %c0_101] : memref<3x3x28x48xbf16, #tpu.memory_space<vmem>>, vector<1x1x28x48xbf16>
    %106 = vector.shape_cast %105 : vector<1x1x28x48xbf16> to vector<28x48xbf16>
    %cst_102 = arith.constant dense<0.000000e+00> : vector<216x48xf32>
    %107 = tpu.matmul %104, %106, %cst_102 {dimension_numbers = #tpu.dot_dimension_numbers<[1], [0], [0], [1], [0, 0, 1, 1], [], []>} : vector<216x28xbf16>, vector<28x48xbf16>, vector<216x48xf32> -> vector<216x48xf32>
    %108 = arith.addf %102, %107 : vector<216x48xf32>
    %109 = vector.extract_strided_slice %97 {offsets = [2, 0], sizes = [216, 28], strides = [1, 1]} : vector<272x28xf32> to vector<216x28xf32>
    %110 = arith.truncf %109 : vector<216x28xf32> to vector<216x28xbf16>
    %c0_103 = arith.constant 0 : index
    %c2_104 = arith.constant 2 : index
    %c0_105 = arith.constant 0 : index
    %c0_106 = arith.constant 0 : index
    %111 = vector.load %arg6[%c0_103, %c2_104, %c0_105, %c0_106] : memref<3x3x28x48xbf16, #tpu.memory_space<vmem>>, vector<1x1x28x48xbf16>
    %112 = vector.shape_cast %111 : vector<1x1x28x48xbf16> to vector<28x48xbf16>
    %cst_107 = arith.constant dense<0.000000e+00> : vector<216x48xf32>
    %113 = tpu.matmul %110, %112, %cst_107 {dimension_numbers = #tpu.dot_dimension_numbers<[1], [0], [0], [1], [0, 0, 1, 1], [], []>} : vector<216x28xbf16>, vector<28x48xbf16>, vector<216x48xf32> -> vector<216x48xf32>
    %114 = arith.addf %108, %113 : vector<216x48xf32>
    %115 = vector.extract_strided_slice %97 {offsets = [24, 0], sizes = [216, 28], strides = [1, 1]} : vector<272x28xf32> to vector<216x28xf32>
    %116 = arith.truncf %115 : vector<216x28xf32> to vector<216x28xbf16>
    %c1_108 = arith.constant 1 : index
    %c0_109 = arith.constant 0 : index
    %c0_110 = arith.constant 0 : index
    %c0_111 = arith.constant 0 : index
    %117 = vector.load %arg6[%c1_108, %c0_109, %c0_110, %c0_111] : memref<3x3x28x48xbf16, #tpu.memory_space<vmem>>, vector<1x1x28x48xbf16>
    %118 = vector.shape_cast %117 : vector<1x1x28x48xbf16> to vector<28x48xbf16>
    %cst_112 = arith.constant dense<0.000000e+00> : vector<216x48xf32>
    %119 = tpu.matmul %116, %118, %cst_112 {dimension_numbers = #tpu.dot_dimension_numbers<[1], [0], [0], [1], [0, 0, 1, 1], [], []>} : vector<216x28xbf16>, vector<28x48xbf16>, vector<216x48xf32> -> vector<216x48xf32>
    %120 = arith.addf %114, %119 : vector<216x48xf32>
    %121 = vector.extract_strided_slice %97 {offsets = [25, 0], sizes = [216, 28], strides = [1, 1]} : vector<272x28xf32> to vector<216x28xf32>
    %122 = arith.truncf %121 : vector<216x28xf32> to vector<216x28xbf16>
    %c1_113 = arith.constant 1 : index
    %c1_114 = arith.constant 1 : index
    %c0_115 = arith.constant 0 : index
    %c0_116 = arith.constant 0 : index
    %123 = vector.load %arg6[%c1_113, %c1_114, %c0_115, %c0_116] : memref<3x3x28x48xbf16, #tpu.memory_space<vmem>>, vector<1x1x28x48xbf16>
    %124 = vector.shape_cast %123 : vector<1x1x28x48xbf16> to vector<28x48xbf16>
    %cst_117 = arith.constant dense<0.000000e+00> : vector<216x48xf32>
    %125 = tpu.matmul %122, %124, %cst_117 {dimension_numbers = #tpu.dot_dimension_numbers<[1], [0], [0], [1], [0, 0, 1, 1], [], []>} : vector<216x28xbf16>, vector<28x48xbf16>, vector<216x48xf32> -> vector<216x48xf32>
    %126 = arith.addf %120, %125 : vector<216x48xf32>
    %127 = vector.extract_strided_slice %97 {offsets = [26, 0], sizes = [216, 28], strides = [1, 1]} : vector<272x28xf32> to vector<216x28xf32>
    %128 = arith.truncf %127 : vector<216x28xf32> to vector<216x28xbf16>
    %c1_118 = arith.constant 1 : index
    %c2_119 = arith.constant 2 : index
    %c0_120 = arith.constant 0 : index
    %c0_121 = arith.constant 0 : index
    %129 = vector.load %arg6[%c1_118, %c2_119, %c0_120, %c0_121] : memref<3x3x28x48xbf16, #tpu.memory_space<vmem>>, vector<1x1x28x48xbf16>
    %130 = vector.shape_cast %129 : vector<1x1x28x48xbf16> to vector<28x48xbf16>
    %cst_122 = arith.constant dense<0.000000e+00> : vector<216x48xf32>
    %131 = tpu.matmul %128, %130, %cst_122 {dimension_numbers = #tpu.dot_dimension_numbers<[1], [0], [0], [1], [0, 0, 1, 1], [], []>} : vector<216x28xbf16>, vector<28x48xbf16>, vector<216x48xf32> -> vector<216x48xf32>
    %132 = arith.addf %126, %131 : vector<216x48xf32>
    %133 = vector.extract_strided_slice %97 {offsets = [48, 0], sizes = [216, 28], strides = [1, 1]} : vector<272x28xf32> to vector<216x28xf32>
    %134 = arith.truncf %133 : vector<216x28xf32> to vector<216x28xbf16>
    %c2_123 = arith.constant 2 : index
    %c0_124 = arith.constant 0 : index
    %c0_125 = arith.constant 0 : index
    %c0_126 = arith.constant 0 : index
    %135 = vector.load %arg6[%c2_123, %c0_124, %c0_125, %c0_126] : memref<3x3x28x48xbf16, #tpu.memory_space<vmem>>, vector<1x1x28x48xbf16>
    %136 = vector.shape_cast %135 : vector<1x1x28x48xbf16> to vector<28x48xbf16>
    %cst_127 = arith.constant dense<0.000000e+00> : vector<216x48xf32>
    %137 = tpu.matmul %134, %136, %cst_127 {dimension_numbers = #tpu.dot_dimension_numbers<[1], [0], [0], [1], [0, 0, 1, 1], [], []>} : vector<216x28xbf16>, vector<28x48xbf16>, vector<216x48xf32> -> vector<216x48xf32>
    %138 = arith.addf %132, %137 : vector<216x48xf32>
    %139 = vector.extract_strided_slice %97 {offsets = [49, 0], sizes = [216, 28], strides = [1, 1]} : vector<272x28xf32> to vector<216x28xf32>
    %140 = arith.truncf %139 : vector<216x28xf32> to vector<216x28xbf16>
    %c2_128 = arith.constant 2 : index
    %c1_129 = arith.constant 1 : index
    %c0_130 = arith.constant 0 : index
    %c0_131 = arith.constant 0 : index
    %141 = vector.load %arg6[%c2_128, %c1_129, %c0_130, %c0_131] : memref<3x3x28x48xbf16, #tpu.memory_space<vmem>>, vector<1x1x28x48xbf16>
    %142 = vector.shape_cast %141 : vector<1x1x28x48xbf16> to vector<28x48xbf16>
    %cst_132 = arith.constant dense<0.000000e+00> : vector<216x48xf32>
    %143 = tpu.matmul %140, %142, %cst_132 {dimension_numbers = #tpu.dot_dimension_numbers<[1], [0], [0], [1], [0, 0, 1, 1], [], []>} : vector<216x28xbf16>, vector<28x48xbf16>, vector<216x48xf32> -> vector<216x48xf32>
    %144 = arith.addf %138, %143 : vector<216x48xf32>
    %145 = vector.extract_strided_slice %97 {offsets = [50, 0], sizes = [216, 28], strides = [1, 1]} : vector<272x28xf32> to vector<216x28xf32>
    %146 = arith.truncf %145 : vector<216x28xf32> to vector<216x28xbf16>
    %c2_133 = arith.constant 2 : index
    %c2_134 = arith.constant 2 : index
    %c0_135 = arith.constant 0 : index
    %c0_136 = arith.constant 0 : index
    %147 = vector.load %arg6[%c2_133, %c2_134, %c0_135, %c0_136] : memref<3x3x28x48xbf16, #tpu.memory_space<vmem>>, vector<1x1x28x48xbf16>
    %148 = vector.shape_cast %147 : vector<1x1x28x48xbf16> to vector<28x48xbf16>
    %cst_137 = arith.constant dense<0.000000e+00> : vector<216x48xf32>
    %149 = tpu.matmul %146, %148, %cst_137 {dimension_numbers = #tpu.dot_dimension_numbers<[1], [0], [0], [1], [0, 0, 1, 1], [], []>} : vector<216x28xbf16>, vector<28x48xbf16>, vector<216x48xf32> -> vector<216x48xf32>
    %150 = arith.addf %144, %149 : vector<216x48xf32>
    %c0_138 = arith.constant 0 : index
    %c0_139 = arith.constant 0 : index
    %151 = vector.load %arg7[%c0_138, %c0_139] : memref<1x48xf32, #tpu.memory_space<vmem>>, vector<1x48xf32>
    %152 = vector.broadcast %151 : vector<1x48xf32> to vector<216x48xf32>
    %153 = arith.addf %150, %152 : vector<216x48xf32>
    %c0_140 = arith.constant 0 : index
    %c0_141 = arith.constant 0 : index
    %154 = vector.load %arg8[%c0_140, %c0_141] : memref<1x48xf32, #tpu.memory_space<vmem>>, vector<1x48xf32>
    %cst_142 = arith.constant 0.000000e+00 : f32
    %155 = vector.broadcast %cst_142 : f32 to vector<216x48xf32>
    %156 = arith.cmpf oge, %153, %155 : vector<216x48xf32>
    %157 = vector.broadcast %154 : vector<1x48xf32> to vector<216x48xf32>
    %158 = arith.mulf %157, %153 : vector<216x48xf32>
    %159 = arith.select %156, %153, %158 : vector<216x48xi1>, vector<216x48xf32>
    %c0_143 = arith.constant 0 : index
    %c0_144 = arith.constant 0 : index
    %160 = vector.load %arg20[%c0_143, %c0_144] : memref<264x48xf32, #tpu.memory_space<vmem>>, vector<216x48xf32>
    tpu.vector_store %arg20[%c0_143, %c0_144], %159 {strides = array<i32>} : memref<264x48xf32, #tpu.memory_space<vmem>>, vector<216x48xf32>,
    %cst_145 = arith.constant 0xFF800000 : f32
    %161 = vector.broadcast %cst_145 : f32 to vector<48x48xf32>
    %c216 = arith.constant 216 : index
    %c0_146 = arith.constant 0 : index
    %162 = vector.load %arg20[%c216, %c0_146] : memref<264x48xf32, #tpu.memory_space<vmem>>, vector<48x48xf32>
    tpu.vector_store %arg20[%c216, %c0_146], %161 {strides = array<i32>} : memref<264x48xf32, #tpu.memory_space<vmem>>, vector<48x48xf32>,
    %c0_147 = arith.constant 0 : index
    %c0_148 = arith.constant 0 : index
    %163 = tpu.strided_load %arg20[%c0_147, %c0_148] {strides = array<i32: 2, 1>} : memref<264x48xf32, #tpu.memory_space<vmem>>, vector<104x48xf32>
    %c1_149 = arith.constant 1 : index
    %c0_150 = arith.constant 0 : index
    %164 = tpu.strided_load %arg20[%c1_149, %c0_150] {strides = array<i32: 2, 1>} : memref<264x48xf32, #tpu.memory_space<vmem>>, vector<104x48xf32>
    %165 = arith.maximumf %163, %164 : vector<104x48xf32>
    %c2_151 = arith.constant 2 : index
    %c0_152 = arith.constant 0 : index
    %166 = tpu.strided_load %arg20[%c2_151, %c0_152] {strides = array<i32: 2, 1>} : memref<264x48xf32, #tpu.memory_space<vmem>>, vector<104x48xf32>
    %167 = arith.maximumf %165, %166 : vector<104x48xf32>
    %c24_153 = arith.constant 24 : index
    %c0_154 = arith.constant 0 : index
    %168 = tpu.strided_load %arg20[%c24_153, %c0_154] {strides = array<i32: 2, 1>} : memref<264x48xf32, #tpu.memory_space<vmem>>, vector<104x48xf32>
    %169 = arith.maximumf %167, %168 : vector<104x48xf32>
    %c25_155 = arith.constant 25 : index
    %c0_156 = arith.constant 0 : index
    %170 = tpu.strided_load %arg20[%c25_155, %c0_156] {strides = array<i32: 2, 1>} : memref<264x48xf32, #tpu.memory_space<vmem>>, vector<104x48xf32>
    %171 = arith.maximumf %169, %170 : vector<104x48xf32>
    %c26_157 = arith.constant 26 : index
    %c0_158 = arith.constant 0 : index
    %172 = tpu.strided_load %arg20[%c26_157, %c0_158] {strides = array<i32: 2, 1>} : memref<264x48xf32, #tpu.memory_space<vmem>>, vector<104x48xf32>
    %173 = arith.maximumf %171, %172 : vector<104x48xf32>
    %c48_159 = arith.constant 48 : index
    %c0_160 = arith.constant 0 : index
    %174 = tpu.strided_load %arg20[%c48_159, %c0_160] {strides = array<i32: 2, 1>} : memref<264x48xf32, #tpu.memory_space<vmem>>, vector<104x48xf32>
    %175 = arith.maximumf %173, %174 : vector<104x48xf32>
    %c49_161 = arith.constant 49 : index
    %c0_162 = arith.constant 0 : index
    %176 = tpu.strided_load %arg20[%c49_161, %c0_162] {strides = array<i32: 2, 1>} : memref<264x48xf32, #tpu.memory_space<vmem>>, vector<104x48xf32>
    %177 = arith.maximumf %175, %176 : vector<104x48xf32>
    %c50_163 = arith.constant 50 : index
    %c0_164 = arith.constant 0 : index
    %178 = tpu.strided_load %arg20[%c50_163, %c0_164] {strides = array<i32: 2, 1>} : memref<264x48xf32, #tpu.memory_space<vmem>>, vector<104x48xf32>
    %179 = arith.maximumf %177, %178 : vector<104x48xf32>
    %180 = vector.extract_strided_slice %179 {offsets = [0, 0], sizes = [72, 48], strides = [1, 1]} : vector<104x48xf32> to vector<72x48xf32>
    %181 = arith.truncf %180 : vector<72x48xf32> to vector<72x48xbf16>
    %c0_165 = arith.constant 0 : index
    %c0_166 = arith.constant 0 : index
    %c0_167 = arith.constant 0 : index
    %c0_168 = arith.constant 0 : index
    %182 = vector.load %arg9[%c0_165, %c0_166, %c0_167, %c0_168] : memref<2x2x48x64xbf16, #tpu.memory_space<vmem>>, vector<1x1x48x64xbf16>
    %183 = vector.shape_cast %182 : vector<1x1x48x64xbf16> to vector<48x64xbf16>
    %cst_169 = arith.constant dense<0.000000e+00> : vector<72x64xf32>
    %184 = tpu.matmul %181, %183, %cst_169 {dimension_numbers = #tpu.dot_dimension_numbers<[1], [0], [0], [1], [0, 0, 1, 1], [], []>} : vector<72x48xbf16>, vector<48x64xbf16>, vector<72x64xf32> -> vector<72x64xf32>
    %185 = vector.extract_strided_slice %179 {offsets = [1, 0], sizes = [72, 48], strides = [1, 1]} : vector<104x48xf32> to vector<72x48xf32>
    %186 = arith.truncf %185 : vector<72x48xf32> to vector<72x48xbf16>
    %c0_170 = arith.constant 0 : index
    %c1_171 = arith.constant 1 : index
    %c0_172 = arith.constant 0 : index
    %c0_173 = arith.constant 0 : index
    %187 = vector.load %arg9[%c0_170, %c1_171, %c0_172, %c0_173] : memref<2x2x48x64xbf16, #tpu.memory_space<vmem>>, vector<1x1x48x64xbf16>
    %188 = vector.shape_cast %187 : vector<1x1x48x64xbf16> to vector<48x64xbf16>
    %cst_174 = arith.constant dense<0.000000e+00> : vector<72x64xf32>
    %189 = tpu.matmul %186, %188, %cst_174 {dimension_numbers = #tpu.dot_dimension_numbers<[1], [0], [0], [1], [0, 0, 1, 1], [], []>} : vector<72x48xbf16>, vector<48x64xbf16>, vector<72x64xf32> -> vector<72x64xf32>
    %190 = arith.addf %184, %189 : vector<72x64xf32>
    %191 = vector.extract_strided_slice %179 {offsets = [24, 0], sizes = [72, 48], strides = [1, 1]} : vector<104x48xf32> to vector<72x48xf32>
    %192 = arith.truncf %191 : vector<72x48xf32> to vector<72x48xbf16>
    %c1_175 = arith.constant 1 : index
    %c0_176 = arith.constant 0 : index
    %c0_177 = arith.constant 0 : index
    %c0_178 = arith.constant 0 : index
    %193 = vector.load %arg9[%c1_175, %c0_176, %c0_177, %c0_178] : memref<2x2x48x64xbf16, #tpu.memory_space<vmem>>, vector<1x1x48x64xbf16>
    %194 = vector.shape_cast %193 : vector<1x1x48x64xbf16> to vector<48x64xbf16>
    %cst_179 = arith.constant dense<0.000000e+00> : vector<72x64xf32>
    %195 = tpu.matmul %192, %194, %cst_179 {dimension_numbers = #tpu.dot_dimension_numbers<[1], [0], [0], [1], [0, 0, 1, 1], [], []>} : vector<72x48xbf16>, vector<48x64xbf16>, vector<72x64xf32> -> vector<72x64xf32>
    %196 = arith.addf %190, %195 : vector<72x64xf32>
    %197 = vector.extract_strided_slice %179 {offsets = [25, 0], sizes = [72, 48], strides = [1, 1]} : vector<104x48xf32> to vector<72x48xf32>
    %198 = arith.truncf %197 : vector<72x48xf32> to vector<72x48xbf16>
    %c1_180 = arith.constant 1 : index
    %c1_181 = arith.constant 1 : index
    %c0_182 = arith.constant 0 : index
    %c0_183 = arith.constant 0 : index
    %199 = vector.load %arg9[%c1_180, %c1_181, %c0_182, %c0_183] : memref<2x2x48x64xbf16, #tpu.memory_space<vmem>>, vector<1x1x48x64xbf16>
    %200 = vector.shape_cast %199 : vector<1x1x48x64xbf16> to vector<48x64xbf16>
    %cst_184 = arith.constant dense<0.000000e+00> : vector<72x64xf32>
    %201 = tpu.matmul %198, %200, %cst_184 {dimension_numbers = #tpu.dot_dimension_numbers<[1], [0], [0], [1], [0, 0, 1, 1], [], []>} : vector<72x48xbf16>, vector<48x64xbf16>, vector<72x64xf32> -> vector<72x64xf32>
    %202 = arith.addf %196, %201 : vector<72x64xf32>
    %c0_185 = arith.constant 0 : index
    %c0_186 = arith.constant 0 : index
    %203 = vector.load %arg10[%c0_185, %c0_186] : memref<1x64xf32, #tpu.memory_space<vmem>>, vector<1x64xf32>
    %204 = vector.broadcast %203 : vector<1x64xf32> to vector<72x64xf32>
    %205 = arith.addf %202, %204 : vector<72x64xf32>
    %c0_187 = arith.constant 0 : index
    %c0_188 = arith.constant 0 : index
    %206 = vector.load %arg11[%c0_187, %c0_188] : memref<1x64xf32, #tpu.memory_space<vmem>>, vector<1x64xf32>
    %cst_189 = arith.constant 0.000000e+00 : f32
    %207 = vector.broadcast %cst_189 : f32 to vector<72x64xf32>
    %208 = arith.cmpf oge, %205, %207 : vector<72x64xf32>
    %209 = vector.broadcast %206 : vector<1x64xf32> to vector<72x64xf32>
    %210 = arith.mulf %209, %205 : vector<72x64xf32>
    %211 = arith.select %208, %205, %210 : vector<72x64xi1>, vector<72x64xf32>
    %212 = vector.extract_strided_slice %211 {offsets = [0, 0], sizes = [1, 64], strides = [1, 1]} : vector<72x64xf32> to vector<1x64xf32>
    %213 = arith.truncf %212 : vector<1x64xf32> to vector<1x64xbf16>
    %c0_190 = arith.constant 0 : index
    %c0_191 = arith.constant 0 : index
    %c0_192 = arith.constant 0 : index
    %214 = vector.load %arg12[%c0_190, %c0_191, %c0_192] : memref<9x64x128xbf16, #tpu.memory_space<vmem>>, vector<1x64x128xbf16>
    %215 = vector.shape_cast %214 : vector<1x64x128xbf16> to vector<64x128xbf16>
    %cst_193 = arith.constant dense<0.000000e+00> : vector<1x128xf32>
    %216 = tpu.matmul %213, %215, %cst_193 {dimension_numbers = #tpu.dot_dimension_numbers<[1], [0], [0], [1], [0, 0, 1, 1], [], []>} : vector<1x64xbf16>, vector<64x128xbf16>, vector<1x128xf32> -> vector<1x128xf32>
    %217 = vector.extract_strided_slice %211 {offsets = [1, 0], sizes = [1, 64], strides = [1, 1]} : vector<72x64xf32> to vector<1x64xf32>
    %218 = arith.truncf %217 : vector<1x64xf32> to vector<1x64xbf16>
    %c1_194 = arith.constant 1 : index
    %c0_195 = arith.constant 0 : index
    %c0_196 = arith.constant 0 : index
    %219 = vector.load %arg12[%c1_194, %c0_195, %c0_196] : memref<9x64x128xbf16, #tpu.memory_space<vmem>>, vector<1x64x128xbf16>
    %220 = vector.shape_cast %219 : vector<1x64x128xbf16> to vector<64x128xbf16>
    %cst_197 = arith.constant dense<0.000000e+00> : vector<1x128xf32>
    %221 = tpu.matmul %218, %220, %cst_197 {dimension_numbers = #tpu.dot_dimension_numbers<[1], [0], [0], [1], [0, 0, 1, 1], [], []>} : vector<1x64xbf16>, vector<64x128xbf16>, vector<1x128xf32> -> vector<1x128xf32>
    %222 = arith.addf %216, %221 : vector<1x128xf32>
    %223 = vector.extract_strided_slice %211 {offsets = [2, 0], sizes = [1, 64], strides = [1, 1]} : vector<72x64xf32> to vector<1x64xf32>
    %224 = arith.truncf %223 : vector<1x64xf32> to vector<1x64xbf16>
    %c2_198 = arith.constant 2 : index
    %c0_199 = arith.constant 0 : index
    %c0_200 = arith.constant 0 : index
    %225 = vector.load %arg12[%c2_198, %c0_199, %c0_200] : memref<9x64x128xbf16, #tpu.memory_space<vmem>>, vector<1x64x128xbf16>
    %226 = vector.shape_cast %225 : vector<1x64x128xbf16> to vector<64x128xbf16>
    %cst_201 = arith.constant dense<0.000000e+00> : vector<1x128xf32>
    %227 = tpu.matmul %224, %226, %cst_201 {dimension_numbers = #tpu.dot_dimension_numbers<[1], [0], [0], [1], [0, 0, 1, 1], [], []>} : vector<1x64xbf16>, vector<64x128xbf16>, vector<1x128xf32> -> vector<1x128xf32>
    %228 = arith.addf %222, %227 : vector<1x128xf32>
    %229 = vector.extract_strided_slice %211 {offsets = [24, 0], sizes = [1, 64], strides = [1, 1]} : vector<72x64xf32> to vector<1x64xf32>
    %230 = arith.truncf %229 : vector<1x64xf32> to vector<1x64xbf16>
    %c3 = arith.constant 3 : index
    %c0_202 = arith.constant 0 : index
    %c0_203 = arith.constant 0 : index
    %231 = vector.load %arg12[%c3, %c0_202, %c0_203] : memref<9x64x128xbf16, #tpu.memory_space<vmem>>, vector<1x64x128xbf16>
    %232 = vector.shape_cast %231 : vector<1x64x128xbf16> to vector<64x128xbf16>
    %cst_204 = arith.constant dense<0.000000e+00> : vector<1x128xf32>
    %233 = tpu.matmul %230, %232, %cst_204 {dimension_numbers = #tpu.dot_dimension_numbers<[1], [0], [0], [1], [0, 0, 1, 1], [], []>} : vector<1x64xbf16>, vector<64x128xbf16>, vector<1x128xf32> -> vector<1x128xf32>
    %234 = arith.addf %228, %233 : vector<1x128xf32>
    %235 = vector.extract_strided_slice %211 {offsets = [25, 0], sizes = [1, 64], strides = [1, 1]} : vector<72x64xf32> to vector<1x64xf32>
    %236 = arith.truncf %235 : vector<1x64xf32> to vector<1x64xbf16>
    %c4 = arith.constant 4 : index
    %c0_205 = arith.constant 0 : index
    %c0_206 = arith.constant 0 : index
    %237 = vector.load %arg12[%c4, %c0_205, %c0_206] : memref<9x64x128xbf16, #tpu.memory_space<vmem>>, vector<1x64x128xbf16>
    %238 = vector.shape_cast %237 : vector<1x64x128xbf16> to vector<64x128xbf16>
    %cst_207 = arith.constant dense<0.000000e+00> : vector<1x128xf32>
    %239 = tpu.matmul %236, %238, %cst_207 {dimension_numbers = #tpu.dot_dimension_numbers<[1], [0], [0], [1], [0, 0, 1, 1], [], []>} : vector<1x64xbf16>, vector<64x128xbf16>, vector<1x128xf32> -> vector<1x128xf32>
    %240 = arith.addf %234, %239 : vector<1x128xf32>
    %241 = vector.extract_strided_slice %211 {offsets = [26, 0], sizes = [1, 64], strides = [1, 1]} : vector<72x64xf32> to vector<1x64xf32>
    %242 = arith.truncf %241 : vector<1x64xf32> to vector<1x64xbf16>
    %c5 = arith.constant 5 : index
    %c0_208 = arith.constant 0 : index
    %c0_209 = arith.constant 0 : index
    %243 = vector.load %arg12[%c5, %c0_208, %c0_209] : memref<9x64x128xbf16, #tpu.memory_space<vmem>>, vector<1x64x128xbf16>
    %244 = vector.shape_cast %243 : vector<1x64x128xbf16> to vector<64x128xbf16>
    %cst_210 = arith.constant dense<0.000000e+00> : vector<1x128xf32>
    %245 = tpu.matmul %242, %244, %cst_210 {dimension_numbers = #tpu.dot_dimension_numbers<[1], [0], [0], [1], [0, 0, 1, 1], [], []>} : vector<1x64xbf16>, vector<64x128xbf16>, vector<1x128xf32> -> vector<1x128xf32>
    %246 = arith.addf %240, %245 : vector<1x128xf32>
    %247 = vector.extract_strided_slice %211 {offsets = [48, 0], sizes = [1, 64], strides = [1, 1]} : vector<72x64xf32> to vector<1x64xf32>
    %248 = arith.truncf %247 : vector<1x64xf32> to vector<1x64xbf16>
    %c6 = arith.constant 6 : index
    %c0_211 = arith.constant 0 : index
    %c0_212 = arith.constant 0 : index
    %249 = vector.load %arg12[%c6, %c0_211, %c0_212] : memref<9x64x128xbf16, #tpu.memory_space<vmem>>, vector<1x64x128xbf16>
    %250 = vector.shape_cast %249 : vector<1x64x128xbf16> to vector<64x128xbf16>
    %cst_213 = arith.constant dense<0.000000e+00> : vector<1x128xf32>
    %251 = tpu.matmul %248, %250, %cst_213 {dimension_numbers = #tpu.dot_dimension_numbers<[1], [0], [0], [1], [0, 0, 1, 1], [], []>} : vector<1x64xbf16>, vector<64x128xbf16>, vector<1x128xf32> -> vector<1x128xf32>
    %252 = arith.addf %246, %251 : vector<1x128xf32>
    %253 = vector.extract_strided_slice %211 {offsets = [49, 0], sizes = [1, 64], strides = [1, 1]} : vector<72x64xf32> to vector<1x64xf32>
    %254 = arith.truncf %253 : vector<1x64xf32> to vector<1x64xbf16>
    %c7 = arith.constant 7 : index
    %c0_214 = arith.constant 0 : index
    %c0_215 = arith.constant 0 : index
    %255 = vector.load %arg12[%c7, %c0_214, %c0_215] : memref<9x64x128xbf16, #tpu.memory_space<vmem>>, vector<1x64x128xbf16>
    %256 = vector.shape_cast %255 : vector<1x64x128xbf16> to vector<64x128xbf16>
    %cst_216 = arith.constant dense<0.000000e+00> : vector<1x128xf32>
    %257 = tpu.matmul %254, %256, %cst_216 {dimension_numbers = #tpu.dot_dimension_numbers<[1], [0], [0], [1], [0, 0, 1, 1], [], []>} : vector<1x64xbf16>, vector<64x128xbf16>, vector<1x128xf32> -> vector<1x128xf32>
    %258 = arith.addf %252, %257 : vector<1x128xf32>
    %259 = vector.extract_strided_slice %211 {offsets = [50, 0], sizes = [1, 64], strides = [1, 1]} : vector<72x64xf32> to vector<1x64xf32>
    %260 = arith.truncf %259 : vector<1x64xf32> to vector<1x64xbf16>
    %c8 = arith.constant 8 : index
    %c0_217 = arith.constant 0 : index
    %c0_218 = arith.constant 0 : index
    %261 = vector.load %arg12[%c8, %c0_217, %c0_218] : memref<9x64x128xbf16, #tpu.memory_space<vmem>>, vector<1x64x128xbf16>
    %262 = vector.shape_cast %261 : vector<1x64x128xbf16> to vector<64x128xbf16>
    %cst_219 = arith.constant dense<0.000000e+00> : vector<1x128xf32>
    %263 = tpu.matmul %260, %262, %cst_219 {dimension_numbers = #tpu.dot_dimension_numbers<[1], [0], [0], [1], [0, 0, 1, 1], [], []>} : vector<1x64xbf16>, vector<64x128xbf16>, vector<1x128xf32> -> vector<1x128xf32>
    %264 = arith.addf %258, %263 : vector<1x128xf32>
    %c0_220 = arith.constant 0 : index
    %c0_221 = arith.constant 0 : index
    %265 = vector.load %arg13[%c0_220, %c0_221] : memref<1x128xf32, #tpu.memory_space<vmem>>, vector<1x128xf32>
    %266 = arith.addf %264, %265 : vector<1x128xf32>
    %c0_222 = arith.constant 0 : index
    %c0_223 = arith.constant 0 : index
    %267 = vector.load %arg14[%c0_222, %c0_223] : memref<1x128xf32, #tpu.memory_space<vmem>>, vector<1x128xf32>
    %cst_224 = arith.constant 0.000000e+00 : f32
    %268 = vector.broadcast %cst_224 : f32 to vector<1x128xf32>
    %269 = arith.cmpf oge, %266, %268 : vector<1x128xf32>
    %270 = arith.mulf %267, %266 : vector<1x128xf32>
    %271 = arith.select %269, %266, %270 : vector<1x128xi1>, vector<1x128xf32>
    %272 = arith.truncf %271 : vector<1x128xf32> to vector<1x128xbf16>
    %c0_225 = arith.constant 0 : index
    %c0_226 = arith.constant 0 : index
    %273 = vector.load %arg15[%c0_225, %c0_226] : memref<128x6xbf16, #tpu.memory_space<vmem>>, vector<128x6xbf16>
    %cst_227 = arith.constant dense<0.000000e+00> : vector<1x6xf32>
    %274 = tpu.matmul %272, %273, %cst_227 {dimension_numbers = #tpu.dot_dimension_numbers<[1], [0], [0], [1], [0, 0, 1, 1], [], []>} : vector<1x128xbf16>, vector<128x6xbf16>, vector<1x6xf32> -> vector<1x6xf32>
    %c0_228 = arith.constant 0 : index
    %c0_229 = arith.constant 0 : index
    %275 = vector.load %arg16[%c0_228, %c0_229] : memref<1x6xf32, #tpu.memory_space<vmem>>, vector<1x6xf32>
    %276 = arith.addf %274, %275 : vector<1x6xf32>
    %277 = vector.extract_strided_slice %276 {offsets = [0, 0], sizes = [1, 2], strides = [1, 1]} : vector<1x6xf32> to vector<1x2xf32>
    %cst_230 = arith.constant dense<0xFF800000> : vector<1xf32>
    %278 = vector.multi_reduction <maximumf>, %277, %cst_230 [1] : vector<1x2xf32> to vector<1xf32>
    %279 = vector.shape_cast %278 : vector<1xf32> to vector<1x1xf32>
    %280 = vector.broadcast %279 : vector<1x1xf32> to vector<1x2xf32>
    %281 = arith.subf %277, %280 : vector<1x2xf32>
    %282 = math.exp %281 : vector<1x2xf32>
    %cst_231 = arith.constant dense<0.000000e+00> : vector<1xf32>
    %283 = vector.multi_reduction <add>, %282, %cst_231 [1] : vector<1x2xf32> to vector<1xf32>
    %284 = vector.shape_cast %283 : vector<1xf32> to vector<1x1xf32>
    %285 = vector.broadcast %284 : vector<1x1xf32> to vector<1x2xf32>
    %286 = arith.divf %282, %285 : vector<1x2xf32>
    %c0_232 = arith.constant 0 : index
    %c0_233 = arith.constant 0 : index
    %c0_234 = arith.constant 0 : index
    %287 = vector.load %arg18[%c0_232, %c0_233, %c0_234] : memref<1x1x2xf32, #tpu.memory_space<vmem>>, vector<1x1x2xf32>
    %288 = vector.shape_cast %287 : vector<1x1x2xf32> to vector<1x2xf32>
    %289 = vector.shape_cast %286 : vector<1x2xf32> to vector<1x1x2xf32>
    tpu.vector_store %arg18[%c0_232, %c0_233, %c0_234], %289 {strides = array<i32>} : memref<1x1x2xf32, #tpu.memory_space<vmem>>, vector<1x1x2xf32>,
    %290 = vector.extract_strided_slice %276 {offsets = [0, 2], sizes = [1, 4], strides = [1, 1]} : vector<1x6xf32> to vector<1x4xf32>
    %c0_235 = arith.constant 0 : index
    %c0_236 = arith.constant 0 : index
    %c0_237 = arith.constant 0 : index
    %291 = vector.load %arg17[%c0_235, %c0_236, %c0_237] : memref<1x1x4xf32, #tpu.memory_space<vmem>>, vector<1x1x4xf32>
    %292 = vector.shape_cast %291 : vector<1x1x4xf32> to vector<1x4xf32>
    %293 = vector.shape_cast %290 : vector<1x4xf32> to vector<1x1x4xf32>
    tpu.vector_store %arg17[%c0_235, %c0_236, %c0_237], %293 {strides = array<i32>} : memref<1x1x4xf32, #tpu.memory_space<vmem>>, vector<1x1x4xf32>,
    return
  }
  func.func @transform_0(%arg0: i32) -> (i32, i32, i32) {
    %c0_i32 = arith.constant 0 : i32
    %c0_i32_0 = arith.constant 0 : i32
    %c0_i32_1 = arith.constant 0 : i32
    return %arg0, %c0_i32, %c0_i32_0 : i32, i32, i32
  }
  func.func @transform_1(%arg0: i32) -> (i32, i32) {
    %c0_i32 = arith.constant 0 : i32
    %c0_i32_0 = arith.constant 0 : i32
    %c0_i32_1 = arith.constant 0 : i32
    return %c0_i32, %c0_i32_0 : i32, i32
  }
  func.func @transform_2(%arg0: i32) -> (i32, i32, i32, i32) {
    %c0_i32 = arith.constant 0 : i32
    %c0_i32_0 = arith.constant 0 : i32
    %c0_i32_1 = arith.constant 0 : i32
    %c0_i32_2 = arith.constant 0 : i32
    %c0_i32_3 = arith.constant 0 : i32
    return %c0_i32, %c0_i32_0, %c0_i32_1, %c0_i32_2 : i32, i32, i32, i32
  }
  func.func @transform_3(%arg0: i32) -> (i32, i32) {
    %c0_i32 = arith.constant 0 : i32
    %c0_i32_0 = arith.constant 0 : i32
    %c0_i32_1 = arith.constant 0 : i32
    return %c0_i32, %c0_i32_0 : i32, i32
  }
  func.func @transform_4(%arg0: i32) -> (i32, i32) {
    %c0_i32 = arith.constant 0 : i32
    %c0_i32_0 = arith.constant 0 : i32
    %c0_i32_1 = arith.constant 0 : i32
    return %c0_i32, %c0_i32_0 : i32, i32
  }
  func.func @transform_5(%arg0: i32) -> (i32, i32, i32, i32) {
    %c0_i32 = arith.constant 0 : i32
    %c0_i32_0 = arith.constant 0 : i32
    %c0_i32_1 = arith.constant 0 : i32
    %c0_i32_2 = arith.constant 0 : i32
    %c0_i32_3 = arith.constant 0 : i32
    return %c0_i32, %c0_i32_0, %c0_i32_1, %c0_i32_2 : i32, i32, i32, i32
  }
  func.func @transform_6(%arg0: i32) -> (i32, i32) {
    %c0_i32 = arith.constant 0 : i32
    %c0_i32_0 = arith.constant 0 : i32
    %c0_i32_1 = arith.constant 0 : i32
    return %c0_i32, %c0_i32_0 : i32, i32
  }
  func.func @transform_7(%arg0: i32) -> (i32, i32) {
    %c0_i32 = arith.constant 0 : i32
    %c0_i32_0 = arith.constant 0 : i32
    %c0_i32_1 = arith.constant 0 : i32
    return %c0_i32, %c0_i32_0 : i32, i32
  }
  func.func @transform_8(%arg0: i32) -> (i32, i32, i32, i32) {
    %c0_i32 = arith.constant 0 : i32
    %c0_i32_0 = arith.constant 0 : i32
    %c0_i32_1 = arith.constant 0 : i32
    %c0_i32_2 = arith.constant 0 : i32
    %c0_i32_3 = arith.constant 0 : i32
    return %c0_i32, %c0_i32_0, %c0_i32_1, %c0_i32_2 : i32, i32, i32, i32
  }
  func.func @transform_9(%arg0: i32) -> (i32, i32) {
    %c0_i32 = arith.constant 0 : i32
    %c0_i32_0 = arith.constant 0 : i32
    %c0_i32_1 = arith.constant 0 : i32
    return %c0_i32, %c0_i32_0 : i32, i32
  }
  func.func @transform_10(%arg0: i32) -> (i32, i32) {
    %c0_i32 = arith.constant 0 : i32
    %c0_i32_0 = arith.constant 0 : i32
    %c0_i32_1 = arith.constant 0 : i32
    return %c0_i32, %c0_i32_0 : i32, i32
  }
  func.func @transform_11(%arg0: i32) -> (i32, i32, i32) {
    %c0_i32 = arith.constant 0 : i32
    %c0_i32_0 = arith.constant 0 : i32
    %c0_i32_1 = arith.constant 0 : i32
    %c0_i32_2 = arith.constant 0 : i32
    return %c0_i32, %c0_i32_0, %c0_i32_1 : i32, i32, i32
  }
  func.func @transform_12(%arg0: i32) -> (i32, i32) {
    %c0_i32 = arith.constant 0 : i32
    %c0_i32_0 = arith.constant 0 : i32
    %c0_i32_1 = arith.constant 0 : i32
    return %c0_i32, %c0_i32_0 : i32, i32
  }
  func.func @transform_13(%arg0: i32) -> (i32, i32) {
    %c0_i32 = arith.constant 0 : i32
    %c0_i32_0 = arith.constant 0 : i32
    %c0_i32_1 = arith.constant 0 : i32
    return %c0_i32, %c0_i32_0 : i32, i32
  }
  func.func @transform_14(%arg0: i32) -> (i32, i32) {
    %c0_i32 = arith.constant 0 : i32
    %c0_i32_0 = arith.constant 0 : i32
    %c0_i32_1 = arith.constant 0 : i32
    return %c0_i32, %c0_i32_0 : i32, i32
  }
  func.func @transform_15(%arg0: i32) -> (i32, i32) {
    %c0_i32 = arith.constant 0 : i32
    %c0_i32_0 = arith.constant 0 : i32
    %c0_i32_1 = arith.constant 0 : i32
    return %c0_i32, %c0_i32_0 : i32, i32
  }
  func.func @transform_16(%arg0: i32) -> (i32, i32, i32) {
    %c0_i32 = arith.constant 0 : i32
    %c0_i32_0 = arith.constant 0 : i32
    %c0_i32_1 = arith.constant 0 : i32
    return %arg0, %c0_i32, %c0_i32_0 : i32, i32, i32
  }
  func.func @transform_17(%arg0: i32) -> (i32, i32, i32) {
    %c0_i32 = arith.constant 0 : i32
    %c0_i32_0 = arith.constant 0 : i32
    %c0_i32_1 = arith.constant 0 : i32
    return %arg0, %c0_i32, %c0_i32_0 : i32, i32, i32
  }
}

</mosaic_0001>

<llo_original>
// kernel: rnet_forward.1
$region0: #{rnet_forward.1}
  #allocation0 [shape = 'u32[]', space=smem, size = 0x4, offset = 0x4, fixed_abs, tag = 'smem constant byte address 0x4 - core index']
  #allocation1 [shape = 'u32[72,128]{1,0:T(1,128)}', space=vmem, size = 0x9000, scoped, tag = 'internal scratch']
  #allocation2 [shape = 'f32[600,28]{1,0:T(8,128)}', space=vmem, size = 0x4b000, scoped, tag = 'scratch operand']
  #allocation3 [shape = 'f32[264,48]{1,0:T(8,128)}', space=vmem, size = 0x21000, scoped, tag = 'scratch operand']
  %s0 = inlined_call_operand.vmem [shape: f32[4,584,3], index: 0, kind: input, shape index: {}]
  %s1 = inlined_call_operand.vmem [shape: f32[528,1], index: 1, kind: input, shape index: {}]
  %s2 = inlined_call_operand.vmem [shape: bf16[3,3,3,28], index: 2, kind: input, shape index: {}]
  %s3 = inlined_call_operand.vmem [shape: f32[1,28], index: 3, kind: input, shape index: {}]
  %s4 = inlined_call_operand.vmem [shape: f32[1,28], index: 4, kind: input, shape index: {}]
  %s5 = inlined_call_operand.vmem [shape: bf16[3,3,28,48], index: 5, kind: input, shape index: {}]
  %s6 = inlined_call_operand.vmem [shape: f32[1,48], index: 6, kind: input, shape index: {}]
  %s7 = inlined_call_operand.vmem [shape: f32[1,48], index: 7, kind: input, shape index: {}]
  %s8 = inlined_call_operand.vmem [shape: bf16[2,2,48,64], index: 8, kind: input, shape index: {}]
  %s9 = inlined_call_operand.vmem [shape: f32[1,64], index: 9, kind: input, shape index: {}]
  %s10 = inlined_call_operand.vmem [shape: f32[1,64], index: 10, kind: input, shape index: {}]
  %s11 = inlined_call_operand.vmem [shape: bf16[9,64,128], index: 11, kind: input, shape index: {}]
  %s12 = inlined_call_operand.vmem [shape: f32[1,128], index: 12, kind: input, shape index: {}]
  %s13 = inlined_call_operand.vmem [shape: f32[1,128], index: 13, kind: input, shape index: {}]
  %s14 = inlined_call_operand.vmem [shape: bf16[128,6], index: 14, kind: input, shape index: {}]
  %s15 = inlined_call_operand.vmem [shape: f32[1,6], index: 15, kind: input, shape index: {}]
  %s16 = inlined_call_operand.hbm [shape: f32[4,1,4], index: 16, kind: output, shape index: {0}]
  %s17 = inlined_call_operand.vmem [shape: f32[4,1,2], index: 17, kind: output, shape index: {1}]
  %18 = xla_tuple %s16, %s17
  %s19 = sld [smem:[#allocation0]]
  $region105: #{rnet_forward.1} parent=0
    _
  %s21 = ssub.s32 1, %s19
  %s22 = scalar_select 0, %s21, %s19
  $region1: #{rnet_forward.1} parent=0
    #allocation4 [shape = 'u8[1024]{0}', space=vmem, size = 0x400, scoped, tag = 'output window, operand 0']
    #allocation5 [shape = 's32[2]{0}', space=sflag, size = 0x8, scoped, tag = 'scoped memory for rnet_forward.1']
    %23 = vsyncpa [#allocation5], 0
    %s24 = scalar_lea.sflag [#allocation5], 1
    %25 = vsyncpa %s24, 0
    loop: start=0, step=1, limit=6
    $region2: #{rnet_forward.1} parent=1 // loop_pre_header
      _
    $region3: #{rnet_forward.1} parent=1 // loop_header
      %s27 = sphi 0, %s31
      %p28 = scmp.ge.s32.totalorder %s27, 6
      %s37 = sphi 0, %s39
      %s40 = sphi 0, %s37
      %s41 = sphi 0, %s40
      %s57 = sphi 0, %s41
      %s61 = sphi 0, %s61
      %s63 = sphi 0, %s61
      %s64 = sphi 0, %s63
      %s78 = sphi 0, %s64
      %s82 = sphi 0, %s82
      %s84 = sphi 0, %s82
      %s85 = sphi 0, %s84
      %s99 = sphi 0, %s85
      %s103 = sphi 0, %s103
      %s105 = sphi 0, %s103
      %s106 = sphi 0, %s105
      %s120 = sphi 0, %s106
      %s124 = sphi 0, %s124
      %s126 = sphi 0, %s124
      %s127 = sphi 0, %s126
      %s141 = sphi 0, %s127
      %s145 = sphi 0, %s145
      %s147 = sphi 0, %s145
      %s148 = sphi 0, %s147
      %s162 = sphi 0, %s148
      %s166 = sphi 0, %s166
      %s168 = sphi 0, %s166
      %s169 = sphi 0, %s168
      %s183 = sphi 0, %s169
      %s187 = sphi 0, %s187
      %s189 = sphi 0, %s187
      %s190 = sphi 0, %s189
      %s204 = sphi 0, %s190
      %s208 = sphi 0, %s208
      %s210 = sphi 0, %s208
      %s211 = sphi 0, %s210
      %s225 = sphi 0, %s211
      %s229 = sphi 0, %s229
      %s231 = sphi 0, %s229
      %s232 = sphi 0, %s231
      %s246 = sphi 0, %s232
      %s250 = sphi 0, %s250
      %s252 = sphi 0, %s250
      %s253 = sphi 0, %s252
      %s267 = sphi 0, %s253
      %s271 = sphi 0, %s271
      %s273 = sphi 0, %s271
      %s274 = sphi 0, %s273
      %s288 = sphi 0, %s274
      %s292 = sphi 0, %s292
      %s294 = sphi 0, %s292
      %s295 = sphi 0, %s294
      %s309 = sphi 0, %s295
      %s313 = sphi 0, %s313
      %s315 = sphi 0, %s313
      %s316 = sphi 0, %s315
      %s330 = sphi 0, %s316
      %s334 = sphi 0, %s334
      %s336 = sphi 0, %s334
      %s337 = sphi 0, %s336
      %s351 = sphi 0, %s337
      %s355 = sphi 0, %s355
      %s357 = sphi 0, %s355
      %s358 = sphi 0, %s357
      %s372 = sphi 0, %s358
      %s378 = sphi 0, %s380
      %s381 = sphi 0, %s378
      %s382 = sphi 0, %s381
      %s398 = sphi 0, %s382
      %s404 = sphi 0, %s406
      %s407 = sphi 0, %s404
      %s408 = sphi 0, %s407
      %s424 = sphi 0, %s408
    $region4: #{rnet_forward.1} parent=1 // loop_header_branch
      %30 = sbr.rel (%p28) target = $region8
    $region5: #{rnet_forward.1} parent=1 // loop_body
      %s32 = ssub.s32 %s27, 1
      %s33 = ssub.s32 %s27, 2
      %s34 = sadd.s32 %s27, 1
      %s35 = ssub.s32 %s27, %s34
      %p36 = scmp.eq.s32.totalorder %s35, 0
      %s38 = sadd.s32 %s37, 1
      %s39 = scalar_select %p36, %s37, %s38
      %p42 = pneg %p36
      %p43 = scmp.eq.s32.totalorder %s27, 3
      %p44 = por %p42, %p43
      %p45 = scmp.ne.s32.totalorder %s37, %s40
      %p46 = scmp.eq.s32.totalorder %s27, 0
      %p47 = por %p45, %p46
      %p48 = scmp.ne.s32.totalorder %s37, %s40
      %p49 = scmp.eq.s32.totalorder %s32, 3
      %p50 = por %p48, %p49
      %p51 = scmp.ne.s32.totalorder %s40, %s41
      %p52 = scmp.eq.s32.totalorder %s32, 0
      %p53 = por %p51, %p52
      %p54 = scmp.ne.s32.totalorder %s40, %s41
      %p55 = scmp.eq.s32.totalorder %s33, 3
      %p56 = por %p54, %p55
      %p58 = scmp.ne.s32.totalorder %s41, %s57
      %p59 = scmp.eq.s32.totalorder %s33, 0
      %p60 = por %p58, %p59
      %s62 = sadd.s32 %s61, 1
      %p65 = scmp.eq.s32.totalorder %s27, 3
      %p66 = scmp.ne.s32.totalorder %s61, %s63
      %p67 = scmp.eq.s32.totalorder %s27, 0
      %p68 = por %p66, %p67
      %p69 = scmp.ne.s32.totalorder %s61, %s63
      %p70 = scmp.eq.s32.totalorder %s32, 3
      %p71 = por %p69, %p70
      %p72 = scmp.ne.s32.totalorder %s63, %s64
      %p73 = scmp.eq.s32.totalorder %s32, 0
      %p74 = por %p72, %p73
      %p75 = scmp.ne.s32.totalorder %s63, %s64
      %p76 = scmp.eq.s32.totalorder %s33, 3
      %p77 = por %p75, %p76
      %p79 = scmp.ne.s32.totalorder %s64, %s78
      %p80 = scmp.eq.s32.totalorder %s33, 0
      %p81 = por %p79, %p80
      %s83 = sadd.s32 %s82, 1
      %p86 = scmp.eq.s32.totalorder %s27, 3
      %p87 = scmp.ne.s32.totalorder %s82, %s84
      %p88 = scmp.eq.s32.totalorder %s27, 0
      %p89 = por %p87, %p88
      %p90 = scmp.ne.s32.totalorder %s82, %s84
      %p91 = scmp.eq.s32.totalorder %s32, 3
      %p92 = por %p90, %p91
      %p93 = scmp.ne.s32.totalorder %s84, %s85
      %p94 = scmp.eq.s32.totalorder %s32, 0
      %p95 = por %p93, %p94
      %p96 = scmp.ne.s32.totalorder %s84, %s85
      %p97 = scmp.eq.s32.totalorder %s33, 3
      %p98 = por %p96, %p97
      %p100 = scmp.ne.s32.totalorder %s85, %s99
      %p101 = scmp.eq.s32.totalorder %s33, 0
      %p102 = por %p100, %p101
      %s104 = sadd.s32 %s103, 1
      %p107 = scmp.eq.s32.totalorder %s27, 3
      %p108 = scmp.ne.s32.totalorder %s103, %s105
      %p109 = scmp.eq.s32.totalorder %s27, 0
      %p110 = por %p108, %p109
      %p111 = scmp.ne.s32.totalorder %s103, %s105
      %p112 = scmp.eq.s32.totalorder %s32, 3
      %p113 = por %p111, %p112
      %p114 = scmp.ne.s32.totalorder %s105, %s106
      %p115 = scmp.eq.s32.totalorder %s32, 0
      %p116 = por %p114, %p115
      %p117 = scmp.ne.s32.totalorder %s105, %s106
      %p118 = scmp.eq.s32.totalorder %s33, 3
      %p119 = por %p117, %p118
      %p121 = scmp.ne.s32.totalorder %s106, %s120
      %p122 = scmp.eq.s32.totalorder %s33, 0
      %p123 = por %p121, %p122
      %s125 = sadd.s32 %s124, 1
      %p128 = scmp.eq.s32.totalorder %s27, 3
      %p129 = scmp.ne.s32.totalorder %s124, %s126
      %p130 = scmp.eq.s32.totalorder %s27, 0
      %p131 = por %p129, %p130
      %p132 = scmp.ne.s32.totalorder %s124, %s126
      %p133 = scmp.eq.s32.totalorder %s32, 3
      %p134 = por %p132, %p133
      %p135 = scmp.ne.s32.totalorder %s126, %s127
      %p136 = scmp.eq.s32.totalorder %s32, 0
      %p137 = por %p135, %p136
      %p138 = scmp.ne.s32.totalorder %s126, %s127
      %p139 = scmp.eq.s32.totalorder %s33, 3
      %p140 = por %p138, %p139
      %p142 = scmp.ne.s32.totalorder %s127, %s141
      %p143 = scmp.eq.s32.totalorder %s33, 0
      %p144 = por %p142, %p143
      %s146 = sadd.s32 %s145, 1
      %p149 = scmp.eq.s32.totalorder %s27, 3
      %p150 = scmp.ne.s32.totalorder %s145, %s147
      %p151 = scmp.eq.s32.totalorder %s27, 0
      %p152 = por %p150, %p151
      %p153 = scmp.ne.s32.totalorder %s145, %s147
      %p154 = scmp.eq.s32.totalorder %s32, 3
      %p155 = por %p153, %p154
      %p156 = scmp.ne.s32.totalorder %s147, %s148
      %p157 = scmp.eq.s32.totalorder %s32, 0
      %p158 = por %p156, %p157
      %p159 = scmp.ne.s32.totalorder %s147, %s148
      %p160 = scmp.eq.s32.totalorder %s33, 3
      %p161 = por %p159, %p160
      %p163 = scmp.ne.s32.totalorder %s148, %s162
      %p164 = scmp.eq.s32.totalorder %s33, 0
      %p165 = por %p163, %p164
      %s167 = sadd.s32 %s166, 1
      %p170 = scmp.eq.s32.totalorder %s27, 3
      %p171 = scmp.ne.s32.totalorder %s166, %s168
      %p172 = scmp.eq.s32.totalorder %s27, 0
      %p173 = por %p171, %p172
      %p174 = scmp.ne.s32.totalorder %s166, %s168
      %p175 = scmp.eq.s32.totalorder %s32, 3
      %p176 = por %p174, %p175
      %p177 = scmp.ne.s32.totalorder %s168, %s169
      %p178 = scmp.eq.s32.totalorder %s32, 0
      %p179 = por %p177, %p178
      %p180 = scmp.ne.s32.totalorder %s168, %s169
      %p181 = scmp.eq.s32.totalorder %s33, 3
      %p182 = por %p180, %p181
      %p184 = scmp.ne.s32.totalorder %s169, %s183
      %p185 = scmp.eq.s32.totalorder %s33, 0
      %p186 = por %p184, %p185
      %s188 = sadd.s32 %s187, 1
      %p191 = scmp.eq.s32.totalorder %s27, 3
      %p192 = scmp.ne.s32.totalorder %s187, %s189
      %p193 = scmp.eq.s32.totalorder %s27, 0
      %p194 = por %p192, %p193
      %p195 = scmp.ne.s32.totalorder %s187, %s189
      %p196 = scmp.eq.s32.totalorder %s32, 3
      %p197 = por %p195, %p196
      %p198 = scmp.ne.s32.totalorder %s189, %s190
      %p199 = scmp.eq.s32.totalorder %s32, 0
      %p200 = por %p198, %p199
      %p201 = scmp.ne.s32.totalorder %s189, %s190
      %p202 = scmp.eq.s32.totalorder %s33, 3
      %p203 = por %p201, %p202
      %p205 = scmp.ne.s32.totalorder %s190, %s204
      %p206 = scmp.eq.s32.totalorder %s33, 0
      %p207 = por %p205, %p206
      %s209 = sadd.s32 %s208, 1
      %p212 = scmp.eq.s32.totalorder %s27, 3
      %p213 = scmp.ne.s32.totalorder %s208, %s210
      %p214 = scmp.eq.s32.totalorder %s27, 0
      %p215 = por %p213, %p214
      %p216 = scmp.ne.s32.totalorder %s208, %s210
      %p217 = scmp.eq.s32.totalorder %s32, 3
      %p218 = por %p216, %p217
      %p219 = scmp.ne.s32.totalorder %s210, %s211
      %p220 = scmp.eq.s32.totalorder %s32, 0
      %p221 = por %p219, %p220
      %p222 = scmp.ne.s32.totalorder %s210, %s211
      %p223 = scmp.eq.s32.totalorder %s33, 3
      %p224 = por %p222, %p223
      %p226 = scmp.ne.s32.totalorder %s211, %s225
      %p227 = scmp.eq.s32.totalorder %s33, 0
      %p228 = por %p226, %p227
      %s230 = sadd.s32 %s229, 1
      %p233 = scmp.eq.s32.totalorder %s27, 3
      %p234 = scmp.ne.s32.totalorder %s229, %s231
      %p235 = scmp.eq.s32.totalorder %s27, 0
      %p236 = por %p234, %p235
      %p237 = scmp.ne.s32.totalorder %s229, %s231
      %p238 = scmp.eq.s32.totalorder %s32, 3
      %p239 = por %p237, %p238
      %p240 = scmp.ne.s32.totalorder %s231, %s232
      %p241 = scmp.eq.s32.totalorder %s32, 0
      %p242 = por %p240, %p241
      %p243 = scmp.ne.s32.totalorder %s231, %s232
      %p244 = scmp.eq.s32.totalorder %s33, 3
      %p245 = por %p243, %p244
      %p247 = scmp.ne.s32.totalorder %s232, %s246
      %p248 = scmp.eq.s32.totalorder %s33, 0
      %p249 = por %p247, %p248
      %s251 = sadd.s32 %s250, 1
      %p254 = scmp.eq.s32.totalorder %s27, 3
      %p255 = scmp.ne.s32.totalorder %s250, %s252
      %p256 = scmp.eq.s32.totalorder %s27, 0
      %p257 = por %p255, %p256
      %p258 = scmp.ne.s32.totalorder %s250, %s252
      %p259 = scmp.eq.s32.totalorder %s32, 3
      %p260 = por %p258, %p259
      %p261 = scmp.ne.s32.totalorder %s252, %s253
      %p262 = scmp.eq.s32.totalorder %s32, 0
      %p263 = por %p261, %p262
      %p264 = scmp.ne.s32.totalorder %s252, %s253
      %p265 = scmp.eq.s32.totalorder %s33, 3
      %p266 = por %p264, %p265
      %p268 = scmp.ne.s32.totalorder %s253, %s267
      %p269 = scmp.eq.s32.totalorder %s33, 0
      %p270 = por %p268, %p269
      %s272 = sadd.s32 %s271, 1
      %p275 = scmp.eq.s32.totalorder %s27, 3
      %p276 = scmp.ne.s32.totalorder %s271, %s273
      %p277 = scmp.eq.s32.totalorder %s27, 0
      %p278 = por %p276, %p277
      %p279 = scmp.ne.s32.totalorder %s271, %s273
      %p280 = scmp.eq.s32.totalorder %s32, 3
      %p281 = por %p279, %p280
      %p282 = scmp.ne.s32.totalorder %s273, %s274
      %p283 = scmp.eq.s32.totalorder %s32, 0
      %p284 = por %p282, %p283
      %p285 = scmp.ne.s32.totalorder %s273, %s274
      %p286 = scmp.eq.s32.totalorder %s33, 3
      %p287 = por %p285, %p286
      %p289 = scmp.ne.s32.totalorder %s274, %s288
      %p290 = scmp.eq.s32.totalorder %s33, 0
      %p291 = por %p289, %p290
      %s293 = sadd.s32 %s292, 1
      %p296 = scmp.eq.s32.totalorder %s27, 3
      %p297 = scmp.ne.s32.totalorder %s292, %s294
      %p298 = scmp.eq.s32.totalorder %s27, 0
      %p299 = por %p297, %p298
      %p300 = scmp.ne.s32.totalorder %s292, %s294
      %p301 = scmp.eq.s32.totalorder %s32, 3
      %p302 = por %p300, %p301
      %p303 = scmp.ne.s32.totalorder %s294, %s295
      %p304 = scmp.eq.s32.totalorder %s32, 0
      %p305 = por %p303, %p304
      %p306 = scmp.ne.s32.totalorder %s294, %s295
      %p307 = scmp.eq.s32.totalorder %s33, 3
      %p308 = por %p306, %p307
      %p310 = scmp.ne.s32.totalorder %s295, %s309
      %p311 = scmp.eq.s32.totalorder %s33, 0
      %p312 = por %p310, %p311
      %s314 = sadd.s32 %s313, 1
      %p317 = scmp.eq.s32.totalorder %s27, 3
      %p318 = scmp.ne.s32.totalorder %s313, %s315
      %p319 = scmp.eq.s32.totalorder %s27, 0
      %p320 = por %p318, %p319
      %p321 = scmp.ne.s32.totalorder %s313, %s315
      %p322 = scmp.eq.s32.totalorder %s32, 3
      %p323 = por %p321, %p322
      %p324 = scmp.ne.s32.totalorder %s315, %s316
      %p325 = scmp.eq.s32.totalorder %s32, 0
      %p326 = por %p324, %p325
      %p327 = scmp.ne.s32.totalorder %s315, %s316
      %p328 = scmp.eq.s32.totalorder %s33, 3
      %p329 = por %p327, %p328
      %p331 = scmp.ne.s32.totalorder %s316, %s330
      %p332 = scmp.eq.s32.totalorder %s33, 0
      %p333 = por %p331, %p332
      %s335 = sadd.s32 %s334, 1
      %p338 = scmp.eq.s32.totalorder %s27, 3
      %p339 = scmp.ne.s32.totalorder %s334, %s336
      %p340 = scmp.eq.s32.totalorder %s27, 0
      %p341 = por %p339, %p340
      %p342 = scmp.ne.s32.totalorder %s334, %s336
      %p343 = scmp.eq.s32.totalorder %s32, 3
      %p344 = por %p342, %p343
      %p345 = scmp.ne.s32.totalorder %s336, %s337
      %p346 = scmp.eq.s32.totalorder %s32, 0
      %p347 = por %p345, %p346
      %p348 = scmp.ne.s32.totalorder %s336, %s337
      %p349 = scmp.eq.s32.totalorder %s33, 3
      %p350 = por %p348, %p349
      %p352 = scmp.ne.s32.totalorder %s337, %s351
      %p353 = scmp.eq.s32.totalorder %s33, 0
      %p354 = por %p352, %p353
      %s356 = sadd.s32 %s355, 1
      %p359 = scmp.eq.s32.totalorder %s27, 3
      %p360 = scmp.ne.s32.totalorder %s355, %s357
      %p361 = scmp.eq.s32.totalorder %s27, 0
      %p362 = por %p360, %p361
      %p363 = scmp.ne.s32.totalorder %s355, %s357
      %p364 = scmp.eq.s32.totalorder %s32, 3
      %p365 = por %p363, %p364
      %p366 = scmp.ne.s32.totalorder %s357, %s358
      %p367 = scmp.eq.s32.totalorder %s32, 0
      %p368 = por %p366, %p367
      %p369 = scmp.ne.s32.totalorder %s357, %s358
      %p370 = scmp.eq.s32.totalorder %s33, 3
      %p371 = por %p369, %p370
      %p373 = scmp.ne.s32.totalorder %s358, %s372
      %p374 = scmp.eq.s32.totalorder %s33, 0
      %p375 = por %p373, %p374
      %s376 = ssub.s32 %s27, %s34
      %p377 = scmp.eq.s32.totalorder %s376, 0
      %s379 = sadd.s32 %s378, 1
      %s380 = scalar_select %p377, %s378, %s379
      %p383 = pneg %p377
      %p384 = scmp.eq.s32.totalorder %s27, 3
      %p385 = por %p383, %p384
      %p386 = scmp.ne.s32.totalorder %s378, %s381
      %p387 = scmp.eq.s32.totalorder %s27, 0
      %p388 = por %p386, %p387
      %p389 = scmp.ne.s32.totalorder %s378, %s381
      %p390 = scmp.eq.s32.totalorder %s32, 3
      %p391 = por %p389, %p390
      %p392 = scmp.ne.s32.totalorder %s381, %s382
      %p393 = scmp.eq.s32.totalorder %s32, 0
      %p394 = por %p392, %p393
      %p395 = scmp.ne.s32.totalorder %s381, %s382
      %p396 = scmp.eq.s32.totalorder %s33, 3
      %p397 = por %p395, %p396
      %p399 = scmp.ne.s32.totalorder %s382, %s398
      %p400 = scmp.eq.s32.totalorder %s33, 0
      %p401 = por %p399, %p400
      %s402 = ssub.s32 %s27, %s34
      %p403 = scmp.eq.s32.totalorder %s402, 0
      %s405 = sadd.s32 %s404, 1
      %s406 = scalar_select %p403, %s404, %s405
      %p409 = pneg %p403
      %p410 = scmp.eq.s32.totalorder %s27, 3
      %p411 = por %p409, %p410
      %p412 = scmp.ne.s32.totalorder %s404, %s407
      %p413 = scmp.eq.s32.totalorder %s27, 0
      %p414 = por %p412, %p413
      %p415 = scmp.ne.s32.totalorder %s404, %s407
      %p416 = scmp.eq.s32.totalorder %s32, 3
      %p417 = por %p415, %p416
      %p418 = scmp.ne.s32.totalorder %s407, %s408
      %p419 = scmp.eq.s32.totalorder %s32, 0
      %p420 = por %p418, %p419
      %p421 = scmp.ne.s32.totalorder %s407, %s408
      %p422 = scmp.eq.s32.totalorder %s33, 3
      %p423 = por %p421, %p422
      %p425 = scmp.ne.s32.totalorder %s408, %s424
      %p426 = scmp.eq.s32.totalorder %s33, 0
      %p427 = por %p425, %p426
      %p428 = scmp.le.s32.totalorder 1, %s27
      %p429 = scmp.lt.s32.totalorder %s27, 5
      %p430 = pnand %p428, %p429
      %p431 = pneg %p430
      // Predicated region
      $region9: #{rnet_forward.1} parent=5 // pred_check
        _
      $region10: #{rnet_forward.1} parent=5 // pred_check_branch
        %433 = sbr.rel (%p430) target = $region12
      $region11: #{rnet_forward.1} parent=5 // pred_region
        %s434 = ssub.s32 %s27, 1
        // Predicated region
        $region13: #{rnet_forward.1} parent=11 // pred_check
          %p435 = pneg %p74
        $region14: #{rnet_forward.1} parent=11 // pred_check_branch
          %437 = sbr.rel (%p435) target = $region16
        $region15: #{rnet_forward.1} parent=11 // pred_region
          _
        $region16: #{rnet_forward.1} parent=11 // pred_fallthru
          _
        // Predicated region
        $region17: #{rnet_forward.1} parent=11 // pred_check
          %p438 = pneg %p95
        $region18: #{rnet_forward.1} parent=11 // pred_check_branch
          %440 = sbr.rel (%p438) target = $region20
        $region19: #{rnet_forward.1} parent=11 // pred_region
          _
        $region20: #{rnet_forward.1} parent=11 // pred_fallthru
          _
        // Predicated region
        $region21: #{rnet_forward.1} parent=11 // pred_check
          %p441 = pneg %p116
        $region22: #{rnet_forward.1} parent=11 // pred_check_branch
          %443 = sbr.rel (%p441) target = $region24
        $region23: #{rnet_forward.1} parent=11 // pred_region
          _
        $region24: #{rnet_forward.1} parent=11 // pred_fallthru
          _
        // Predicated region
        $region25: #{rnet_forward.1} parent=11 // pred_check
          %p444 = pneg %p137
        $region26: #{rnet_forward.1} parent=11 // pred_check_branch
          %446 = sbr.rel (%p444) target = $region28
        $region27: #{rnet_forward.1} parent=11 // pred_region
          _
        $region28: #{rnet_forward.1} parent=11 // pred_fallthru
          _
        // Predicated region
        $region29: #{rnet_forward.1} parent=11 // pred_check
          %p447 = pneg %p158
        $region30: #{rnet_forward.1} parent=11 // pred_check_branch
          %449 = sbr.rel (%p447) target = $region32
        $region31: #{rnet_forward.1} parent=11 // pred_region
          _
        $region32: #{rnet_forward.1} parent=11 // pred_fallthru
          _
        // Predicated region
        $region33: #{rnet_forward.1} parent=11 // pred_check
          %p450 = pneg %p179
        $region34: #{rnet_forward.1} parent=11 // pred_check_branch
          %452 = sbr.rel (%p450) target = $region36
        $region35: #{rnet_forward.1} parent=11 // pred_region
          _
        $region36: #{rnet_forward.1} parent=11 // pred_fallthru
          _
        // Predicated region
        $region37: #{rnet_forward.1} parent=11 // pred_check
          %p453 = pneg %p200
        $region38: #{rnet_forward.1} parent=11 // pred_check_branch
          %455 = sbr.rel (%p453) target = $region40
        $region39: #{rnet_forward.1} parent=11 // pred_region
          _
        $region40: #{rnet_forward.1} parent=11 // pred_fallthru
          _
        // Predicated region
        $region41: #{rnet_forward.1} parent=11 // pred_check
          %p456 = pneg %p221
        $region42: #{rnet_forward.1} parent=11 // pred_check_branch
          %458 = sbr.rel (%p456) target = $region44
        $region43: #{rnet_forward.1} parent=11 // pred_region
          _
        $region44: #{rnet_forward.1} parent=11 // pred_fallthru
          _
        // Predicated region
        $region45: #{rnet_forward.1} parent=11 // pred_check
          %p459 = pneg %p242
        $region46: #{rnet_forward.1} parent=11 // pred_check_branch
          %461 = sbr.rel (%p459) target = $region48
        $region47: #{rnet_forward.1} parent=11 // pred_region
          _
        $region48: #{rnet_forward.1} parent=11 // pred_fallthru
          _
        // Predicated region
        $region49: #{rnet_forward.1} parent=11 // pred_check
          %p462 = pneg %p263
        $region50: #{rnet_forward.1} parent=11 // pred_check_branch
          %464 = sbr.rel (%p462) target = $region52
        $region51: #{rnet_forward.1} parent=11 // pred_region
          _
        $region52: #{rnet_forward.1} parent=11 // pred_fallthru
          _
        // Predicated region
        $region53: #{rnet_forward.1} parent=11 // pred_check
          %p465 = pneg %p284
        $region54: #{rnet_forward.1} parent=11 // pred_check_branch
          %467 = sbr.rel (%p465) target = $region56
        $region55: #{rnet_forward.1} parent=11 // pred_region
          _
        $region56: #{rnet_forward.1} parent=11 // pred_fallthru
          _
        // Predicated region
        $region57: #{rnet_forward.1} parent=11 // pred_check
          %p468 = pneg %p305
        $region58: #{rnet_forward.1} parent=11 // pred_check_branch
          %470 = sbr.rel (%p468) target = $region60
        $region59: #{rnet_forward.1} parent=11 // pred_region
          _
        $region60: #{rnet_forward.1} parent=11 // pred_fallthru
          _
        // Predicated region
        $region61: #{rnet_forward.1} parent=11 // pred_check
          %p471 = pneg %p326
        $region62: #{rnet_forward.1} parent=11 // pred_check_branch
          %473 = sbr.rel (%p471) target = $region64
        $region63: #{rnet_forward.1} parent=11 // pred_region
          _
        $region64: #{rnet_forward.1} parent=11 // pred_fallthru
          _
        // Predicated region
        $region65: #{rnet_forward.1} parent=11 // pred_check
          %p474 = pneg %p347
        $region66: #{rnet_forward.1} parent=11 // pred_check_branch
          %476 = sbr.rel (%p474) target = $region68
        $region67: #{rnet_forward.1} parent=11 // pred_region
          _
        $region68: #{rnet_forward.1} parent=11 // pred_fallthru
          _
        // Predicated region
        $region69: #{rnet_forward.1} parent=11 // pred_check
          %p477 = pneg %p368
        $region70: #{rnet_forward.1} parent=11 // pred_check_branch
          %479 = sbr.rel (%p477) target = $region72
        $region71: #{rnet_forward.1} parent=11 // pred_region
          _
        $region72: #{rnet_forward.1} parent=11 // pred_fallthru
          _
      $region12: #{rnet_forward.1} parent=5 // pred_fallthru
        _
      %p480 = scmp.lt.s32.totalorder %s27, 4
      // Predicated region
      $region73: #{rnet_forward.1} parent=5 // pred_check
        %p481 = pneg %p480
      $region74: #{rnet_forward.1} parent=5 // pred_check_branch
        %483 = sbr.rel (%p481) target = $region76
      $region75: #{rnet_forward.1} parent=5 // pred_region
        // Predicated region
        $region77: #{rnet_forward.1} parent=75 // pred_check
          %p484 = pneg %p47
        $region78: #{rnet_forward.1} parent=75 // pred_check_branch
          %486 = sbr.rel (%p484) target = $region80
        $region79: #{rnet_forward.1} parent=75 // pred_region
          %p487 = scmp.lt.s32.totalorder %s27, 3
          %s488 = scalar_select %p487, %s27, 3
          %s489 = smul.addr %s488, 73
          %s490 = smul.addr %s489, 8
          %s491 = scalar_lea.vmem %s0, %s490
        $region80: #{rnet_forward.1} parent=75 // pred_fallthru
          _
      $region76: #{rnet_forward.1} parent=5 // pred_fallthru
        _
      %p492 = scmp.le.s32.totalorder 1, %s27
      %p493 = scmp.lt.s32.totalorder %s27, 5
      %p494 = pnand %p492, %p493
      %p495 = pneg %p494
      // Predicated region
      $region81: #{rnet_forward.1} parent=5 // pred_check
        _
      $region82: #{rnet_forward.1} parent=5 // pred_check_branch
        %497 = sbr.rel (%p494) target = $region84
      $region83: #{rnet_forward.1} parent=5 // pred_region
        %s498 = ssub.s32 %s27, 1
        %p499 = scmp.lt.s32.totalorder %s32, 3
        %s500 = scalar_select %p499, %s32, 3
        %s501 = smul.addr %s500, 73
        %s502 = smul.addr %s501, 8
        %s503 = scalar_lea.vmem %s0, %s502
        %p504 = pneg %p53
        %p505 = pneg %p50
        %p506 = pneg %p74
        %p507 = pneg %p71
        %p508 = pneg %p95
        %p509 = pneg %p92
        %p510 = pneg %p116
        %p511 = pneg %p113
        %p512 = pneg %p137
        %p513 = pneg %p134
        %p514 = pneg %p158
        %p515 = pneg %p155
        %p516 = pneg %p179
        %p517 = pneg %p176
        %p518 = pneg %p200
        %p519 = pneg %p197
        %p520 = pneg %p221
        %p521 = pneg %p218
        %p522 = pneg %p242
        %p523 = pneg %p239
        %p524 = pneg %p263
        %p525 = pneg %p260
        %p526 = pneg %p284
        %p527 = pneg %p281
        %p528 = pneg %p305
        %p529 = pneg %p302
        %p530 = pneg %p326
        %p531 = pneg %p323
        %p532 = pneg %p347
        %p533 = pneg %p344
        %p534 = pneg %p368
        %p535 = pneg %p365
        %p536 = pneg %p394
        %p537 = pneg %p391
        %s538 = sand.u32 %s381, 1
        %s539 = scalar_lea.sflag [#allocation5], %s538
        %s540 = sand.u32 %s381, 1
        %s541 = scalar_lea.vmem [#allocation4], %s540
        %p542 = pneg %p420
        %p543 = pneg %p417
        %p544 = scmp.lt.s32.totalorder %s32, 3
        %s545 = scalar_select %p544, %s32, 3
        %s546 = scalar_lea.vmem %s17, %s545
        %p547 = scmp.lt.s32.totalorder %s32, 3
        %s548 = scalar_select %p547, %s32, 3
        %s549 = smul.addr %s548, 73
        %s550 = smul.addr %s549, 8
        %s551 = scalar_lea.vmem %s0, %s550
        %p552 = scmp.lt.s32.totalorder %s32, 3
        %s553 = scalar_select %p552, %s32, 3
        %s554 = scalar_lea.vmem %s17, %s553
        %v556 = vld [vmem:[%s551] sm:$0xff]
        %v557 = vld [vmem:[%s551 + $0x8] sm:$0xff]
        %v558 = vld [vmem:[%s551 + $0x10] sm:$0xff]
        %v559 = vld [vmem:[%s551 + $0x18] sm:$0xff]
        %v560 = vld [vmem:[%s551 + $0x20] sm:$0xff]
        %v561 = vld [vmem:[%s551 + $0x28] sm:$0xff]
        %v562 = vld [vmem:[%s551 + $0x30] sm:$0xff]
        %v563 = vld [vmem:[%s551 + $0x38] sm:$0xff]
        %v564 = vld [vmem:[%s551 + $0x40] sm:$0xff]
        %v565 = vld [vmem:[%s551 + $0x48] sm:$0xff]
        %v566 = vld [vmem:[%s551 + $0x50] sm:$0xff]
        %v567 = vld [vmem:[%s551 + $0x58] sm:$0xff]
        %v568 = vld [vmem:[%s551 + $0x60] sm:$0xff]
        %v569 = vld [vmem:[%s551 + $0x68] sm:$0xff]
        %v570 = vld [vmem:[%s551 + $0x70] sm:$0xff]
        %v571 = vld [vmem:[%s551 + $0x78] sm:$0xff]
        %v572 = vld [vmem:[%s551 + $0x80] sm:$0xff]
        %v573 = vld [vmem:[%s551 + $0x88] sm:$0xff]
        %v574 = vld [vmem:[%s551 + $0x90] sm:$0xff]
        %v575 = vld [vmem:[%s551 + $0x98] sm:$0xff]
        %v576 = vld [vmem:[%s551 + $0xa0] sm:$0xff]
        %v577 = vld [vmem:[%s551 + $0xa8] sm:$0xff]
        %v578 = vld [vmem:[%s551 + $0xb0] sm:$0xff]
        %v579 = vld [vmem:[%s551 + $0xb8] sm:$0xff]
        %v580 = vld [vmem:[%s551 + $0xc0] sm:$0xff]
        %v581 = vld [vmem:[%s551 + $0xc8] sm:$0xff]
        %v582 = vld [vmem:[%s551 + $0xd0] sm:$0xff]
        %v583 = vld [vmem:[%s551 + $0xd8] sm:$0xff]
        %v584 = vld [vmem:[%s551 + $0xe0] sm:$0xff]
        %v585 = vld [vmem:[%s551 + $0xe8] sm:$0xff]
        %v586 = vld [vmem:[%s551 + $0xf0] sm:$0xff]
        %v587 = vld [vmem:[%s551 + $0xf8] sm:$0xff]
        %v588 = vld [vmem:[%s551 + $0x100] sm:$0xff]
        %v589 = vld [vmem:[%s551 + $0x108] sm:$0xff]
        %v590 = vld [vmem:[%s551 + $0x110] sm:$0xff]
        %v591 = vld [vmem:[%s551 + $0x118] sm:$0xff]
        %v592 = vld [vmem:[%s551 + $0x120] sm:$0xff]
        %v593 = vld [vmem:[%s551 + $0x128] sm:$0xff]
        %v594 = vld [vmem:[%s551 + $0x130] sm:$0xff]
        %v595 = vld [vmem:[%s551 + $0x138] sm:$0xff]
        %v596 = vld [vmem:[%s551 + $0x140] sm:$0xff]
        %v597 = vld [vmem:[%s551 + $0x148] sm:$0xff]
        %v598 = vld [vmem:[%s551 + $0x150] sm:$0xff]
        %v599 = vld [vmem:[%s551 + $0x158] sm:$0xff]
        %v600 = vld [vmem:[%s551 + $0x160] sm:$0xff]
        %v601 = vld [vmem:[%s551 + $0x168] sm:$0xff]
        %v602 = vld [vmem:[%s551 + $0x170] sm:$0xff]
        %v603 = vld [vmem:[%s551 + $0x178] sm:$0xff]
        %v604 = vld [vmem:[%s551 + $0x180] sm:$0xff]
        %v605 = vld [vmem:[%s551 + $0x188] sm:$0xff]
        %v606 = vld [vmem:[%s551 + $0x190] sm:$0xff]
        %v607 = vld [vmem:[%s551 + $0x198] sm:$0xff]
        %v608 = vld [vmem:[%s551 + $0x1a0] sm:$0xff]
        %v609 = vld [vmem:[%s551 + $0x1a8] sm:$0xff]
        %v610 = vld [vmem:[%s551 + $0x1b0] sm:$0xff]
        %v611 = vld [vmem:[%s551 + $0x1b8] sm:$0xff]
        %v612 = vld [vmem:[%s551 + $0x1c0] sm:$0xff]
        %v613 = vld [vmem:[%s551 + $0x1c8] sm:$0xff]
        %v614 = vld [vmem:[%s551 + $0x1d0] sm:$0xff]
        %v615 = vld [vmem:[%s551 + $0x1d8] sm:$0xff]
        %v616 = vld [vmem:[%s551 + $0x1e0] sm:$0xff]
        %v617 = vld [vmem:[%s551 + $0x1e8] sm:$0xff]
        %v618 = vld [vmem:[%s551 + $0x1f0] sm:$0xff]
        %v619 = vld [vmem:[%s551 + $0x1f8] sm:$0xff]
        %v620 = vld [vmem:[%s551 + $0x200] sm:$0xff]
        %v621 = vld [vmem:[%s551 + $0x208] sm:$0xff]
        %v622 = vpack.c.bf16 %v557, %v556
        %v623 = vpack.c.bf16 %v559, %v558
        %v624 = vpack.c.bf16 %v561, %v560
        %v625 = vpack.c.bf16 %v563, %v562
        %v626 = vpack.c.bf16 %v565, %v564
        %v627 = vpack.c.bf16 %v567, %v566
        %v628 = vpack.c.bf16 %v569, %v568
        %v629 = vpack.c.bf16 %v571, %v570
        %v630 = vpack.c.bf16 %v573, %v572
        %v631 = vpack.c.bf16 %v575, %v574
        %v632 = vpack.c.bf16 %v577, %v576
        %v633 = vpack.c.bf16 %v579, %v578
        %v634 = vpack.c.bf16 %v581, %v580
        %v635 = vpack.c.bf16 %v583, %v582
        %v636 = vpack.c.bf16 %v585, %v584
        %v637 = vpack.c.bf16 %v587, %v586
        %v638 = vpack.c.bf16 %v589, %v588
        %v639 = vpack.c.bf16 %v591, %v590
        %v640 = vpack.c.bf16 %v593, %v592
        %v641 = vpack.c.bf16 %v595, %v594
        %v642 = vpack.c.bf16 %v597, %v596
        %v643 = vpack.c.bf16 %v599, %v598
        %v644 = vpack.c.bf16 %v601, %v600
        %v645 = vpack.c.bf16 %v603, %v602
        %v646 = vpack.c.bf16 %v605, %v604
        %v647 = vpack.c.bf16 %v607, %v606
        %v648 = vpack.c.bf16 %v609, %v608
        %v649 = vpack.c.bf16 %v611, %v610
        %v650 = vpack.c.bf16 %v613, %v612
        %v651 = vpack.c.bf16 %v615, %v614
        %v652 = vpack.c.bf16 %v617, %v616
        %v653 = vpack.c.bf16 %v619, %v618
        %v654 = vpack.c.bf16 %v621, %v620
        %v655 = vld [vmem:[%s2] sm:$0x3]
        %v656 = vld [vmem:[%s551 + $0x1] sm:$0xff]
        %v657 = vld [vmem:[%s551 + $0x9] sm:$0xff]
        %v658 = vld [vmem:[%s551 + $0x11] sm:$0xff]
        %v659 = vld [vmem:[%s551 + $0x19] sm:$0xff]
        %v660 = vld [vmem:[%s551 + $0x21] sm:$0xff]
        %v661 = vld [vmem:[%s551 + $0x29] sm:$0xff]
        %v662 = vld [vmem:[%s551 + $0x31] sm:$0xff]
        %v663 = vld [vmem:[%s551 + $0x39] sm:$0xff]
        %v664 = vld [vmem:[%s551 + $0x41] sm:$0xff]
        %v665 = vld [vmem:[%s551 + $0x49] sm:$0xff]
        %v666 = vld [vmem:[%s551 + $0x51] sm:$0xff]
        %v667 = vld [vmem:[%s551 + $0x59] sm:$0xff]
        %v668 = vld [vmem:[%s551 + $0x61] sm:$0xff]
        %v669 = vld [vmem:[%s551 + $0x69] sm:$0xff]
        %v670 = vld [vmem:[%s551 + $0x71] sm:$0xff]
        %v671 = vld [vmem:[%s551 + $0x79] sm:$0xff]
        %v672 = vld [vmem:[%s551 + $0x81] sm:$0xff]
        %v673 = vld [vmem:[%s551 + $0x89] sm:$0xff]
        %v674 = vld [vmem:[%s551 + $0x91] sm:$0xff]
        %v675 = vld [vmem:[%s551 + $0x99] sm:$0xff]
        %v676 = vld [vmem:[%s551 + $0xa1] sm:$0xff]
        %v677 = vld [vmem:[%s551 + $0xa9] sm:$0xff]
        %v678 = vld [vmem:[%s551 + $0xb1] sm:$0xff]
        %v679 = vld [vmem:[%s551 + $0xb9] sm:$0xff]
        %v680 = vld [vmem:[%s551 + $0xc1] sm:$0xff]
        %v681 = vld [vmem:[%s551 + $0xc9] sm:$0xff]
        %v682 = vld [vmem:[%s551 + $0xd1] sm:$0xff]
        %v683 = vld [vmem:[%s551 + $0xd9] sm:$0xff]
        %v684 = vld [vmem:[%s551 + $0xe1] sm:$0xff]
        %v685 = vld [vmem:[%s551 + $0xe9] sm:$0xff]
        %v686 = vld [vmem:[%s551 + $0xf1] sm:$0xff]
        %v687 = vld [vmem:[%s551 + $0xf9] sm:$0xff]
        %v688 = vld [vmem:[%s551 + $0x101] sm:$0xff]
        %v689 = vld [vmem:[%s551 + $0x109] sm:$0xff]
        %v690 = vld [vmem:[%s551 + $0x111] sm:$0xff]
        %v691 = vld [vmem:[%s551 + $0x119] sm:$0xff]
        %v692 = vld [vmem:[%s551 + $0x121] sm:$0xff]
        %v693 = vld [vmem:[%s551 + $0x129] sm:$0xff]
        %v694 = vld [vmem:[%s551 + $0x131] sm:$0xff]
        %v695 = vld [vmem:[%s551 + $0x139] sm:$0xff]
        %v696 = vld [vmem:[%s551 + $0x141] sm:$0xff]
        %v697 = vld [vmem:[%s551 + $0x149] sm:$0xff]
        %v698 = vld [vmem:[%s551 + $0x151] sm:$0xff]
        %v699 = vld [vmem:[%s551 + $0x159] sm:$0xff]
        %v700 = vld [vmem:[%s551 + $0x161] sm:$0xff]
        %v701 = vld [vmem:[%s551 + $0x169] sm:$0xff]
        %v702 = vld [vmem:[%s551 + $0x171] sm:$0xff]
        %v703 = vld [vmem:[%s551 + $0x179] sm:$0xff]
        %v704 = vld [vmem:[%s551 + $0x181] sm:$0xff]
        %v705 = vld [vmem:[%s551 + $0x189] sm:$0xff]
        %v706 = vld [vmem:[%s551 + $0x191] sm:$0xff]
        %v707 = vld [vmem:[%s551 + $0x199] sm:$0xff]
        %v708 = vld [vmem:[%s551 + $0x1a1] sm:$0xff]
        %v709 = vld [vmem:[%s551 + $0x1a9] sm:$0xff]
        %v710 = vld [vmem:[%s551 + $0x1b1] sm:$0xff]
        %v711 = vld [vmem:[%s551 + $0x1b9] sm:$0xff]
        %v712 = vld [vmem:[%s551 + $0x1c1] sm:$0xff]
        %v713 = vld [vmem:[%s551 + $0x1c9] sm:$0xff]
        %v714 = vld [vmem:[%s551 + $0x1d1] sm:$0xff]
        %v715 = vld [vmem:[%s551 + $0x1d9] sm:$0xff]
        %v716 = vld [vmem:[%s551 + $0x1e1] sm:$0xff]
        %v717 = vld [vmem:[%s551 + $0x1e9] sm:$0xff]
        %v718 = vld [vmem:[%s551 + $0x1f1] sm:$0xff]
        %v719 = vld [vmem:[%s551 + $0x1f9] sm:$0xff]
        %v720 = vld [vmem:[%s551 + $0x201] sm:$0xff]
        %v721 = vld [vmem:[%s551 + $0x209] sm:$0xff]
        %v722 = vpack.c.bf16 %v657, %v656
        %v723 = vpack.c.bf16 %v659, %v658
        %v724 = vpack.c.bf16 %v661, %v660
        %v725 = vpack.c.bf16 %v663, %v662
        %v726 = vpack.c.bf16 %v665, %v664
        %v727 = vpack.c.bf16 %v667, %v666
        %v728 = vpack.c.bf16 %v669, %v668
        %v729 = vpack.c.bf16 %v671, %v670
        %v730 = vpack.c.bf16 %v673, %v672
        %v731 = vpack.c.bf16 %v675, %v674
        %v732 = vpack.c.bf16 %v677, %v676
        %v733 = vpack.c.bf16 %v679, %v678
        %v734 = vpack.c.bf16 %v681, %v680
        %v735 = vpack.c.bf16 %v683, %v682
        %v736 = vpack.c.bf16 %v685, %v684
        %v737 = vpack.c.bf16 %v687, %v686
        %v738 = vpack.c.bf16 %v689, %v688
        %v739 = vpack.c.bf16 %v691, %v690
        %v740 = vpack.c.bf16 %v693, %v692
        %v741 = vpack.c.bf16 %v695, %v694
        %v742 = vpack.c.bf16 %v697, %v696
        %v743 = vpack.c.bf16 %v699, %v698
        %v744 = vpack.c.bf16 %v701, %v700
        %v745 = vpack.c.bf16 %v703, %v702
        %v746 = vpack.c.bf16 %v705, %v704
        %v747 = vpack.c.bf16 %v707, %v706
        %v748 = vpack.c.bf16 %v709, %v708
        %v749 = vpack.c.bf16 %v711, %v710
        %v750 = vpack.c.bf16 %v713, %v712
        %v751 = vpack.c.bf16 %v715, %v714
        %v752 = vpack.c.bf16 %v717, %v716
        %v753 = vpack.c.bf16 %v719, %v718
        %v754 = vpack.c.bf16 %v721, %v720
        %s755 = scalar_lea.vmem %s2, 2
        %v756 = vld [vmem:[%s755] sm:$0x3]
        %vm757 = vcmask 23552
        %v759 = vsel %vm757, %v722, 0
        %v762 = vsel %vm757, %v723, 0
        %v765 = vsel %vm757, %v724, 0
        %v768 = vsel %vm757, %v725, 0
        %v771 = vsel %vm757, %v726, 0
        %v774 = vsel %vm757, %v727, 0
        %v777 = vsel %vm757, %v728, 0
        %v780 = vsel %vm757, %v729, 0
        %v783 = vsel %vm757, %v730, 0
        %v786 = vsel %vm757, %v731, 0
        %v789 = vsel %vm757, %v732, 0
        %v792 = vsel %vm757, %v733, 0
        %v795 = vsel %vm757, %v734, 0
        %v798 = vsel %vm757, %v735, 0
        %v801 = vsel %vm757, %v736, 0
        %v804 = vsel %vm757, %v737, 0
        %v807 = vsel %vm757, %v738, 0
        %v810 = vsel %vm757, %v739, 0
        %v813 = vsel %vm757, %v740, 0
        %v816 = vsel %vm757, %v741, 0
        %v819 = vsel %vm757, %v742, 0
        %v822 = vsel %vm757, %v743, 0
        %v825 = vsel %vm757, %v744, 0
        %v828 = vsel %vm757, %v745, 0
        %v831 = vsel %vm757, %v746, 0
        %v834 = vsel %vm757, %v747, 0
        %v837 = vsel %vm757, %v748, 0
        %v840 = vsel %vm757, %v749, 0
        %v843 = vsel %vm757, %v750, 0
        %v846 = vsel %vm757, %v751, 0
        %v849 = vsel %vm757, %v752, 0
        %v852 = vsel %vm757, %v753, 0
        %v855 = vsel %vm757, %v754, 0
        %vm857 = vcmask 1040384
        %vm858 = vcmask 1041408
        %v859 = vsel %vm857, 4294967295, 65535
        %v860 = vsel %vm858, %v859, 0
        %v862 = vand.u32 %v756, %v860
        %864 = vmatpush.bf16.msra.mxu0 0
        %865 = vmatpush.bf16.msra.mxu0 0
        %866 = vmatpush.bf16.msra.mxu0 0
        %867 = vmatpush.bf16.msra.mxu0 0
        %868 = vmatpush.bf16.msra.mxu0 0
        %869 = vmatpush.bf16.msra.mxu0 0
        %870 = vmatpush.bf16.msra.mxu0 0
        %871 = vmatpush.bf16.msra.mxu0 %v862
        %872 = vmatmul.bf16.gmra.mxu0 %v759
        %v873 = vpop.f32.mrf.mxu0
        %v874 = vadd.f32 0.0, %v873
        %v875 = vpop.f32.mrf.mxu0
        %v876 = vadd.f32 0.0, %v875
        %877 = vmatmul.bf16.gmra.mxu0 %v762
        %v878 = vpop.f32.mrf.mxu0
        %v879 = vadd.f32 0.0, %v878
        %v880 = vpop.f32.mrf.mxu0
        %v881 = vadd.f32 0.0, %v880
        %882 = vmatmul.bf16.gmra.mxu0 %v765
        %v883 = vpop.f32.mrf.mxu0
        %v884 = vadd.f32 0.0, %v883
        %v885 = vpop.f32.mrf.mxu0
        %v886 = vadd.f32 0.0, %v885
        %887 = vmatmul.bf16.gmra.mxu0 %v768
        %v888 = vpop.f32.mrf.mxu0
        %v889 = vadd.f32 0.0, %v888
        %v890 = vpop.f32.mrf.mxu0
        %v891 = vadd.f32 0.0, %v890
        %892 = vmatmul.bf16.gmra.mxu0 %v771
        %v893 = vpop.f32.mrf.mxu0
        %v894 = vadd.f32 0.0, %v893
        %v895 = vpop.f32.mrf.mxu0
        %v896 = vadd.f32 0.0, %v895
        %897 = vmatmul.bf16.gmra.mxu0 %v774
        %v898 = vpop.f32.mrf.mxu0
        %v899 = vadd.f32 0.0, %v898
        %v900 = vpop.f32.mrf.mxu0
        %v901 = vadd.f32 0.0, %v900
        %902 = vmatmul.bf16.gmra.mxu0 %v777
        %v903 = vpop.f32.mrf.mxu0
        %v904 = vadd.f32 0.0, %v903
        %v905 = vpop.f32.mrf.mxu0
        %v906 = vadd.f32 0.0, %v905
        %907 = vmatmul.bf16.gmra.mxu0 %v780
        %v908 = vpop.f32.mrf.mxu0
        %v909 = vadd.f32 0.0, %v908
        %v910 = vpop.f32.mrf.mxu0
        %v911 = vadd.f32 0.0, %v910
        %912 = vmatmul.bf16.gmra.mxu0 %v783
        %v913 = vpop.f32.mrf.mxu0
        %v914 = vadd.f32 0.0, %v913
        %v915 = vpop.f32.mrf.mxu0
        %v916 = vadd.f32 0.0, %v915
        %917 = vmatmul.bf16.gmra.mxu0 %v786
        %v918 = vpop.f32.mrf.mxu0
        %v919 = vadd.f32 0.0, %v918
        %v920 = vpop.f32.mrf.mxu0
        %v921 = vadd.f32 0.0, %v920
        %922 = vmatmul.bf16.gmra.mxu0 %v789
        %v923 = vpop.f32.mrf.mxu0
        %v924 = vadd.f32 0.0, %v923
        %v925 = vpop.f32.mrf.mxu0
        %v926 = vadd.f32 0.0, %v925
        %927 = vmatmul.bf16.gmra.mxu0 %v792
        %v928 = vpop.f32.mrf.mxu0
        %v929 = vadd.f32 0.0, %v928
        %v930 = vpop.f32.mrf.mxu0
        %v931 = vadd.f32 0.0, %v930
        %932 = vmatmul.bf16.gmra.mxu0 %v795
        %v933 = vpop.f32.mrf.mxu0
        %v934 = vadd.f32 0.0, %v933
        %v935 = vpop.f32.mrf.mxu0
        %v936 = vadd.f32 0.0, %v935
        %937 = vmatmul.bf16.gmra.mxu0 %v798
        %v938 = vpop.f32.mrf.mxu0
        %v939 = vadd.f32 0.0, %v938
        %v940 = vpop.f32.mrf.mxu0
        %v941 = vadd.f32 0.0, %v940
        %942 = vmatmul.bf16.gmra.mxu0 %v801
        %v943 = vpop.f32.mrf.mxu0
        %v944 = vadd.f32 0.0, %v943
        %v945 = vpop.f32.mrf.mxu0
        %v946 = vadd.f32 0.0, %v945
        %947 = vmatmul.bf16.gmra.mxu0 %v804
        %v948 = vpop.f32.mrf.mxu0
        %v949 = vadd.f32 0.0, %v948
        %v950 = vpop.f32.mrf.mxu0
        %v951 = vadd.f32 0.0, %v950
        %952 = vmatmul.bf16.gmra.mxu0 %v807
        %v953 = vpop.f32.mrf.mxu0
        %v954 = vadd.f32 0.0, %v953
        %v955 = vpop.f32.mrf.mxu0
        %v956 = vadd.f32 0.0, %v955
        %957 = vmatmul.bf16.gmra.mxu0 %v810
        %v958 = vpop.f32.mrf.mxu0
        %v959 = vadd.f32 0.0, %v958
        %v960 = vpop.f32.mrf.mxu0
        %v961 = vadd.f32 0.0, %v960
        %962 = vmatmul.bf16.gmra.mxu0 %v813
        %v963 = vpop.f32.mrf.mxu0
        %v964 = vadd.f32 0.0, %v963
        %v965 = vpop.f32.mrf.mxu0
        %v966 = vadd.f32 0.0, %v965
        %967 = vmatmul.bf16.gmra.mxu0 %v816
        %v968 = vpop.f32.mrf.mxu0
        %v969 = vadd.f32 0.0, %v968
        %v970 = vpop.f32.mrf.mxu0
        %v971 = vadd.f32 0.0, %v970
        %972 = vmatmul.bf16.gmra.mxu0 %v819
        %v973 = vpop.f32.mrf.mxu0
        %v974 = vadd.f32 0.0, %v973
        %v975 = vpop.f32.mrf.mxu0
        %v976 = vadd.f32 0.0, %v975
        %977 = vmatmul.bf16.gmra.mxu0 %v822
        %v978 = vpop.f32.mrf.mxu0
        %v979 = vadd.f32 0.0, %v978
        %v980 = vpop.f32.mrf.mxu0
        %v981 = vadd.f32 0.0, %v980
        %982 = vmatmul.bf16.gmra.mxu0 %v825
        %v983 = vpop.f32.mrf.mxu0
        %v984 = vadd.f32 0.0, %v983
        %v985 = vpop.f32.mrf.mxu0
        %v986 = vadd.f32 0.0, %v985
        %987 = vmatmul.bf16.gmra.mxu0 %v828
        %v988 = vpop.f32.mrf.mxu0
        %v989 = vadd.f32 0.0, %v988
        %v990 = vpop.f32.mrf.mxu0
        %v991 = vadd.f32 0.0, %v990
        %992 = vmatmul.bf16.gmra.mxu0 %v831
        %v993 = vpop.f32.mrf.mxu0
        %v994 = vadd.f32 0.0, %v993
        %v995 = vpop.f32.mrf.mxu0
        %v996 = vadd.f32 0.0, %v995
        %997 = vmatmul.bf16.gmra.mxu0 %v834
        %v998 = vpop.f32.mrf.mxu0
        %v999 = vadd.f32 0.0, %v998
        %v1000 = vpop.f32.mrf.mxu0
        %v1001 = vadd.f32 0.0, %v1000
        %1002 = vmatmul.bf16.gmra.mxu0 %v837
        %v1003 = vpop.f32.mrf.mxu0
        %v1004 = vadd.f32 0.0, %v1003
        %v1005 = vpop.f32.mrf.mxu0
        %v1006 = vadd.f32 0.0, %v1005
        %1007 = vmatmul.bf16.gmra.mxu0 %v840
        %v1008 = vpop.f32.mrf.mxu0
        %v1009 = vadd.f32 0.0, %v1008
        %v1010 = vpop.f32.mrf.mxu0
        %v1011 = vadd.f32 0.0, %v1010
        %1012 = vmatmul.bf16.gmra.mxu0 %v843
        %v1013 = vpop.f32.mrf.mxu0
        %v1014 = vadd.f32 0.0, %v1013
        %v1015 = vpop.f32.mrf.mxu0
        %v1016 = vadd.f32 0.0, %v1015
        %1017 = vmatmul.bf16.gmra.mxu0 %v846
        %v1018 = vpop.f32.mrf.mxu0
        %v1019 = vadd.f32 0.0, %v1018
        %v1020 = vpop.f32.mrf.mxu0
        %v1021 = vadd.f32 0.0, %v1020
        %1022 = vmatmul.bf16.gmra.mxu0 %v849
        %v1023 = vpop.f32.mrf.mxu0
        %v1024 = vadd.f32 0.0, %v1023
        %v1025 = vpop.f32.mrf.mxu0
        %v1026 = vadd.f32 0.0, %v1025
        %1027 = vmatmul.bf16.gmra.mxu0 %v852
        %v1028 = vpop.f32.mrf.mxu0
        %v1029 = vadd.f32 0.0, %v1028
        %v1030 = vpop.f32.mrf.mxu0
        %v1031 = vadd.f32 0.0, %v1030
        %1032 = vmatmul.bf16.gmra.mxu0 %v855
        %v1033 = vpop.f32.mrf.mxu0
        %v1034 = vadd.f32 0.0, %v1033
        %v1035 = vpop.f32.mrf.mxu0
        %v1036 = vadd.f32 0.0, %v1035
        %1037 = vdwg.mxu0
        %v1039 = vsel %vm757, %v622, 0
        %v1042 = vsel %vm757, %v623, 0
        %v1045 = vsel %vm757, %v624, 0
        %v1048 = vsel %vm757, %v625, 0
        %v1051 = vsel %vm757, %v626, 0
        %v1054 = vsel %vm757, %v627, 0
        %v1057 = vsel %vm757, %v628, 0
        %v1060 = vsel %vm757, %v629, 0
        %v1063 = vsel %vm757, %v630, 0
        %v1066 = vsel %vm757, %v631, 0
        %v1069 = vsel %vm757, %v632, 0
        %v1072 = vsel %vm757, %v633, 0
        %v1075 = vsel %vm757, %v634, 0
        %v1078 = vsel %vm757, %v635, 0
        %v1081 = vsel %vm757, %v636, 0
        %v1084 = vsel %vm757, %v637, 0
        %v1087 = vsel %vm757, %v638, 0
        %v1090 = vsel %vm757, %v639, 0
        %v1093 = vsel %vm757, %v640, 0
        %v1096 = vsel %vm757, %v641, 0
        %v1099 = vsel %vm757, %v642, 0
        %v1102 = vsel %vm757, %v643, 0
        %v1105 = vsel %vm757, %v644, 0
        %v1108 = vsel %vm757, %v645, 0
        %v1111 = vsel %vm757, %v646, 0
        %v1114 = vsel %vm757, %v647, 0
        %v1117 = vsel %vm757, %v648, 0
        %v1120 = vsel %vm757, %v649, 0
        %v1123 = vsel %vm757, %v650, 0
        %v1126 = vsel %vm757, %v651, 0
        %v1129 = vsel %vm757, %v652, 0
        %v1132 = vsel %vm757, %v653, 0
        %v1135 = vsel %vm757, %v654, 0
        %v1138 = vand.u32 %v655, %v860
        %1140 = vmatpush.bf16.msra.mxu0 0
        %1141 = vmatpush.bf16.msra.mxu0 0
        %1142 = vmatpush.bf16.msra.mxu0 0
        %1143 = vmatpush.bf16.msra.mxu0 0
        %1144 = vmatpush.bf16.msra.mxu0 0
        %1145 = vmatpush.bf16.msra.mxu0 0
        %1146 = vmatpush.bf16.msra.mxu0 0
        %1147 = vmatpush.bf16.msra.mxu0 %v1138
        %1148 = vmatmul.bf16.gmra.mxu0 %v1039
        %v1149 = vpop.f32.mrf.mxu0
        %v1150 = vadd.f32 %v874, %v1149
        %v1151 = vpop.f32.mrf.mxu0
        %v1152 = vadd.f32 %v876, %v1151
        %1153 = vmatmul.bf16.gmra.mxu0 %v1042
        %v1154 = vpop.f32.mrf.mxu0
        %v1155 = vadd.f32 %v879, %v1154
        %v1156 = vpop.f32.mrf.mxu0
        %v1157 = vadd.f32 %v881, %v1156
        %1158 = vmatmul.bf16.gmra.mxu0 %v1045
        %v1159 = vpop.f32.mrf.mxu0
        %v1160 = vadd.f32 %v884, %v1159
        %v1161 = vpop.f32.mrf.mxu0
        %v1162 = vadd.f32 %v886, %v1161
        %1163 = vmatmul.bf16.gmra.mxu0 %v1048
        %v1164 = vpop.f32.mrf.mxu0
        %v1165 = vadd.f32 %v889, %v1164
        %v1166 = vpop.f32.mrf.mxu0
        %v1167 = vadd.f32 %v891, %v1166
        %1168 = vmatmul.bf16.gmra.mxu0 %v1051
        %v1169 = vpop.f32.mrf.mxu0
        %v1170 = vadd.f32 %v894, %v1169
        %v1171 = vpop.f32.mrf.mxu0
        %v1172 = vadd.f32 %v896, %v1171
        %1173 = vmatmul.bf16.gmra.mxu0 %v1054
        %v1174 = vpop.f32.mrf.mxu0
        %v1175 = vadd.f32 %v899, %v1174
        %v1176 = vpop.f32.mrf.mxu0
        %v1177 = vadd.f32 %v901, %v1176
        %1178 = vmatmul.bf16.gmra.mxu0 %v1057
        %v1179 = vpop.f32.mrf.mxu0
        %v1180 = vadd.f32 %v904, %v1179
        %v1181 = vpop.f32.mrf.mxu0
        %v1182 = vadd.f32 %v906, %v1181
        %1183 = vmatmul.bf16.gmra.mxu0 %v1060
        %v1184 = vpop.f32.mrf.mxu0
        %v1185 = vadd.f32 %v909, %v1184
        %v1186 = vpop.f32.mrf.mxu0
        %v1187 = vadd.f32 %v911, %v1186
        %1188 = vmatmul.bf16.gmra.mxu0 %v1063
        %v1189 = vpop.f32.mrf.mxu0
        %v1190 = vadd.f32 %v914, %v1189
        %v1191 = vpop.f32.mrf.mxu0
        %v1192 = vadd.f32 %v916, %v1191
        %1193 = vmatmul.bf16.gmra.mxu0 %v1066
        %v1194 = vpop.f32.mrf.mxu0
        %v1195 = vadd.f32 %v919, %v1194
        %v1196 = vpop.f32.mrf.mxu0
        %v1197 = vadd.f32 %v921, %v1196
        %1198 = vmatmul.bf16.gmra.mxu0 %v1069
        %v1199 = vpop.f32.mrf.mxu0
        %v1200 = vadd.f32 %v924, %v1199
        %v1201 = vpop.f32.mrf.mxu0
        %v1202 = vadd.f32 %v926, %v1201
        %1203 = vmatmul.bf16.gmra.mxu0 %v1072
        %v1204 = vpop.f32.mrf.mxu0
        %v1205 = vadd.f32 %v929, %v1204
        %v1206 = vpop.f32.mrf.mxu0
        %v1207 = vadd.f32 %v931, %v1206
        %1208 = vmatmul.bf16.gmra.mxu0 %v1075
        %v1209 = vpop.f32.mrf.mxu0
        %v1210 = vadd.f32 %v934, %v1209
        %v1211 = vpop.f32.mrf.mxu0
        %v1212 = vadd.f32 %v936, %v1211
        %1213 = vmatmul.bf16.gmra.mxu0 %v1078
        %v1214 = vpop.f32.mrf.mxu0
        %v1215 = vadd.f32 %v939, %v1214
        %v1216 = vpop.f32.mrf.mxu0
        %v1217 = vadd.f32 %v941, %v1216
        %1218 = vmatmul.bf16.gmra.mxu0 %v1081
        %v1219 = vpop.f32.mrf.mxu0
        %v1220 = vadd.f32 %v944, %v1219
        %v1221 = vpop.f32.mrf.mxu0
        %v1222 = vadd.f32 %v946, %v1221
        %1223 = vmatmul.bf16.gmra.mxu0 %v1084
        %v1224 = vpop.f32.mrf.mxu0
        %v1225 = vadd.f32 %v949, %v1224
        %v1226 = vpop.f32.mrf.mxu0
        %v1227 = vadd.f32 %v951, %v1226
        %1228 = vmatmul.bf16.gmra.mxu0 %v1087
        %v1229 = vpop.f32.mrf.mxu0
        %v1230 = vadd.f32 %v954, %v1229
        %v1231 = vpop.f32.mrf.mxu0
        %v1232 = vadd.f32 %v956, %v1231
        %1233 = vmatmul.bf16.gmra.mxu0 %v1090
        %v1234 = vpop.f32.mrf.mxu0
        %v1235 = vadd.f32 %v959, %v1234
        %v1236 = vpop.f32.mrf.mxu0
        %v1237 = vadd.f32 %v961, %v1236
        %1238 = vmatmul.bf16.gmra.mxu0 %v1093
        %v1239 = vpop.f32.mrf.mxu0
        %v1240 = vadd.f32 %v964, %v1239
        %v1241 = vpop.f32.mrf.mxu0
        %v1242 = vadd.f32 %v966, %v1241
        %1243 = vmatmul.bf16.gmra.mxu0 %v1096
        %v1244 = vpop.f32.mrf.mxu0
        %v1245 = vadd.f32 %v969, %v1244
        %v1246 = vpop.f32.mrf.mxu0
        %v1247 = vadd.f32 %v971, %v1246
        %1248 = vmatmul.bf16.gmra.mxu0 %v1099
        %v1249 = vpop.f32.mrf.mxu0
        %v1250 = vadd.f32 %v974, %v1249
        %v1251 = vpop.f32.mrf.mxu0
        %v1252 = vadd.f32 %v976, %v1251
        %1253 = vmatmul.bf16.gmra.mxu0 %v1102
        %v1254 = vpop.f32.mrf.mxu0
        %v1255 = vadd.f32 %v979, %v1254
        %v1256 = vpop.f32.mrf.mxu0
        %v1257 = vadd.f32 %v981, %v1256
        %1258 = vmatmul.bf16.gmra.mxu0 %v1105
        %v1259 = vpop.f32.mrf.mxu0
        %v1260 = vadd.f32 %v984, %v1259
        %v1261 = vpop.f32.mrf.mxu0
        %v1262 = vadd.f32 %v986, %v1261
        %1263 = vmatmul.bf16.gmra.mxu0 %v1108
        %v1264 = vpop.f32.mrf.mxu0
        %v1265 = vadd.f32 %v989, %v1264
        %v1266 = vpop.f32.mrf.mxu0
        %v1267 = vadd.f32 %v991, %v1266
        %1268 = vmatmul.bf16.gmra.mxu0 %v1111
        %v1269 = vpop.f32.mrf.mxu0
        %v1270 = vadd.f32 %v994, %v1269
        %v1271 = vpop.f32.mrf.mxu0
        %v1272 = vadd.f32 %v996, %v1271
        %1273 = vmatmul.bf16.gmra.mxu0 %v1114
        %v1274 = vpop.f32.mrf.mxu0
        %v1275 = vadd.f32 %v999, %v1274
        %v1276 = vpop.f32.mrf.mxu0
        %v1277 = vadd.f32 %v1001, %v1276
        %1278 = vmatmul.bf16.gmra.mxu0 %v1117
        %v1279 = vpop.f32.mrf.mxu0
        %v1280 = vadd.f32 %v1004, %v1279
        %v1281 = vpop.f32.mrf.mxu0
        %v1282 = vadd.f32 %v1006, %v1281
        %1283 = vmatmul.bf16.gmra.mxu0 %v1120
        %v1284 = vpop.f32.mrf.mxu0
        %v1285 = vadd.f32 %v1009, %v1284
        %v1286 = vpop.f32.mrf.mxu0
        %v1287 = vadd.f32 %v1011, %v1286
        %1288 = vmatmul.bf16.gmra.mxu0 %v1123
        %v1289 = vpop.f32.mrf.mxu0
        %v1290 = vadd.f32 %v1014, %v1289
        %v1291 = vpop.f32.mrf.mxu0
        %v1292 = vadd.f32 %v1016, %v1291
        %1293 = vmatmul.bf16.gmra.mxu0 %v1126
        %v1294 = vpop.f32.mrf.mxu0
        %v1295 = vadd.f32 %v1019, %v1294
        %v1296 = vpop.f32.mrf.mxu0
        %v1297 = vadd.f32 %v1021, %v1296
        %1298 = vmatmul.bf16.gmra.mxu0 %v1129
        %v1299 = vpop.f32.mrf.mxu0
        %v1300 = vadd.f32 %v1024, %v1299
        %v1301 = vpop.f32.mrf.mxu0
        %v1302 = vadd.f32 %v1026, %v1301
        %1303 = vmatmul.bf16.gmra.mxu0 %v1132
        %v1304 = vpop.f32.mrf.mxu0
        %v1305 = vadd.f32 %v1029, %v1304
        %v1306 = vpop.f32.mrf.mxu0
        %v1307 = vadd.f32 %v1031, %v1306
        %1308 = vmatmul.bf16.gmra.mxu0 %v1135
        %v1309 = vpop.f32.mrf.mxu0
        %v1310 = vadd.f32 %v1034, %v1309
        %v1311 = vpop.f32.mrf.mxu0
        %v1312 = vadd.f32 %v1036, %v1311
        %1313 = vdwg.mxu0
        %v1314 = vld [vmem:[%s551 + $0x2] sm:$0xff]
        %v1315 = vld [vmem:[%s551 + $0xa] sm:$0xff]
        %v1316 = vld [vmem:[%s551 + $0x12] sm:$0xff]
        %v1317 = vld [vmem:[%s551 + $0x1a] sm:$0xff]
        %v1318 = vld [vmem:[%s551 + $0x22] sm:$0xff]
        %v1319 = vld [vmem:[%s551 + $0x2a] sm:$0xff]
        %v1320 = vld [vmem:[%s551 + $0x32] sm:$0xff]
        %v1321 = vld [vmem:[%s551 + $0x3a] sm:$0xff]
        %v1322 = vld [vmem:[%s551 + $0x42] sm:$0xff]
        %v1323 = vld [vmem:[%s551 + $0x4a] sm:$0xff]
        %v1324 = vld [vmem:[%s551 + $0x52] sm:$0xff]
        %v1325 = vld [vmem:[%s551 + $0x5a] sm:$0xff]
        %v1326 = vld [vmem:[%s551 + $0x62] sm:$0xff]
        %v1327 = vld [vmem:[%s551 + $0x6a] sm:$0xff]
        %v1328 = vld [vmem:[%s551 + $0x72] sm:$0xff]
        %v1329 = vld [vmem:[%s551 + $0x7a] sm:$0xff]
        %v1330 = vld [vmem:[%s551 + $0x82] sm:$0xff]
        %v1331 = vld [vmem:[%s551 + $0x8a] sm:$0xff]
        %v1332 = vld [vmem:[%s551 + $0x92] sm:$0xff]
        %v1333 = vld [vmem:[%s551 + $0x9a] sm:$0xff]
        %v1334 = vld [vmem:[%s551 + $0xa2] sm:$0xff]
        %v1335 = vld [vmem:[%s551 + $0xaa] sm:$0xff]
        %v1336 = vld [vmem:[%s551 + $0xb2] sm:$0xff]
        %v1337 = vld [vmem:[%s551 + $0xba] sm:$0xff]
        %v1338 = vld [vmem:[%s551 + $0xc2] sm:$0xff]
        %v1339 = vld [vmem:[%s551 + $0xca] sm:$0xff]
        %v1340 = vld [vmem:[%s551 + $0xd2] sm:$0xff]
        %v1341 = vld [vmem:[%s551 + $0xda] sm:$0xff]
        %v1342 = vld [vmem:[%s551 + $0xe2] sm:$0xff]
        %v1343 = vld [vmem:[%s551 + $0xea] sm:$0xff]
        %v1344 = vld [vmem:[%s551 + $0xf2] sm:$0xff]
        %v1345 = vld [vmem:[%s551 + $0xfa] sm:$0xff]
        %v1346 = vld [vmem:[%s551 + $0x102] sm:$0xff]
        %v1347 = vld [vmem:[%s551 + $0x10a] sm:$0xff]
        %v1348 = vld [vmem:[%s551 + $0x112] sm:$0xff]
        %v1349 = vld [vmem:[%s551 + $0x11a] sm:$0xff]
        %v1350 = vld [vmem:[%s551 + $0x122] sm:$0xff]
        %v1351 = vld [vmem:[%s551 + $0x12a] sm:$0xff]
        %v1352 = vld [vmem:[%s551 + $0x132] sm:$0xff]
        %v1353 = vld [vmem:[%s551 + $0x13a] sm:$0xff]
        %v1354 = vld [vmem:[%s551 + $0x142] sm:$0xff]
        %v1355 = vld [vmem:[%s551 + $0x14a] sm:$0xff]
        %v1356 = vld [vmem:[%s551 + $0x152] sm:$0xff]
        %v1357 = vld [vmem:[%s551 + $0x15a] sm:$0xff]
        %v1358 = vld [vmem:[%s551 + $0x162] sm:$0xff]
        %v1359 = vld [vmem:[%s551 + $0x16a] sm:$0xff]
        %v1360 = vld [vmem:[%s551 + $0x172] sm:$0xff]
        %v1361 = vld [vmem:[%s551 + $0x17a] sm:$0xff]
        %v1362 = vld [vmem:[%s551 + $0x182] sm:$0xff]
        %v1363 = vld [vmem:[%s551 + $0x18a] sm:$0xff]
        %v1364 = vld [vmem:[%s551 + $0x192] sm:$0xff]
        %v1365 = vld [vmem:[%s551 + $0x19a] sm:$0xff]
        %v1366 = vld [vmem:[%s551 + $0x1a2] sm:$0xff]
        %v1367 = vld [vmem:[%s551 + $0x1aa] sm:$0xff]
        %v1368 = vld [vmem:[%s551 + $0x1b2] sm:$0xff]
        %v1369 = vld [vmem:[%s551 + $0x1ba] sm:$0xff]
        %v1370 = vld [vmem:[%s551 + $0x1c2] sm:$0xff]
        %v1371 = vld [vmem:[%s551 + $0x1ca] sm:$0xff]
        %v1372 = vld [vmem:[%s551 + $0x1d2] sm:$0xff]
        %v1373 = vld [vmem:[%s551 + $0x1da] sm:$0xff]
        %v1374 = vld [vmem:[%s551 + $0x1e2] sm:$0xff]
        %v1375 = vld [vmem:[%s551 + $0x1ea] sm:$0xff]
        %v1376 = vld [vmem:[%s551 + $0x1f2] sm:$0xff]
        %v1377 = vld [vmem:[%s551 + $0x1fa] sm:$0xff]
        %v1378 = vld [vmem:[%s551 + $0x202] sm:$0xff]
        %v1379 = vld [vmem:[%s551 + $0x20a] sm:$0xff]
        %v1380 = vpack.c.bf16 %v1315, %v1314
        %v1381 = vpack.c.bf16 %v1317, %v1316
        %v1382 = vpack.c.bf16 %v1319, %v1318
        %v1383 = vpack.c.bf16 %v1321, %v1320
        %v1384 = vpack.c.bf16 %v1323, %v1322
        %v1385 = vpack.c.bf16 %v1325, %v1324
        %v1386 = vpack.c.bf16 %v1327, %v1326
        %v1387 = vpack.c.bf16 %v1329, %v1328
        %v1388 = vpack.c.bf16 %v1331, %v1330
        %v1389 = vpack.c.bf16 %v1333, %v1332
        %v1390 = vpack.c.bf16 %v1335, %v1334
        %v1391 = vpack.c.bf16 %v1337, %v1336
        %v1392 = vpack.c.bf16 %v1339, %v1338
        %v1393 = vpack.c.bf16 %v1341, %v1340
        %v1394 = vpack.c.bf16 %v1343, %v1342
        %v1395 = vpack.c.bf16 %v1345, %v1344
        %v1396 = vpack.c.bf16 %v1347, %v1346
        %v1397 = vpack.c.bf16 %v1349, %v1348
        %v1398 = vpack.c.bf16 %v1351, %v1350
        %v1399 = vpack.c.bf16 %v1353, %v1352
        %v1400 = vpack.c.bf16 %v1355, %v1354
        %v1401 = vpack.c.bf16 %v1357, %v1356
        %v1402 = vpack.c.bf16 %v1359, %v1358
        %v1403 = vpack.c.bf16 %v1361, %v1360
        %v1404 = vpack.c.bf16 %v1363, %v1362
        %v1405 = vpack.c.bf16 %v1365, %v1364
        %v1406 = vpack.c.bf16 %v1367, %v1366
        %v1407 = vpack.c.bf16 %v1369, %v1368
        %v1408 = vpack.c.bf16 %v1371, %v1370
        %v1409 = vpack.c.bf16 %v1373, %v1372
        %v1410 = vpack.c.bf16 %v1375, %v1374
        %v1411 = vpack.c.bf16 %v1377, %v1376
        %v1412 = vpack.c.bf16 %v1379, %v1378
        %s1413 = scalar_lea.vmem %s2, 4
        %v1414 = vld [vmem:[%s1413] sm:$0x3]
        %v1416 = vsel %vm757, %v1380, 0
        %v1419 = vsel %vm757, %v1381, 0
        %v1422 = vsel %vm757, %v1382, 0
        %v1425 = vsel %vm757, %v1383, 0
        %v1428 = vsel %vm757, %v1384, 0
        %v1431 = vsel %vm757, %v1385, 0
        %v1434 = vsel %vm757, %v1386, 0
        %v1437 = vsel %vm757, %v1387, 0
        %v1440 = vsel %vm757, %v1388, 0
        %v1443 = vsel %vm757, %v1389, 0
        %v1446 = vsel %vm757, %v1390, 0
        %v1449 = vsel %vm757, %v1391, 0
        %v1452 = vsel %vm757, %v1392, 0
        %v1455 = vsel %vm757, %v1393, 0
        %v1458 = vsel %vm757, %v1394, 0
        %v1461 = vsel %vm757, %v1395, 0
        %v1464 = vsel %vm757, %v1396, 0
        %v1467 = vsel %vm757, %v1397, 0
        %v1470 = vsel %vm757, %v1398, 0
        %v1473 = vsel %vm757, %v1399, 0
        %v1476 = vsel %vm757, %v1400, 0
        %v1479 = vsel %vm757, %v1401, 0
        %v1482 = vsel %vm757, %v1402, 0
        %v1485 = vsel %vm757, %v1403, 0
        %v1488 = vsel %vm757, %v1404, 0
        %v1491 = vsel %vm757, %v1405, 0
        %v1494 = vsel %vm757, %v1406, 0
        %v1497 = vsel %vm757, %v1407, 0
        %v1500 = vsel %vm757, %v1408, 0
        %v1503 = vsel %vm757, %v1409, 0
        %v1506 = vsel %vm757, %v1410, 0
        %v1509 = vsel %vm757, %v1411, 0
        %v1512 = vsel %vm757, %v1412, 0
        %v1515 = vand.u32 %v1414, %v860
        %1517 = vmatpush.bf16.msra.mxu0 0
        %1518 = vmatpush.bf16.msra.mxu0 0
        %1519 = vmatpush.bf16.msra.mxu0 0
        %1520 = vmatpush.bf16.msra.mxu0 0
        %1521 = vmatpush.bf16.msra.mxu0 0
        %1522 = vmatpush.bf16.msra.mxu0 0
        %1523 = vmatpush.bf16.msra.mxu0 0
        %1524 = vmatpush.bf16.msra.mxu0 %v1515
        %1525 = vmatmul.bf16.gmra.mxu0 %v1416
        %v1526 = vpop.f32.mrf.mxu0
        %v1527 = vadd.f32 0.0, %v1526
        %v1528 = vpop.f32.mrf.mxu0
        %v1529 = vadd.f32 0.0, %v1528
        %1530 = vmatmul.bf16.gmra.mxu0 %v1419
        %v1531 = vpop.f32.mrf.mxu0
        %v1532 = vadd.f32 0.0, %v1531
        %v1533 = vpop.f32.mrf.mxu0
        %v1534 = vadd.f32 0.0, %v1533
        %1535 = vmatmul.bf16.gmra.mxu0 %v1422
        %v1536 = vpop.f32.mrf.mxu0
        %v1537 = vadd.f32 0.0, %v1536
        %v1538 = vpop.f32.mrf.mxu0
        %v1539 = vadd.f32 0.0, %v1538
        %1540 = vmatmul.bf16.gmra.mxu0 %v1425
        %v1541 = vpop.f32.mrf.mxu0
        %v1542 = vadd.f32 0.0, %v1541
        %v1543 = vpop.f32.mrf.mxu0
        %v1544 = vadd.f32 0.0, %v1543
        %1545 = vmatmul.bf16.gmra.mxu0 %v1428
        %v1546 = vpop.f32.mrf.mxu0
        %v1547 = vadd.f32 0.0, %v1546
        %v1548 = vpop.f32.mrf.mxu0
        %v1549 = vadd.f32 0.0, %v1548
        %1550 = vmatmul.bf16.gmra.mxu0 %v1431
        %v1551 = vpop.f32.mrf.mxu0
        %v1552 = vadd.f32 0.0, %v1551
        %v1553 = vpop.f32.mrf.mxu0
        %v1554 = vadd.f32 0.0, %v1553
        %1555 = vmatmul.bf16.gmra.mxu0 %v1434
        %v1556 = vpop.f32.mrf.mxu0
        %v1557 = vadd.f32 0.0, %v1556
        %v1558 = vpop.f32.mrf.mxu0
        %v1559 = vadd.f32 0.0, %v1558
        %1560 = vmatmul.bf16.gmra.mxu0 %v1437
        %v1561 = vpop.f32.mrf.mxu0
        %v1562 = vadd.f32 0.0, %v1561
        %v1563 = vpop.f32.mrf.mxu0
        %v1564 = vadd.f32 0.0, %v1563
        %1565 = vmatmul.bf16.gmra.mxu0 %v1440
        %v1566 = vpop.f32.mrf.mxu0
        %v1567 = vadd.f32 0.0, %v1566
        %v1568 = vpop.f32.mrf.mxu0
        %v1569 = vadd.f32 0.0, %v1568
        %1570 = vmatmul.bf16.gmra.mxu0 %v1443
        %v1571 = vpop.f32.mrf.mxu0
        %v1572 = vadd.f32 0.0, %v1571
        %v1573 = vpop.f32.mrf.mxu0
        %v1574 = vadd.f32 0.0, %v1573
        %1575 = vmatmul.bf16.gmra.mxu0 %v1446
        %v1576 = vpop.f32.mrf.mxu0
        %v1577 = vadd.f32 0.0, %v1576
        %v1578 = vpop.f32.mrf.mxu0
        %v1579 = vadd.f32 0.0, %v1578
        %1580 = vmatmul.bf16.gmra.mxu0 %v1449
        %v1581 = vpop.f32.mrf.mxu0
        %v1582 = vadd.f32 0.0, %v1581
        %v1583 = vpop.f32.mrf.mxu0
        %v1584 = vadd.f32 0.0, %v1583
        %1585 = vmatmul.bf16.gmra.mxu0 %v1452
        %v1586 = vpop.f32.mrf.mxu0
        %v1587 = vadd.f32 0.0, %v1586
        %v1588 = vpop.f32.mrf.mxu0
        %v1589 = vadd.f32 0.0, %v1588
        %1590 = vmatmul.bf16.gmra.mxu0 %v1455
        %v1591 = vpop.f32.mrf.mxu0
        %v1592 = vadd.f32 0.0, %v1591
        %v1593 = vpop.f32.mrf.mxu0
        %v1594 = vadd.f32 0.0, %v1593
        %1595 = vmatmul.bf16.gmra.mxu0 %v1458
        %v1596 = vpop.f32.mrf.mxu0
        %v1597 = vadd.f32 0.0, %v1596
        %v1598 = vpop.f32.mrf.mxu0
        %v1599 = vadd.f32 0.0, %v1598
        %1600 = vmatmul.bf16.gmra.mxu0 %v1461
        %v1601 = vpop.f32.mrf.mxu0
        %v1602 = vadd.f32 0.0, %v1601
        %v1603 = vpop.f32.mrf.mxu0
        %v1604 = vadd.f32 0.0, %v1603
        %1605 = vmatmul.bf16.gmra.mxu0 %v1464
        %v1606 = vpop.f32.mrf.mxu0
        %v1607 = vadd.f32 0.0, %v1606
        %v1608 = vpop.f32.mrf.mxu0
        %v1609 = vadd.f32 0.0, %v1608
        %1610 = vmatmul.bf16.gmra.mxu0 %v1467
        %v1611 = vpop.f32.mrf.mxu0
        %v1612 = vadd.f32 0.0, %v1611
        %v1613 = vpop.f32.mrf.mxu0
        %v1614 = vadd.f32 0.0, %v1613
        %1615 = vmatmul.bf16.gmra.mxu0 %v1470
        %v1616 = vpop.f32.mrf.mxu0
        %v1617 = vadd.f32 0.0, %v1616
        %v1618 = vpop.f32.mrf.mxu0
        %v1619 = vadd.f32 0.0, %v1618
        %1620 = vmatmul.bf16.gmra.mxu0 %v1473
        %v1621 = vpop.f32.mrf.mxu0
        %v1622 = vadd.f32 0.0, %v1621
        %v1623 = vpop.f32.mrf.mxu0
        %v1624 = vadd.f32 0.0, %v1623
        %1625 = vmatmul.bf16.gmra.mxu0 %v1476
        %v1626 = vpop.f32.mrf.mxu0
        %v1627 = vadd.f32 0.0, %v1626
        %v1628 = vpop.f32.mrf.mxu0
        %v1629 = vadd.f32 0.0, %v1628
        %1630 = vmatmul.bf16.gmra.mxu0 %v1479
        %v1631 = vpop.f32.mrf.mxu0
        %v1632 = vadd.f32 0.0, %v1631
        %v1633 = vpop.f32.mrf.mxu0
        %v1634 = vadd.f32 0.0, %v1633
        %1635 = vmatmul.bf16.gmra.mxu0 %v1482
        %v1636 = vpop.f32.mrf.mxu0
        %v1637 = vadd.f32 0.0, %v1636
        %v1638 = vpop.f32.mrf.mxu0
        %v1639 = vadd.f32 0.0, %v1638
        %1640 = vmatmul.bf16.gmra.mxu0 %v1485
        %v1641 = vpop.f32.mrf.mxu0
        %v1642 = vadd.f32 0.0, %v1641
        %v1643 = vpop.f32.mrf.mxu0
        %v1644 = vadd.f32 0.0, %v1643
        %1645 = vmatmul.bf16.gmra.mxu0 %v1488
        %v1646 = vpop.f32.mrf.mxu0
        %v1647 = vadd.f32 0.0, %v1646
        %v1648 = vpop.f32.mrf.mxu0
        %v1649 = vadd.f32 0.0, %v1648
        %1650 = vmatmul.bf16.gmra.mxu0 %v1491
        %v1651 = vpop.f32.mrf.mxu0
        %v1652 = vadd.f32 0.0, %v1651
        %v1653 = vpop.f32.mrf.mxu0
        %v1654 = vadd.f32 0.0, %v1653
        %1655 = vmatmul.bf16.gmra.mxu0 %v1494
        %v1656 = vpop.f32.mrf.mxu0
        %v1657 = vadd.f32 0.0, %v1656
        %v1658 = vpop.f32.mrf.mxu0
        %v1659 = vadd.f32 0.0, %v1658
        %1660 = vmatmul.bf16.gmra.mxu0 %v1497
        %v1661 = vpop.f32.mrf.mxu0
        %v1662 = vadd.f32 0.0, %v1661
        %v1663 = vpop.f32.mrf.mxu0
        %v1664 = vadd.f32 0.0, %v1663
        %1665 = vmatmul.bf16.gmra.mxu0 %v1500
        %v1666 = vpop.f32.mrf.mxu0
        %v1667 = vadd.f32 0.0, %v1666
        %v1668 = vpop.f32.mrf.mxu0
        %v1669 = vadd.f32 0.0, %v1668
        %1670 = vmatmul.bf16.gmra.mxu0 %v1503
        %v1671 = vpop.f32.mrf.mxu0
        %v1672 = vadd.f32 0.0, %v1671
        %v1673 = vpop.f32.mrf.mxu0
        %v1674 = vadd.f32 0.0, %v1673
        %1675 = vmatmul.bf16.gmra.mxu0 %v1506
        %v1676 = vpop.f32.mrf.mxu0
        %v1677 = vadd.f32 0.0, %v1676
        %v1678 = vpop.f32.mrf.mxu0
        %v1679 = vadd.f32 0.0, %v1678
        %1680 = vmatmul.bf16.gmra.mxu0 %v1509
        %v1681 = vpop.f32.mrf.mxu0
        %v1682 = vadd.f32 0.0, %v1681
        %v1683 = vpop.f32.mrf.mxu0
        %v1684 = vadd.f32 0.0, %v1683
        %1685 = vmatmul.bf16.gmra.mxu0 %v1512
        %v1686 = vpop.f32.mrf.mxu0
        %v1687 = vadd.f32 0.0, %v1686
        %v1688 = vpop.f32.mrf.mxu0
        %v1689 = vadd.f32 0.0, %v1688
        %1690 = vdwg.mxu0
        %v1691 = vadd.f32 %v1150, %v1527
        %v1692 = vadd.f32 %v1152, %v1529
        %v1693 = vadd.f32 %v1155, %v1532
        %v1694 = vadd.f32 %v1157, %v1534
        %v1695 = vadd.f32 %v1160, %v1537
        %v1696 = vadd.f32 %v1162, %v1539
        %v1697 = vadd.f32 %v1165, %v1542
        %v1698 = vadd.f32 %v1167, %v1544
        %v1699 = vadd.f32 %v1170, %v1547
        %v1700 = vadd.f32 %v1172, %v1549
        %v1701 = vadd.f32 %v1175, %v1552
        %v1702 = vadd.f32 %v1177, %v1554
        %v1703 = vadd.f32 %v1180, %v1557
        %v1704 = vadd.f32 %v1182, %v1559
        %v1705 = vadd.f32 %v1185, %v1562
        %v1706 = vadd.f32 %v1187, %v1564
        %v1707 = vadd.f32 %v1190, %v1567
        %v1708 = vadd.f32 %v1192, %v1569
        %v1709 = vadd.f32 %v1195, %v1572
        %v1710 = vadd.f32 %v1197, %v1574
        %v1711 = vadd.f32 %v1200, %v1577
        %v1712 = vadd.f32 %v1202, %v1579
        %v1713 = vadd.f32 %v1205, %v1582
        %v1714 = vadd.f32 %v1207, %v1584
        %v1715 = vadd.f32 %v1210, %v1587
        %v1716 = vadd.f32 %v1212, %v1589
        %v1717 = vadd.f32 %v1215, %v1592
        %v1718 = vadd.f32 %v1217, %v1594
        %v1719 = vadd.f32 %v1220, %v1597
        %v1720 = vadd.f32 %v1222, %v1599
        %v1721 = vadd.f32 %v1225, %v1602
        %v1722 = vadd.f32 %v1227, %v1604
        %v1723 = vadd.f32 %v1230, %v1607
        %v1724 = vadd.f32 %v1232, %v1609
        %v1725 = vadd.f32 %v1235, %v1612
        %v1726 = vadd.f32 %v1237, %v1614
        %v1727 = vadd.f32 %v1240, %v1617
        %v1728 = vadd.f32 %v1242, %v1619
        %v1729 = vadd.f32 %v1245, %v1622
        %v1730 = vadd.f32 %v1247, %v1624
        %v1731 = vadd.f32 %v1250, %v1627
        %v1732 = vadd.f32 %v1252, %v1629
        %v1733 = vadd.f32 %v1255, %v1632
        %v1734 = vadd.f32 %v1257, %v1634
        %v1735 = vadd.f32 %v1260, %v1637
        %v1736 = vadd.f32 %v1262, %v1639
        %v1737 = vadd.f32 %v1265, %v1642
        %v1738 = vadd.f32 %v1267, %v1644
        %v1739 = vadd.f32 %v1270, %v1647
        %v1740 = vadd.f32 %v1272, %v1649
        %v1741 = vadd.f32 %v1275, %v1652
        %v1742 = vadd.f32 %v1277, %v1654
        %v1743 = vadd.f32 %v1280, %v1657
        %v1744 = vadd.f32 %v1282, %v1659
        %v1745 = vadd.f32 %v1285, %v1662
        %v1746 = vadd.f32 %v1287, %v1664
        %v1747 = vadd.f32 %v1290, %v1667
        %v1748 = vadd.f32 %v1292, %v1669
        %v1749 = vadd.f32 %v1295, %v1672
        %v1750 = vadd.f32 %v1297, %v1674
        %v1751 = vadd.f32 %v1300, %v1677
        %v1752 = vadd.f32 %v1302, %v1679
        %v1753 = vadd.f32 %v1305, %v1682
        %v1754 = vadd.f32 %v1307, %v1684
        %v1755 = vadd.f32 %v1310, %v1687
        %v1756 = vadd.f32 %v1312, %v1689
        %v1757 = vld [vmem:[%s551 + $0x18] sm:$0xff]
        %v1758 = vld [vmem:[%s551 + $0x20] sm:$0xff]
        %v1759 = vld [vmem:[%s551 + $0x28] sm:$0xff]
        %v1760 = vld [vmem:[%s551 + $0x30] sm:$0xff]
        %v1761 = vld [vmem:[%s551 + $0x38] sm:$0xff]
        %v1762 = vld [vmem:[%s551 + $0x40] sm:$0xff]
        %v1763 = vld [vmem:[%s551 + $0x48] sm:$0xff]
        %v1764 = vld [vmem:[%s551 + $0x50] sm:$0xff]
        %v1765 = vld [vmem:[%s551 + $0x58] sm:$0xff]
        %v1766 = vld [vmem:[%s551 + $0x60] sm:$0xff]
        %v1767 = vld [vmem:[%s551 + $0x68] sm:$0xff]
        %v1768 = vld [vmem:[%s551 + $0x70] sm:$0xff]
        %v1769 = vld [vmem:[%s551 + $0x78] sm:$0xff]
        %v1770 = vld [vmem:[%s551 + $0x80] sm:$0xff]
        %v1771 = vld [vmem:[%s551 + $0x88] sm:$0xff]
        %v1772 = vld [vmem:[%s551 + $0x90] sm:$0xff]
        %v1773 = vld [vmem:[%s551 + $0x98] sm:$0xff]
        %v1774 = vld [vmem:[%s551 + $0xa0] sm:$0xff]
        %v1775 = vld [vmem:[%s551 + $0xa8] sm:$0xff]
        %v1776 = vld [vmem:[%s551 + $0xb0] sm:$0xff]
        %v1777 = vld [vmem:[%s551 + $0xb8] sm:$0xff]
        %v1778 = vld [vmem:[%s551 + $0xc0] sm:$0xff]
        %v1779 = vld [vmem:[%s551 + $0xc8] sm:$0xff]
        %v1780 = vld [vmem:[%s551 + $0xd0] sm:$0xff]
        %v1781 = vld [vmem:[%s551 + $0xd8] sm:$0xff]
        %v1782 = vld [vmem:[%s551 + $0xe0] sm:$0xff]
        %v1783 = vld [vmem:[%s551 + $0xe8] sm:$0xff]
        %v1784 = vld [vmem:[%s551 + $0xf0] sm:$0xff]
        %v1785 = vld [vmem:[%s551 + $0xf8] sm:$0xff]
        %v1786 = vld [vmem:[%s551 + $0x100] sm:$0xff]
        %v1787 = vld [vmem:[%s551 + $0x108] sm:$0xff]
        %v1788 = vld [vmem:[%s551 + $0x110] sm:$0xff]
        %v1789 = vld [vmem:[%s551 + $0x118] sm:$0xff]
        %v1790 = vld [vmem:[%s551 + $0x120] sm:$0xff]
        %v1791 = vld [vmem:[%s551 + $0x128] sm:$0xff]
        %v1792 = vld [vmem:[%s551 + $0x130] sm:$0xff]
        %v1793 = vld [vmem:[%s551 + $0x138] sm:$0xff]
        %v1794 = vld [vmem:[%s551 + $0x140] sm:$0xff]
        %v1795 = vld [vmem:[%s551 + $0x148] sm:$0xff]
        %v1796 = vld [vmem:[%s551 + $0x150] sm:$0xff]
        %v1797 = vld [vmem:[%s551 + $0x158] sm:$0xff]
        %v1798 = vld [vmem:[%s551 + $0x160] sm:$0xff]
        %v1799 = vld [vmem:[%s551 + $0x168] sm:$0xff]
        %v1800 = vld [vmem:[%s551 + $0x170] sm:$0xff]
        %v1801 = vld [vmem:[%s551 + $0x178] sm:$0xff]
        %v1802 = vld [vmem:[%s551 + $0x180] sm:$0xff]
        %v1803 = vld [vmem:[%s551 + $0x188] sm:$0xff]
        %v1804 = vld [vmem:[%s551 + $0x190] sm:$0xff]
        %v1805 = vld [vmem:[%s551 + $0x198] sm:$0xff]
        %v1806 = vld [vmem:[%s551 + $0x1a0] sm:$0xff]
        %v1807 = vld [vmem:[%s551 + $0x1a8] sm:$0xff]
        %v1808 = vld [vmem:[%s551 + $0x1b0] sm:$0xff]
        %v1809 = vld [vmem:[%s551 + $0x1b8] sm:$0xff]
        %v1810 = vld [vmem:[%s551 + $0x1c0] sm:$0xff]
        %v1811 = vld [vmem:[%s551 + $0x1c8] sm:$0xff]
        %v1812 = vld [vmem:[%s551 + $0x1d0] sm:$0xff]
        %v1813 = vld [vmem:[%s551 + $0x1d8] sm:$0xff]
        %v1814 = vld [vmem:[%s551 + $0x1e0] sm:$0xff]
        %v1815 = vld [vmem:[%s551 + $0x1e8] sm:$0xff]
        %v1816 = vld [vmem:[%s551 + $0x1f0] sm:$0xff]
        %v1817 = vld [vmem:[%s551 + $0x1f8] sm:$0xff]
        %v1818 = vld [vmem:[%s551 + $0x200] sm:$0xff]
        %v1819 = vld [vmem:[%s551 + $0x208] sm:$0xff]
        %v1820 = vld [vmem:[%s551 + $0x210] sm:$0xff]
        %v1821 = vld [vmem:[%s551 + $0x218] sm:$0xff]
        %v1822 = vld [vmem:[%s551 + $0x220] sm:$0xff]
        %v1823 = vpack.c.bf16 %v1758, %v1757
        %v1824 = vpack.c.bf16 %v1760, %v1759
        %v1825 = vpack.c.bf16 %v1762, %v1761
        %v1826 = vpack.c.bf16 %v1764, %v1763
        %v1827 = vpack.c.bf16 %v1766, %v1765
        %v1828 = vpack.c.bf16 %v1768, %v1767
        %v1829 = vpack.c.bf16 %v1770, %v1769
        %v1830 = vpack.c.bf16 %v1772, %v1771
        %v1831 = vpack.c.bf16 %v1774, %v1773
        %v1832 = vpack.c.bf16 %v1776, %v1775
        %v1833 = vpack.c.bf16 %v1778, %v1777
        %v1834 = vpack.c.bf16 %v1780, %v1779
        %v1835 = vpack.c.bf16 %v1782, %v1781
        %v1836 = vpack.c.bf16 %v1784, %v1783
        %v1837 = vpack.c.bf16 %v1786, %v1785
        %v1838 = vpack.c.bf16 %v1788, %v1787
        %v1839 = vpack.c.bf16 %v1790, %v1789
        %v1840 = vpack.c.bf16 %v1792, %v1791
        %v1841 = vpack.c.bf16 %v1794, %v1793
        %v1842 = vpack.c.bf16 %v1796, %v1795
        %v1843 = vpack.c.bf16 %v1798, %v1797
        %v1844 = vpack.c.bf16 %v1800, %v1799
        %v1845 = vpack.c.bf16 %v1802, %v1801
        %v1846 = vpack.c.bf16 %v1804, %v1803
        %v1847 = vpack.c.bf16 %v1806, %v1805
        %v1848 = vpack.c.bf16 %v1808, %v1807
        %v1849 = vpack.c.bf16 %v1810, %v1809
        %v1850 = vpack.c.bf16 %v1812, %v1811
        %v1851 = vpack.c.bf16 %v1814, %v1813
        %v1852 = vpack.c.bf16 %v1816, %v1815
        %v1853 = vpack.c.bf16 %v1818, %v1817
        %v1854 = vpack.c.bf16 %v1820, %v1819
        %v1855 = vpack.c.bf16 %v1822, %v1821
        %s1856 = scalar_lea.vmem %s2, 6
        %v1857 = vld [vmem:[%s1856] sm:$0x3]
        %v1859 = vsel %vm757, %v1823, 0
        %v1862 = vsel %vm757, %v1824, 0
        %v1865 = vsel %vm757, %v1825, 0
        %v1868 = vsel %vm757, %v1826, 0
        %v1871 = vsel %vm757, %v1827, 0
        %v1874 = vsel %vm757, %v1828, 0
        %v1877 = vsel %vm757, %v1829, 0
        %v1880 = vsel %vm757, %v1830, 0
        %v1883 = vsel %vm757, %v1831, 0
        %v1886 = vsel %vm757, %v1832, 0
        %v1889 = vsel %vm757, %v1833, 0
        %v1892 = vsel %vm757, %v1834, 0
        %v1895 = vsel %vm757, %v1835, 0
        %v1898 = vsel %vm757, %v1836, 0
        %v1901 = vsel %vm757, %v1837, 0
        %v1904 = vsel %vm757, %v1838, 0
        %v1907 = vsel %vm757, %v1839, 0
        %v1910 = vsel %vm757, %v1840, 0
        %v1913 = vsel %vm757, %v1841, 0
        %v1916 = vsel %vm757, %v1842, 0
        %v1919 = vsel %vm757, %v1843, 0
        %v1922 = vsel %vm757, %v1844, 0
        %v1925 = vsel %vm757, %v1845, 0
        %v1928 = vsel %vm757, %v1846, 0
        %v1931 = vsel %vm757, %v1847, 0
        %v1934 = vsel %vm757, %v1848, 0
        %v1937 = vsel %vm757, %v1849, 0
        %v1940 = vsel %vm757, %v1850, 0
        %v1943 = vsel %vm757, %v1851, 0
        %v1946 = vsel %vm757, %v1852, 0
        %v1949 = vsel %vm757, %v1853, 0
        %v1952 = vsel %vm757, %v1854, 0
        %v1955 = vsel %vm757, %v1855, 0
        %v1958 = vand.u32 %v1857, %v860
        %1960 = vmatpush.bf16.msra.mxu0 0
        %1961 = vmatpush.bf16.msra.mxu0 0
        %1962 = vmatpush.bf16.msra.mxu0 0
        %1963 = vmatpush.bf16.msra.mxu0 0
        %1964 = vmatpush.bf16.msra.mxu0 0
        %1965 = vmatpush.bf16.msra.mxu0 0
        %1966 = vmatpush.bf16.msra.mxu0 0
        %1967 = vmatpush.bf16.msra.mxu0 %v1958
        %1968 = vmatmul.bf16.gmra.mxu0 %v1859
        %v1969 = vpop.f32.mrf.mxu0
        %v1970 = vadd.f32 0.0, %v1969
        %v1971 = vpop.f32.mrf.mxu0
        %v1972 = vadd.f32 0.0, %v1971
        %1973 = vmatmul.bf16.gmra.mxu0 %v1862
        %v1974 = vpop.f32.mrf.mxu0
        %v1975 = vadd.f32 0.0, %v1974
        %v1976 = vpop.f32.mrf.mxu0
        %v1977 = vadd.f32 0.0, %v1976
        %1978 = vmatmul.bf16.gmra.mxu0 %v1865
        %v1979 = vpop.f32.mrf.mxu0
        %v1980 = vadd.f32 0.0, %v1979
        %v1981 = vpop.f32.mrf.mxu0
        %v1982 = vadd.f32 0.0, %v1981
        %1983 = vmatmul.bf16.gmra.mxu0 %v1868
        %v1984 = vpop.f32.mrf.mxu0
        %v1985 = vadd.f32 0.0, %v1984
        %v1986 = vpop.f32.mrf.mxu0
        %v1987 = vadd.f32 0.0, %v1986
        %1988 = vmatmul.bf16.gmra.mxu0 %v1871
        %v1989 = vpop.f32.mrf.mxu0
        %v1990 = vadd.f32 0.0, %v1989
        %v1991 = vpop.f32.mrf.mxu0
        %v1992 = vadd.f32 0.0, %v1991
        %1993 = vmatmul.bf16.gmra.mxu0 %v1874
        %v1994 = vpop.f32.mrf.mxu0
        %v1995 = vadd.f32 0.0, %v1994
        %v1996 = vpop.f32.mrf.mxu0
        %v1997 = vadd.f32 0.0, %v1996
        %1998 = vmatmul.bf16.gmra.mxu0 %v1877
        %v1999 = vpop.f32.mrf.mxu0
        %v2000 = vadd.f32 0.0, %v1999
        %v2001 = vpop.f32.mrf.mxu0
        %v2002 = vadd.f32 0.0, %v2001
        %2003 = vmatmul.bf16.gmra.mxu0 %v1880
        %v2004 = vpop.f32.mrf.mxu0
        %v2005 = vadd.f32 0.0, %v2004
        %v2006 = vpop.f32.mrf.mxu0
        %v2007 = vadd.f32 0.0, %v2006
        %2008 = vmatmul.bf16.gmra.mxu0 %v1883
        %v2009 = vpop.f32.mrf.mxu0
        %v2010 = vadd.f32 0.0, %v2009
        %v2011 = vpop.f32.mrf.mxu0
        %v2012 = vadd.f32 0.0, %v2011
        %2013 = vmatmul.bf16.gmra.mxu0 %v1886
        %v2014 = vpop.f32.mrf.mxu0
        %v2015 = vadd.f32 0.0, %v2014
        %v2016 = vpop.f32.mrf.mxu0
        %v2017 = vadd.f32 0.0, %v2016
        %2018 = vmatmul.bf16.gmra.mxu0 %v1889
        %v2019 = vpop.f32.mrf.mxu0
        %v2020 = vadd.f32 0.0, %v2019
        %v2021 = vpop.f32.mrf.mxu0
        %v2022 = vadd.f32 0.0, %v2021
        %2023 = vmatmul.bf16.gmra.mxu0 %v1892
        %v2024 = vpop.f32.mrf.mxu0
        %v2025 = vadd.f32 0.0, %v2024
        %v2026 = vpop.f32.mrf.mxu0
        %v2027 = vadd.f32 0.0, %v2026
        %2028 = vmatmul.bf16.gmra.mxu0 %v1895
        %v2029 = vpop.f32.mrf.mxu0
        %v2030 = vadd.f32 0.0, %v2029
        %v2031 = vpop.f32.mrf.mxu0
        %v2032 = vadd.f32 0.0, %v2031
        %2033 = vmatmul.bf16.gmra.mxu0 %v1898
        %v2034 = vpop.f32.mrf.mxu0
        %v2035 = vadd.f32 0.0, %v2034
        %v2036 = vpop.f32.mrf.mxu0
        %v2037 = vadd.f32 0.0, %v2036
        %2038 = vmatmul.bf16.gmra.mxu0 %v1901
        %v2039 = vpop.f32.mrf.mxu0
        %v2040 = vadd.f32 0.0, %v2039
        %v2041 = vpop.f32.mrf.mxu0
        %v2042 = vadd.f32 0.0, %v2041
        %2043 = vmatmul.bf16.gmra.mxu0 %v1904
        %v2044 = vpop.f32.mrf.mxu0
        %v2045 = vadd.f32 0.0, %v2044
        %v2046 = vpop.f32.mrf.mxu0
        %v2047 = vadd.f32 0.0, %v2046
        %2048 = vmatmul.bf16.gmra.mxu0 %v1907
        %v2049 = vpop.f32.mrf.mxu0
        %v2050 = vadd.f32 0.0, %v2049
        %v2051 = vpop.f32.mrf.mxu0
        %v2052 = vadd.f32 0.0, %v2051
        %2053 = vmatmul.bf16.gmra.mxu0 %v1910
        %v2054 = vpop.f32.mrf.mxu0
        %v2055 = vadd.f32 0.0, %v2054
        %v2056 = vpop.f32.mrf.mxu0
        %v2057 = vadd.f32 0.0, %v2056
        %2058 = vmatmul.bf16.gmra.mxu0 %v1913
        %v2059 = vpop.f32.mrf.mxu0
        %v2060 = vadd.f32 0.0, %v2059
        %v2061 = vpop.f32.mrf.mxu0
        %v2062 = vadd.f32 0.0, %v2061
        %2063 = vmatmul.bf16.gmra.mxu0 %v1916
        %v2064 = vpop.f32.mrf.mxu0
        %v2065 = vadd.f32 0.0, %v2064
        %v2066 = vpop.f32.mrf.mxu0
        %v2067 = vadd.f32 0.0, %v2066
        %2068 = vmatmul.bf16.gmra.mxu0 %v1919
        %v2069 = vpop.f32.mrf.mxu0
        %v2070 = vadd.f32 0.0, %v2069
        %v2071 = vpop.f32.mrf.mxu0
        %v2072 = vadd.f32 0.0, %v2071
        %2073 = vmatmul.bf16.gmra.mxu0 %v1922
        %v2074 = vpop.f32.mrf.mxu0
        %v2075 = vadd.f32 0.0, %v2074
        %v2076 = vpop.f32.mrf.mxu0
        %v2077 = vadd.f32 0.0, %v2076
        %2078 = vmatmul.bf16.gmra.mxu0 %v1925
        %v2079 = vpop.f32.mrf.mxu0
        %v2080 = vadd.f32 0.0, %v2079
        %v2081 = vpop.f32.mrf.mxu0
        %v2082 = vadd.f32 0.0, %v2081
        %2083 = vmatmul.bf16.gmra.mxu0 %v1928
        %v2084 = vpop.f32.mrf.mxu0
        %v2085 = vadd.f32 0.0, %v2084
        %v2086 = vpop.f32.mrf.mxu0
        %v2087 = vadd.f32 0.0, %v2086
        %2088 = vmatmul.bf16.gmra.mxu0 %v1931
        %v2089 = vpop.f32.mrf.mxu0
        %v2090 = vadd.f32 0.0, %v2089
        %v2091 = vpop.f32.mrf.mxu0
        %v2092 = vadd.f32 0.0, %v2091
        %2093 = vmatmul.bf16.gmra.mxu0 %v1934
        %v2094 = vpop.f32.mrf.mxu0
        %v2095 = vadd.f32 0.0, %v2094
        %v2096 = vpop.f32.mrf.mxu0
        %v2097 = vadd.f32 0.0, %v2096
        %2098 = vmatmul.bf16.gmra.mxu0 %v1937
        %v2099 = vpop.f32.mrf.mxu0
        %v2100 = vadd.f32 0.0, %v2099
        %v2101 = vpop.f32.mrf.mxu0
        %v2102 = vadd.f32 0.0, %v2101
        %2103 = vmatmul.bf16.gmra.mxu0 %v1940
        %v2104 = vpop.f32.mrf.mxu0
        %v2105 = vadd.f32 0.0, %v2104
        %v2106 = vpop.f32.mrf.mxu0
        %v2107 = vadd.f32 0.0, %v2106
        %2108 = vmatmul.bf16.gmra.mxu0 %v1943
        %v2109 = vpop.f32.mrf.mxu0
        %v2110 = vadd.f32 0.0, %v2109
        %v2111 = vpop.f32.mrf.mxu0
        %v2112 = vadd.f32 0.0, %v2111
        %2113 = vmatmul.bf16.gmra.mxu0 %v1946
        %v2114 = vpop.f32.mrf.mxu0
        %v2115 = vadd.f32 0.0, %v2114
        %v2116 = vpop.f32.mrf.mxu0
        %v2117 = vadd.f32 0.0, %v2116
        %2118 = vmatmul.bf16.gmra.mxu0 %v1949
        %v2119 = vpop.f32.mrf.mxu0
        %v2120 = vadd.f32 0.0, %v2119
        %v2121 = vpop.f32.mrf.mxu0
        %v2122 = vadd.f32 0.0, %v2121
        %2123 = vmatmul.bf16.gmra.mxu0 %v1952
        %v2124 = vpop.f32.mrf.mxu0
        %v2125 = vadd.f32 0.0, %v2124
        %v2126 = vpop.f32.mrf.mxu0
        %v2127 = vadd.f32 0.0, %v2126
        %2128 = vmatmul.bf16.gmra.mxu0 %v1955
        %v2129 = vpop.f32.mrf.mxu0
        %v2130 = vadd.f32 0.0, %v2129
        %v2131 = vpop.f32.mrf.mxu0
        %v2132 = vadd.f32 0.0, %v2131
        %2133 = vdwg.mxu0
        %v2134 = vadd.f32 %v1691, %v1970
        %v2135 = vadd.f32 %v1692, %v1972
        %v2136 = vadd.f32 %v1693, %v1975
        %v2137 = vadd.f32 %v1694, %v1977
        %v2138 = vadd.f32 %v1695, %v1980
        %v2139 = vadd.f32 %v1696, %v1982
        %v2140 = vadd.f32 %v1697, %v1985
        %v2141 = vadd.f32 %v1698, %v1987
        %v2142 = vadd.f32 %v1699, %v1990
        %v2143 = vadd.f32 %v1700, %v1992
        %v2144 = vadd.f32 %v1701, %v1995
        %v2145 = vadd.f32 %v1702, %v1997
        %v2146 = vadd.f32 %v1703, %v2000
        %v2147 = vadd.f32 %v1704, %v2002
        %v2148 = vadd.f32 %v1705, %v2005
        %v2149 = vadd.f32 %v1706, %v2007
        %v2150 = vadd.f32 %v1707, %v2010
        %v2151 = vadd.f32 %v1708, %v2012
        %v2152 = vadd.f32 %v1709, %v2015
        %v2153 = vadd.f32 %v1710, %v2017
        %v2154 = vadd.f32 %v1711, %v2020
        %v2155 = vadd.f32 %v1712, %v2022
        %v2156 = vadd.f32 %v1713, %v2025
        %v2157 = vadd.f32 %v1714, %v2027
        %v2158 = vadd.f32 %v1715, %v2030
        %v2159 = vadd.f32 %v1716, %v2032
        %v2160 = vadd.f32 %v1717, %v2035
        %v2161 = vadd.f32 %v1718, %v2037
        %v2162 = vadd.f32 %v1719, %v2040
        %v2163 = vadd.f32 %v1720, %v2042
        %v2164 = vadd.f32 %v1721, %v2045
        %v2165 = vadd.f32 %v1722, %v2047
        %v2166 = vadd.f32 %v1723, %v2050
        %v2167 = vadd.f32 %v1724, %v2052
        %v2168 = vadd.f32 %v1725, %v2055
        %v2169 = vadd.f32 %v1726, %v2057
        %v2170 = vadd.f32 %v1727, %v2060
        %v2171 = vadd.f32 %v1728, %v2062
        %v2172 = vadd.f32 %v1729, %v2065
        %v2173 = vadd.f32 %v1730, %v2067
        %v2174 = vadd.f32 %v1731, %v2070
        %v2175 = vadd.f32 %v1732, %v2072
        %v2176 = vadd.f32 %v1733, %v2075
        %v2177 = vadd.f32 %v1734, %v2077
        %v2178 = vadd.f32 %v1735, %v2080
        %v2179 = vadd.f32 %v1736, %v2082
        %v2180 = vadd.f32 %v1737, %v2085
        %v2181 = vadd.f32 %v1738, %v2087
        %v2182 = vadd.f32 %v1739, %v2090
        %v2183 = vadd.f32 %v1740, %v2092
        %v2184 = vadd.f32 %v1741, %v2095
        %v2185 = vadd.f32 %v1742, %v2097
        %v2186 = vadd.f32 %v1743, %v2100
        %v2187 = vadd.f32 %v1744, %v2102
        %v2188 = vadd.f32 %v1745, %v2105
        %v2189 = vadd.f32 %v1746, %v2107
        %v2190 = vadd.f32 %v1747, %v2110
        %v2191 = vadd.f32 %v1748, %v2112
        %v2192 = vadd.f32 %v1749, %v2115
        %v2193 = vadd.f32 %v1750, %v2117
        %v2194 = vadd.f32 %v1751, %v2120
        %v2195 = vadd.f32 %v1752, %v2122
        %v2196 = vadd.f32 %v1753, %v2125
        %v2197 = vadd.f32 %v1754, %v2127
        %v2198 = vadd.f32 %v1755, %v2130
        %v2199 = vadd.f32 %v1756, %v2132
        %v2200 = vld [vmem:[%s551 + $0x19] sm:$0xff]
        %v2201 = vld [vmem:[%s551 + $0x21] sm:$0xff]
        %v2202 = vld [vmem:[%s551 + $0x29] sm:$0xff]
        %v2203 = vld [vmem:[%s551 + $0x31] sm:$0xff]
        %v2204 = vld [vmem:[%s551 + $0x39] sm:$0xff]
        %v2205 = vld [vmem:[%s551 + $0x41] sm:$0xff]
        %v2206 = vld [vmem:[%s551 + $0x49] sm:$0xff]
        %v2207 = vld [vmem:[%s551 + $0x51] sm:$0xff]
        %v2208 = vld [vmem:[%s551 + $0x59] sm:$0xff]
        %v2209 = vld [vmem:[%s551 + $0x61] sm:$0xff]
        %v2210 = vld [vmem:[%s551 + $0x69] sm:$0xff]
        %v2211 = vld [vmem:[%s551 + $0x71] sm:$0xff]
        %v2212 = vld [vmem:[%s551 + $0x79] sm:$0xff]
        %v2213 = vld [vmem:[%s551 + $0x81] sm:$0xff]
        %v2214 = vld [vmem:[%s551 + $0x89] sm:$0xff]
        %v2215 = vld [vmem:[%s551 + $0x91] sm:$0xff]
        %v2216 = vld [vmem:[%s551 + $0x99] sm:$0xff]
        %v2217 = vld [vmem:[%s551 + $0xa1] sm:$0xff]
        %v2218 = vld [vmem:[%s551 + $0xa9] sm:$0xff]
        %v2219 = vld [vmem:[%s551 + $0xb1] sm:$0xff]
        %v2220 = vld [vmem:[%s551 + $0xb9] sm:$0xff]
        %v2221 = vld [vmem:[%s551 + $0xc1] sm:$0xff]
        %v2222 = vld [vmem:[%s551 + $0xc9] sm:$0xff]
        %v2223 = vld [vmem:[%s551 + $0xd1] sm:$0xff]
        %v2224 = vld [vmem:[%s551 + $0xd9] sm:$0xff]
        %v2225 = vld [vmem:[%s551 + $0xe1] sm:$0xff]
        %v2226 = vld [vmem:[%s551 + $0xe9] sm:$0xff]
        %v2227 = vld [vmem:[%s551 + $0xf1] sm:$0xff]
        %v2228 = vld [vmem:[%s551 + $0xf9] sm:$0xff]
        %v2229 = vld [vmem:[%s551 + $0x101] sm:$0xff]
        %v2230 = vld [vmem:[%s551 + $0x109] sm:$0xff]
        %v2231 = vld [vmem:[%s551 + $0x111] sm:$0xff]
        %v2232 = vld [vmem:[%s551 + $0x119] sm:$0xff]
        %v2233 = vld [vmem:[%s551 + $0x121] sm:$0xff]
        %v2234 = vld [vmem:[%s551 + $0x129] sm:$0xff]
        %v2235 = vld [vmem:[%s551 + $0x131] sm:$0xff]
        %v2236 = vld [vmem:[%s551 + $0x139] sm:$0xff]
        %v2237 = vld [vmem:[%s551 + $0x141] sm:$0xff]
        %v2238 = vld [vmem:[%s551 + $0x149] sm:$0xff]
        %v2239 = vld [vmem:[%s551 + $0x151] sm:$0xff]
        %v2240 = vld [vmem:[%s551 + $0x159] sm:$0xff]
        %v2241 = vld [vmem:[%s551 + $0x161] sm:$0xff]
        %v2242 = vld [vmem:[%s551 + $0x169] sm:$0xff]
        %v2243 = vld [vmem:[%s551 + $0x171] sm:$0xff]
        %v2244 = vld [vmem:[%s551 + $0x179] sm:$0xff]
        %v2245 = vld [vmem:[%s551 + $0x181] sm:$0xff]
        %v2246 = vld [vmem:[%s551 + $0x189] sm:$0xff]
        %v2247 = vld [vmem:[%s551 + $0x191] sm:$0xff]
        %v2248 = vld [vmem:[%s551 + $0x199] sm:$0xff]
        %v2249 = vld [vmem:[%s551 + $0x1a1] sm:$0xff]
        %v2250 = vld [vmem:[%s551 + $0x1a9] sm:$0xff]
        %v2251 = vld [vmem:[%s551 + $0x1b1] sm:$0xff]
        %v2252 = vld [vmem:[%s551 + $0x1b9] sm:$0xff]
        %v2253 = vld [vmem:[%s551 + $0x1c1] sm:$0xff]
        %v2254 = vld [vmem:[%s551 + $0x1c9] sm:$0xff]
        %v2255 = vld [vmem:[%s551 + $0x1d1] sm:$0xff]
        %v2256 = vld [vmem:[%s551 + $0x1d9] sm:$0xff]
        %v2257 = vld [vmem:[%s551 + $0x1e1] sm:$0xff]
        %v2258 = vld [vmem:[%s551 + $0x1e9] sm:$0xff]
        %v2259 = vld [vmem:[%s551 + $0x1f1] sm:$0xff]
        %v2260 = vld [vmem:[%s551 + $0x1f9] sm:$0xff]
        %v2261 = vld [vmem:[%s551 + $0x201] sm:$0xff]
        %v2262 = vld [vmem:[%s551 + $0x209] sm:$0xff]
        %v2263 = vld [vmem:[%s551 + $0x211] sm:$0xff]
        %v2264 = vld [vmem:[%s551 + $0x219] sm:$0xff]
        %v2265 = vld [vmem:[%s551 + $0x221] sm:$0xff]
        %v2266 = vpack.c.bf16 %v2201, %v2200
        %v2267 = vpack.c.bf16 %v2203, %v2202
        %v2268 = vpack.c.bf16 %v2205, %v2204
        %v2269 = vpack.c.bf16 %v2207, %v2206
        %v2270 = vpack.c.bf16 %v2209, %v2208
        %v2271 = vpack.c.bf16 %v2211, %v2210
        %v2272 = vpack.c.bf16 %v2213, %v2212
        %v2273 = vpack.c.bf16 %v2215, %v2214
        %v2274 = vpack.c.bf16 %v2217, %v2216
        %v2275 = vpack.c.bf16 %v2219, %v2218
        %v2276 = vpack.c.bf16 %v2221, %v2220
        %v2277 = vpack.c.bf16 %v2223, %v2222
        %v2278 = vpack.c.bf16 %v2225, %v2224
        %v2279 = vpack.c.bf16 %v2227, %v2226
        %v2280 = vpack.c.bf16 %v2229, %v2228
        %v2281 = vpack.c.bf16 %v2231, %v2230
        %v2282 = vpack.c.bf16 %v2233, %v2232
        %v2283 = vpack.c.bf16 %v2235, %v2234
        %v2284 = vpack.c.bf16 %v2237, %v2236
        %v2285 = vpack.c.bf16 %v2239, %v2238
        %v2286 = vpack.c.bf16 %v2241, %v2240
        %v2287 = vpack.c.bf16 %v2243, %v2242
        %v2288 = vpack.c.bf16 %v2245, %v2244
        %v2289 = vpack.c.bf16 %v2247, %v2246
        %v2290 = vpack.c.bf16 %v2249, %v2248
        %v2291 = vpack.c.bf16 %v2251, %v2250
        %v2292 = vpack.c.bf16 %v2253, %v2252
        %v2293 = vpack.c.bf16 %v2255, %v2254
        %v2294 = vpack.c.bf16 %v2257, %v2256
        %v2295 = vpack.c.bf16 %v2259, %v2258
        %v2296 = vpack.c.bf16 %v2261, %v2260
        %v2297 = vpack.c.bf16 %v2263, %v2262
        %v2298 = vpack.c.bf16 %v2265, %v2264
        %s2299 = scalar_lea.vmem %s2, 8
        %v2300 = vld [vmem:[%s2299] sm:$0x3]
        %v2302 = vsel %vm757, %v2266, 0
        %v2305 = vsel %vm757, %v2267, 0
        %v2308 = vsel %vm757, %v2268, 0
        %v2311 = vsel %vm757, %v2269, 0
        %v2314 = vsel %vm757, %v2270, 0
        %v2317 = vsel %vm757, %v2271, 0
        %v2320 = vsel %vm757, %v2272, 0
        %v2323 = vsel %vm757, %v2273, 0
        %v2326 = vsel %vm757, %v2274, 0
        %v2329 = vsel %vm757, %v2275, 0
        %v2332 = vsel %vm757, %v2276, 0
        %v2335 = vsel %vm757, %v2277, 0
        %v2338 = vsel %vm757, %v2278, 0
        %v2341 = vsel %vm757, %v2279, 0
        %v2344 = vsel %vm757, %v2280, 0
        %v2347 = vsel %vm757, %v2281, 0
        %v2350 = vsel %vm757, %v2282, 0
        %v2353 = vsel %vm757, %v2283, 0
        %v2356 = vsel %vm757, %v2284, 0
        %v2359 = vsel %vm757, %v2285, 0
        %v2362 = vsel %vm757, %v2286, 0
        %v2365 = vsel %vm757, %v2287, 0
        %v2368 = vsel %vm757, %v2288, 0
        %v2371 = vsel %vm757, %v2289, 0
        %v2374 = vsel %vm757, %v2290, 0
        %v2377 = vsel %vm757, %v2291, 0
        %v2380 = vsel %vm757, %v2292, 0
        %v2383 = vsel %vm757, %v2293, 0
        %v2386 = vsel %vm757, %v2294, 0
        %v2389 = vsel %vm757, %v2295, 0
        %v2392 = vsel %vm757, %v2296, 0
        %v2395 = vsel %vm757, %v2297, 0
        %v2398 = vsel %vm757, %v2298, 0
        %v2401 = vand.u32 %v2300, %v860
        %2403 = vmatpush.bf16.msra.mxu0 0
        %2404 = vmatpush.bf16.msra.mxu0 0
        %2405 = vmatpush.bf16.msra.mxu0 0
        %2406 = vmatpush.bf16.msra.mxu0 0
        %2407 = vmatpush.bf16.msra.mxu0 0
        %2408 = vmatpush.bf16.msra.mxu0 0
        %2409 = vmatpush.bf16.msra.mxu0 0
        %2410 = vmatpush.bf16.msra.mxu0 %v2401
        %2411 = vmatmul.bf16.gmra.mxu0 %v2302
        %v2412 = vpop.f32.mrf.mxu0
        %v2413 = vadd.f32 0.0, %v2412
        %v2414 = vpop.f32.mrf.mxu0
        %v2415 = vadd.f32 0.0, %v2414
        %2416 = vmatmul.bf16.gmra.mxu0 %v2305
        %v2417 = vpop.f32.mrf.mxu0
        %v2418 = vadd.f32 0.0, %v2417
        %v2419 = vpop.f32.mrf.mxu0
        %v2420 = vadd.f32 0.0, %v2419
        %2421 = vmatmul.bf16.gmra.mxu0 %v2308
        %v2422 = vpop.f32.mrf.mxu0
        %v2423 = vadd.f32 0.0, %v2422
        %v2424 = vpop.f32.mrf.mxu0
        %v2425 = vadd.f32 0.0, %v2424
        %2426 = vmatmul.bf16.gmra.mxu0 %v2311
        %v2427 = vpop.f32.mrf.mxu0
        %v2428 = vadd.f32 0.0, %v2427
        %v2429 = vpop.f32.mrf.mxu0
        %v2430 = vadd.f32 0.0, %v2429
        %2431 = vmatmul.bf16.gmra.mxu0 %v2314
        %v2432 = vpop.f32.mrf.mxu0
        %v2433 = vadd.f32 0.0, %v2432
        %v2434 = vpop.f32.mrf.mxu0
        %v2435 = vadd.f32 0.0, %v2434
        %2436 = vmatmul.bf16.gmra.mxu0 %v2317
        %v2437 = vpop.f32.mrf.mxu0
        %v2438 = vadd.f32 0.0, %v2437
        %v2439 = vpop.f32.mrf.mxu0
        %v2440 = vadd.f32 0.0, %v2439
        %2441 = vmatmul.bf16.gmra.mxu0 %v2320
        %v2442 = vpop.f32.mrf.mxu0
        %v2443 = vadd.f32 0.0, %v2442
        %v2444 = vpop.f32.mrf.mxu0
        %v2445 = vadd.f32 0.0, %v2444
        %2446 = vmatmul.bf16.gmra.mxu0 %v2323
        %v2447 = vpop.f32.mrf.mxu0
        %v2448 = vadd.f32 0.0, %v2447
        %v2449 = vpop.f32.mrf.mxu0
        %v2450 = vadd.f32 0.0, %v2449
        %2451 = vmatmul.bf16.gmra.mxu0 %v2326
        %v2452 = vpop.f32.mrf.mxu0
        %v2453 = vadd.f32 0.0, %v2452
        %v2454 = vpop.f32.mrf.mxu0
        %v2455 = vadd.f32 0.0, %v2454
        %2456 = vmatmul.bf16.gmra.mxu0 %v2329
        %v2457 = vpop.f32.mrf.mxu0
        %v2458 = vadd.f32 0.0, %v2457
        %v2459 = vpop.f32.mrf.mxu0
        %v2460 = vadd.f32 0.0, %v2459
        %2461 = vmatmul.bf16.gmra.mxu0 %v2332
        %v2462 = vpop.f32.mrf.mxu0
        %v2463 = vadd.f32 0.0, %v2462
        %v2464 = vpop.f32.mrf.mxu0
        %v2465 = vadd.f32 0.0, %v2464
        %2466 = vmatmul.bf16.gmra.mxu0 %v2335
        %v2467 = vpop.f32.mrf.mxu0
        %v2468 = vadd.f32 0.0, %v2467
        %v2469 = vpop.f32.mrf.mxu0
        %v2470 = vadd.f32 0.0, %v2469
        %2471 = vmatmul.bf16.gmra.mxu0 %v2338
        %v2472 = vpop.f32.mrf.mxu0
        %v2473 = vadd.f32 0.0, %v2472
        %v2474 = vpop.f32.mrf.mxu0
        %v2475 = vadd.f32 0.0, %v2474
        %2476 = vmatmul.bf16.gmra.mxu0 %v2341
        %v2477 = vpop.f32.mrf.mxu0
        %v2478 = vadd.f32 0.0, %v2477
        %v2479 = vpop.f32.mrf.mxu0
        %v2480 = vadd.f32 0.0, %v2479
        %2481 = vmatmul.bf16.gmra.mxu0 %v2344
        %v2482 = vpop.f32.mrf.mxu0
        %v2483 = vadd.f32 0.0, %v2482
        %v2484 = vpop.f32.mrf.mxu0
        %v2485 = vadd.f32 0.0, %v2484
        %2486 = vmatmul.bf16.gmra.mxu0 %v2347
        %v2487 = vpop.f32.mrf.mxu0
        %v2488 = vadd.f32 0.0, %v2487
        %v2489 = vpop.f32.mrf.mxu0
        %v2490 = vadd.f32 0.0, %v2489
        %2491 = vmatmul.bf16.gmra.mxu0 %v2350
        %v2492 = vpop.f32.mrf.mxu0
        %v2493 = vadd.f32 0.0, %v2492
        %v2494 = vpop.f32.mrf.mxu0
        %v2495 = vadd.f32 0.0, %v2494
        %2496 = vmatmul.bf16.gmra.mxu0 %v2353
        %v2497 = vpop.f32.mrf.mxu0
        %v2498 = vadd.f32 0.0, %v2497
        %v2499 = vpop.f32.mrf.mxu0
        %v2500 = vadd.f32 0.0, %v2499
        %2501 = vmatmul.bf16.gmra.mxu0 %v2356
        %v2502 = vpop.f32.mrf.mxu0
        %v2503 = vadd.f32 0.0, %v2502
        %v2504 = vpop.f32.mrf.mxu0
        %v2505 = vadd.f32 0.0, %v2504
        %2506 = vmatmul.bf16.gmra.mxu0 %v2359
        %v2507 = vpop.f32.mrf.mxu0
        %v2508 = vadd.f32 0.0, %v2507
        %v2509 = vpop.f32.mrf.mxu0
        %v2510 = vadd.f32 0.0, %v2509
        %2511 = vmatmul.bf16.gmra.mxu0 %v2362
        %v2512 = vpop.f32.mrf.mxu0
        %v2513 = vadd.f32 0.0, %v2512
        %v2514 = vpop.f32.mrf.mxu0
        %v2515 = vadd.f32 0.0, %v2514
        %2516 = vmatmul.bf16.gmra.mxu0 %v2365
        %v2517 = vpop.f32.mrf.mxu0
        %v2518 = vadd.f32 0.0, %v2517
        %v2519 = vpop.f32.mrf.mxu0
        %v2520 = vadd.f32 0.0, %v2519
        %2521 = vmatmul.bf16.gmra.mxu0 %v2368
        %v2522 = vpop.f32.mrf.mxu0
        %v2523 = vadd.f32 0.0, %v2522
        %v2524 = vpop.f32.mrf.mxu0
        %v2525 = vadd.f32 0.0, %v2524
        %2526 = vmatmul.bf16.gmra.mxu0 %v2371
        %v2527 = vpop.f32.mrf.mxu0
        %v2528 = vadd.f32 0.0, %v2527
        %v2529 = vpop.f32.mrf.mxu0
        %v2530 = vadd.f32 0.0, %v2529
        %2531 = vmatmul.bf16.gmra.mxu0 %v2374
        %v2532 = vpop.f32.mrf.mxu0
        %v2533 = vadd.f32 0.0, %v2532
        %v2534 = vpop.f32.mrf.mxu0
        %v2535 = vadd.f32 0.0, %v2534
        %2536 = vmatmul.bf16.gmra.mxu0 %v2377
        %v2537 = vpop.f32.mrf.mxu0
        %v2538 = vadd.f32 0.0, %v2537
        %v2539 = vpop.f32.mrf.mxu0
        %v2540 = vadd.f32 0.0, %v2539
        %2541 = vmatmul.bf16.gmra.mxu0 %v2380
        %v2542 = vpop.f32.mrf.mxu0
        %v2543 = vadd.f32 0.0, %v2542
        %v2544 = vpop.f32.mrf.mxu0
        %v2545 = vadd.f32 0.0, %v2544
        %2546 = vmatmul.bf16.gmra.mxu0 %v2383
        %v2547 = vpop.f32.mrf.mxu0
        %v2548 = vadd.f32 0.0, %v2547
        %v2549 = vpop.f32.mrf.mxu0
        %v2550 = vadd.f32 0.0, %v2549
        %2551 = vmatmul.bf16.gmra.mxu0 %v2386
        %v2552 = vpop.f32.mrf.mxu0
        %v2553 = vadd.f32 0.0, %v2552
        %v2554 = vpop.f32.mrf.mxu0
        %v2555 = vadd.f32 0.0, %v2554
        %2556 = vmatmul.bf16.gmra.mxu0 %v2389
        %v2557 = vpop.f32.mrf.mxu0
        %v2558 = vadd.f32 0.0, %v2557
        %v2559 = vpop.f32.mrf.mxu0
        %v2560 = vadd.f32 0.0, %v2559
        %2561 = vmatmul.bf16.gmra.mxu0 %v2392
        %v2562 = vpop.f32.mrf.mxu0
        %v2563 = vadd.f32 0.0, %v2562
        %v2564 = vpop.f32.mrf.mxu0
        %v2565 = vadd.f32 0.0, %v2564
        %2566 = vmatmul.bf16.gmra.mxu0 %v2395
        %v2567 = vpop.f32.mrf.mxu0
        %v2568 = vadd.f32 0.0, %v2567
        %v2569 = vpop.f32.mrf.mxu0
        %v2570 = vadd.f32 0.0, %v2569
        %2571 = vmatmul.bf16.gmra.mxu0 %v2398
        %v2572 = vpop.f32.mrf.mxu0
        %v2573 = vadd.f32 0.0, %v2572
        %v2574 = vpop.f32.mrf.mxu0
        %v2575 = vadd.f32 0.0, %v2574
        %2576 = vdwg.mxu0
        %v2577 = vadd.f32 %v2134, %v2413
        %v2578 = vadd.f32 %v2135, %v2415
        %v2579 = vadd.f32 %v2136, %v2418
        %v2580 = vadd.f32 %v2137, %v2420
        %v2581 = vadd.f32 %v2138, %v2423
        %v2582 = vadd.f32 %v2139, %v2425
        %v2583 = vadd.f32 %v2140, %v2428
        %v2584 = vadd.f32 %v2141, %v2430
        %v2585 = vadd.f32 %v2142, %v2433
        %v2586 = vadd.f32 %v2143, %v2435
        %v2587 = vadd.f32 %v2144, %v2438
        %v2588 = vadd.f32 %v2145, %v2440
        %v2589 = vadd.f32 %v2146, %v2443
        %v2590 = vadd.f32 %v2147, %v2445
        %v2591 = vadd.f32 %v2148, %v2448
        %v2592 = vadd.f32 %v2149, %v2450
        %v2593 = vadd.f32 %v2150, %v2453
        %v2594 = vadd.f32 %v2151, %v2455
        %v2595 = vadd.f32 %v2152, %v2458
        %v2596 = vadd.f32 %v2153, %v2460
        %v2597 = vadd.f32 %v2154, %v2463
        %v2598 = vadd.f32 %v2155, %v2465
        %v2599 = vadd.f32 %v2156, %v2468
        %v2600 = vadd.f32 %v2157, %v2470
        %v2601 = vadd.f32 %v2158, %v2473
        %v2602 = vadd.f32 %v2159, %v2475
        %v2603 = vadd.f32 %v2160, %v2478
        %v2604 = vadd.f32 %v2161, %v2480
        %v2605 = vadd.f32 %v2162, %v2483
        %v2606 = vadd.f32 %v2163, %v2485
        %v2607 = vadd.f32 %v2164, %v2488
        %v2608 = vadd.f32 %v2165, %v2490
        %v2609 = vadd.f32 %v2166, %v2493
        %v2610 = vadd.f32 %v2167, %v2495
        %v2611 = vadd.f32 %v2168, %v2498
        %v2612 = vadd.f32 %v2169, %v2500
        %v2613 = vadd.f32 %v2170, %v2503
        %v2614 = vadd.f32 %v2171, %v2505
        %v2615 = vadd.f32 %v2172, %v2508
        %v2616 = vadd.f32 %v2173, %v2510
        %v2617 = vadd.f32 %v2174, %v2513
        %v2618 = vadd.f32 %v2175, %v2515
        %v2619 = vadd.f32 %v2176, %v2518
        %v2620 = vadd.f32 %v2177, %v2520
        %v2621 = vadd.f32 %v2178, %v2523
        %v2622 = vadd.f32 %v2179, %v2525
        %v2623 = vadd.f32 %v2180, %v2528
        %v2624 = vadd.f32 %v2181, %v2530
        %v2625 = vadd.f32 %v2182, %v2533
        %v2626 = vadd.f32 %v2183, %v2535
        %v2627 = vadd.f32 %v2184, %v2538
        %v2628 = vadd.f32 %v2185, %v2540
        %v2629 = vadd.f32 %v2186, %v2543
        %v2630 = vadd.f32 %v2187, %v2545
        %v2631 = vadd.f32 %v2188, %v2548
        %v2632 = vadd.f32 %v2189, %v2550
        %v2633 = vadd.f32 %v2190, %v2553
        %v2634 = vadd.f32 %v2191, %v2555
        %v2635 = vadd.f32 %v2192, %v2558
        %v2636 = vadd.f32 %v2193, %v2560
        %v2637 = vadd.f32 %v2194, %v2563
        %v2638 = vadd.f32 %v2195, %v2565
        %v2639 = vadd.f32 %v2196, %v2568
        %v2640 = vadd.f32 %v2197, %v2570
        %v2641 = vadd.f32 %v2198, %v2573
        %v2642 = vadd.f32 %v2199, %v2575
        %v2643 = vld [vmem:[%s551 + $0x1a] sm:$0xff]
        %v2644 = vld [vmem:[%s551 + $0x22] sm:$0xff]
        %v2645 = vld [vmem:[%s551 + $0x2a] sm:$0xff]
        %v2646 = vld [vmem:[%s551 + $0x32] sm:$0xff]
        %v2647 = vld [vmem:[%s551 + $0x3a] sm:$0xff]
        %v2648 = vld [vmem:[%s551 + $0x42] sm:$0xff]
        %v2649 = vld [vmem:[%s551 + $0x4a] sm:$0xff]
        %v2650 = vld [vmem:[%s551 + $0x52] sm:$0xff]
        %v2651 = vld [vmem:[%s551 + $0x5a] sm:$0xff]
        %v2652 = vld [vmem:[%s551 + $0x62] sm:$0xff]
        %v2653 = vld [vmem:[%s551 + $0x6a] sm:$0xff]
        %v2654 = vld [vmem:[%s551 + $0x72] sm:$0xff]
        %v2655 = vld [vmem:[%s551 + $0x7a] sm:$0xff]
        %v2656 = vld [vmem:[%s551 + $0x82] sm:$0xff]
        %v2657 = vld [vmem:[%s551 + $0x8a] sm:$0xff]
        %v2658 = vld [vmem:[%s551 + $0x92] sm:$0xff]
        %v2659 = vld [vmem:[%s551 + $0x9a] sm:$0xff]
        %v2660 = vld [vmem:[%s551 + $0xa2] sm:$0xff]
        %v2661 = vld [vmem:[%s551 + $0xaa] sm:$0xff]
        %v2662 = vld [vmem:[%s551 + $0xb2] sm:$0xff]
        %v2663 = vld [vmem:[%s551 + $0xba] sm:$0xff]
        %v2664 = vld [vmem:[%s551 + $0xc2] sm:$0xff]
        %v2665 = vld [vmem:[%s551 + $0xca] sm:$0xff]
        %v2666 = vld [vmem:[%s551 + $0xd2] sm:$0xff]
        %v2667 = vld [vmem:[%s551 + $0xda] sm:$0xff]
        %v2668 = vld [vmem:[%s551 + $0xe2] sm:$0xff]
        %v2669 = vld [vmem:[%s551 + $0xea] sm:$0xff]
        %v2670 = vld [vmem:[%s551 + $0xf2] sm:$0xff]
        %v2671 = vld [vmem:[%s551 + $0xfa] sm:$0xff]
        %v2672 = vld [vmem:[%s551 + $0x102] sm:$0xff]
        %v2673 = vld [vmem:[%s551 + $0x10a] sm:$0xff]
        %v2674 = vld [vmem:[%s551 + $0x112] sm:$0xff]
        %v2675 = vld [vmem:[%s551 + $0x11a] sm:$0xff]
        %v2676 = vld [vmem:[%s551 + $0x122] sm:$0xff]
        %v2677 = vld [vmem:[%s551 + $0x12a] sm:$0xff]
        %v2678 = vld [vmem:[%s551 + $0x132] sm:$0xff]
        %v2679 = vld [vmem:[%s551 + $0x13a] sm:$0xff]
        %v2680 = vld [vmem:[%s551 + $0x142] sm:$0xff]
        %v2681 = vld [vmem:[%s551 + $0x14a] sm:$0xff]
        %v2682 = vld [vmem:[%s551 + $0x152] sm:$0xff]
        %v2683 = vld [vmem:[%s551 + $0x15a] sm:$0xff]
        %v2684 = vld [vmem:[%s551 + $0x162] sm:$0xff]
        %v2685 = vld [vmem:[%s551 + $0x16a] sm:$0xff]
        %v2686 = vld [vmem:[%s551 + $0x172] sm:$0xff]
        %v2687 = vld [vmem:[%s551 + $0x17a] sm:$0xff]
        %v2688 = vld [vmem:[%s551 + $0x182] sm:$0xff]
        %v2689 = vld [vmem:[%s551 + $0x18a] sm:$0xff]
        %v2690 = vld [vmem:[%s551 + $0x192] sm:$0xff]
        %v2691 = vld [vmem:[%s551 + $0x19a] sm:$0xff]
        %v2692 = vld [vmem:[%s551 + $0x1a2] sm:$0xff]
        %v2693 = vld [vmem:[%s551 + $0x1aa] sm:$0xff]
        %v2694 = vld [vmem:[%s551 + $0x1b2] sm:$0xff]
        %v2695 = vld [vmem:[%s551 + $0x1ba] sm:$0xff]
        %v2696 = vld [vmem:[%s551 + $0x1c2] sm:$0xff]
        %v2697 = vld [vmem:[%s551 + $0x1ca] sm:$0xff]
        %v2698 = vld [vmem:[%s551 + $0x1d2] sm:$0xff]
        %v2699 = vld [vmem:[%s551 + $0x1da] sm:$0xff]
        %v2700 = vld [vmem:[%s551 + $0x1e2] sm:$0xff]
        %v2701 = vld [vmem:[%s551 + $0x1ea] sm:$0xff]
        %v2702 = vld [vmem:[%s551 + $0x1f2] sm:$0xff]
        %v2703 = vld [vmem:[%s551 + $0x1fa] sm:$0xff]
        %v2704 = vld [vmem:[%s551 + $0x202] sm:$0xff]
        %v2705 = vld [vmem:[%s551 + $0x20a] sm:$0xff]
        %v2706 = vld [vmem:[%s551 + $0x212] sm:$0xff]
        %v2707 = vld [vmem:[%s551 + $0x21a] sm:$0xff]
        %v2708 = vld [vmem:[%s551 + $0x222] sm:$0xff]
        %v2709 = vpack.c.bf16 %v2644, %v2643
        %v2710 = vpack.c.bf16 %v2646, %v2645
        %v2711 = vpack.c.bf16 %v2648, %v2647
        %v2712 = vpack.c.bf16 %v2650, %v2649
        %v2713 = vpack.c.bf16 %v2652, %v2651
        %v2714 = vpack.c.bf16 %v2654, %v2653
        %v2715 = vpack.c.bf16 %v2656, %v2655
        %v2716 = vpack.c.bf16 %v2658, %v2657
        %v2717 = vpack.c.bf16 %v2660, %v2659
        %v2718 = vpack.c.bf16 %v2662, %v2661
        %v2719 = vpack.c.bf16 %v2664, %v2663
        %v2720 = vpack.c.bf16 %v2666, %v2665
        %v2721 = vpack.c.bf16 %v2668, %v2667
        %v2722 = vpack.c.bf16 %v2670, %v2669
        %v2723 = vpack.c.bf16 %v2672, %v2671
        %v2724 = vpack.c.bf16 %v2674, %v2673
        %v2725 = vpack.c.bf16 %v2676, %v2675
        %v2726 = vpack.c.bf16 %v2678, %v2677
        %v2727 = vpack.c.bf16 %v2680, %v2679
        %v2728 = vpack.c.bf16 %v2682, %v2681
        %v2729 = vpack.c.bf16 %v2684, %v2683
        %v2730 = vpack.c.bf16 %v2686, %v2685
        %v2731 = vpack.c.bf16 %v2688, %v2687
        %v2732 = vpack.c.bf16 %v2690, %v2689
        %v2733 = vpack.c.bf16 %v2692, %v2691
        %v2734 = vpack.c.bf16 %v2694, %v2693
        %v2735 = vpack.c.bf16 %v2696, %v2695
        %v2736 = vpack.c.bf16 %v2698, %v2697
        %v2737 = vpack.c.bf16 %v2700, %v2699
        %v2738 = vpack.c.bf16 %v2702, %v2701
        %v2739 = vpack.c.bf16 %v2704, %v2703
        %v2740 = vpack.c.bf16 %v2706, %v2705
        %v2741 = vpack.c.bf16 %v2708, %v2707
        %s2742 = scalar_lea.vmem %s2, 10
        %v2743 = vld [vmem:[%s2742] sm:$0x3]
        %v2745 = vsel %vm757, %v2709, 0
        %v2748 = vsel %vm757, %v2710, 0
        %v2751 = vsel %vm757, %v2711, 0
        %v2754 = vsel %vm757, %v2712, 0
        %v2757 = vsel %vm757, %v2713, 0
        %v2760 = vsel %vm757, %v2714, 0
        %v2763 = vsel %vm757, %v2715, 0
        %v2766 = vsel %vm757, %v2716, 0
        %v2769 = vsel %vm757, %v2717, 0
        %v2772 = vsel %vm757, %v2718, 0
        %v2775 = vsel %vm757, %v2719, 0
        %v2778 = vsel %vm757, %v2720, 0
        %v2781 = vsel %vm757, %v2721, 0
        %v2784 = vsel %vm757, %v2722, 0
        %v2787 = vsel %vm757, %v2723, 0
        %v2790 = vsel %vm757, %v2724, 0
        %v2793 = vsel %vm757, %v2725, 0
        %v2796 = vsel %vm757, %v2726, 0
        %v2799 = vsel %vm757, %v2727, 0
        %v2802 = vsel %vm757, %v2728, 0
        %v2805 = vsel %vm757, %v2729, 0
        %v2808 = vsel %vm757, %v2730, 0
        %v2811 = vsel %vm757, %v2731, 0
        %v2814 = vsel %vm757, %v2732, 0
        %v2817 = vsel %vm757, %v2733, 0
        %v2820 = vsel %vm757, %v2734, 0
        %v2823 = vsel %vm757, %v2735, 0
        %v2826 = vsel %vm757, %v2736, 0
        %v2829 = vsel %vm757, %v2737, 0
        %v2832 = vsel %vm757, %v2738, 0
        %v2835 = vsel %vm757, %v2739, 0
        %v2838 = vsel %vm757, %v2740, 0
        %v2841 = vsel %vm757, %v2741, 0
        %v2844 = vand.u32 %v2743, %v860
        %2846 = vmatpush.bf16.msra.mxu0 0
        %2847 = vmatpush.bf16.msra.mxu0 0
        %2848 = vmatpush.bf16.msra.mxu0 0
        %2849 = vmatpush.bf16.msra.mxu0 0
        %2850 = vmatpush.bf16.msra.mxu0 0
        %2851 = vmatpush.bf16.msra.mxu0 0
        %2852 = vmatpush.bf16.msra.mxu0 0
        %2853 = vmatpush.bf16.msra.mxu0 %v2844
        %2854 = vmatmul.bf16.gmra.mxu0 %v2745
        %v2855 = vpop.f32.mrf.mxu0
        %v2856 = vadd.f32 0.0, %v2855
        %v2857 = vpop.f32.mrf.mxu0
        %v2858 = vadd.f32 0.0, %v2857
        %2859 = vmatmul.bf16.gmra.mxu0 %v2748
        %v2860 = vpop.f32.mrf.mxu0
        %v2861 = vadd.f32 0.0, %v2860
        %v2862 = vpop.f32.mrf.mxu0
        %v2863 = vadd.f32 0.0, %v2862
        %2864 = vmatmul.bf16.gmra.mxu0 %v2751
        %v2865 = vpop.f32.mrf.mxu0
        %v2866 = vadd.f32 0.0, %v2865
        %v2867 = vpop.f32.mrf.mxu0
        %v2868 = vadd.f32 0.0, %v2867
        %2869 = vmatmul.bf16.gmra.mxu0 %v2754
        %v2870 = vpop.f32.mrf.mxu0
        %v2871 = vadd.f32 0.0, %v2870
        %v2872 = vpop.f32.mrf.mxu0
        %v2873 = vadd.f32 0.0, %v2872
        %2874 = vmatmul.bf16.gmra.mxu0 %v2757
        %v2875 = vpop.f32.mrf.mxu0
        %v2876 = vadd.f32 0.0, %v2875
        %v2877 = vpop.f32.mrf.mxu0
        %v2878 = vadd.f32 0.0, %v2877
        %2879 = vmatmul.bf16.gmra.mxu0 %v2760
        %v2880 = vpop.f32.mrf.mxu0
        %v2881 = vadd.f32 0.0, %v2880
        %v2882 = vpop.f32.mrf.mxu0
        %v2883 = vadd.f32 0.0, %v2882
        %2884 = vmatmul.bf16.gmra.mxu0 %v2763
        %v2885 = vpop.f32.mrf.mxu0
        %v2886 = vadd.f32 0.0, %v2885
        %v2887 = vpop.f32.mrf.mxu0
        %v2888 = vadd.f32 0.0, %v2887
        %2889 = vmatmul.bf16.gmra.mxu0 %v2766
        %v2890 = vpop.f32.mrf.mxu0
        %v2891 = vadd.f32 0.0, %v2890
        %v2892 = vpop.f32.mrf.mxu0
        %v2893 = vadd.f32 0.0, %v2892
        %2894 = vmatmul.bf16.gmra.mxu0 %v2769
        %v2895 = vpop.f32.mrf.mxu0
        %v2896 = vadd.f32 0.0, %v2895
        %v2897 = vpop.f32.mrf.mxu0
        %v2898 = vadd.f32 0.0, %v2897
        %2899 = vmatmul.bf16.gmra.mxu0 %v2772
        %v2900 = vpop.f32.mrf.mxu0
        %v2901 = vadd.f32 0.0, %v2900
        %v2902 = vpop.f32.mrf.mxu0
        %v2903 = vadd.f32 0.0, %v2902
        %2904 = vmatmul.bf16.gmra.mxu0 %v2775
        %v2905 = vpop.f32.mrf.mxu0
        %v2906 = vadd.f32 0.0, %v2905
        %v2907 = vpop.f32.mrf.mxu0
        %v2908 = vadd.f32 0.0, %v2907
        %2909 = vmatmul.bf16.gmra.mxu0 %v2778
        %v2910 = vpop.f32.mrf.mxu0
        %v2911 = vadd.f32 0.0, %v2910
        %v2912 = vpop.f32.mrf.mxu0
        %v2913 = vadd.f32 0.0, %v2912
        %2914 = vmatmul.bf16.gmra.mxu0 %v2781
        %v2915 = vpop.f32.mrf.mxu0
        %v2916 = vadd.f32 0.0, %v2915
        %v2917 = vpop.f32.mrf.mxu0
        %v2918 = vadd.f32 0.0, %v2917
        %2919 = vmatmul.bf16.gmra.mxu0 %v2784
        %v2920 = vpop.f32.mrf.mxu0
        %v2921 = vadd.f32 0.0, %v2920
        %v2922 = vpop.f32.mrf.mxu0
        %v2923 = vadd.f32 0.0, %v2922
        %2924 = vmatmul.bf16.gmra.mxu0 %v2787
        %v2925 = vpop.f32.mrf.mxu0
        %v2926 = vadd.f32 0.0, %v2925
        %v2927 = vpop.f32.mrf.mxu0
        %v2928 = vadd.f32 0.0, %v2927
        %2929 = vmatmul.bf16.gmra.mxu0 %v2790
        %v2930 = vpop.f32.mrf.mxu0
        %v2931 = vadd.f32 0.0, %v2930
        %v2932 = vpop.f32.mrf.mxu0
        %v2933 = vadd.f32 0.0, %v2932
        %2934 = vmatmul.bf16.gmra.mxu0 %v2793
        %v2935 = vpop.f32.mrf.mxu0
        %v2936 = vadd.f32 0.0, %v2935
        %v2937 = vpop.f32.mrf.mxu0
        %v2938 = vadd.f32 0.0, %v2937
        %2939 = vmatmul.bf16.gmra.mxu0 %v2796
        %v2940 = vpop.f32.mrf.mxu0
        %v2941 = vadd.f32 0.0, %v2940
        %v2942 = vpop.f32.mrf.mxu0
        %v2943 = vadd.f32 0.0, %v2942
        %2944 = vmatmul.bf16.gmra.mxu0 %v2799
        %v2945 = vpop.f32.mrf.mxu0
        %v2946 = vadd.f32 0.0, %v2945
        %v2947 = vpop.f32.mrf.mxu0
        %v2948 = vadd.f32 0.0, %v2947
        %2949 = vmatmul.bf16.gmra.mxu0 %v2802
        %v2950 = vpop.f32.mrf.mxu0
        %v2951 = vadd.f32 0.0, %v2950
        %v2952 = vpop.f32.mrf.mxu0
        %v2953 = vadd.f32 0.0, %v2952
        %2954 = vmatmul.bf16.gmra.mxu0 %v2805
        %v2955 = vpop.f32.mrf.mxu0
        %v2956 = vadd.f32 0.0, %v2955
        %v2957 = vpop.f32.mrf.mxu0
        %v2958 = vadd.f32 0.0, %v2957
        %2959 = vmatmul.bf16.gmra.mxu0 %v2808
        %v2960 = vpop.f32.mrf.mxu0
        %v2961 = vadd.f32 0.0, %v2960
        %v2962 = vpop.f32.mrf.mxu0
        %v2963 = vadd.f32 0.0, %v2962
        %2964 = vmatmul.bf16.gmra.mxu0 %v2811
        %v2965 = vpop.f32.mrf.mxu0
        %v2966 = vadd.f32 0.0, %v2965
        %v2967 = vpop.f32.mrf.mxu0
        %v2968 = vadd.f32 0.0, %v2967
        %2969 = vmatmul.bf16.gmra.mxu0 %v2814
        %v2970 = vpop.f32.mrf.mxu0
        %v2971 = vadd.f32 0.0, %v2970
        %v2972 = vpop.f32.mrf.mxu0
        %v2973 = vadd.f32 0.0, %v2972
        %2974 = vmatmul.bf16.gmra.mxu0 %v2817
        %v2975 = vpop.f32.mrf.mxu0
        %v2976 = vadd.f32 0.0, %v2975
        %v2977 = vpop.f32.mrf.mxu0
        %v2978 = vadd.f32 0.0, %v2977
        %2979 = vmatmul.bf16.gmra.mxu0 %v2820
        %v2980 = vpop.f32.mrf.mxu0
        %v2981 = vadd.f32 0.0, %v2980
        %v2982 = vpop.f32.mrf.mxu0
        %v2983 = vadd.f32 0.0, %v2982
        %2984 = vmatmul.bf16.gmra.mxu0 %v2823
        %v2985 = vpop.f32.mrf.mxu0
        %v2986 = vadd.f32 0.0, %v2985
        %v2987 = vpop.f32.mrf.mxu0
        %v2988 = vadd.f32 0.0, %v2987
        %2989 = vmatmul.bf16.gmra.mxu0 %v2826
        %v2990 = vpop.f32.mrf.mxu0
        %v2991 = vadd.f32 0.0, %v2990
        %v2992 = vpop.f32.mrf.mxu0
        %v2993 = vadd.f32 0.0, %v2992
        %2994 = vmatmul.bf16.gmra.mxu0 %v2829
        %v2995 = vpop.f32.mrf.mxu0
        %v2996 = vadd.f32 0.0, %v2995
        %v2997 = vpop.f32.mrf.mxu0
        %v2998 = vadd.f32 0.0, %v2997
        %2999 = vmatmul.bf16.gmra.mxu0 %v2832
        %v3000 = vpop.f32.mrf.mxu0
        %v3001 = vadd.f32 0.0, %v3000
        %v3002 = vpop.f32.mrf.mxu0
        %v3003 = vadd.f32 0.0, %v3002
        %3004 = vmatmul.bf16.gmra.mxu0 %v2835
        %v3005 = vpop.f32.mrf.mxu0
        %v3006 = vadd.f32 0.0, %v3005
        %v3007 = vpop.f32.mrf.mxu0
        %v3008 = vadd.f32 0.0, %v3007
        %3009 = vmatmul.bf16.gmra.mxu0 %v2838
        %v3010 = vpop.f32.mrf.mxu0
        %v3011 = vadd.f32 0.0, %v3010
        %v3012 = vpop.f32.mrf.mxu0
        %v3013 = vadd.f32 0.0, %v3012
        %3014 = vmatmul.bf16.gmra.mxu0 %v2841
        %v3015 = vpop.f32.mrf.mxu0
        %v3016 = vadd.f32 0.0, %v3015
        %v3017 = vpop.f32.mrf.mxu0
        %v3018 = vadd.f32 0.0, %v3017
        %3019 = vdwg.mxu0
        %v3020 = vadd.f32 %v2577, %v2856
        %v3021 = vadd.f32 %v2578, %v2858
        %v3022 = vadd.f32 %v2579, %v2861
        %v3023 = vadd.f32 %v2580, %v2863
        %v3024 = vadd.f32 %v2581, %v2866
        %v3025 = vadd.f32 %v2582, %v2868
        %v3026 = vadd.f32 %v2583, %v2871
        %v3027 = vadd.f32 %v2584, %v2873
        %v3028 = vadd.f32 %v2585, %v2876
        %v3029 = vadd.f32 %v2586, %v2878
        %v3030 = vadd.f32 %v2587, %v2881
        %v3031 = vadd.f32 %v2588, %v2883
        %v3032 = vadd.f32 %v2589, %v2886
        %v3033 = vadd.f32 %v2590, %v2888
        %v3034 = vadd.f32 %v2591, %v2891
        %v3035 = vadd.f32 %v2592, %v2893
        %v3036 = vadd.f32 %v2593, %v2896
        %v3037 = vadd.f32 %v2594, %v2898
        %v3038 = vadd.f32 %v2595, %v2901
        %v3039 = vadd.f32 %v2596, %v2903
        %v3040 = vadd.f32 %v2597, %v2906
        %v3041 = vadd.f32 %v2598, %v2908
        %v3042 = vadd.f32 %v2599, %v2911
        %v3043 = vadd.f32 %v2600, %v2913
        %v3044 = vadd.f32 %v2601, %v2916
        %v3045 = vadd.f32 %v2602, %v2918
        %v3046 = vadd.f32 %v2603, %v2921
        %v3047 = vadd.f32 %v2604, %v2923
        %v3048 = vadd.f32 %v2605, %v2926
        %v3049 = vadd.f32 %v2606, %v2928
        %v3050 = vadd.f32 %v2607, %v2931
        %v3051 = vadd.f32 %v2608, %v2933
        %v3052 = vadd.f32 %v2609, %v2936
        %v3053 = vadd.f32 %v2610, %v2938
        %v3054 = vadd.f32 %v2611, %v2941
        %v3055 = vadd.f32 %v2612, %v2943
        %v3056 = vadd.f32 %v2613, %v2946
        %v3057 = vadd.f32 %v2614, %v2948
        %v3058 = vadd.f32 %v2615, %v2951
        %v3059 = vadd.f32 %v2616, %v2953
        %v3060 = vadd.f32 %v2617, %v2956
        %v3061 = vadd.f32 %v2618, %v2958
        %v3062 = vadd.f32 %v2619, %v2961
        %v3063 = vadd.f32 %v2620, %v2963
        %v3064 = vadd.f32 %v2621, %v2966
        %v3065 = vadd.f32 %v2622, %v2968
        %v3066 = vadd.f32 %v2623, %v2971
        %v3067 = vadd.f32 %v2624, %v2973
        %v3068 = vadd.f32 %v2625, %v2976
        %v3069 = vadd.f32 %v2626, %v2978
        %v3070 = vadd.f32 %v2627, %v2981
        %v3071 = vadd.f32 %v2628, %v2983
        %v3072 = vadd.f32 %v2629, %v2986
        %v3073 = vadd.f32 %v2630, %v2988
        %v3074 = vadd.f32 %v2631, %v2991
        %v3075 = vadd.f32 %v2632, %v2993
        %v3076 = vadd.f32 %v2633, %v2996
        %v3077 = vadd.f32 %v2634, %v2998
        %v3078 = vadd.f32 %v2635, %v3001
        %v3079 = vadd.f32 %v2636, %v3003
        %v3080 = vadd.f32 %v2637, %v3006
        %v3081 = vadd.f32 %v2638, %v3008
        %v3082 = vadd.f32 %v2639, %v3011
        %v3083 = vadd.f32 %v2640, %v3013
        %v3084 = vadd.f32 %v2641, %v3016
        %v3085 = vadd.f32 %v2642, %v3018
        %v3086 = vld [vmem:[%s551 + $0x30] sm:$0xff]
        %v3087 = vld [vmem:[%s551 + $0x38] sm:$0xff]
        %v3088 = vld [vmem:[%s551 + $0x40] sm:$0xff]
        %v3089 = vld [vmem:[%s551 + $0x48] sm:$0xff]
        %v3090 = vld [vmem:[%s551 + $0x50] sm:$0xff]
        %v3091 = vld [vmem:[%s551 + $0x58] sm:$0xff]
        %v3092 = vld [vmem:[%s551 + $0x60] sm:$0xff]
        %v3093 = vld [vmem:[%s551 + $0x68] sm:$0xff]
        %v3094 = vld [vmem:[%s551 + $0x70] sm:$0xff]
        %v3095 = vld [vmem:[%s551 + $0x78] sm:$0xff]
        %v3096 = vld [vmem:[%s551 + $0x80] sm:$0xff]
        %v3097 = vld [vmem:[%s551 + $0x88] sm:$0xff]
        %v3098 = vld [vmem:[%s551 + $0x90] sm:$0xff]
        %v3099 = vld [vmem:[%s551 + $0x98] sm:$0xff]
        %v3100 = vld [vmem:[%s551 + $0xa0] sm:$0xff]
        %v3101 = vld [vmem:[%s551 + $0xa8] sm:$0xff]
        %v3102 = vld [vmem:[%s551 + $0xb0] sm:$0xff]
        %v3103 = vld [vmem:[%s551 + $0xb8] sm:$0xff]
        %v3104 = vld [vmem:[%s551 + $0xc0] sm:$0xff]
        %v3105 = vld [vmem:[%s551 + $0xc8] sm:$0xff]
        %v3106 = vld [vmem:[%s551 + $0xd0] sm:$0xff]
        %v3107 = vld [vmem:[%s551 + $0xd8] sm:$0xff]
        %v3108 = vld [vmem:[%s551 + $0xe0] sm:$0xff]
        %v3109 = vld [vmem:[%s551 + $0xe8] sm:$0xff]
        %v3110 = vld [vmem:[%s551 + $0xf0] sm:$0xff]
        %v3111 = vld [vmem:[%s551 + $0xf8] sm:$0xff]
        %v3112 = vld [vmem:[%s551 + $0x100] sm:$0xff]
        %v3113 = vld [vmem:[%s551 + $0x108] sm:$0xff]
        %v3114 = vld [vmem:[%s551 + $0x110] sm:$0xff]
        %v3115 = vld [vmem:[%s551 + $0x118] sm:$0xff]
        %v3116 = vld [vmem:[%s551 + $0x120] sm:$0xff]
        %v3117 = vld [vmem:[%s551 + $0x128] sm:$0xff]
        %v3118 = vld [vmem:[%s551 + $0x130] sm:$0xff]
        %v3119 = vld [vmem:[%s551 + $0x138] sm:$0xff]
        %v3120 = vld [vmem:[%s551 + $0x140] sm:$0xff]
        %v3121 = vld [vmem:[%s551 + $0x148] sm:$0xff]
        %v3122 = vld [vmem:[%s551 + $0x150] sm:$0xff]
        %v3123 = vld [vmem:[%s551 + $0x158] sm:$0xff]
        %v3124 = vld [vmem:[%s551 + $0x160] sm:$0xff]
        %v3125 = vld [vmem:[%s551 + $0x168] sm:$0xff]
        %v3126 = vld [vmem:[%s551 + $0x170] sm:$0xff]
        %v3127 = vld [vmem:[%s551 + $0x178] sm:$0xff]
        %v3128 = vld [vmem:[%s551 + $0x180] sm:$0xff]
        %v3129 = vld [vmem:[%s551 + $0x188] sm:$0xff]
        %v3130 = vld [vmem:[%s551 + $0x190] sm:$0xff]
        %v3131 = vld [vmem:[%s551 + $0x198] sm:$0xff]
        %v3132 = vld [vmem:[%s551 + $0x1a0] sm:$0xff]
        %v3133 = vld [vmem:[%s551 + $0x1a8] sm:$0xff]
        %v3134 = vld [vmem:[%s551 + $0x1b0] sm:$0xff]
        %v3135 = vld [vmem:[%s551 + $0x1b8] sm:$0xff]
        %v3136 = vld [vmem:[%s551 + $0x1c0] sm:$0xff]
        %v3137 = vld [vmem:[%s551 + $0x1c8] sm:$0xff]
        %v3138 = vld [vmem:[%s551 + $0x1d0] sm:$0xff]
        %v3139 = vld [vmem:[%s551 + $0x1d8] sm:$0xff]
        %v3140 = vld [vmem:[%s551 + $0x1e0] sm:$0xff]
        %v3141 = vld [vmem:[%s551 + $0x1e8] sm:$0xff]
        %v3142 = vld [vmem:[%s551 + $0x1f0] sm:$0xff]
        %v3143 = vld [vmem:[%s551 + $0x1f8] sm:$0xff]
        %v3144 = vld [vmem:[%s551 + $0x200] sm:$0xff]
        %v3145 = vld [vmem:[%s551 + $0x208] sm:$0xff]
        %v3146 = vld [vmem:[%s551 + $0x210] sm:$0xff]
        %v3147 = vld [vmem:[%s551 + $0x218] sm:$0xff]
        %v3148 = vld [vmem:[%s551 + $0x220] sm:$0xff]
        %v3149 = vld [vmem:[%s551 + $0x228] sm:$0xff]
        %v3150 = vld [vmem:[%s551 + $0x230] sm:$0xff]
        %v3151 = vld [vmem:[%s551 + $0x238] sm:$0xff]
        %v3152 = vpack.c.bf16 %v3087, %v3086
        %v3153 = vpack.c.bf16 %v3089, %v3088
        %v3154 = vpack.c.bf16 %v3091, %v3090
        %v3155 = vpack.c.bf16 %v3093, %v3092
        %v3156 = vpack.c.bf16 %v3095, %v3094
        %v3157 = vpack.c.bf16 %v3097, %v3096
        %v3158 = vpack.c.bf16 %v3099, %v3098
        %v3159 = vpack.c.bf16 %v3101, %v3100
        %v3160 = vpack.c.bf16 %v3103, %v3102
        %v3161 = vpack.c.bf16 %v3105, %v3104
        %v3162 = vpack.c.bf16 %v3107, %v3106
        %v3163 = vpack.c.bf16 %v3109, %v3108
        %v3164 = vpack.c.bf16 %v3111, %v3110
        %v3165 = vpack.c.bf16 %v3113, %v3112
        %v3166 = vpack.c.bf16 %v3115, %v3114
        %v3167 = vpack.c.bf16 %v3117, %v3116
        %v3168 = vpack.c.bf16 %v3119, %v3118
        %v3169 = vpack.c.bf16 %v3121, %v3120
        %v3170 = vpack.c.bf16 %v3123, %v3122
        %v3171 = vpack.c.bf16 %v3125, %v3124
        %v3172 = vpack.c.bf16 %v3127, %v3126
        %v3173 = vpack.c.bf16 %v3129, %v3128
        %v3174 = vpack.c.bf16 %v3131, %v3130
        %v3175 = vpack.c.bf16 %v3133, %v3132
        %v3176 = vpack.c.bf16 %v3135, %v3134
        %v3177 = vpack.c.bf16 %v3137, %v3136
        %v3178 = vpack.c.bf16 %v3139, %v3138
        %v3179 = vpack.c.bf16 %v3141, %v3140
        %v3180 = vpack.c.bf16 %v3143, %v3142
        %v3181 = vpack.c.bf16 %v3145, %v3144
        %v3182 = vpack.c.bf16 %v3147, %v3146
        %v3183 = vpack.c.bf16 %v3149, %v3148
        %v3184 = vpack.c.bf16 %v3151, %v3150
        %s3185 = scalar_lea.vmem %s2, 12
        %v3186 = vld [vmem:[%s3185] sm:$0x3]
        %v3188 = vsel %vm757, %v3152, 0
        %v3191 = vsel %vm757, %v3153, 0
        %v3194 = vsel %vm757, %v3154, 0
        %v3197 = vsel %vm757, %v3155, 0
        %v3200 = vsel %vm757, %v3156, 0
        %v3203 = vsel %vm757, %v3157, 0
        %v3206 = vsel %vm757, %v3158, 0
        %v3209 = vsel %vm757, %v3159, 0
        %v3212 = vsel %vm757, %v3160, 0
        %v3215 = vsel %vm757, %v3161, 0
        %v3218 = vsel %vm757, %v3162, 0
        %v3221 = vsel %vm757, %v3163, 0
        %v3224 = vsel %vm757, %v3164, 0
        %v3227 = vsel %vm757, %v3165, 0
        %v3230 = vsel %vm757, %v3166, 0
        %v3233 = vsel %vm757, %v3167, 0
        %v3236 = vsel %vm757, %v3168, 0
        %v3239 = vsel %vm757, %v3169, 0
        %v3242 = vsel %vm757, %v3170, 0
        %v3245 = vsel %vm757, %v3171, 0
        %v3248 = vsel %vm757, %v3172, 0
        %v3251 = vsel %vm757, %v3173, 0
        %v3254 = vsel %vm757, %v3174, 0
        %v3257 = vsel %vm757, %v3175, 0
        %v3260 = vsel %vm757, %v3176, 0
        %v3263 = vsel %vm757, %v3177, 0
        %v3266 = vsel %vm757, %v3178, 0
        %v3269 = vsel %vm757, %v3179, 0
        %v3272 = vsel %vm757, %v3180, 0
        %v3275 = vsel %vm757, %v3181, 0
        %v3278 = vsel %vm757, %v3182, 0
        %v3281 = vsel %vm757, %v3183, 0
        %v3284 = vsel %vm757, %v3184, 0
        %v3287 = vand.u32 %v3186, %v860
        %3289 = vmatpush.bf16.msra.mxu0 0
        %3290 = vmatpush.bf16.msra.mxu0 0
        %3291 = vmatpush.bf16.msra.mxu0 0
        %3292 = vmatpush.bf16.msra.mxu0 0
        %3293 = vmatpush.bf16.msra.mxu0 0
        %3294 = vmatpush.bf16.msra.mxu0 0
        %3295 = vmatpush.bf16.msra.mxu0 0
        %3296 = vmatpush.bf16.msra.mxu0 %v3287
        %3297 = vmatmul.bf16.gmra.mxu0 %v3188
        %v3298 = vpop.f32.mrf.mxu0
        %v3299 = vadd.f32 0.0, %v3298
        %v3300 = vpop.f32.mrf.mxu0
        %v3301 = vadd.f32 0.0, %v3300
        %3302 = vmatmul.bf16.gmra.mxu0 %v3191
        %v3303 = vpop.f32.mrf.mxu0
        %v3304 = vadd.f32 0.0, %v3303
        %v3305 = vpop.f32.mrf.mxu0
        %v3306 = vadd.f32 0.0, %v3305
        %3307 = vmatmul.bf16.gmra.mxu0 %v3194
        %v3308 = vpop.f32.mrf.mxu0
        %v3309 = vadd.f32 0.0, %v3308
        %v3310 = vpop.f32.mrf.mxu0
        %v3311 = vadd.f32 0.0, %v3310
        %3312 = vmatmul.bf16.gmra.mxu0 %v3197
        %v3313 = vpop.f32.mrf.mxu0
        %v3314 = vadd.f32 0.0, %v3313
        %v3315 = vpop.f32.mrf.mxu0
        %v3316 = vadd.f32 0.0, %v3315
        %3317 = vmatmul.bf16.gmra.mxu0 %v3200
        %v3318 = vpop.f32.mrf.mxu0
        %v3319 = vadd.f32 0.0, %v3318
        %v3320 = vpop.f32.mrf.mxu0
        %v3321 = vadd.f32 0.0, %v3320
        %3322 = vmatmul.bf16.gmra.mxu0 %v3203
        %v3323 = vpop.f32.mrf.mxu0
        %v3324 = vadd.f32 0.0, %v3323
        %v3325 = vpop.f32.mrf.mxu0
        %v3326 = vadd.f32 0.0, %v3325
        %3327 = vmatmul.bf16.gmra.mxu0 %v3206
        %v3328 = vpop.f32.mrf.mxu0
        %v3329 = vadd.f32 0.0, %v3328
        %v3330 = vpop.f32.mrf.mxu0
        %v3331 = vadd.f32 0.0, %v3330
        %3332 = vmatmul.bf16.gmra.mxu0 %v3209
        %v3333 = vpop.f32.mrf.mxu0
        %v3334 = vadd.f32 0.0, %v3333
        %v3335 = vpop.f32.mrf.mxu0
        %v3336 = vadd.f32 0.0, %v3335
        %3337 = vmatmul.bf16.gmra.mxu0 %v3212
        %v3338 = vpop.f32.mrf.mxu0
        %v3339 = vadd.f32 0.0, %v3338
        %v3340 = vpop.f32.mrf.mxu0
        %v3341 = vadd.f32 0.0, %v3340
        %3342 = vmatmul.bf16.gmra.mxu0 %v3215
        %v3343 = vpop.f32.mrf.mxu0
        %v3344 = vadd.f32 0.0, %v3343
        %v3345 = vpop.f32.mrf.mxu0
        %v3346 = vadd.f32 0.0, %v3345
        %3347 = vmatmul.bf16.gmra.mxu0 %v3218
        %v3348 = vpop.f32.mrf.mxu0
        %v3349 = vadd.f32 0.0, %v3348
        %v3350 = vpop.f32.mrf.mxu0
        %v3351 = vadd.f32 0.0, %v3350
        %3352 = vmatmul.bf16.gmra.mxu0 %v3221
        %v3353 = vpop.f32.mrf.mxu0
        %v3354 = vadd.f32 0.0, %v3353
        %v3355 = vpop.f32.mrf.mxu0
        %v3356 = vadd.f32 0.0, %v3355
        %3357 = vmatmul.bf16.gmra.mxu0 %v3224
        %v3358 = vpop.f32.mrf.mxu0
        %v3359 = vadd.f32 0.0, %v3358
        %v3360 = vpop.f32.mrf.mxu0
        %v3361 = vadd.f32 0.0, %v3360
        %3362 = vmatmul.bf16.gmra.mxu0 %v3227
        %v3363 = vpop.f32.mrf.mxu0
        %v3364 = vadd.f32 0.0, %v3363
        %v3365 = vpop.f32.mrf.mxu0
        %v3366 = vadd.f32 0.0, %v3365
        %3367 = vmatmul.bf16.gmra.mxu0 %v3230
        %v3368 = vpop.f32.mrf.mxu0
        %v3369 = vadd.f32 0.0, %v3368
        %v3370 = vpop.f32.mrf.mxu0
        %v3371 = vadd.f32 0.0, %v3370
        %3372 = vmatmul.bf16.gmra.mxu0 %v3233
        %v3373 = vpop.f32.mrf.mxu0
        %v3374 = vadd.f32 0.0, %v3373
        %v3375 = vpop.f32.mrf.mxu0
        %v3376 = vadd.f32 0.0, %v3375
        %3377 = vmatmul.bf16.gmra.mxu0 %v3236
        %v3378 = vpop.f32.mrf.mxu0
        %v3379 = vadd.f32 0.0, %v3378
        %v3380 = vpop.f32.mrf.mxu0
        %v3381 = vadd.f32 0.0, %v3380
        %3382 = vmatmul.bf16.gmra.mxu0 %v3239
        %v3383 = vpop.f32.mrf.mxu0
        %v3384 = vadd.f32 0.0, %v3383
        %v3385 = vpop.f32.mrf.mxu0
        %v3386 = vadd.f32 0.0, %v3385
        %3387 = vmatmul.bf16.gmra.mxu0 %v3242
        %v3388 = vpop.f32.mrf.mxu0
        %v3389 = vadd.f32 0.0, %v3388
        %v3390 = vpop.f32.mrf.mxu0
        %v3391 = vadd.f32 0.0, %v3390
        %3392 = vmatmul.bf16.gmra.mxu0 %v3245
        %v3393 = vpop.f32.mrf.mxu0
        %v3394 = vadd.f32 0.0, %v3393
        %v3395 = vpop.f32.mrf.mxu0
        %v3396 = vadd.f32 0.0, %v3395
        %3397 = vmatmul.bf16.gmra.mxu0 %v3248
        %v3398 = vpop.f32.mrf.mxu0
        %v3399 = vadd.f32 0.0, %v3398
        %v3400 = vpop.f32.mrf.mxu0
        %v3401 = vadd.f32 0.0, %v3400
        %3402 = vmatmul.bf16.gmra.mxu0 %v3251
        %v3403 = vpop.f32.mrf.mxu0
        %v3404 = vadd.f32 0.0, %v3403
        %v3405 = vpop.f32.mrf.mxu0
        %v3406 = vadd.f32 0.0, %v3405
        %3407 = vmatmul.bf16.gmra.mxu0 %v3254
        %v3408 = vpop.f32.mrf.mxu0
        %v3409 = vadd.f32 0.0, %v3408
        %v3410 = vpop.f32.mrf.mxu0
        %v3411 = vadd.f32 0.0, %v3410
        %3412 = vmatmul.bf16.gmra.mxu0 %v3257
        %v3413 = vpop.f32.mrf.mxu0
        %v3414 = vadd.f32 0.0, %v3413
        %v3415 = vpop.f32.mrf.mxu0
        %v3416 = vadd.f32 0.0, %v3415
        %3417 = vmatmul.bf16.gmra.mxu0 %v3260
        %v3418 = vpop.f32.mrf.mxu0
        %v3419 = vadd.f32 0.0, %v3418
        %v3420 = vpop.f32.mrf.mxu0
        %v3421 = vadd.f32 0.0, %v3420
        %3422 = vmatmul.bf16.gmra.mxu0 %v3263
        %v3423 = vpop.f32.mrf.mxu0
        %v3424 = vadd.f32 0.0, %v3423
        %v3425 = vpop.f32.mrf.mxu0
        %v3426 = vadd.f32 0.0, %v3425
        %3427 = vmatmul.bf16.gmra.mxu0 %v3266
        %v3428 = vpop.f32.mrf.mxu0
        %v3429 = vadd.f32 0.0, %v3428
        %v3430 = vpop.f32.mrf.mxu0
        %v3431 = vadd.f32 0.0, %v3430
        %3432 = vmatmul.bf16.gmra.mxu0 %v3269
        %v3433 = vpop.f32.mrf.mxu0
        %v3434 = vadd.f32 0.0, %v3433
        %v3435 = vpop.f32.mrf.mxu0
        %v3436 = vadd.f32 0.0, %v3435
        %3437 = vmatmul.bf16.gmra.mxu0 %v3272
        %v3438 = vpop.f32.mrf.mxu0
        %v3439 = vadd.f32 0.0, %v3438
        %v3440 = vpop.f32.mrf.mxu0
        %v3441 = vadd.f32 0.0, %v3440
        %3442 = vmatmul.bf16.gmra.mxu0 %v3275
        %v3443 = vpop.f32.mrf.mxu0
        %v3444 = vadd.f32 0.0, %v3443
        %v3445 = vpop.f32.mrf.mxu0
        %v3446 = vadd.f32 0.0, %v3445
        %3447 = vmatmul.bf16.gmra.mxu0 %v3278
        %v3448 = vpop.f32.mrf.mxu0
        %v3449 = vadd.f32 0.0, %v3448
        %v3450 = vpop.f32.mrf.mxu0
        %v3451 = vadd.f32 0.0, %v3450
        %3452 = vmatmul.bf16.gmra.mxu0 %v3281
        %v3453 = vpop.f32.mrf.mxu0
        %v3454 = vadd.f32 0.0, %v3453
        %v3455 = vpop.f32.mrf.mxu0
        %v3456 = vadd.f32 0.0, %v3455
        %3457 = vmatmul.bf16.gmra.mxu0 %v3284
        %v3458 = vpop.f32.mrf.mxu0
        %v3459 = vadd.f32 0.0, %v3458
        %v3460 = vpop.f32.mrf.mxu0
        %v3461 = vadd.f32 0.0, %v3460
        %3462 = vdwg.mxu0
        %v3463 = vadd.f32 %v3020, %v3299
        %v3464 = vadd.f32 %v3021, %v3301
        %v3465 = vadd.f32 %v3022, %v3304
        %v3466 = vadd.f32 %v3023, %v3306
        %v3467 = vadd.f32 %v3024, %v3309
        %v3468 = vadd.f32 %v3025, %v3311
        %v3469 = vadd.f32 %v3026, %v3314
        %v3470 = vadd.f32 %v3027, %v3316
        %v3471 = vadd.f32 %v3028, %v3319
        %v3472 = vadd.f32 %v3029, %v3321
        %v3473 = vadd.f32 %v3030, %v3324
        %v3474 = vadd.f32 %v3031, %v3326
        %v3475 = vadd.f32 %v3032, %v3329
        %v3476 = vadd.f32 %v3033, %v3331
        %v3477 = vadd.f32 %v3034, %v3334
        %v3478 = vadd.f32 %v3035, %v3336
        %v3479 = vadd.f32 %v3036, %v3339
        %v3480 = vadd.f32 %v3037, %v3341
        %v3481 = vadd.f32 %v3038, %v3344
        %v3482 = vadd.f32 %v3039, %v3346
        %v3483 = vadd.f32 %v3040, %v3349
        %v3484 = vadd.f32 %v3041, %v3351
        %v3485 = vadd.f32 %v3042, %v3354
        %v3486 = vadd.f32 %v3043, %v3356
        %v3487 = vadd.f32 %v3044, %v3359
        %v3488 = vadd.f32 %v3045, %v3361
        %v3489 = vadd.f32 %v3046, %v3364
        %v3490 = vadd.f32 %v3047, %v3366
        %v3491 = vadd.f32 %v3048, %v3369
        %v3492 = vadd.f32 %v3049, %v3371
        %v3493 = vadd.f32 %v3050, %v3374
        %v3494 = vadd.f32 %v3051, %v3376
        %v3495 = vadd.f32 %v3052, %v3379
        %v3496 = vadd.f32 %v3053, %v3381
        %v3497 = vadd.f32 %v3054, %v3384
        %v3498 = vadd.f32 %v3055, %v3386
        %v3499 = vadd.f32 %v3056, %v3389
        %v3500 = vadd.f32 %v3057, %v3391
        %v3501 = vadd.f32 %v3058, %v3394
        %v3502 = vadd.f32 %v3059, %v3396
        %v3503 = vadd.f32 %v3060, %v3399
        %v3504 = vadd.f32 %v3061, %v3401
        %v3505 = vadd.f32 %v3062, %v3404
        %v3506 = vadd.f32 %v3063, %v3406
        %v3507 = vadd.f32 %v3064, %v3409
        %v3508 = vadd.f32 %v3065, %v3411
        %v3509 = vadd.f32 %v3066, %v3414
        %v3510 = vadd.f32 %v3067, %v3416
        %v3511 = vadd.f32 %v3068, %v3419
        %v3512 = vadd.f32 %v3069, %v3421
        %v3513 = vadd.f32 %v3070, %v3424
        %v3514 = vadd.f32 %v3071, %v3426
        %v3515 = vadd.f32 %v3072, %v3429
        %v3516 = vadd.f32 %v3073, %v3431
        %v3517 = vadd.f32 %v3074, %v3434
        %v3518 = vadd.f32 %v3075, %v3436
        %v3519 = vadd.f32 %v3076, %v3439
        %v3520 = vadd.f32 %v3077, %v3441
        %v3521 = vadd.f32 %v3078, %v3444
        %v3522 = vadd.f32 %v3079, %v3446
        %v3523 = vadd.f32 %v3080, %v3449
        %v3524 = vadd.f32 %v3081, %v3451
        %v3525 = vadd.f32 %v3082, %v3454
        %v3526 = vadd.f32 %v3083, %v3456
        %v3527 = vadd.f32 %v3084, %v3459
        %v3528 = vadd.f32 %v3085, %v3461
        %v3529 = vld [vmem:[%s551 + $0x31] sm:$0xff]
        %v3530 = vld [vmem:[%s551 + $0x39] sm:$0xff]
        %v3531 = vld [vmem:[%s551 + $0x41] sm:$0xff]
        %v3532 = vld [vmem:[%s551 + $0x49] sm:$0xff]
        %v3533 = vld [vmem:[%s551 + $0x51] sm:$0xff]
        %v3534 = vld [vmem:[%s551 + $0x59] sm:$0xff]
        %v3535 = vld [vmem:[%s551 + $0x61] sm:$0xff]
        %v3536 = vld [vmem:[%s551 + $0x69] sm:$0xff]
        %v3537 = vld [vmem:[%s551 + $0x71] sm:$0xff]
        %v3538 = vld [vmem:[%s551 + $0x79] sm:$0xff]
        %v3539 = vld [vmem:[%s551 + $0x81] sm:$0xff]
        %v3540 = vld [vmem:[%s551 + $0x89] sm:$0xff]
        %v3541 = vld [vmem:[%s551 + $0x91] sm:$0xff]
        %v3542 = vld [vmem:[%s551 + $0x99] sm:$0xff]
        %v3543 = vld [vmem:[%s551 + $0xa1] sm:$0xff]
        %v3544 = vld [vmem:[%s551 + $0xa9] sm:$0xff]
        %v3545 = vld [vmem:[%s551 + $0xb1] sm:$0xff]
        %v3546 = vld [vmem:[%s551 + $0xb9] sm:$0xff]
        %v3547 = vld [vmem:[%s551 + $0xc1] sm:$0xff]
        %v3548 = vld [vmem:[%s551 + $0xc9] sm:$0xff]
        %v3549 = vld [vmem:[%s551 + $0xd1] sm:$0xff]
        %v3550 = vld [vmem:[%s551 + $0xd9] sm:$0xff]
        %v3551 = vld [vmem:[%s551 + $0xe1] sm:$0xff]
        %v3552 = vld [vmem:[%s551 + $0xe9] sm:$0xff]
        %v3553 = vld [vmem:[%s551 + $0xf1] sm:$0xff]
        %v3554 = vld [vmem:[%s551 + $0xf9] sm:$0xff]
        %v3555 = vld [vmem:[%s551 + $0x101] sm:$0xff]
        %v3556 = vld [vmem:[%s551 + $0x109] sm:$0xff]
        %v3557 = vld [vmem:[%s551 + $0x111] sm:$0xff]
        %v3558 = vld [vmem:[%s551 + $0x119] sm:$0xff]
        %v3559 = vld [vmem:[%s551 + $0x121] sm:$0xff]
        %v3560 = vld [vmem:[%s551 + $0x129] sm:$0xff]
        %v3561 = vld [vmem:[%s551 + $0x131] sm:$0xff]
        %v3562 = vld [vmem:[%s551 + $0x139] sm:$0xff]
        %v3563 = vld [vmem:[%s551 + $0x141] sm:$0xff]
        %v3564 = vld [vmem:[%s551 + $0x149] sm:$0xff]
        %v3565 = vld [vmem:[%s551 + $0x151] sm:$0xff]
        %v3566 = vld [vmem:[%s551 + $0x159] sm:$0xff]
        %v3567 = vld [vmem:[%s551 + $0x161] sm:$0xff]
        %v3568 = vld [vmem:[%s551 + $0x169] sm:$0xff]
        %v3569 = vld [vmem:[%s551 + $0x171] sm:$0xff]
        %v3570 = vld [vmem:[%s551 + $0x179] sm:$0xff]
        %v3571 = vld [vmem:[%s551 + $0x181] sm:$0xff]
        %v3572 = vld [vmem:[%s551 + $0x189] sm:$0xff]
        %v3573 = vld [vmem:[%s551 + $0x191] sm:$0xff]
        %v3574 = vld [vmem:[%s551 + $0x199] sm:$0xff]
        %v3575 = vld [vmem:[%s551 + $0x1a1] sm:$0xff]
        %v3576 = vld [vmem:[%s551 + $0x1a9] sm:$0xff]
        %v3577 = vld [vmem:[%s551 + $0x1b1] sm:$0xff]
        %v3578 = vld [vmem:[%s551 + $0x1b9] sm:$0xff]
        %v3579 = vld [vmem:[%s551 + $0x1c1] sm:$0xff]
        %v3580 = vld [vmem:[%s551 + $0x1c9] sm:$0xff]
        %v3581 = vld [vmem:[%s551 + $0x1d1] sm:$0xff]
        %v3582 = vld [vmem:[%s551 + $0x1d9] sm:$0xff]
        %v3583 = vld [vmem:[%s551 + $0x1e1] sm:$0xff]
        %v3584 = vld [vmem:[%s551 + $0x1e9] sm:$0xff]
        %v3585 = vld [vmem:[%s551 + $0x1f1] sm:$0xff]
        %v3586 = vld [vmem:[%s551 + $0x1f9] sm:$0xff]
        %v3587 = vld [vmem:[%s551 + $0x201] sm:$0xff]
        %v3588 = vld [vmem:[%s551 + $0x209] sm:$0xff]
        %v3589 = vld [vmem:[%s551 + $0x211] sm:$0xff]
        %v3590 = vld [vmem:[%s551 + $0x219] sm:$0xff]
        %v3591 = vld [vmem:[%s551 + $0x221] sm:$0xff]
        %v3592 = vld [vmem:[%s551 + $0x229] sm:$0xff]
        %v3593 = vld [vmem:[%s551 + $0x231] sm:$0xff]
        %v3594 = vld [vmem:[%s551 + $0x239] sm:$0xff]
        %v3595 = vpack.c.bf16 %v3530, %v3529
        %v3596 = vpack.c.bf16 %v3532, %v3531
        %v3597 = vpack.c.bf16 %v3534, %v3533
        %v3598 = vpack.c.bf16 %v3536, %v3535
        %v3599 = vpack.c.bf16 %v3538, %v3537
        %v3600 = vpack.c.bf16 %v3540, %v3539
        %v3601 = vpack.c.bf16 %v3542, %v3541
        %v3602 = vpack.c.bf16 %v3544, %v3543
        %v3603 = vpack.c.bf16 %v3546, %v3545
        %v3604 = vpack.c.bf16 %v3548, %v3547
        %v3605 = vpack.c.bf16 %v3550, %v3549
        %v3606 = vpack.c.bf16 %v3552, %v3551
        %v3607 = vpack.c.bf16 %v3554, %v3553
        %v3608 = vpack.c.bf16 %v3556, %v3555
        %v3609 = vpack.c.bf16 %v3558, %v3557
        %v3610 = vpack.c.bf16 %v3560, %v3559
        %v3611 = vpack.c.bf16 %v3562, %v3561
        %v3612 = vpack.c.bf16 %v3564, %v3563
        %v3613 = vpack.c.bf16 %v3566, %v3565
        %v3614 = vpack.c.bf16 %v3568, %v3567
        %v3615 = vpack.c.bf16 %v3570, %v3569
        %v3616 = vpack.c.bf16 %v3572, %v3571
        %v3617 = vpack.c.bf16 %v3574, %v3573
        %v3618 = vpack.c.bf16 %v3576, %v3575
        %v3619 = vpack.c.bf16 %v3578, %v3577
        %v3620 = vpack.c.bf16 %v3580, %v3579
        %v3621 = vpack.c.bf16 %v3582, %v3581
        %v3622 = vpack.c.bf16 %v3584, %v3583
        %v3623 = vpack.c.bf16 %v3586, %v3585
        %v3624 = vpack.c.bf16 %v3588, %v3587
        %v3625 = vpack.c.bf16 %v3590, %v3589
        %v3626 = vpack.c.bf16 %v3592, %v3591
        %v3627 = vpack.c.bf16 %v3594, %v3593
        %s3628 = scalar_lea.vmem %s2, 14
        %v3629 = vld [vmem:[%s3628] sm:$0x3]
        %v3631 = vsel %vm757, %v3595, 0
        %v3634 = vsel %vm757, %v3596, 0
        %v3637 = vsel %vm757, %v3597, 0
        %v3640 = vsel %vm757, %v3598, 0
        %v3643 = vsel %vm757, %v3599, 0
        %v3646 = vsel %vm757, %v3600, 0
        %v3649 = vsel %vm757, %v3601, 0
        %v3652 = vsel %vm757, %v3602, 0
        %v3655 = vsel %vm757, %v3603, 0
        %v3658 = vsel %vm757, %v3604, 0
        %v3661 = vsel %vm757, %v3605, 0
        %v3664 = vsel %vm757, %v3606, 0
        %v3667 = vsel %vm757, %v3607, 0
        %v3670 = vsel %vm757, %v3608, 0
        %v3673 = vsel %vm757, %v3609, 0
        %v3676 = vsel %vm757, %v3610, 0
        %v3679 = vsel %vm757, %v3611, 0
        %v3682 = vsel %vm757, %v3612, 0
        %v3685 = vsel %vm757, %v3613, 0
        %v3688 = vsel %vm757, %v3614, 0
        %v3691 = vsel %vm757, %v3615, 0
        %v3694 = vsel %vm757, %v3616, 0
        %v3697 = vsel %vm757, %v3617, 0
        %v3700 = vsel %vm757, %v3618, 0
        %v3703 = vsel %vm757, %v3619, 0
        %v3706 = vsel %vm757, %v3620, 0
        %v3709 = vsel %vm757, %v3621, 0
        %v3712 = vsel %vm757, %v3622, 0
        %v3715 = vsel %vm757, %v3623, 0
        %v3718 = vsel %vm757, %v3624, 0
        %v3721 = vsel %vm757, %v3625, 0
        %v3724 = vsel %vm757, %v3626, 0
        %v3727 = vsel %vm757, %v3627, 0
        %v3730 = vand.u32 %v3629, %v860
        %3732 = vmatpush.bf16.msra.mxu0 0
        %3733 = vmatpush.bf16.msra.mxu0 0
        %3734 = vmatpush.bf16.msra.mxu0 0
        %3735 = vmatpush.bf16.msra.mxu0 0
        %3736 = vmatpush.bf16.msra.mxu0 0
        %3737 = vmatpush.bf16.msra.mxu0 0
        %3738 = vmatpush.bf16.msra.mxu0 0
        %3739 = vmatpush.bf16.msra.mxu0 %v3730
        %3740 = vmatmul.bf16.gmra.mxu0 %v3631
        %v3741 = vpop.f32.mrf.mxu0
        %v3742 = vadd.f32 0.0, %v3741
        %v3743 = vpop.f32.mrf.mxu0
        %v3744 = vadd.f32 0.0, %v3743
        %3745 = vmatmul.bf16.gmra.mxu0 %v3634
        %v3746 = vpop.f32.mrf.mxu0
        %v3747 = vadd.f32 0.0, %v3746
        %v3748 = vpop.f32.mrf.mxu0
        %v3749 = vadd.f32 0.0, %v3748
        %3750 = vmatmul.bf16.gmra.mxu0 %v3637
        %v3751 = vpop.f32.mrf.mxu0
        %v3752 = vadd.f32 0.0, %v3751
        %v3753 = vpop.f32.mrf.mxu0
        %v3754 = vadd.f32 0.0, %v3753
        %3755 = vmatmul.bf16.gmra.mxu0 %v3640
        %v3756 = vpop.f32.mrf.mxu0
        %v3757 = vadd.f32 0.0, %v3756
        %v3758 = vpop.f32.mrf.mxu0
        %v3759 = vadd.f32 0.0, %v3758
        %3760 = vmatmul.bf16.gmra.mxu0 %v3643
        %v3761 = vpop.f32.mrf.mxu0
        %v3762 = vadd.f32 0.0, %v3761
        %v3763 = vpop.f32.mrf.mxu0
        %v3764 = vadd.f32 0.0, %v3763
        %3765 = vmatmul.bf16.gmra.mxu0 %v3646
        %v3766 = vpop.f32.mrf.mxu0
        %v3767 = vadd.f32 0.0, %v3766
        %v3768 = vpop.f32.mrf.mxu0
        %v3769 = vadd.f32 0.0, %v3768
        %3770 = vmatmul.bf16.gmra.mxu0 %v3649
        %v3771 = vpop.f32.mrf.mxu0
        %v3772 = vadd.f32 0.0, %v3771
        %v3773 = vpop.f32.mrf.mxu0
        %v3774 = vadd.f32 0.0, %v3773
        %3775 = vmatmul.bf16.gmra.mxu0 %v3652
        %v3776 = vpop.f32.mrf.mxu0
        %v3777 = vadd.f32 0.0, %v3776
        %v3778 = vpop.f32.mrf.mxu0
        %v3779 = vadd.f32 0.0, %v3778
        %3780 = vmatmul.bf16.gmra.mxu0 %v3655
        %v3781 = vpop.f32.mrf.mxu0
        %v3782 = vadd.f32 0.0, %v3781
        %v3783 = vpop.f32.mrf.mxu0
        %v3784 = vadd.f32 0.0, %v3783
        %3785 = vmatmul.bf16.gmra.mxu0 %v3658
        %v3786 = vpop.f32.mrf.mxu0
        %v3787 = vadd.f32 0.0, %v3786
        %v3788 = vpop.f32.mrf.mxu0
        %v3789 = vadd.f32 0.0, %v3788
        %3790 = vmatmul.bf16.gmra.mxu0 %v3661
        %v3791 = vpop.f32.mrf.mxu0
        %v3792 = vadd.f32 0.0, %v3791
        %v3793 = vpop.f32.mrf.mxu0
        %v3794 = vadd.f32 0.0, %v3793
        %3795 = vmatmul.bf16.gmra.mxu0 %v3664
        %v3796 = vpop.f32.mrf.mxu0
        %v3797 = vadd.f32 0.0, %v3796
        %v3798 = vpop.f32.mrf.mxu0
        %v3799 = vadd.f32 0.0, %v3798
        %3800 = vmatmul.bf16.gmra.mxu0 %v3667
        %v3801 = vpop.f32.mrf.mxu0
        %v3802 = vadd.f32 0.0, %v3801
        %v3803 = vpop.f32.mrf.mxu0
        %v3804 = vadd.f32 0.0, %v3803
        %3805 = vmatmul.bf16.gmra.mxu0 %v3670
        %v3806 = vpop.f32.mrf.mxu0
        %v3807 = vadd.f32 0.0, %v3806
        %v3808 = vpop.f32.mrf.mxu0
        %v3809 = vadd.f32 0.0, %v3808
        %3810 = vmatmul.bf16.gmra.mxu0 %v3673
        %v3811 = vpop.f32.mrf.mxu0
        %v3812 = vadd.f32 0.0, %v3811
        %v3813 = vpop.f32.mrf.mxu0
        %v3814 = vadd.f32 0.0, %v3813
        %3815 = vmatmul.bf16.gmra.mxu0 %v3676
        %v3816 = vpop.f32.mrf.mxu0
        %v3817 = vadd.f32 0.0, %v3816
        %v3818 = vpop.f32.mrf.mxu0
        %v3819 = vadd.f32 0.0, %v3818
        %3820 = vmatmul.bf16.gmra.mxu0 %v3679
        %v3821 = vpop.f32.mrf.mxu0
        %v3822 = vadd.f32 0.0, %v3821
        %v3823 = vpop.f32.mrf.mxu0
        %v3824 = vadd.f32 0.0, %v3823
        %3825 = vmatmul.bf16.gmra.mxu0 %v3682
        %v3826 = vpop.f32.mrf.mxu0
        %v3827 = vadd.f32 0.0, %v3826
        %v3828 = vpop.f32.mrf.mxu0
        %v3829 = vadd.f32 0.0, %v3828
        %3830 = vmatmul.bf16.gmra.mxu0 %v3685
        %v3831 = vpop.f32.mrf.mxu0
        %v3832 = vadd.f32 0.0, %v3831
        %v3833 = vpop.f32.mrf.mxu0
        %v3834 = vadd.f32 0.0, %v3833
        %3835 = vmatmul.bf16.gmra.mxu0 %v3688
        %v3836 = vpop.f32.mrf.mxu0
        %v3837 = vadd.f32 0.0, %v3836
        %v3838 = vpop.f32.mrf.mxu0
        %v3839 = vadd.f32 0.0, %v3838
        %3840 = vmatmul.bf16.gmra.mxu0 %v3691
        %v3841 = vpop.f32.mrf.mxu0
        %v3842 = vadd.f32 0.0, %v3841
        %v3843 = vpop.f32.mrf.mxu0
        %v3844 = vadd.f32 0.0, %v3843
        %3845 = vmatmul.bf16.gmra.mxu0 %v3694
        %v3846 = vpop.f32.mrf.mxu0
        %v3847 = vadd.f32 0.0, %v3846
        %v3848 = vpop.f32.mrf.mxu0
        %v3849 = vadd.f32 0.0, %v3848
        %3850 = vmatmul.bf16.gmra.mxu0 %v3697
        %v3851 = vpop.f32.mrf.mxu0
        %v3852 = vadd.f32 0.0, %v3851
        %v3853 = vpop.f32.mrf.mxu0
        %v3854 = vadd.f32 0.0, %v3853
        %3855 = vmatmul.bf16.gmra.mxu0 %v3700
        %v3856 = vpop.f32.mrf.mxu0
        %v3857 = vadd.f32 0.0, %v3856
        %v3858 = vpop.f32.mrf.mxu0
        %v3859 = vadd.f32 0.0, %v3858
        %3860 = vmatmul.bf16.gmra.mxu0 %v3703
        %v3861 = vpop.f32.mrf.mxu0
        %v3862 = vadd.f32 0.0, %v3861
        %v3863 = vpop.f32.mrf.mxu0
        %v3864 = vadd.f32 0.0, %v3863
        %3865 = vmatmul.bf16.gmra.mxu0 %v3706
        %v3866 = vpop.f32.mrf.mxu0
        %v3867 = vadd.f32 0.0, %v3866
        %v3868 = vpop.f32.mrf.mxu0
        %v3869 = vadd.f32 0.0, %v3868
        %3870 = vmatmul.bf16.gmra.mxu0 %v3709
        %v3871 = vpop.f32.mrf.mxu0
        %v3872 = vadd.f32 0.0, %v3871
        %v3873 = vpop.f32.mrf.mxu0
        %v3874 = vadd.f32 0.0, %v3873
        %3875 = vmatmul.bf16.gmra.mxu0 %v3712
        %v3876 = vpop.f32.mrf.mxu0
        %v3877 = vadd.f32 0.0, %v3876
        %v3878 = vpop.f32.mrf.mxu0
        %v3879 = vadd.f32 0.0, %v3878
        %3880 = vmatmul.bf16.gmra.mxu0 %v3715
        %v3881 = vpop.f32.mrf.mxu0
        %v3882 = vadd.f32 0.0, %v3881
        %v3883 = vpop.f32.mrf.mxu0
        %v3884 = vadd.f32 0.0, %v3883
        %3885 = vmatmul.bf16.gmra.mxu0 %v3718
        %v3886 = vpop.f32.mrf.mxu0
        %v3887 = vadd.f32 0.0, %v3886
        %v3888 = vpop.f32.mrf.mxu0
        %v3889 = vadd.f32 0.0, %v3888
        %3890 = vmatmul.bf16.gmra.mxu0 %v3721
        %v3891 = vpop.f32.mrf.mxu0
        %v3892 = vadd.f32 0.0, %v3891
        %v3893 = vpop.f32.mrf.mxu0
        %v3894 = vadd.f32 0.0, %v3893
        %3895 = vmatmul.bf16.gmra.mxu0 %v3724
        %v3896 = vpop.f32.mrf.mxu0
        %v3897 = vadd.f32 0.0, %v3896
        %v3898 = vpop.f32.mrf.mxu0
        %v3899 = vadd.f32 0.0, %v3898
        %3900 = vmatmul.bf16.gmra.mxu0 %v3727
        %v3901 = vpop.f32.mrf.mxu0
        %v3902 = vadd.f32 0.0, %v3901
        %v3903 = vpop.f32.mrf.mxu0
        %v3904 = vadd.f32 0.0, %v3903
        %3905 = vdwg.mxu0
        %v3906 = vadd.f32 %v3463, %v3742
        %v3907 = vadd.f32 %v3464, %v3744
        %v3908 = vadd.f32 %v3465, %v3747
        %v3909 = vadd.f32 %v3466, %v3749
        %v3910 = vadd.f32 %v3467, %v3752
        %v3911 = vadd.f32 %v3468, %v3754
        %v3912 = vadd.f32 %v3469, %v3757
        %v3913 = vadd.f32 %v3470, %v3759
        %v3914 = vadd.f32 %v3471, %v3762
        %v3915 = vadd.f32 %v3472, %v3764
        %v3916 = vadd.f32 %v3473, %v3767
        %v3917 = vadd.f32 %v3474, %v3769
        %v3918 = vadd.f32 %v3475, %v3772
        %v3919 = vadd.f32 %v3476, %v3774
        %v3920 = vadd.f32 %v3477, %v3777
        %v3921 = vadd.f32 %v3478, %v3779
        %v3922 = vadd.f32 %v3479, %v3782
        %v3923 = vadd.f32 %v3480, %v3784
        %v3924 = vadd.f32 %v3481, %v3787
        %v3925 = vadd.f32 %v3482, %v3789
        %v3926 = vadd.f32 %v3483, %v3792
        %v3927 = vadd.f32 %v3484, %v3794
        %v3928 = vadd.f32 %v3485, %v3797
        %v3929 = vadd.f32 %v3486, %v3799
        %v3930 = vadd.f32 %v3487, %v3802
        %v3931 = vadd.f32 %v3488, %v3804
        %v3932 = vadd.f32 %v3489, %v3807
        %v3933 = vadd.f32 %v3490, %v3809
        %v3934 = vadd.f32 %v3491, %v3812
        %v3935 = vadd.f32 %v3492, %v3814
        %v3936 = vadd.f32 %v3493, %v3817
        %v3937 = vadd.f32 %v3494, %v3819
        %v3938 = vadd.f32 %v3495, %v3822
        %v3939 = vadd.f32 %v3496, %v3824
        %v3940 = vadd.f32 %v3497, %v3827
        %v3941 = vadd.f32 %v3498, %v3829
        %v3942 = vadd.f32 %v3499, %v3832
        %v3943 = vadd.f32 %v3500, %v3834
        %v3944 = vadd.f32 %v3501, %v3837
        %v3945 = vadd.f32 %v3502, %v3839
        %v3946 = vadd.f32 %v3503, %v3842
        %v3947 = vadd.f32 %v3504, %v3844
        %v3948 = vadd.f32 %v3505, %v3847
        %v3949 = vadd.f32 %v3506, %v3849
        %v3950 = vadd.f32 %v3507, %v3852
        %v3951 = vadd.f32 %v3508, %v3854
        %v3952 = vadd.f32 %v3509, %v3857
        %v3953 = vadd.f32 %v3510, %v3859
        %v3954 = vadd.f32 %v3511, %v3862
        %v3955 = vadd.f32 %v3512, %v3864
        %v3956 = vadd.f32 %v3513, %v3867
        %v3957 = vadd.f32 %v3514, %v3869
        %v3958 = vadd.f32 %v3515, %v3872
        %v3959 = vadd.f32 %v3516, %v3874
        %v3960 = vadd.f32 %v3517, %v3877
        %v3961 = vadd.f32 %v3518, %v3879
        %v3962 = vadd.f32 %v3519, %v3882
        %v3963 = vadd.f32 %v3520, %v3884
        %v3964 = vadd.f32 %v3521, %v3887
        %v3965 = vadd.f32 %v3522, %v3889
        %v3966 = vadd.f32 %v3523, %v3892
        %v3967 = vadd.f32 %v3524, %v3894
        %v3968 = vadd.f32 %v3525, %v3897
        %v3969 = vadd.f32 %v3526, %v3899
        %v3970 = vadd.f32 %v3527, %v3902
        %v3971 = vadd.f32 %v3528, %v3904
        %v3972 = vld [vmem:[%s551 + $0x32] sm:$0xff]
        %v3973 = vld [vmem:[%s551 + $0x3a] sm:$0xff]
        %v3974 = vld [vmem:[%s551 + $0x42] sm:$0xff]
        %v3975 = vld [vmem:[%s551 + $0x4a] sm:$0xff]
        %v3976 = vld [vmem:[%s551 + $0x52] sm:$0xff]
        %v3977 = vld [vmem:[%s551 + $0x5a] sm:$0xff]
        %v3978 = vld [vmem:[%s551 + $0x62] sm:$0xff]
        %v3979 = vld [vmem:[%s551 + $0x6a] sm:$0xff]
        %v3980 = vld [vmem:[%s551 + $0x72] sm:$0xff]
        %v3981 = vld [vmem:[%s551 + $0x7a] sm:$0xff]
        %v3982 = vld [vmem:[%s551 + $0x82] sm:$0xff]
        %v3983 = vld [vmem:[%s551 + $0x8a] sm:$0xff]
        %v3984 = vld [vmem:[%s551 + $0x92] sm:$0xff]
        %v3985 = vld [vmem:[%s551 + $0x9a] sm:$0xff]
        %v3986 = vld [vmem:[%s551 + $0xa2] sm:$0xff]
        %v3987 = vld [vmem:[%s551 + $0xaa] sm:$0xff]
        %v3988 = vld [vmem:[%s551 + $0xb2] sm:$0xff]
        %v3989 = vld [vmem:[%s551 + $0xba] sm:$0xff]
        %v3990 = vld [vmem:[%s551 + $0xc2] sm:$0xff]
        %v3991 = vld [vmem:[%s551 + $0xca] sm:$0xff]
        %v3992 = vld [vmem:[%s551 + $0xd2] sm:$0xff]
        %v3993 = vld [vmem:[%s551 + $0xda] sm:$0xff]
        %v3994 = vld [vmem:[%s551 + $0xe2] sm:$0xff]
        %v3995 = vld [vmem:[%s551 + $0xea] sm:$0xff]
        %v3996 = vld [vmem:[%s551 + $0xf2] sm:$0xff]
        %v3997 = vld [vmem:[%s551 + $0xfa] sm:$0xff]
        %v3998 = vld [vmem:[%s551 + $0x102] sm:$0xff]
        %v3999 = vld [vmem:[%s551 + $0x10a] sm:$0xff]
        %v4000 = vld [vmem:[%s551 + $0x112] sm:$0xff]
        %v4001 = vld [vmem:[%s551 + $0x11a] sm:$0xff]
        %v4002 = vld [vmem:[%s551 + $0x122] sm:$0xff]
        %v4003 = vld [vmem:[%s551 + $0x12a] sm:$0xff]
        %v4004 = vld [vmem:[%s551 + $0x132] sm:$0xff]
        %v4005 = vld [vmem:[%s551 + $0x13a] sm:$0xff]
        %v4006 = vld [vmem:[%s551 + $0x142] sm:$0xff]
        %v4007 = vld [vmem:[%s551 + $0x14a] sm:$0xff]
        %v4008 = vld [vmem:[%s551 + $0x152] sm:$0xff]
        %v4009 = vld [vmem:[%s551 + $0x15a] sm:$0xff]
        %v4010 = vld [vmem:[%s551 + $0x162] sm:$0xff]
        %v4011 = vld [vmem:[%s551 + $0x16a] sm:$0xff]
        %v4012 = vld [vmem:[%s551 + $0x172] sm:$0xff]
        %v4013 = vld [vmem:[%s551 + $0x17a] sm:$0xff]
        %v4014 = vld [vmem:[%s551 + $0x182] sm:$0xff]
        %v4015 = vld [vmem:[%s551 + $0x18a] sm:$0xff]
        %v4016 = vld [vmem:[%s551 + $0x192] sm:$0xff]
        %v4017 = vld [vmem:[%s551 + $0x19a] sm:$0xff]
        %v4018 = vld [vmem:[%s551 + $0x1a2] sm:$0xff]
        %v4019 = vld [vmem:[%s551 + $0x1aa] sm:$0xff]
        %v4020 = vld [vmem:[%s551 + $0x1b2] sm:$0xff]
        %v4021 = vld [vmem:[%s551 + $0x1ba] sm:$0xff]
        %v4022 = vld [vmem:[%s551 + $0x1c2] sm:$0xff]
        %v4023 = vld [vmem:[%s551 + $0x1ca] sm:$0xff]
        %v4024 = vld [vmem:[%s551 + $0x1d2] sm:$0xff]
        %v4025 = vld [vmem:[%s551 + $0x1da] sm:$0xff]
        %v4026 = vld [vmem:[%s551 + $0x1e2] sm:$0xff]
        %v4027 = vld [vmem:[%s551 + $0x1ea] sm:$0xff]
        %v4028 = vld [vmem:[%s551 + $0x1f2] sm:$0xff]
        %v4029 = vld [vmem:[%s551 + $0x1fa] sm:$0xff]
        %v4030 = vld [vmem:[%s551 + $0x202] sm:$0xff]
        %v4031 = vld [vmem:[%s551 + $0x20a] sm:$0xff]
        %v4032 = vld [vmem:[%s551 + $0x212] sm:$0xff]
        %v4033 = vld [vmem:[%s551 + $0x21a] sm:$0xff]
        %v4034 = vld [vmem:[%s551 + $0x222] sm:$0xff]
        %v4035 = vld [vmem:[%s551 + $0x22a] sm:$0xff]
        %v4036 = vld [vmem:[%s551 + $0x232] sm:$0xff]
        %v4037 = vld [vmem:[%s551 + $0x23a] sm:$0xff]
        %v4038 = vpack.c.bf16 %v3973, %v3972
        %v4039 = vpack.c.bf16 %v3975, %v3974
        %v4040 = vpack.c.bf16 %v3977, %v3976
        %v4041 = vpack.c.bf16 %v3979, %v3978
        %v4042 = vpack.c.bf16 %v3981, %v3980
        %v4043 = vpack.c.bf16 %v3983, %v3982
        %v4044 = vpack.c.bf16 %v3985, %v3984
        %v4045 = vpack.c.bf16 %v3987, %v3986
        %v4046 = vpack.c.bf16 %v3989, %v3988
        %v4047 = vpack.c.bf16 %v3991, %v3990
        %v4048 = vpack.c.bf16 %v3993, %v3992
        %v4049 = vpack.c.bf16 %v3995, %v3994
        %v4050 = vpack.c.bf16 %v3997, %v3996
        %v4051 = vpack.c.bf16 %v3999, %v3998
        %v4052 = vpack.c.bf16 %v4001, %v4000
        %v4053 = vpack.c.bf16 %v4003, %v4002
        %v4054 = vpack.c.bf16 %v4005, %v4004
        %v4055 = vpack.c.bf16 %v4007, %v4006
        %v4056 = vpack.c.bf16 %v4009, %v4008
        %v4057 = vpack.c.bf16 %v4011, %v4010
        %v4058 = vpack.c.bf16 %v4013, %v4012
        %v4059 = vpack.c.bf16 %v4015, %v4014
        %v4060 = vpack.c.bf16 %v4017, %v4016
        %v4061 = vpack.c.bf16 %v4019, %v4018
        %v4062 = vpack.c.bf16 %v4021, %v4020
        %v4063 = vpack.c.bf16 %v4023, %v4022
        %v4064 = vpack.c.bf16 %v4025, %v4024
        %v4065 = vpack.c.bf16 %v4027, %v4026
        %v4066 = vpack.c.bf16 %v4029, %v4028
        %v4067 = vpack.c.bf16 %v4031, %v4030
        %v4068 = vpack.c.bf16 %v4033, %v4032
        %v4069 = vpack.c.bf16 %v4035, %v4034
        %v4070 = vpack.c.bf16 %v4037, %v4036
        %s4071 = scalar_lea.vmem %s2, 16
        %v4072 = vld [vmem:[%s4071] sm:$0x3]
        %v4074 = vsel %vm757, %v4038, 0
        %v4077 = vsel %vm757, %v4039, 0
        %v4080 = vsel %vm757, %v4040, 0
        %v4083 = vsel %vm757, %v4041, 0
        %v4086 = vsel %vm757, %v4042, 0
        %v4089 = vsel %vm757, %v4043, 0
        %v4092 = vsel %vm757, %v4044, 0
        %v4095 = vsel %vm757, %v4045, 0
        %v4098 = vsel %vm757, %v4046, 0
        %v4101 = vsel %vm757, %v4047, 0
        %v4104 = vsel %vm757, %v4048, 0
        %v4107 = vsel %vm757, %v4049, 0
        %v4110 = vsel %vm757, %v4050, 0
        %v4113 = vsel %vm757, %v4051, 0
        %v4116 = vsel %vm757, %v4052, 0
        %v4119 = vsel %vm757, %v4053, 0
        %v4122 = vsel %vm757, %v4054, 0
        %v4125 = vsel %vm757, %v4055, 0
        %v4128 = vsel %vm757, %v4056, 0
        %v4131 = vsel %vm757, %v4057, 0
        %v4134 = vsel %vm757, %v4058, 0
        %v4137 = vsel %vm757, %v4059, 0
        %v4140 = vsel %vm757, %v4060, 0
        %v4143 = vsel %vm757, %v4061, 0
        %v4146 = vsel %vm757, %v4062, 0
        %v4149 = vsel %vm757, %v4063, 0
        %v4152 = vsel %vm757, %v4064, 0
        %v4155 = vsel %vm757, %v4065, 0
        %v4158 = vsel %vm757, %v4066, 0
        %v4161 = vsel %vm757, %v4067, 0
        %v4164 = vsel %vm757, %v4068, 0
        %v4167 = vsel %vm757, %v4069, 0
        %v4170 = vsel %vm757, %v4070, 0
        %v4173 = vand.u32 %v4072, %v860
        %4175 = vmatpush.bf16.msra.mxu0 0
        %4176 = vmatpush.bf16.msra.mxu0 0
        %4177 = vmatpush.bf16.msra.mxu0 0
        %4178 = vmatpush.bf16.msra.mxu0 0
        %4179 = vmatpush.bf16.msra.mxu0 0
        %4180 = vmatpush.bf16.msra.mxu0 0
        %4181 = vmatpush.bf16.msra.mxu0 0
        %4182 = vmatpush.bf16.msra.mxu0 %v4173
        %4183 = vmatmul.bf16.gmra.mxu0 %v4074
        %v4184 = vpop.f32.mrf.mxu0
        %v4185 = vadd.f32 0.0, %v4184
        %v4186 = vpop.f32.mrf.mxu0
        %v4187 = vadd.f32 0.0, %v4186
        %4188 = vmatmul.bf16.gmra.mxu0 %v4077
        %v4189 = vpop.f32.mrf.mxu0
        %v4190 = vadd.f32 0.0, %v4189
        %v4191 = vpop.f32.mrf.mxu0
        %v4192 = vadd.f32 0.0, %v4191
        %4193 = vmatmul.bf16.gmra.mxu0 %v4080
        %v4194 = vpop.f32.mrf.mxu0
        %v4195 = vadd.f32 0.0, %v4194
        %v4196 = vpop.f32.mrf.mxu0
        %v4197 = vadd.f32 0.0, %v4196
        %4198 = vmatmul.bf16.gmra.mxu0 %v4083
        %v4199 = vpop.f32.mrf.mxu0
        %v4200 = vadd.f32 0.0, %v4199
        %v4201 = vpop.f32.mrf.mxu0
        %v4202 = vadd.f32 0.0, %v4201
        %4203 = vmatmul.bf16.gmra.mxu0 %v4086
        %v4204 = vpop.f32.mrf.mxu0
        %v4205 = vadd.f32 0.0, %v4204
        %v4206 = vpop.f32.mrf.mxu0
        %v4207 = vadd.f32 0.0, %v4206
        %4208 = vmatmul.bf16.gmra.mxu0 %v4089
        %v4209 = vpop.f32.mrf.mxu0
        %v4210 = vadd.f32 0.0, %v4209
        %v4211 = vpop.f32.mrf.mxu0
        %v4212 = vadd.f32 0.0, %v4211
        %4213 = vmatmul.bf16.gmra.mxu0 %v4092
        %v4214 = vpop.f32.mrf.mxu0
        %v4215 = vadd.f32 0.0, %v4214
        %v4216 = vpop.f32.mrf.mxu0
        %v4217 = vadd.f32 0.0, %v4216
        %4218 = vmatmul.bf16.gmra.mxu0 %v4095
        %v4219 = vpop.f32.mrf.mxu0
        %v4220 = vadd.f32 0.0, %v4219
        %v4221 = vpop.f32.mrf.mxu0
        %v4222 = vadd.f32 0.0, %v4221
        %4223 = vmatmul.bf16.gmra.mxu0 %v4098
        %v4224 = vpop.f32.mrf.mxu0
        %v4225 = vadd.f32 0.0, %v4224
        %v4226 = vpop.f32.mrf.mxu0
        %v4227 = vadd.f32 0.0, %v4226
        %4228 = vmatmul.bf16.gmra.mxu0 %v4101
        %v4229 = vpop.f32.mrf.mxu0
        %v4230 = vadd.f32 0.0, %v4229
        %v4231 = vpop.f32.mrf.mxu0
        %v4232 = vadd.f32 0.0, %v4231
        %4233 = vmatmul.bf16.gmra.mxu0 %v4104
        %v4234 = vpop.f32.mrf.mxu0
        %v4235 = vadd.f32 0.0, %v4234
        %v4236 = vpop.f32.mrf.mxu0
        %v4237 = vadd.f32 0.0, %v4236
        %4238 = vmatmul.bf16.gmra.mxu0 %v4107
        %v4239 = vpop.f32.mrf.mxu0
        %v4240 = vadd.f32 0.0, %v4239
        %v4241 = vpop.f32.mrf.mxu0
        %v4242 = vadd.f32 0.0, %v4241
        %4243 = vmatmul.bf16.gmra.mxu0 %v4110
        %v4244 = vpop.f32.mrf.mxu0
        %v4245 = vadd.f32 0.0, %v4244
        %v4246 = vpop.f32.mrf.mxu0
        %v4247 = vadd.f32 0.0, %v4246
        %4248 = vmatmul.bf16.gmra.mxu0 %v4113
        %v4249 = vpop.f32.mrf.mxu0
        %v4250 = vadd.f32 0.0, %v4249
        %v4251 = vpop.f32.mrf.mxu0
        %v4252 = vadd.f32 0.0, %v4251
        %4253 = vmatmul.bf16.gmra.mxu0 %v4116
        %v4254 = vpop.f32.mrf.mxu0
        %v4255 = vadd.f32 0.0, %v4254
        %v4256 = vpop.f32.mrf.mxu0
        %v4257 = vadd.f32 0.0, %v4256
        %4258 = vmatmul.bf16.gmra.mxu0 %v4119
        %v4259 = vpop.f32.mrf.mxu0
        %v4260 = vadd.f32 0.0, %v4259
        %v4261 = vpop.f32.mrf.mxu0
        %v4262 = vadd.f32 0.0, %v4261
        %4263 = vmatmul.bf16.gmra.mxu0 %v4122
        %v4264 = vpop.f32.mrf.mxu0
        %v4265 = vadd.f32 0.0, %v4264
        %v4266 = vpop.f32.mrf.mxu0
        %v4267 = vadd.f32 0.0, %v4266
        %4268 = vmatmul.bf16.gmra.mxu0 %v4125
        %v4269 = vpop.f32.mrf.mxu0
        %v4270 = vadd.f32 0.0, %v4269
        %v4271 = vpop.f32.mrf.mxu0
        %v4272 = vadd.f32 0.0, %v4271
        %4273 = vmatmul.bf16.gmra.mxu0 %v4128
        %v4274 = vpop.f32.mrf.mxu0
        %v4275 = vadd.f32 0.0, %v4274
        %v4276 = vpop.f32.mrf.mxu0
        %v4277 = vadd.f32 0.0, %v4276
        %4278 = vmatmul.bf16.gmra.mxu0 %v4131
        %v4279 = vpop.f32.mrf.mxu0
        %v4280 = vadd.f32 0.0, %v4279
        %v4281 = vpop.f32.mrf.mxu0
        %v4282 = vadd.f32 0.0, %v4281
        %4283 = vmatmul.bf16.gmra.mxu0 %v4134
        %v4284 = vpop.f32.mrf.mxu0
        %v4285 = vadd.f32 0.0, %v4284
        %v4286 = vpop.f32.mrf.mxu0
        %v4287 = vadd.f32 0.0, %v4286
        %4288 = vmatmul.bf16.gmra.mxu0 %v4137
        %v4289 = vpop.f32.mrf.mxu0
        %v4290 = vadd.f32 0.0, %v4289
        %v4291 = vpop.f32.mrf.mxu0
        %v4292 = vadd.f32 0.0, %v4291
        %4293 = vmatmul.bf16.gmra.mxu0 %v4140
        %v4294 = vpop.f32.mrf.mxu0
        %v4295 = vadd.f32 0.0, %v4294
        %v4296 = vpop.f32.mrf.mxu0
        %v4297 = vadd.f32 0.0, %v4296
        %4298 = vmatmul.bf16.gmra.mxu0 %v4143
        %v4299 = vpop.f32.mrf.mxu0
        %v4300 = vadd.f32 0.0, %v4299
        %v4301 = vpop.f32.mrf.mxu0
        %v4302 = vadd.f32 0.0, %v4301
        %4303 = vmatmul.bf16.gmra.mxu0 %v4146
        %v4304 = vpop.f32.mrf.mxu0
        %v4305 = vadd.f32 0.0, %v4304
        %v4306 = vpop.f32.mrf.mxu0
        %v4307 = vadd.f32 0.0, %v4306
        %4308 = vmatmul.bf16.gmra.mxu0 %v4149
        %v4309 = vpop.f32.mrf.mxu0
        %v4310 = vadd.f32 0.0, %v4309
        %v4311 = vpop.f32.mrf.mxu0
        %v4312 = vadd.f32 0.0, %v4311
        %4313 = vmatmul.bf16.gmra.mxu0 %v4152
        %v4314 = vpop.f32.mrf.mxu0
        %v4315 = vadd.f32 0.0, %v4314
        %v4316 = vpop.f32.mrf.mxu0
        %v4317 = vadd.f32 0.0, %v4316
        %4318 = vmatmul.bf16.gmra.mxu0 %v4155
        %v4319 = vpop.f32.mrf.mxu0
        %v4320 = vadd.f32 0.0, %v4319
        %v4321 = vpop.f32.mrf.mxu0
        %v4322 = vadd.f32 0.0, %v4321
        %4323 = vmatmul.bf16.gmra.mxu0 %v4158
        %v4324 = vpop.f32.mrf.mxu0
        %v4325 = vadd.f32 0.0, %v4324
        %v4326 = vpop.f32.mrf.mxu0
        %v4327 = vadd.f32 0.0, %v4326
        %4328 = vmatmul.bf16.gmra.mxu0 %v4161
        %v4329 = vpop.f32.mrf.mxu0
        %v4330 = vadd.f32 0.0, %v4329
        %v4331 = vpop.f32.mrf.mxu0
        %v4332 = vadd.f32 0.0, %v4331
        %4333 = vmatmul.bf16.gmra.mxu0 %v4164
        %v4334 = vpop.f32.mrf.mxu0
        %v4335 = vadd.f32 0.0, %v4334
        %v4336 = vpop.f32.mrf.mxu0
        %v4337 = vadd.f32 0.0, %v4336
        %4338 = vmatmul.bf16.gmra.mxu0 %v4167
        %v4339 = vpop.f32.mrf.mxu0
        %v4340 = vadd.f32 0.0, %v4339
        %v4341 = vpop.f32.mrf.mxu0
        %v4342 = vadd.f32 0.0, %v4341
        %4343 = vmatmul.bf16.gmra.mxu0 %v4170
        %v4344 = vpop.f32.mrf.mxu0
        %v4345 = vadd.f32 0.0, %v4344
        %v4346 = vpop.f32.mrf.mxu0
        %v4347 = vadd.f32 0.0, %v4346
        %4348 = vdwg.mxu0
        %v4349 = vadd.f32 %v3906, %v4185
        %v4350 = vadd.f32 %v3907, %v4187
        %v4351 = vadd.f32 %v3908, %v4190
        %v4352 = vadd.f32 %v3909, %v4192
        %v4353 = vadd.f32 %v3910, %v4195
        %v4354 = vadd.f32 %v3911, %v4197
        %v4355 = vadd.f32 %v3912, %v4200
        %v4356 = vadd.f32 %v3913, %v4202
        %v4357 = vadd.f32 %v3914, %v4205
        %v4358 = vadd.f32 %v3915, %v4207
        %v4359 = vadd.f32 %v3916, %v4210
        %v4360 = vadd.f32 %v3917, %v4212
        %v4361 = vadd.f32 %v3918, %v4215
        %v4362 = vadd.f32 %v3919, %v4217
        %v4363 = vadd.f32 %v3920, %v4220
        %v4364 = vadd.f32 %v3921, %v4222
        %v4365 = vadd.f32 %v3922, %v4225
        %v4366 = vadd.f32 %v3923, %v4227
        %v4367 = vadd.f32 %v3924, %v4230
        %v4368 = vadd.f32 %v3925, %v4232
        %v4369 = vadd.f32 %v3926, %v4235
        %v4370 = vadd.f32 %v3927, %v4237
        %v4371 = vadd.f32 %v3928, %v4240
        %v4372 = vadd.f32 %v3929, %v4242
        %v4373 = vadd.f32 %v3930, %v4245
        %v4374 = vadd.f32 %v3931, %v4247
        %v4375 = vadd.f32 %v3932, %v4250
        %v4376 = vadd.f32 %v3933, %v4252
        %v4377 = vadd.f32 %v3934, %v4255
        %v4378 = vadd.f32 %v3935, %v4257
        %v4379 = vadd.f32 %v3936, %v4260
        %v4380 = vadd.f32 %v3937, %v4262
        %v4381 = vadd.f32 %v3938, %v4265
        %v4382 = vadd.f32 %v3939, %v4267
        %v4383 = vadd.f32 %v3940, %v4270
        %v4384 = vadd.f32 %v3941, %v4272
        %v4385 = vadd.f32 %v3942, %v4275
        %v4386 = vadd.f32 %v3943, %v4277
        %v4387 = vadd.f32 %v3944, %v4280
        %v4388 = vadd.f32 %v3945, %v4282
        %v4389 = vadd.f32 %v3946, %v4285
        %v4390 = vadd.f32 %v3947, %v4287
        %v4391 = vadd.f32 %v3948, %v4290
        %v4392 = vadd.f32 %v3949, %v4292
        %v4393 = vadd.f32 %v3950, %v4295
        %v4394 = vadd.f32 %v3951, %v4297
        %v4395 = vadd.f32 %v3952, %v4300
        %v4396 = vadd.f32 %v3953, %v4302
        %v4397 = vadd.f32 %v3954, %v4305
        %v4398 = vadd.f32 %v3955, %v4307
        %v4399 = vadd.f32 %v3956, %v4310
        %v4400 = vadd.f32 %v3957, %v4312
        %v4401 = vadd.f32 %v3958, %v4315
        %v4402 = vadd.f32 %v3959, %v4317
        %v4403 = vadd.f32 %v3960, %v4320
        %v4404 = vadd.f32 %v3961, %v4322
        %v4405 = vadd.f32 %v3962, %v4325
        %v4406 = vadd.f32 %v3963, %v4327
        %v4407 = vadd.f32 %v3964, %v4330
        %v4408 = vadd.f32 %v3965, %v4332
        %v4409 = vadd.f32 %v3966, %v4335
        %v4410 = vadd.f32 %v3967, %v4337
        %v4411 = vadd.f32 %v3968, %v4340
        %v4412 = vadd.f32 %v3969, %v4342
        %v4413 = vadd.f32 %v3970, %v4345
        %v4414 = vadd.f32 %v3971, %v4347
        %v4415 = vld [vmem:[%s3] sm:$0x1]
        %v4417 = vperm.slane %v4415, 0
        %v4419 = vadd.f32 %v4349, %v4417
        %v4420 = vadd.f32 %v4350, %v4417
        %v4421 = vadd.f32 %v4351, %v4417
        %v4422 = vadd.f32 %v4352, %v4417
        %v4423 = vadd.f32 %v4353, %v4417
        %v4424 = vadd.f32 %v4354, %v4417
        %v4425 = vadd.f32 %v4355, %v4417
        %v4426 = vadd.f32 %v4356, %v4417
        %v4427 = vadd.f32 %v4357, %v4417
        %v4428 = vadd.f32 %v4358, %v4417
        %v4429 = vadd.f32 %v4359, %v4417
        %v4430 = vadd.f32 %v4360, %v4417
        %v4431 = vadd.f32 %v4361, %v4417
        %v4432 = vadd.f32 %v4362, %v4417
        %v4433 = vadd.f32 %v4363, %v4417
        %v4434 = vadd.f32 %v4364, %v4417
        %v4435 = vadd.f32 %v4365, %v4417
        %v4436 = vadd.f32 %v4366, %v4417
        %v4437 = vadd.f32 %v4367, %v4417
        %v4438 = vadd.f32 %v4368, %v4417
        %v4439 = vadd.f32 %v4369, %v4417
        %v4440 = vadd.f32 %v4370, %v4417
        %v4441 = vadd.f32 %v4371, %v4417
        %v4442 = vadd.f32 %v4372, %v4417
        %v4443 = vadd.f32 %v4373, %v4417
        %v4444 = vadd.f32 %v4374, %v4417
        %v4445 = vadd.f32 %v4375, %v4417
        %v4446 = vadd.f32 %v4376, %v4417
        %v4447 = vadd.f32 %v4377, %v4417
        %v4448 = vadd.f32 %v4378, %v4417
        %v4449 = vadd.f32 %v4379, %v4417
        %v4450 = vadd.f32 %v4380, %v4417
        %v4451 = vadd.f32 %v4381, %v4417
        %v4452 = vadd.f32 %v4382, %v4417
        %v4453 = vadd.f32 %v4383, %v4417
        %v4454 = vadd.f32 %v4384, %v4417
        %v4455 = vadd.f32 %v4385, %v4417
        %v4456 = vadd.f32 %v4386, %v4417
        %v4457 = vadd.f32 %v4387, %v4417
        %v4458 = vadd.f32 %v4388, %v4417
        %v4459 = vadd.f32 %v4389, %v4417
        %v4460 = vadd.f32 %v4390, %v4417
        %v4461 = vadd.f32 %v4391, %v4417
        %v4462 = vadd.f32 %v4392, %v4417
        %v4463 = vadd.f32 %v4393, %v4417
        %v4464 = vadd.f32 %v4394, %v4417
        %v4465 = vadd.f32 %v4395, %v4417
        %v4466 = vadd.f32 %v4396, %v4417
        %v4467 = vadd.f32 %v4397, %v4417
        %v4468 = vadd.f32 %v4398, %v4417
        %v4469 = vadd.f32 %v4399, %v4417
        %v4470 = vadd.f32 %v4400, %v4417
        %v4471 = vadd.f32 %v4401, %v4417
        %v4472 = vadd.f32 %v4402, %v4417
        %v4473 = vadd.f32 %v4403, %v4417
        %v4474 = vadd.f32 %v4404, %v4417
        %v4475 = vadd.f32 %v4405, %v4417
        %v4476 = vadd.f32 %v4406, %v4417
        %v4477 = vadd.f32 %v4407, %v4417
        %v4478 = vadd.f32 %v4408, %v4417
        %v4479 = vadd.f32 %v4409, %v4417
        %v4480 = vadd.f32 %v4410, %v4417
        %v4481 = vadd.f32 %v4411, %v4417
        %v4482 = vadd.f32 %v4412, %v4417
        %v4483 = vadd.f32 %v4413, %v4417
        %v4484 = vadd.f32 %v4414, %v4417
        %v4485 = vld [vmem:[%s4] sm:$0x1]
        %vm4486 = vcmp.ge.f32.partialorder %v4419, 0.0
        %vm4487 = vcmp.ge.f32.partialorder %v4420, 0.0
        %vm4488 = vcmp.ge.f32.partialorder %v4421, 0.0
        %vm4489 = vcmp.ge.f32.partialorder %v4422, 0.0
        %vm4490 = vcmp.ge.f32.partialorder %v4423, 0.0
        %vm4491 = vcmp.ge.f32.partialorder %v4424, 0.0
        %vm4492 = vcmp.ge.f32.partialorder %v4425, 0.0
        %vm4493 = vcmp.ge.f32.partialorder %v4426, 0.0
        %vm4494 = vcmp.ge.f32.partialorder %v4427, 0.0
        %vm4495 = vcmp.ge.f32.partialorder %v4428, 0.0
        %vm4496 = vcmp.ge.f32.partialorder %v4429, 0.0
        %vm4497 = vcmp.ge.f32.partialorder %v4430, 0.0
        %vm4498 = vcmp.ge.f32.partialorder %v4431, 0.0
        %vm4499 = vcmp.ge.f32.partialorder %v4432, 0.0
        %vm4500 = vcmp.ge.f32.partialorder %v4433, 0.0
        %vm4501 = vcmp.ge.f32.partialorder %v4434, 0.0
        %vm4502 = vcmp.ge.f32.partialorder %v4435, 0.0
        %vm4503 = vcmp.ge.f32.partialorder %v4436, 0.0
        %vm4504 = vcmp.ge.f32.partialorder %v4437, 0.0
        %vm4505 = vcmp.ge.f32.partialorder %v4438, 0.0
        %vm4506 = vcmp.ge.f32.partialorder %v4439, 0.0
        %vm4507 = vcmp.ge.f32.partialorder %v4440, 0.0
        %vm4508 = vcmp.ge.f32.partialorder %v4441, 0.0
        %vm4509 = vcmp.ge.f32.partialorder %v4442, 0.0
        %vm4510 = vcmp.ge.f32.partialorder %v4443, 0.0
        %vm4511 = vcmp.ge.f32.partialorder %v4444, 0.0
        %vm4512 = vcmp.ge.f32.partialorder %v4445, 0.0
        %vm4513 = vcmp.ge.f32.partialorder %v4446, 0.0
        %vm4514 = vcmp.ge.f32.partialorder %v4447, 0.0
        %vm4515 = vcmp.ge.f32.partialorder %v4448, 0.0
        %vm4516 = vcmp.ge.f32.partialorder %v4449, 0.0
        %vm4517 = vcmp.ge.f32.partialorder %v4450, 0.0
        %vm4518 = vcmp.ge.f32.partialorder %v4451, 0.0
        %vm4519 = vcmp.ge.f32.partialorder %v4452, 0.0
        %vm4520 = vcmp.ge.f32.partialorder %v4453, 0.0
        %vm4521 = vcmp.ge.f32.partialorder %v4454, 0.0
        %vm4522 = vcmp.ge.f32.partialorder %v4455, 0.0
        %vm4523 = vcmp.ge.f32.partialorder %v4456, 0.0
        %vm4524 = vcmp.ge.f32.partialorder %v4457, 0.0
        %vm4525 = vcmp.ge.f32.partialorder %v4458, 0.0
        %vm4526 = vcmp.ge.f32.partialorder %v4459, 0.0
        %vm4527 = vcmp.ge.f32.partialorder %v4460, 0.0
        %vm4528 = vcmp.ge.f32.partialorder %v4461, 0.0
        %vm4529 = vcmp.ge.f32.partialorder %v4462, 0.0
        %vm4530 = vcmp.ge.f32.partialorder %v4463, 0.0
        %vm4531 = vcmp.ge.f32.partialorder %v4464, 0.0
        %vm4532 = vcmp.ge.f32.partialorder %v4465, 0.0
        %vm4533 = vcmp.ge.f32.partialorder %v4466, 0.0
        %vm4534 = vcmp.ge.f32.partialorder %v4467, 0.0
        %vm4535 = vcmp.ge.f32.partialorder %v4468, 0.0
        %vm4536 = vcmp.ge.f32.partialorder %v4469, 0.0
        %vm4537 = vcmp.ge.f32.partialorder %v4470, 0.0
        %vm4538 = vcmp.ge.f32.partialorder %v4471, 0.0
        %vm4539 = vcmp.ge.f32.partialorder %v4472, 0.0
        %vm4540 = vcmp.ge.f32.partialorder %v4473, 0.0
        %vm4541 = vcmp.ge.f32.partialorder %v4474, 0.0
        %vm4542 = vcmp.ge.f32.partialorder %v4475, 0.0
        %vm4543 = vcmp.ge.f32.partialorder %v4476, 0.0
        %vm4544 = vcmp.ge.f32.partialorder %v4477, 0.0
        %vm4545 = vcmp.ge.f32.partialorder %v4478, 0.0
        %vm4546 = vcmp.ge.f32.partialorder %v4479, 0.0
        %vm4547 = vcmp.ge.f32.partialorder %v4480, 0.0
        %vm4548 = vcmp.ge.f32.partialorder %v4481, 0.0
        %vm4549 = vcmp.ge.f32.partialorder %v4482, 0.0
        %vm4550 = vcmp.ge.f32.partialorder %v4483, 0.0
        %vm4551 = vcmp.ge.f32.partialorder %v4484, 0.0
        %v4553 = vperm.slane %v4485, 0
        %v4555 = vmul.f32 %v4553, %v4419
        %v4556 = vmul.f32 %v4553, %v4420
        %v4557 = vmul.f32 %v4553, %v4421
        %v4558 = vmul.f32 %v4553, %v4422
        %v4559 = vmul.f32 %v4553, %v4423
        %v4560 = vmul.f32 %v4553, %v4424
        %v4561 = vmul.f32 %v4553, %v4425
        %v4562 = vmul.f32 %v4553, %v4426
        %v4563 = vmul.f32 %v4553, %v4427
        %v4564 = vmul.f32 %v4553, %v4428
        %v4565 = vmul.f32 %v4553, %v4429
        %v4566 = vmul.f32 %v4553, %v4430
        %v4567 = vmul.f32 %v4553, %v4431
        %v4568 = vmul.f32 %v4553, %v4432
        %v4569 = vmul.f32 %v4553, %v4433
        %v4570 = vmul.f32 %v4553, %v4434
        %v4571 = vmul.f32 %v4553, %v4435
        %v4572 = vmul.f32 %v4553, %v4436
        %v4573 = vmul.f32 %v4553, %v4437
        %v4574 = vmul.f32 %v4553, %v4438
        %v4575 = vmul.f32 %v4553, %v4439
        %v4576 = vmul.f32 %v4553, %v4440
        %v4577 = vmul.f32 %v4553, %v4441
        %v4578 = vmul.f32 %v4553, %v4442
        %v4579 = vmul.f32 %v4553, %v4443
        %v4580 = vmul.f32 %v4553, %v4444
        %v4581 = vmul.f32 %v4553, %v4445
        %v4582 = vmul.f32 %v4553, %v4446
        %v4583 = vmul.f32 %v4553, %v4447
        %v4584 = vmul.f32 %v4553, %v4448
        %v4585 = vmul.f32 %v4553, %v4449
        %v4586 = vmul.f32 %v4553, %v4450
        %v4587 = vmul.f32 %v4553, %v4451
        %v4588 = vmul.f32 %v4553, %v4452
        %v4589 = vmul.f32 %v4553, %v4453
        %v4590 = vmul.f32 %v4553, %v4454
        %v4591 = vmul.f32 %v4553, %v4455
        %v4592 = vmul.f32 %v4553, %v4456
        %v4593 = vmul.f32 %v4553, %v4457
        %v4594 = vmul.f32 %v4553, %v4458
        %v4595 = vmul.f32 %v4553, %v4459
        %v4596 = vmul.f32 %v4553, %v4460
        %v4597 = vmul.f32 %v4553, %v4461
        %v4598 = vmul.f32 %v4553, %v4462
        %v4599 = vmul.f32 %v4553, %v4463
        %v4600 = vmul.f32 %v4553, %v4464
        %v4601 = vmul.f32 %v4553, %v4465
        %v4602 = vmul.f32 %v4553, %v4466
        %v4603 = vmul.f32 %v4553, %v4467
        %v4604 = vmul.f32 %v4553, %v4468
        %v4605 = vmul.f32 %v4553, %v4469
        %v4606 = vmul.f32 %v4553, %v4470
        %v4607 = vmul.f32 %v4553, %v4471
        %v4608 = vmul.f32 %v4553, %v4472
        %v4609 = vmul.f32 %v4553, %v4473
        %v4610 = vmul.f32 %v4553, %v4474
        %v4611 = vmul.f32 %v4553, %v4475
        %v4612 = vmul.f32 %v4553, %v4476
        %v4613 = vmul.f32 %v4553, %v4477
        %v4614 = vmul.f32 %v4553, %v4478
        %v4615 = vmul.f32 %v4553, %v4479
        %v4616 = vmul.f32 %v4553, %v4480
        %v4617 = vmul.f32 %v4553, %v4481
        %v4618 = vmul.f32 %v4553, %v4482
        %v4619 = vmul.f32 %v4553, %v4483
        %v4620 = vmul.f32 %v4553, %v4484
        %v4621 = vsel %vm4486, %v4419, %v4555
        %v4622 = vsel %vm4487, %v4420, %v4556
        %v4623 = vsel %vm4488, %v4421, %v4557
        %v4624 = vsel %vm4489, %v4422, %v4558
        %v4625 = vsel %vm4490, %v4423, %v4559
        %v4626 = vsel %vm4491, %v4424, %v4560
        %v4627 = vsel %vm4492, %v4425, %v4561
        %v4628 = vsel %vm4493, %v4426, %v4562
        %v4629 = vsel %vm4494, %v4427, %v4563
        %v4630 = vsel %vm4495, %v4428, %v4564
        %v4631 = vsel %vm4496, %v4429, %v4565
        %v4632 = vsel %vm4497, %v4430, %v4566
        %v4633 = vsel %vm4498, %v4431, %v4567
        %v4634 = vsel %vm4499, %v4432, %v4568
        %v4635 = vsel %vm4500, %v4433, %v4569
        %v4636 = vsel %vm4501, %v4434, %v4570
        %v4637 = vsel %vm4502, %v4435, %v4571
        %v4638 = vsel %vm4503, %v4436, %v4572
        %v4639 = vsel %vm4504, %v4437, %v4573
        %v4640 = vsel %vm4505, %v4438, %v4574
        %v4641 = vsel %vm4506, %v4439, %v4575
        %v4642 = vsel %vm4507, %v4440, %v4576
        %v4643 = vsel %vm4508, %v4441, %v4577
        %v4644 = vsel %vm4509, %v4442, %v4578
        %v4645 = vsel %vm4510, %v4443, %v4579
        %v4646 = vsel %vm4511, %v4444, %v4580
        %v4647 = vsel %vm4512, %v4445, %v4581
        %v4648 = vsel %vm4513, %v4446, %v4582
        %v4649 = vsel %vm4514, %v4447, %v4583
        %v4650 = vsel %vm4515, %v4448, %v4584
        %v4651 = vsel %vm4516, %v4449, %v4585
        %v4652 = vsel %vm4517, %v4450, %v4586
        %v4653 = vsel %vm4518, %v4451, %v4587
        %v4654 = vsel %vm4519, %v4452, %v4588
        %v4655 = vsel %vm4520, %v4453, %v4589
        %v4656 = vsel %vm4521, %v4454, %v4590
        %v4657 = vsel %vm4522, %v4455, %v4591
        %v4658 = vsel %vm4523, %v4456, %v4592
        %v4659 = vsel %vm4524, %v4457, %v4593
        %v4660 = vsel %vm4525, %v4458, %v4594
        %v4661 = vsel %vm4526, %v4459, %v4595
        %v4662 = vsel %vm4527, %v4460, %v4596
        %v4663 = vsel %vm4528, %v4461, %v4597
        %v4664 = vsel %vm4529, %v4462, %v4598
        %v4665 = vsel %vm4530, %v4463, %v4599
        %v4666 = vsel %vm4531, %v4464, %v4600
        %v4667 = vsel %vm4532, %v4465, %v4601
        %v4668 = vsel %vm4533, %v4466, %v4602
        %v4669 = vsel %vm4534, %v4467, %v4603
        %v4670 = vsel %vm4535, %v4468, %v4604
        %v4671 = vsel %vm4536, %v4469, %v4605
        %v4672 = vsel %vm4537, %v4470, %v4606
        %v4673 = vsel %vm4538, %v4471, %v4607
        %v4674 = vsel %vm4539, %v4472, %v4608
        %v4675 = vsel %vm4540, %v4473, %v4609
        %v4676 = vsel %vm4541, %v4474, %v4610
        %v4677 = vsel %vm4542, %v4475, %v4611
        %v4678 = vsel %vm4543, %v4476, %v4612
        %v4679 = vsel %vm4544, %v4477, %v4613
        %v4680 = vsel %vm4545, %v4478, %v4614
        %v4681 = vsel %vm4546, %v4479, %v4615
        %v4682 = vsel %vm4547, %v4480, %v4616
        %v4683 = vsel %vm4548, %v4481, %v4617
        %v4684 = vsel %vm4549, %v4482, %v4618
        %v4685 = vsel %vm4550, %v4483, %v4619
        %v4686 = vsel %vm4551, %v4484, %v4620
        %v4687 = vld [vmem:[%s1] sm:$0xff]
        %v4688 = vld [vmem:[%s1 + $0x8] sm:$0xff]
        %v4689 = vld [vmem:[%s1 + $0x10] sm:$0xff]
        %v4690 = vld [vmem:[%s1 + $0x18] sm:$0xff]
        %v4691 = vld [vmem:[%s1 + $0x20] sm:$0xff]
        %v4692 = vld [vmem:[%s1 + $0x28] sm:$0xff]
        %v4693 = vld [vmem:[%s1 + $0x30] sm:$0xff]
        %v4694 = vld [vmem:[%s1 + $0x38] sm:$0xff]
        %v4695 = vld [vmem:[%s1 + $0x40] sm:$0xff]
        %v4696 = vld [vmem:[%s1 + $0x48] sm:$0xff]
        %v4697 = vld [vmem:[%s1 + $0x50] sm:$0xff]
        %v4698 = vld [vmem:[%s1 + $0x58] sm:$0xff]
        %v4699 = vld [vmem:[%s1 + $0x60] sm:$0xff]
        %v4700 = vld [vmem:[%s1 + $0x68] sm:$0xff]
        %v4701 = vld [vmem:[%s1 + $0x70] sm:$0xff]
        %v4702 = vld [vmem:[%s1 + $0x78] sm:$0xff]
        %v4703 = vld [vmem:[%s1 + $0x80] sm:$0xff]
        %v4704 = vld [vmem:[%s1 + $0x88] sm:$0xff]
        %v4705 = vld [vmem:[%s1 + $0x90] sm:$0xff]
        %v4706 = vld [vmem:[%s1 + $0x98] sm:$0xff]
        %v4707 = vld [vmem:[%s1 + $0xa0] sm:$0xff]
        %v4708 = vld [vmem:[%s1 + $0xa8] sm:$0xff]
        %v4709 = vld [vmem:[%s1 + $0xb0] sm:$0xff]
        %v4710 = vld [vmem:[%s1 + $0xb8] sm:$0xff]
        %v4711 = vld [vmem:[%s1 + $0xc0] sm:$0xff]
        %v4712 = vld [vmem:[%s1 + $0xc8] sm:$0xff]
        %v4713 = vld [vmem:[%s1 + $0xd0] sm:$0xff]
        %v4714 = vld [vmem:[%s1 + $0xd8] sm:$0xff]
        %v4715 = vld [vmem:[%s1 + $0xe0] sm:$0xff]
        %v4716 = vld [vmem:[%s1 + $0xe8] sm:$0xff]
        %v4717 = vld [vmem:[%s1 + $0xf0] sm:$0xff]
        %v4718 = vld [vmem:[%s1 + $0xf8] sm:$0xff]
        %v4719 = vld [vmem:[%s1 + $0x100] sm:$0xff]
        %v4720 = vld [vmem:[%s1 + $0x108] sm:$0xff]
        %v4721 = vld [vmem:[%s1 + $0x110] sm:$0xff]
        %v4722 = vld [vmem:[%s1 + $0x118] sm:$0xff]
        %v4723 = vld [vmem:[%s1 + $0x120] sm:$0xff]
        %v4724 = vld [vmem:[%s1 + $0x128] sm:$0xff]
        %v4725 = vld [vmem:[%s1 + $0x130] sm:$0xff]
        %v4726 = vld [vmem:[%s1 + $0x138] sm:$0xff]
        %v4727 = vld [vmem:[%s1 + $0x140] sm:$0xff]
        %v4728 = vld [vmem:[%s1 + $0x148] sm:$0xff]
        %v4729 = vld [vmem:[%s1 + $0x150] sm:$0xff]
        %v4730 = vld [vmem:[%s1 + $0x158] sm:$0xff]
        %v4731 = vld [vmem:[%s1 + $0x160] sm:$0xff]
        %v4732 = vld [vmem:[%s1 + $0x168] sm:$0xff]
        %v4733 = vld [vmem:[%s1 + $0x170] sm:$0xff]
        %v4734 = vld [vmem:[%s1 + $0x178] sm:$0xff]
        %v4735 = vld [vmem:[%s1 + $0x180] sm:$0xff]
        %v4736 = vld [vmem:[%s1 + $0x188] sm:$0xff]
        %v4737 = vld [vmem:[%s1 + $0x190] sm:$0xff]
        %v4738 = vld [vmem:[%s1 + $0x198] sm:$0xff]
        %v4739 = vld [vmem:[%s1 + $0x1a0] sm:$0xff]
        %v4740 = vld [vmem:[%s1 + $0x1a8] sm:$0xff]
        %v4741 = vld [vmem:[%s1 + $0x1b0] sm:$0xff]
        %v4742 = vld [vmem:[%s1 + $0x1b8] sm:$0xff]
        %v4743 = vld [vmem:[%s1 + $0x1c0] sm:$0xff]
        %v4744 = vld [vmem:[%s1 + $0x1c8] sm:$0xff]
        %v4745 = vld [vmem:[%s1 + $0x1d0] sm:$0xff]
        %v4746 = vld [vmem:[%s1 + $0x1d8] sm:$0xff]
        %v4747 = vld [vmem:[%s1 + $0x1e0] sm:$0xff]
        %v4748 = vld [vmem:[%s1 + $0x1e8] sm:$0xff]
        %v4749 = vld [vmem:[%s1 + $0x1f0] sm:$0xff]
        %v4750 = vld [vmem:[%s1 + $0x1f8] sm:$0xff]
        %v4751 = vld [vmem:[%s1 + $0x200] sm:$0xff]
        %v4752 = vld [vmem:[%s1 + $0x208] sm:$0xff]
        %vm4753 = vcmp.gt.f32.partialorder %v4687, 0.0
        %vm4754 = vcmp.gt.f32.partialorder %v4688, 0.0
        %vm4755 = vcmp.gt.f32.partialorder %v4689, 0.0
        %vm4756 = vcmp.gt.f32.partialorder %v4690, 0.0
        %vm4757 = vcmp.gt.f32.partialorder %v4691, 0.0
        %vm4758 = vcmp.gt.f32.partialorder %v4692, 0.0
        %vm4759 = vcmp.gt.f32.partialorder %v4693, 0.0
        %vm4760 = vcmp.gt.f32.partialorder %v4694, 0.0
        %vm4761 = vcmp.gt.f32.partialorder %v4695, 0.0
        %vm4762 = vcmp.gt.f32.partialorder %v4696, 0.0
        %vm4763 = vcmp.gt.f32.partialorder %v4697, 0.0
        %vm4764 = vcmp.gt.f32.partialorder %v4698, 0.0
        %vm4765 = vcmp.gt.f32.partialorder %v4699, 0.0
        %vm4766 = vcmp.gt.f32.partialorder %v4700, 0.0
        %vm4767 = vcmp.gt.f32.partialorder %v4701, 0.0
        %vm4768 = vcmp.gt.f32.partialorder %v4702, 0.0
        %vm4769 = vcmp.gt.f32.partialorder %v4703, 0.0
        %vm4770 = vcmp.gt.f32.partialorder %v4704, 0.0
        %vm4771 = vcmp.gt.f32.partialorder %v4705, 0.0
        %vm4772 = vcmp.gt.f32.partialorder %v4706, 0.0
        %vm4773 = vcmp.gt.f32.partialorder %v4707, 0.0
        %vm4774 = vcmp.gt.f32.partialorder %v4708, 0.0
        %vm4775 = vcmp.gt.f32.partialorder %v4709, 0.0
        %vm4776 = vcmp.gt.f32.partialorder %v4710, 0.0
        %vm4777 = vcmp.gt.f32.partialorder %v4711, 0.0
        %vm4778 = vcmp.gt.f32.partialorder %v4712, 0.0
        %vm4779 = vcmp.gt.f32.partialorder %v4713, 0.0
        %vm4780 = vcmp.gt.f32.partialorder %v4714, 0.0
        %vm4781 = vcmp.gt.f32.partialorder %v4715, 0.0
        %vm4782 = vcmp.gt.f32.partialorder %v4716, 0.0
        %vm4783 = vcmp.gt.f32.partialorder %v4717, 0.0
        %vm4784 = vcmp.gt.f32.partialorder %v4718, 0.0
        %vm4785 = vcmp.gt.f32.partialorder %v4719, 0.0
        %vm4786 = vcmp.gt.f32.partialorder %v4720, 0.0
        %vm4787 = vcmp.gt.f32.partialorder %v4721, 0.0
        %vm4788 = vcmp.gt.f32.partialorder %v4722, 0.0
        %vm4789 = vcmp.gt.f32.partialorder %v4723, 0.0
        %vm4790 = vcmp.gt.f32.partialorder %v4724, 0.0
        %vm4791 = vcmp.gt.f32.partialorder %v4725, 0.0
        %vm4792 = vcmp.gt.f32.partialorder %v4726, 0.0
        %vm4793 = vcmp.gt.f32.partialorder %v4727, 0.0
        %vm4794 = vcmp.gt.f32.partialorder %v4728, 0.0
        %vm4795 = vcmp.gt.f32.partialorder %v4729, 0.0
        %vm4796 = vcmp.gt.f32.partialorder %v4730, 0.0
        %vm4797 = vcmp.gt.f32.partialorder %v4731, 0.0
        %vm4798 = vcmp.gt.f32.partialorder %v4732, 0.0
        %vm4799 = vcmp.gt.f32.partialorder %v4733, 0.0
        %vm4800 = vcmp.gt.f32.partialorder %v4734, 0.0
        %vm4801 = vcmp.gt.f32.partialorder %v4735, 0.0
        %vm4802 = vcmp.gt.f32.partialorder %v4736, 0.0
        %vm4803 = vcmp.gt.f32.partialorder %v4737, 0.0
        %vm4804 = vcmp.gt.f32.partialorder %v4738, 0.0
        %vm4805 = vcmp.gt.f32.partialorder %v4739, 0.0
        %vm4806 = vcmp.gt.f32.partialorder %v4740, 0.0
        %vm4807 = vcmp.gt.f32.partialorder %v4741, 0.0
        %vm4808 = vcmp.gt.f32.partialorder %v4742, 0.0
        %vm4809 = vcmp.gt.f32.partialorder %v4743, 0.0
        %vm4810 = vcmp.gt.f32.partialorder %v4744, 0.0
        %vm4811 = vcmp.gt.f32.partialorder %v4745, 0.0
        %vm4812 = vcmp.gt.f32.partialorder %v4746, 0.0
        %vm4813 = vcmp.gt.f32.partialorder %v4747, 0.0
        %vm4814 = vcmp.gt.f32.partialorder %v4748, 0.0
        %vm4815 = vcmp.gt.f32.partialorder %v4749, 0.0
        %vm4816 = vcmp.gt.f32.partialorder %v4750, 0.0
        %vm4817 = vcmp.gt.f32.partialorder %v4751, 0.0
        %vm4818 = vcmp.gt.f32.partialorder %v4752, 0.0
        %v4819 = vsel %vm4753, 1, 0
        %v4820 = vsel %vm4754, 1, 0
        %v4821 = vsel %vm4755, 1, 0
        %v4822 = vsel %vm4756, 1, 0
        %v4823 = vsel %vm4757, 1, 0
        %v4824 = vsel %vm4758, 1, 0
        %v4825 = vsel %vm4759, 1, 0
        %v4826 = vsel %vm4760, 1, 0
        %v4827 = vsel %vm4761, 1, 0
        %v4828 = vsel %vm4762, 1, 0
        %v4829 = vsel %vm4763, 1, 0
        %v4830 = vsel %vm4764, 1, 0
        %v4831 = vsel %vm4765, 1, 0
        %v4832 = vsel %vm4766, 1, 0
        %v4833 = vsel %vm4767, 1, 0
        %v4834 = vsel %vm4768, 1, 0
        %v4835 = vsel %vm4769, 1, 0
        %v4836 = vsel %vm4770, 1, 0
        %v4837 = vsel %vm4771, 1, 0
        %v4838 = vsel %vm4772, 1, 0
        %v4839 = vsel %vm4773, 1, 0
        %v4840 = vsel %vm4774, 1, 0
        %v4841 = vsel %vm4775, 1, 0
        %v4842 = vsel %vm4776, 1, 0
        %v4843 = vsel %vm4777, 1, 0
        %v4844 = vsel %vm4778, 1, 0
        %v4845 = vsel %vm4779, 1, 0
        %v4846 = vsel %vm4780, 1, 0
        %v4847 = vsel %vm4781, 1, 0
        %v4848 = vsel %vm4782, 1, 0
        %v4849 = vsel %vm4783, 1, 0
        %v4850 = vsel %vm4784, 1, 0
        %v4851 = vsel %vm4785, 1, 0
        %v4852 = vsel %vm4786, 1, 0
        %v4853 = vsel %vm4787, 1, 0
        %v4854 = vsel %vm4788, 1, 0
        %v4855 = vsel %vm4789, 1, 0
        %v4856 = vsel %vm4790, 1, 0
        %v4857 = vsel %vm4791, 1, 0
        %v4858 = vsel %vm4792, 1, 0
        %v4859 = vsel %vm4793, 1, 0
        %v4860 = vsel %vm4794, 1, 0
        %v4861 = vsel %vm4795, 1, 0
        %v4862 = vsel %vm4796, 1, 0
        %v4863 = vsel %vm4797, 1, 0
        %v4864 = vsel %vm4798, 1, 0
        %v4865 = vsel %vm4799, 1, 0
        %v4866 = vsel %vm4800, 1, 0
        %v4867 = vsel %vm4801, 1, 0
        %v4868 = vsel %vm4802, 1, 0
        %v4869 = vsel %vm4803, 1, 0
        %v4870 = vsel %vm4804, 1, 0
        %v4871 = vsel %vm4805, 1, 0
        %v4872 = vsel %vm4806, 1, 0
        %v4873 = vsel %vm4807, 1, 0
        %v4874 = vsel %vm4808, 1, 0
        %v4875 = vsel %vm4809, 1, 0
        %v4876 = vsel %vm4810, 1, 0
        %v4877 = vsel %vm4811, 1, 0
        %v4878 = vsel %vm4812, 1, 0
        %v4879 = vsel %vm4813, 1, 0
        %v4880 = vsel %vm4814, 1, 0
        %v4881 = vsel %vm4815, 1, 0
        %v4882 = vsel %vm4816, 1, 0
        %v4883 = vsel %vm4817, 1, 0
        %v4884 = vsel %vm4818, 1, 0
        %4885 = vset.pattern.permute.xlu0 0
        %4886 = vperm.xlu0 %4885, %v4819
        %v4887 = vpop.permute.xlu0 %4886
        %4888 = vset.pattern.permute.xlu0 0
        %4889 = vperm.xlu0 %4888, %v4820
        %v4890 = vpop.permute.xlu0 %4889
        %4891 = vset.pattern.permute.xlu0 0
        %4892 = vperm.xlu0 %4891, %v4821
        %v4893 = vpop.permute.xlu0 %4892
        %4894 = vset.pattern.permute.xlu0 0
        %4895 = vperm.xlu0 %4894, %v4822
        %v4896 = vpop.permute.xlu0 %4895
        %4897 = vset.pattern.permute.xlu0 0
        %4898 = vperm.xlu0 %4897, %v4823
        %v4899 = vpop.permute.xlu0 %4898
        %4900 = vset.pattern.permute.xlu0 0
        %4901 = vperm.xlu0 %4900, %v4824
        %v4902 = vpop.permute.xlu0 %4901
        %4903 = vset.pattern.permute.xlu0 0
        %4904 = vperm.xlu0 %4903, %v4825
        %v4905 = vpop.permute.xlu0 %4904
        %4906 = vset.pattern.permute.xlu0 0
        %4907 = vperm.xlu0 %4906, %v4826
        %v4908 = vpop.permute.xlu0 %4907
        %4909 = vset.pattern.permute.xlu0 0
        %4910 = vperm.xlu0 %4909, %v4827
        %v4911 = vpop.permute.xlu0 %4910
        %4912 = vset.pattern.permute.xlu0 0
        %4913 = vperm.xlu0 %4912, %v4828
        %v4914 = vpop.permute.xlu0 %4913
        %4915 = vset.pattern.permute.xlu0 0
        %4916 = vperm.xlu0 %4915, %v4829
        %v4917 = vpop.permute.xlu0 %4916
        %4918 = vset.pattern.permute.xlu0 0
        %4919 = vperm.xlu0 %4918, %v4830
        %v4920 = vpop.permute.xlu0 %4919
        %4921 = vset.pattern.permute.xlu0 0
        %4922 = vperm.xlu0 %4921, %v4831
        %v4923 = vpop.permute.xlu0 %4922
        %4924 = vset.pattern.permute.xlu0 0
        %4925 = vperm.xlu0 %4924, %v4832
        %v4926 = vpop.permute.xlu0 %4925
        %4927 = vset.pattern.permute.xlu0 0
        %4928 = vperm.xlu0 %4927, %v4833
        %v4929 = vpop.permute.xlu0 %4928
        %4930 = vset.pattern.permute.xlu0 0
        %4931 = vperm.xlu0 %4930, %v4834
        %v4932 = vpop.permute.xlu0 %4931
        %4933 = vset.pattern.permute.xlu0 0
        %4934 = vperm.xlu0 %4933, %v4835
        %v4935 = vpop.permute.xlu0 %4934
        %4936 = vset.pattern.permute.xlu0 0
        %4937 = vperm.xlu0 %4936, %v4836
        %v4938 = vpop.permute.xlu0 %4937
        %4939 = vset.pattern.permute.xlu0 0
        %4940 = vperm.xlu0 %4939, %v4837
        %v4941 = vpop.permute.xlu0 %4940
        %4942 = vset.pattern.permute.xlu0 0
        %4943 = vperm.xlu0 %4942, %v4838
        %v4944 = vpop.permute.xlu0 %4943
        %4945 = vset.pattern.permute.xlu0 0
        %4946 = vperm.xlu0 %4945, %v4839
        %v4947 = vpop.permute.xlu0 %4946
        %4948 = vset.pattern.permute.xlu0 0
        %4949 = vperm.xlu0 %4948, %v4840
        %v4950 = vpop.permute.xlu0 %4949
        %4951 = vset.pattern.permute.xlu0 0
        %4952 = vperm.xlu0 %4951, %v4841
        %v4953 = vpop.permute.xlu0 %4952
        %4954 = vset.pattern.permute.xlu0 0
        %4955 = vperm.xlu0 %4954, %v4842
        %v4956 = vpop.permute.xlu0 %4955
        %4957 = vset.pattern.permute.xlu0 0
        %4958 = vperm.xlu0 %4957, %v4843
        %v4959 = vpop.permute.xlu0 %4958
        %4960 = vset.pattern.permute.xlu0 0
        %4961 = vperm.xlu0 %4960, %v4844
        %v4962 = vpop.permute.xlu0 %4961
        %4963 = vset.pattern.permute.xlu0 0
        %4964 = vperm.xlu0 %4963, %v4845
        %v4965 = vpop.permute.xlu0 %4964
        %4966 = vset.pattern.permute.xlu0 0
        %4967 = vperm.xlu0 %4966, %v4846
        %v4968 = vpop.permute.xlu0 %4967
        %4969 = vset.pattern.permute.xlu0 0
        %4970 = vperm.xlu0 %4969, %v4847
        %v4971 = vpop.permute.xlu0 %4970
        %4972 = vset.pattern.permute.xlu0 0
        %4973 = vperm.xlu0 %4972, %v4848
        %v4974 = vpop.permute.xlu0 %4973
        %4975 = vset.pattern.permute.xlu0 0
        %4976 = vperm.xlu0 %4975, %v4849
        %v4977 = vpop.permute.xlu0 %4976
        %4978 = vset.pattern.permute.xlu0 0
        %4979 = vperm.xlu0 %4978, %v4850
        %v4980 = vpop.permute.xlu0 %4979
        %4981 = vset.pattern.permute.xlu0 0
        %4982 = vperm.xlu0 %4981, %v4851
        %v4983 = vpop.permute.xlu0 %4982
        %4984 = vset.pattern.permute.xlu0 0
        %4985 = vperm.xlu0 %4984, %v4852
        %v4986 = vpop.permute.xlu0 %4985
        %4987 = vset.pattern.permute.xlu0 0
        %4988 = vperm.xlu0 %4987, %v4853
        %v4989 = vpop.permute.xlu0 %4988
        %4990 = vset.pattern.permute.xlu0 0
        %4991 = vperm.xlu0 %4990, %v4854
        %v4992 = vpop.permute.xlu0 %4991
        %4993 = vset.pattern.permute.xlu0 0
        %4994 = vperm.xlu0 %4993, %v4855
        %v4995 = vpop.permute.xlu0 %4994
        %4996 = vset.pattern.permute.xlu0 0
        %4997 = vperm.xlu0 %4996, %v4856
        %v4998 = vpop.permute.xlu0 %4997
        %4999 = vset.pattern.permute.xlu0 0
        %5000 = vperm.xlu0 %4999, %v4857
        %v5001 = vpop.permute.xlu0 %5000
        %5002 = vset.pattern.permute.xlu0 0
        %5003 = vperm.xlu0 %5002, %v4858
        %v5004 = vpop.permute.xlu0 %5003
        %5005 = vset.pattern.permute.xlu0 0
        %5006 = vperm.xlu0 %5005, %v4859
        %v5007 = vpop.permute.xlu0 %5006
        %5008 = vset.pattern.permute.xlu0 0
        %5009 = vperm.xlu0 %5008, %v4860
        %v5010 = vpop.permute.xlu0 %5009
        %5011 = vset.pattern.permute.xlu0 0
        %5012 = vperm.xlu0 %5011, %v4861
        %v5013 = vpop.permute.xlu0 %5012
        %5014 = vset.pattern.permute.xlu0 0
        %5015 = vperm.xlu0 %5014, %v4862
        %v5016 = vpop.permute.xlu0 %5015
        %5017 = vset.pattern.permute.xlu0 0
        %5018 = vperm.xlu0 %5017, %v4863
        %v5019 = vpop.permute.xlu0 %5018
        %5020 = vset.pattern.permute.xlu0 0
        %5021 = vperm.xlu0 %5020, %v4864
        %v5022 = vpop.permute.xlu0 %5021
        %5023 = vset.pattern.permute.xlu0 0
        %5024 = vperm.xlu0 %5023, %v4865
        %v5025 = vpop.permute.xlu0 %5024
        %5026 = vset.pattern.permute.xlu0 0
        %5027 = vperm.xlu0 %5026, %v4866
        %v5028 = vpop.permute.xlu0 %5027
        %5029 = vset.pattern.permute.xlu0 0
        %5030 = vperm.xlu0 %5029, %v4867
        %v5031 = vpop.permute.xlu0 %5030
        %5032 = vset.pattern.permute.xlu0 0
        %5033 = vperm.xlu0 %5032, %v4868
        %v5034 = vpop.permute.xlu0 %5033
        %5035 = vset.pattern.permute.xlu0 0
        %5036 = vperm.xlu0 %5035, %v4869
        %v5037 = vpop.permute.xlu0 %5036
        %5038 = vset.pattern.permute.xlu0 0
        %5039 = vperm.xlu0 %5038, %v4870
        %v5040 = vpop.permute.xlu0 %5039
        %5041 = vset.pattern.permute.xlu0 0
        %5042 = vperm.xlu0 %5041, %v4871
        %v5043 = vpop.permute.xlu0 %5042
        %5044 = vset.pattern.permute.xlu0 0
        %5045 = vperm.xlu0 %5044, %v4872
        %v5046 = vpop.permute.xlu0 %5045
        %5047 = vset.pattern.permute.xlu0 0
        %5048 = vperm.xlu0 %5047, %v4873
        %v5049 = vpop.permute.xlu0 %5048
        %5050 = vset.pattern.permute.xlu0 0
        %5051 = vperm.xlu0 %5050, %v4874
        %v5052 = vpop.permute.xlu0 %5051
        %5053 = vset.pattern.permute.xlu0 0
        %5054 = vperm.xlu0 %5053, %v4875
        %v5055 = vpop.permute.xlu0 %5054
        %5056 = vset.pattern.permute.xlu0 0
        %5057 = vperm.xlu0 %5056, %v4876
        %v5058 = vpop.permute.xlu0 %5057
        %5059 = vset.pattern.permute.xlu0 0
        %5060 = vperm.xlu0 %5059, %v4877
        %v5061 = vpop.permute.xlu0 %5060
        %5062 = vset.pattern.permute.xlu0 0
        %5063 = vperm.xlu0 %5062, %v4878
        %v5064 = vpop.permute.xlu0 %5063
        %5065 = vset.pattern.permute.xlu0 0
        %5066 = vperm.xlu0 %5065, %v4879
        %v5067 = vpop.permute.xlu0 %5066
        %5068 = vset.pattern.permute.xlu0 0
        %5069 = vperm.xlu0 %5068, %v4880
        %v5070 = vpop.permute.xlu0 %5069
        %5071 = vset.pattern.permute.xlu0 0
        %5072 = vperm.xlu0 %5071, %v4881
        %v5073 = vpop.permute.xlu0 %5072
        %5074 = vset.pattern.permute.xlu0 0
        %5075 = vperm.xlu0 %5074, %v4882
        %v5076 = vpop.permute.xlu0 %5075
        %5077 = vset.pattern.permute.xlu0 0
        %5078 = vperm.xlu0 %5077, %v4883
        %v5079 = vpop.permute.xlu0 %5078
        %5080 = vset.pattern.permute.xlu0 0
        %5081 = vperm.xlu0 %5080, %v4884
        %v5082 = vpop.permute.xlu0 %5081
        %vm5083 = vcmp.eq.s32.totalorder %v4887, 1
        %vm5084 = vcmp.eq.s32.totalorder %v4890, 1
        %vm5085 = vcmp.eq.s32.totalorder %v4893, 1
        %vm5086 = vcmp.eq.s32.totalorder %v4896, 1
        %vm5087 = vcmp.eq.s32.totalorder %v4899, 1
        %vm5088 = vcmp.eq.s32.totalorder %v4902, 1
        %vm5089 = vcmp.eq.s32.totalorder %v4905, 1
        %vm5090 = vcmp.eq.s32.totalorder %v4908, 1
        %vm5091 = vcmp.eq.s32.totalorder %v4911, 1
        %vm5092 = vcmp.eq.s32.totalorder %v4914, 1
        %vm5093 = vcmp.eq.s32.totalorder %v4917, 1
        %vm5094 = vcmp.eq.s32.totalorder %v4920, 1
        %vm5095 = vcmp.eq.s32.totalorder %v4923, 1
        %vm5096 = vcmp.eq.s32.totalorder %v4926, 1
        %vm5097 = vcmp.eq.s32.totalorder %v4929, 1
        %vm5098 = vcmp.eq.s32.totalorder %v4932, 1
        %vm5099 = vcmp.eq.s32.totalorder %v4935, 1
        %vm5100 = vcmp.eq.s32.totalorder %v4938, 1
        %vm5101 = vcmp.eq.s32.totalorder %v4941, 1
        %vm5102 = vcmp.eq.s32.totalorder %v4944, 1
        %vm5103 = vcmp.eq.s32.totalorder %v4947, 1
        %vm5104 = vcmp.eq.s32.totalorder %v4950, 1
        %vm5105 = vcmp.eq.s32.totalorder %v4953, 1
        %vm5106 = vcmp.eq.s32.totalorder %v4956, 1
        %vm5107 = vcmp.eq.s32.totalorder %v4959, 1
        %vm5108 = vcmp.eq.s32.totalorder %v4962, 1
        %vm5109 = vcmp.eq.s32.totalorder %v4965, 1
        %vm5110 = vcmp.eq.s32.totalorder %v4968, 1
        %vm5111 = vcmp.eq.s32.totalorder %v4971, 1
        %vm5112 = vcmp.eq.s32.totalorder %v4974, 1
        %vm5113 = vcmp.eq.s32.totalorder %v4977, 1
        %vm5114 = vcmp.eq.s32.totalorder %v4980, 1
        %vm5115 = vcmp.eq.s32.totalorder %v4983, 1
        %vm5116 = vcmp.eq.s32.totalorder %v4986, 1
        %vm5117 = vcmp.eq.s32.totalorder %v4989, 1
        %vm5118 = vcmp.eq.s32.totalorder %v4992, 1
        %vm5119 = vcmp.eq.s32.totalorder %v4995, 1
        %vm5120 = vcmp.eq.s32.totalorder %v4998, 1
        %vm5121 = vcmp.eq.s32.totalorder %v5001, 1
        %vm5122 = vcmp.eq.s32.totalorder %v5004, 1
        %vm5123 = vcmp.eq.s32.totalorder %v5007, 1
        %vm5124 = vcmp.eq.s32.totalorder %v5010, 1
        %vm5125 = vcmp.eq.s32.totalorder %v5013, 1
        %vm5126 = vcmp.eq.s32.totalorder %v5016, 1
        %vm5127 = vcmp.eq.s32.totalorder %v5019, 1
        %vm5128 = vcmp.eq.s32.totalorder %v5022, 1
        %vm5129 = vcmp.eq.s32.totalorder %v5025, 1
        %vm5130 = vcmp.eq.s32.totalorder %v5028, 1
        %vm5131 = vcmp.eq.s32.totalorder %v5031, 1
        %vm5132 = vcmp.eq.s32.totalorder %v5034, 1
        %vm5133 = vcmp.eq.s32.totalorder %v5037, 1
        %vm5134 = vcmp.eq.s32.totalorder %v5040, 1
        %vm5135 = vcmp.eq.s32.totalorder %v5043, 1
        %vm5136 = vcmp.eq.s32.totalorder %v5046, 1
        %vm5137 = vcmp.eq.s32.totalorder %v5049, 1
        %vm5138 = vcmp.eq.s32.totalorder %v5052, 1
        %vm5139 = vcmp.eq.s32.totalorder %v5055, 1
        %vm5140 = vcmp.eq.s32.totalorder %v5058, 1
        %vm5141 = vcmp.eq.s32.totalorder %v5061, 1
        %vm5142 = vcmp.eq.s32.totalorder %v5064, 1
        %vm5143 = vcmp.eq.s32.totalorder %v5067, 1
        %vm5144 = vcmp.eq.s32.totalorder %v5070, 1
        %vm5145 = vcmp.eq.s32.totalorder %v5073, 1
        %vm5146 = vcmp.eq.s32.totalorder %v5076, 1
        %vm5147 = vcmp.eq.s32.totalorder %v5079, 1
        %vm5148 = vcmp.eq.s32.totalorder %v5082, 1
        %v5149 = vsel %vm5083, %v4621, -inf
        %v5150 = vsel %vm5084, %v4622, -inf
        %v5151 = vsel %vm5085, %v4623, -inf
        %v5152 = vsel %vm5086, %v4624, -inf
        %v5153 = vsel %vm5087, %v4625, -inf
        %v5154 = vsel %vm5088, %v4626, -inf
        %v5155 = vsel %vm5089, %v4627, -inf
        %v5156 = vsel %vm5090, %v4628, -inf
        %v5157 = vsel %vm5091, %v4629, -inf
        %v5158 = vsel %vm5092, %v4630, -inf
        %v5159 = vsel %vm5093, %v4631, -inf
        %v5160 = vsel %vm5094, %v4632, -inf
        %v5161 = vsel %vm5095, %v4633, -inf
        %v5162 = vsel %vm5096, %v4634, -inf
        %v5163 = vsel %vm5097, %v4635, -inf
        %v5164 = vsel %vm5098, %v4636, -inf
        %v5165 = vsel %vm5099, %v4637, -inf
        %v5166 = vsel %vm5100, %v4638, -inf
        %v5167 = vsel %vm5101, %v4639, -inf
        %v5168 = vsel %vm5102, %v4640, -inf
        %v5169 = vsel %vm5103, %v4641, -inf
        %v5170 = vsel %vm5104, %v4642, -inf
        %v5171 = vsel %vm5105, %v4643, -inf
        %v5172 = vsel %vm5106, %v4644, -inf
        %v5173 = vsel %vm5107, %v4645, -inf
        %v5174 = vsel %vm5108, %v4646, -inf
        %v5175 = vsel %vm5109, %v4647, -inf
        %v5176 = vsel %vm5110, %v4648, -inf
        %v5177 = vsel %vm5111, %v4649, -inf
        %v5178 = vsel %vm5112, %v4650, -inf
        %v5179 = vsel %vm5113, %v4651, -inf
        %v5180 = vsel %vm5114, %v4652, -inf
        %v5181 = vsel %vm5115, %v4653, -inf
        %v5182 = vsel %vm5116, %v4654, -inf
        %v5183 = vsel %vm5117, %v4655, -inf
        %v5184 = vsel %vm5118, %v4656, -inf
        %v5185 = vsel %vm5119, %v4657, -inf
        %v5186 = vsel %vm5120, %v4658, -inf
        %v5187 = vsel %vm5121, %v4659, -inf
        %v5188 = vsel %vm5122, %v4660, -inf
        %v5189 = vsel %vm5123, %v4661, -inf
        %v5190 = vsel %vm5124, %v4662, -inf
        %v5191 = vsel %vm5125, %v4663, -inf
        %v5192 = vsel %vm5126, %v4664, -inf
        %v5193 = vsel %vm5127, %v4665, -inf
        %v5194 = vsel %vm5128, %v4666, -inf
        %v5195 = vsel %vm5129, %v4667, -inf
        %v5196 = vsel %vm5130, %v4668, -inf
        %v5197 = vsel %vm5131, %v4669, -inf
        %v5198 = vsel %vm5132, %v4670, -inf
        %v5199 = vsel %vm5133, %v4671, -inf
        %v5200 = vsel %vm5134, %v4672, -inf
        %v5201 = vsel %vm5135, %v4673, -inf
        %v5202 = vsel %vm5136, %v4674, -inf
        %v5203 = vsel %vm5137, %v4675, -inf
        %v5204 = vsel %vm5138, %v4676, -inf
        %v5205 = vsel %vm5139, %v4677, -inf
        %v5206 = vsel %vm5140, %v4678, -inf
        %v5207 = vsel %vm5141, %v4679, -inf
        %v5208 = vsel %vm5142, %v4680, -inf
        %v5209 = vsel %vm5143, %v4681, -inf
        %v5210 = vsel %vm5144, %v4682, -inf
        %v5211 = vsel %vm5145, %v4683, -inf
        %v5212 = vsel %vm5146, %v4684, -inf
        %v5213 = vsel %vm5147, %v4685, -inf
        %v5214 = vsel %vm5148, %v4686, -inf
        %vm5215 = vcmask 228352
        %5216 = vst.msk [vmem:[#allocation2] sm:$0xff] %vm5215, %v5149
        %5217 = vst.msk [vmem:[#allocation2 + $0x8] sm:$0xff] %vm5215, %v5150
        %5218 = vst.msk [vmem:[#allocation2 + $0x10] sm:$0xff] %vm5215, %v5151
        %5219 = vst.msk [vmem:[#allocation2 + $0x18] sm:$0xff] %vm5215, %v5152
        %5220 = vst.msk [vmem:[#allocation2 + $0x20] sm:$0xff] %vm5215, %v5153
        %5221 = vst.msk [vmem:[#allocation2 + $0x28] sm:$0xff] %vm5215, %v5154
        %5222 = vst.msk [vmem:[#allocation2 + $0x30] sm:$0xff] %vm5215, %v5155
        %5223 = vst.msk [vmem:[#allocation2 + $0x38] sm:$0xff] %vm5215, %v5156
        %5224 = vst.msk [vmem:[#allocation2 + $0x40] sm:$0xff] %vm5215, %v5157
        %5225 = vst.msk [vmem:[#allocation2 + $0x48] sm:$0xff] %vm5215, %v5158
        %5226 = vst.msk [vmem:[#allocation2 + $0x50] sm:$0xff] %vm5215, %v5159
        %5227 = vst.msk [vmem:[#allocation2 + $0x58] sm:$0xff] %vm5215, %v5160
        %5228 = vst.msk [vmem:[#allocation2 + $0x60] sm:$0xff] %vm5215, %v5161
        %5229 = vst.msk [vmem:[#allocation2 + $0x68] sm:$0xff] %vm5215, %v5162
        %5230 = vst.msk [vmem:[#allocation2 + $0x70] sm:$0xff] %vm5215, %v5163
        %5231 = vst.msk [vmem:[#allocation2 + $0x78] sm:$0xff] %vm5215, %v5164
        %5232 = vst.msk [vmem:[#allocation2 + $0x80] sm:$0xff] %vm5215, %v5165
        %5233 = vst.msk [vmem:[#allocation2 + $0x88] sm:$0xff] %vm5215, %v5166
        %5234 = vst.msk [vmem:[#allocation2 + $0x90] sm:$0xff] %vm5215, %v5167
        %5235 = vst.msk [vmem:[#allocation2 + $0x98] sm:$0xff] %vm5215, %v5168
        %5236 = vst.msk [vmem:[#allocation2 + $0xa0] sm:$0xff] %vm5215, %v5169
        %5237 = vst.msk [vmem:[#allocation2 + $0xa8] sm:$0xff] %vm5215, %v5170
        %5238 = vst.msk [vmem:[#allocation2 + $0xb0] sm:$0xff] %vm5215, %v5171
        %5239 = vst.msk [vmem:[#allocation2 + $0xb8] sm:$0xff] %vm5215, %v5172
        %5240 = vst.msk [vmem:[#allocation2 + $0xc0] sm:$0xff] %vm5215, %v5173
        %5241 = vst.msk [vmem:[#allocation2 + $0xc8] sm:$0xff] %vm5215, %v5174
        %5242 = vst.msk [vmem:[#allocation2 + $0xd0] sm:$0xff] %vm5215, %v5175
        %5243 = vst.msk [vmem:[#allocation2 + $0xd8] sm:$0xff] %vm5215, %v5176
        %5244 = vst.msk [vmem:[#allocation2 + $0xe0] sm:$0xff] %vm5215, %v5177
        %5245 = vst.msk [vmem:[#allocation2 + $0xe8] sm:$0xff] %vm5215, %v5178
        %5246 = vst.msk [vmem:[#allocation2 + $0xf0] sm:$0xff] %vm5215, %v5179
        %5247 = vst.msk [vmem:[#allocation2 + $0xf8] sm:$0xff] %vm5215, %v5180
        %5248 = vst.msk [vmem:[#allocation2 + $0x100] sm:$0xff] %vm5215, %v5181
        %5249 = vst.msk [vmem:[#allocation2 + $0x108] sm:$0xff] %vm5215, %v5182
        %5250 = vst.msk [vmem:[#allocation2 + $0x110] sm:$0xff] %vm5215, %v5183
        %5251 = vst.msk [vmem:[#allocation2 + $0x118] sm:$0xff] %vm5215, %v5184
        %5252 = vst.msk [vmem:[#allocation2 + $0x120] sm:$0xff] %vm5215, %v5185
        %5253 = vst.msk [vmem:[#allocation2 + $0x128] sm:$0xff] %vm5215, %v5186
        %5254 = vst.msk [vmem:[#allocation2 + $0x130] sm:$0xff] %vm5215, %v5187
        %5255 = vst.msk [vmem:[#allocation2 + $0x138] sm:$0xff] %vm5215, %v5188
        %5256 = vst.msk [vmem:[#allocation2 + $0x140] sm:$0xff] %vm5215, %v5189
        %5257 = vst.msk [vmem:[#allocation2 + $0x148] sm:$0xff] %vm5215, %v5190
        %5258 = vst.msk [vmem:[#allocation2 + $0x150] sm:$0xff] %vm5215, %v5191
        %5259 = vst.msk [vmem:[#allocation2 + $0x158] sm:$0xff] %vm5215, %v5192
        %5260 = vst.msk [vmem:[#allocation2 + $0x160] sm:$0xff] %vm5215, %v5193
        %5261 = vst.msk [vmem:[#allocation2 + $0x168] sm:$0xff] %vm5215, %v5194
        %5262 = vst.msk [vmem:[#allocation2 + $0x170] sm:$0xff] %vm5215, %v5195
        %5263 = vst.msk [vmem:[#allocation2 + $0x178] sm:$0xff] %vm5215, %v5196
        %5264 = vst.msk [vmem:[#allocation2 + $0x180] sm:$0xff] %vm5215, %v5197
        %5265 = vst.msk [vmem:[#allocation2 + $0x188] sm:$0xff] %vm5215, %v5198
        %5266 = vst.msk [vmem:[#allocation2 + $0x190] sm:$0xff] %vm5215, %v5199
        %5267 = vst.msk [vmem:[#allocation2 + $0x198] sm:$0xff] %vm5215, %v5200
        %5268 = vst.msk [vmem:[#allocation2 + $0x1a0] sm:$0xff] %vm5215, %v5201
        %5269 = vst.msk [vmem:[#allocation2 + $0x1a8] sm:$0xff] %vm5215, %v5202
        %5270 = vst.msk [vmem:[#allocation2 + $0x1b0] sm:$0xff] %vm5215, %v5203
        %5271 = vst.msk [vmem:[#allocation2 + $0x1b8] sm:$0xff] %vm5215, %v5204
        %5272 = vst.msk [vmem:[#allocation2 + $0x1c0] sm:$0xff] %vm5215, %v5205
        %5273 = vst.msk [vmem:[#allocation2 + $0x1c8] sm:$0xff] %vm5215, %v5206
        %5274 = vst.msk [vmem:[#allocation2 + $0x1d0] sm:$0xff] %vm5215, %v5207
        %5275 = vst.msk [vmem:[#allocation2 + $0x1d8] sm:$0xff] %vm5215, %v5208
        %5276 = vst.msk [vmem:[#allocation2 + $0x1e0] sm:$0xff] %vm5215, %v5209
        %5277 = vst.msk [vmem:[#allocation2 + $0x1e8] sm:$0xff] %vm5215, %v5210
        %5278 = vst.msk [vmem:[#allocation2 + $0x1f0] sm:$0xff] %vm5215, %v5211
        %5279 = vst.msk [vmem:[#allocation2 + $0x1f8] sm:$0xff] %vm5215, %v5212
        %5280 = vst.msk [vmem:[#allocation2 + $0x200] sm:$0xff] %vm5215, %v5213
        %5281 = vst.msk [vmem:[#allocation2 + $0x208] sm:$0xff] %vm5215, %v5214
        %5282 = vst.msk [vmem:[#allocation2 + $0x210] sm:$0xff] %vm5215, -inf
        %5283 = vst.msk [vmem:[#allocation2 + $0x218] sm:$0xff] %vm5215, -inf
        %5284 = vst.msk [vmem:[#allocation2 + $0x220] sm:$0xff] %vm5215, -inf
        %5285 = vst.msk [vmem:[#allocation2 + $0x228] sm:$0xff] %vm5215, -inf
        %5286 = vst.msk [vmem:[#allocation2 + $0x230] sm:$0xff] %vm5215, -inf
        %5287 = vst.msk [vmem:[#allocation2 + $0x238] sm:$0xff] %vm5215, -inf
        %5288 = vst.msk [vmem:[#allocation2 + $0x240] sm:$0xff] %vm5215, -inf
        %5289 = vst.msk [vmem:[#allocation2 + $0x248] sm:$0xff] %vm5215, -inf
        %5290 = vst.msk [vmem:[#allocation2 + $0x250] sm:$0xff] %vm5215, -inf
        %v5291 = vld [vmem:[#allocation2] ss:$2 sm:$0xff]
        %s5292 = scalar_lea.vmem [#allocation2], 16
        %v5293 = vld [vmem:[%s5292] ss:$2 sm:$0xff]
        %s5294 = scalar_lea.vmem [#allocation2], 32
        %v5295 = vld [vmem:[%s5294] ss:$2 sm:$0xff]
        %s5296 = scalar_lea.vmem [#allocation2], 48
        %v5297 = vld [vmem:[%s5296] ss:$2 sm:$0xff]
        %s5298 = scalar_lea.vmem [#allocation2], 64
        %v5299 = vld [vmem:[%s5298] ss:$2 sm:$0xff]
        %s5300 = scalar_lea.vmem [#allocation2], 80
        %v5301 = vld [vmem:[%s5300] ss:$2 sm:$0xff]
        %s5302 = scalar_lea.vmem [#allocation2], 96
        %v5303 = vld [vmem:[%s5302] ss:$2 sm:$0xff]
        %s5304 = scalar_lea.vmem [#allocation2], 112
        %v5305 = vld [vmem:[%s5304] ss:$2 sm:$0xff]
        %s5306 = scalar_lea.vmem [#allocation2], 128
        %v5307 = vld [vmem:[%s5306] ss:$2 sm:$0xff]
        %s5308 = scalar_lea.vmem [#allocation2], 144
        %v5309 = vld [vmem:[%s5308] ss:$2 sm:$0xff]
        %s5310 = scalar_lea.vmem [#allocation2], 160
        %v5311 = vld [vmem:[%s5310] ss:$2 sm:$0xff]
        %s5312 = scalar_lea.vmem [#allocation2], 176
        %v5313 = vld [vmem:[%s5312] ss:$2 sm:$0xff]
        %s5314 = scalar_lea.vmem [#allocation2], 192
        %v5315 = vld [vmem:[%s5314] ss:$2 sm:$0xff]
        %s5316 = scalar_lea.vmem [#allocation2], 208
        %v5317 = vld [vmem:[%s5316] ss:$2 sm:$0xff]
        %s5318 = scalar_lea.vmem [#allocation2], 224
        %v5319 = vld [vmem:[%s5318] ss:$2 sm:$0xff]
        %s5320 = scalar_lea.vmem [#allocation2], 240
        %v5321 = vld [vmem:[%s5320] ss:$2 sm:$0xff]
        %s5322 = scalar_lea.vmem [#allocation2], 256
        %v5323 = vld [vmem:[%s5322] ss:$2 sm:$0xff]
        %s5324 = scalar_lea.vmem [#allocation2], 272
        %v5325 = vld [vmem:[%s5324] ss:$2 sm:$0xff]
        %s5326 = scalar_lea.vmem [#allocation2], 288
        %v5327 = vld [vmem:[%s5326] ss:$2 sm:$0xff]
        %s5328 = scalar_lea.vmem [#allocation2], 304
        %v5329 = vld [vmem:[%s5328] ss:$2 sm:$0xff]
        %s5330 = scalar_lea.vmem [#allocation2], 320
        %v5331 = vld [vmem:[%s5330] ss:$2 sm:$0xff]
        %s5332 = scalar_lea.vmem [#allocation2], 336
        %v5333 = vld [vmem:[%s5332] ss:$2 sm:$0xff]
        %s5334 = scalar_lea.vmem [#allocation2], 352
        %v5335 = vld [vmem:[%s5334] ss:$2 sm:$0xff]
        %s5336 = scalar_lea.vmem [#allocation2], 368
        %v5337 = vld [vmem:[%s5336] ss:$2 sm:$0xff]
        %s5338 = scalar_lea.vmem [#allocation2], 384
        %v5339 = vld [vmem:[%s5338] ss:$2 sm:$0xff]
        %s5340 = scalar_lea.vmem [#allocation2], 400
        %v5341 = vld [vmem:[%s5340] ss:$2 sm:$0xff]
        %s5342 = scalar_lea.vmem [#allocation2], 416
        %v5343 = vld [vmem:[%s5342] ss:$2 sm:$0xff]
        %s5344 = scalar_lea.vmem [#allocation2], 432
        %v5345 = vld [vmem:[%s5344] ss:$2 sm:$0xff]
        %s5346 = scalar_lea.vmem [#allocation2], 448
        %v5347 = vld [vmem:[%s5346] ss:$2 sm:$0xff]
        %s5348 = scalar_lea.vmem [#allocation2], 464
        %v5349 = vld [vmem:[%s5348] ss:$2 sm:$0xff]
        %s5350 = scalar_lea.vmem [#allocation2], 480
        %v5351 = vld [vmem:[%s5350] ss:$2 sm:$0xff]
        %s5352 = scalar_lea.vmem [#allocation2], 496
        %v5353 = vld [vmem:[%s5352] ss:$2 sm:$0xff]
        %s5354 = scalar_lea.vmem [#allocation2], 512
        %v5355 = vld [vmem:[%s5354] ss:$2 sm:$0xff]
        %s5356 = scalar_lea.vmem [#allocation2], 528
        %v5357 = vld [vmem:[%s5356] ss:$2 sm:$0xff]
        %s5358 = scalar_lea.vmem [#allocation2], 1
        %v5359 = vld [vmem:[%s5358] ss:$2 sm:$0xff]
        %s5360 = scalar_lea.vmem [#allocation2], 17
        %v5361 = vld [vmem:[%s5360] ss:$2 sm:$0xff]
        %s5362 = scalar_lea.vmem [#allocation2], 33
        %v5363 = vld [vmem:[%s5362] ss:$2 sm:$0xff]
        %s5364 = scalar_lea.vmem [#allocation2], 49
        %v5365 = vld [vmem:[%s5364] ss:$2 sm:$0xff]
        %s5366 = scalar_lea.vmem [#allocation2], 65
        %v5367 = vld [vmem:[%s5366] ss:$2 sm:$0xff]
        %s5368 = scalar_lea.vmem [#allocation2], 81
        %v5369 = vld [vmem:[%s5368] ss:$2 sm:$0xff]
        %s5370 = scalar_lea.vmem [#allocation2], 97
        %v5371 = vld [vmem:[%s5370] ss:$2 sm:$0xff]
        %s5372 = scalar_lea.vmem [#allocation2], 113
        %v5373 = vld [vmem:[%s5372] ss:$2 sm:$0xff]
        %s5374 = scalar_lea.vmem [#allocation2], 129
        %v5375 = vld [vmem:[%s5374] ss:$2 sm:$0xff]
        %s5376 = scalar_lea.vmem [#allocation2], 145
        %v5377 = vld [vmem:[%s5376] ss:$2 sm:$0xff]
        %s5378 = scalar_lea.vmem [#allocation2], 161
        %v5379 = vld [vmem:[%s5378] ss:$2 sm:$0xff]
        %s5380 = scalar_lea.vmem [#allocation2], 177
        %v5381 = vld [vmem:[%s5380] ss:$2 sm:$0xff]
        %s5382 = scalar_lea.vmem [#allocation2], 193
        %v5383 = vld [vmem:[%s5382] ss:$2 sm:$0xff]
        %s5384 = scalar_lea.vmem [#allocation2], 209
        %v5385 = vld [vmem:[%s5384] ss:$2 sm:$0xff]
        %s5386 = scalar_lea.vmem [#allocation2], 225
        %v5387 = vld [vmem:[%s5386] ss:$2 sm:$0xff]
        %s5388 = scalar_lea.vmem [#allocation2], 241
        %v5389 = vld [vmem:[%s5388] ss:$2 sm:$0xff]
        %s5390 = scalar_lea.vmem [#allocation2], 257
        %v5391 = vld [vmem:[%s5390] ss:$2 sm:$0xff]
        %s5392 = scalar_lea.vmem [#allocation2], 273
        %v5393 = vld [vmem:[%s5392] ss:$2 sm:$0xff]
        %s5394 = scalar_lea.vmem [#allocation2], 289
        %v5395 = vld [vmem:[%s5394] ss:$2 sm:$0xff]
        %s5396 = scalar_lea.vmem [#allocation2], 305
        %v5397 = vld [vmem:[%s5396] ss:$2 sm:$0xff]
        %s5398 = scalar_lea.vmem [#allocation2], 321
        %v5399 = vld [vmem:[%s5398] ss:$2 sm:$0xff]
        %s5400 = scalar_lea.vmem [#allocation2], 337
        %v5401 = vld [vmem:[%s5400] ss:$2 sm:$0xff]
        %s5402 = scalar_lea.vmem [#allocation2], 353
        %v5403 = vld [vmem:[%s5402] ss:$2 sm:$0xff]
        %s5404 = scalar_lea.vmem [#allocation2], 369
        %v5405 = vld [vmem:[%s5404] ss:$2 sm:$0xff]
        %s5406 = scalar_lea.vmem [#allocation2], 385
        %v5407 = vld [vmem:[%s5406] ss:$2 sm:$0xff]
        %s5408 = scalar_lea.vmem [#allocation2], 401
        %v5409 = vld [vmem:[%s5408] ss:$2 sm:$0xff]
        %s5410 = scalar_lea.vmem [#allocation2], 417
        %v5411 = vld [vmem:[%s5410] ss:$2 sm:$0xff]
        %s5412 = scalar_lea.vmem [#allocation2], 433
        %v5413 = vld [vmem:[%s5412] ss:$2 sm:$0xff]
        %s5414 = scalar_lea.vmem [#allocation2], 449
        %v5415 = vld [vmem:[%s5414] ss:$2 sm:$0xff]
        %s5416 = scalar_lea.vmem [#allocation2], 465
        %v5417 = vld [vmem:[%s5416] ss:$2 sm:$0xff]
        %s5418 = scalar_lea.vmem [#allocation2], 481
        %v5419 = vld [vmem:[%s5418] ss:$2 sm:$0xff]
        %s5420 = scalar_lea.vmem [#allocation2], 497
        %v5421 = vld [vmem:[%s5420] ss:$2 sm:$0xff]
        %s5422 = scalar_lea.vmem [#allocation2], 513
        %v5423 = vld [vmem:[%s5422] ss:$2 sm:$0xff]
        %s5424 = scalar_lea.vmem [#allocation2], 529
        %v5425 = vld [vmem:[%s5424] ss:$2 sm:$0xff]
        %v5426 = vmax.f32 %v5291, %v5359
        %v5427 = vmax.f32 %v5293, %v5361
        %v5428 = vmax.f32 %v5295, %v5363
        %v5429 = vmax.f32 %v5297, %v5365
        %v5430 = vmax.f32 %v5299, %v5367
        %v5431 = vmax.f32 %v5301, %v5369
        %v5432 = vmax.f32 %v5303, %v5371
        %v5433 = vmax.f32 %v5305, %v5373
        %v5434 = vmax.f32 %v5307, %v5375
        %v5435 = vmax.f32 %v5309, %v5377
        %v5436 = vmax.f32 %v5311, %v5379
        %v5437 = vmax.f32 %v5313, %v5381
        %v5438 = vmax.f32 %v5315, %v5383
        %v5439 = vmax.f32 %v5317, %v5385
        %v5440 = vmax.f32 %v5319, %v5387
        %v5441 = vmax.f32 %v5321, %v5389
        %v5442 = vmax.f32 %v5323, %v5391
        %v5443 = vmax.f32 %v5325, %v5393
        %v5444 = vmax.f32 %v5327, %v5395
        %v5445 = vmax.f32 %v5329, %v5397
        %v5446 = vmax.f32 %v5331, %v5399
        %v5447 = vmax.f32 %v5333, %v5401
        %v5448 = vmax.f32 %v5335, %v5403
        %v5449 = vmax.f32 %v5337, %v5405
        %v5450 = vmax.f32 %v5339, %v5407
        %v5451 = vmax.f32 %v5341, %v5409
        %v5452 = vmax.f32 %v5343, %v5411
        %v5453 = vmax.f32 %v5345, %v5413
        %v5454 = vmax.f32 %v5347, %v5415
        %v5455 = vmax.f32 %v5349, %v5417
        %v5456 = vmax.f32 %v5351, %v5419
        %v5457 = vmax.f32 %v5353, %v5421
        %v5458 = vmax.f32 %v5355, %v5423
        %v5459 = vmax.f32 %v5357, %v5425
        %s5460 = scalar_lea.vmem [#allocation2], 2
        %v5461 = vld [vmem:[%s5460] ss:$2 sm:$0xff]
        %s5462 = scalar_lea.vmem [#allocation2], 18
        %v5463 = vld [vmem:[%s5462] ss:$2 sm:$0xff]
        %s5464 = scalar_lea.vmem [#allocation2], 34
        %v5465 = vld [vmem:[%s5464] ss:$2 sm:$0xff]
        %s5466 = scalar_lea.vmem [#allocation2], 50
        %v5467 = vld [vmem:[%s5466] ss:$2 sm:$0xff]
        %s5468 = scalar_lea.vmem [#allocation2], 66
        %v5469 = vld [vmem:[%s5468] ss:$2 sm:$0xff]
        %s5470 = scalar_lea.vmem [#allocation2], 82
        %v5471 = vld [vmem:[%s5470] ss:$2 sm:$0xff]
        %s5472 = scalar_lea.vmem [#allocation2], 98
        %v5473 = vld [vmem:[%s5472] ss:$2 sm:$0xff]
        %s5474 = scalar_lea.vmem [#allocation2], 114
        %v5475 = vld [vmem:[%s5474] ss:$2 sm:$0xff]
        %s5476 = scalar_lea.vmem [#allocation2], 130
        %v5477 = vld [vmem:[%s5476] ss:$2 sm:$0xff]
        %s5478 = scalar_lea.vmem [#allocation2], 146
        %v5479 = vld [vmem:[%s5478] ss:$2 sm:$0xff]
        %s5480 = scalar_lea.vmem [#allocation2], 162
        %v5481 = vld [vmem:[%s5480] ss:$2 sm:$0xff]
        %s5482 = scalar_lea.vmem [#allocation2], 178
        %v5483 = vld [vmem:[%s5482] ss:$2 sm:$0xff]
        %s5484 = scalar_lea.vmem [#allocation2], 194
        %v5485 = vld [vmem:[%s5484] ss:$2 sm:$0xff]
        %s5486 = scalar_lea.vmem [#allocation2], 210
        %v5487 = vld [vmem:[%s5486] ss:$2 sm:$0xff]
        %s5488 = scalar_lea.vmem [#allocation2], 226
        %v5489 = vld [vmem:[%s5488] ss:$2 sm:$0xff]
        %s5490 = scalar_lea.vmem [#allocation2], 242
        %v5491 = vld [vmem:[%s5490] ss:$2 sm:$0xff]
        %s5492 = scalar_lea.vmem [#allocation2], 258
        %v5493 = vld [vmem:[%s5492] ss:$2 sm:$0xff]
        %s5494 = scalar_lea.vmem [#allocation2], 274
        %v5495 = vld [vmem:[%s5494] ss:$2 sm:$0xff]
        %s5496 = scalar_lea.vmem [#allocation2], 290
        %v5497 = vld [vmem:[%s5496] ss:$2 sm:$0xff]
        %s5498 = scalar_lea.vmem [#allocation2], 306
        %v5499 = vld [vmem:[%s5498] ss:$2 sm:$0xff]
        %s5500 = scalar_lea.vmem [#allocation2], 322
        %v5501 = vld [vmem:[%s5500] ss:$2 sm:$0xff]
        %s5502 = scalar_lea.vmem [#allocation2], 338
        %v5503 = vld [vmem:[%s5502] ss:$2 sm:$0xff]
        %s5504 = scalar_lea.vmem [#allocation2], 354
        %v5505 = vld [vmem:[%s5504] ss:$2 sm:$0xff]
        %s5506 = scalar_lea.vmem [#allocation2], 370
        %v5507 = vld [vmem:[%s5506] ss:$2 sm:$0xff]
        %s5508 = scalar_lea.vmem [#allocation2], 386
        %v5509 = vld [vmem:[%s5508] ss:$2 sm:$0xff]
        %s5510 = scalar_lea.vmem [#allocation2], 402
        %v5511 = vld [vmem:[%s5510] ss:$2 sm:$0xff]
        %s5512 = scalar_lea.vmem [#allocation2], 418
        %v5513 = vld [vmem:[%s5512] ss:$2 sm:$0xff]
        %s5514 = scalar_lea.vmem [#allocation2], 434
        %v5515 = vld [vmem:[%s5514] ss:$2 sm:$0xff]
        %s5516 = scalar_lea.vmem [#allocation2], 450
        %v5517 = vld [vmem:[%s5516] ss:$2 sm:$0xff]
        %s5518 = scalar_lea.vmem [#allocation2], 466
        %v5519 = vld [vmem:[%s5518] ss:$2 sm:$0xff]
        %s5520 = scalar_lea.vmem [#allocation2], 482
        %v5521 = vld [vmem:[%s5520] ss:$2 sm:$0xff]
        %s5522 = scalar_lea.vmem [#allocation2], 498
        %v5523 = vld [vmem:[%s5522] ss:$2 sm:$0xff]
        %s5524 = scalar_lea.vmem [#allocation2], 514
        %v5525 = vld [vmem:[%s5524] ss:$2 sm:$0xff]
        %s5526 = scalar_lea.vmem [#allocation2], 530
        %v5527 = vld [vmem:[%s5526] ss:$2 sm:$0xff]
        %v5528 = vmax.f32 %v5426, %v5461
        %v5529 = vmax.f32 %v5427, %v5463
        %v5530 = vmax.f32 %v5428, %v5465
        %v5531 = vmax.f32 %v5429, %v5467
        %v5532 = vmax.f32 %v5430, %v5469
        %v5533 = vmax.f32 %v5431, %v5471
        %v5534 = vmax.f32 %v5432, %v5473
        %v5535 = vmax.f32 %v5433, %v5475
        %v5536 = vmax.f32 %v5434, %v5477
        %v5537 = vmax.f32 %v5435, %v5479
        %v5538 = vmax.f32 %v5436, %v5481
        %v5539 = vmax.f32 %v5437, %v5483
        %v5540 = vmax.f32 %v5438, %v5485
        %v5541 = vmax.f32 %v5439, %v5487
        %v5542 = vmax.f32 %v5440, %v5489
        %v5543 = vmax.f32 %v5441, %v5491
        %v5544 = vmax.f32 %v5442, %v5493
        %v5545 = vmax.f32 %v5443, %v5495
        %v5546 = vmax.f32 %v5444, %v5497
        %v5547 = vmax.f32 %v5445, %v5499
        %v5548 = vmax.f32 %v5446, %v5501
        %v5549 = vmax.f32 %v5447, %v5503
        %v5550 = vmax.f32 %v5448, %v5505
        %v5551 = vmax.f32 %v5449, %v5507
        %v5552 = vmax.f32 %v5450, %v5509
        %v5553 = vmax.f32 %v5451, %v5511
        %v5554 = vmax.f32 %v5452, %v5513
        %v5555 = vmax.f32 %v5453, %v5515
        %v5556 = vmax.f32 %v5454, %v5517
        %v5557 = vmax.f32 %v5455, %v5519
        %v5558 = vmax.f32 %v5456, %v5521
        %v5559 = vmax.f32 %v5457, %v5523
        %v5560 = vmax.f32 %v5458, %v5525
        %v5561 = vmax.f32 %v5459, %v5527
        %s5562 = scalar_lea.vmem [#allocation2], 24
        %v5563 = vld [vmem:[%s5562] ss:$2 sm:$0xff]
        %s5564 = scalar_lea.vmem [#allocation2], 40
        %v5565 = vld [vmem:[%s5564] ss:$2 sm:$0xff]
        %s5566 = scalar_lea.vmem [#allocation2], 56
        %v5567 = vld [vmem:[%s5566] ss:$2 sm:$0xff]
        %s5568 = scalar_lea.vmem [#allocation2], 72
        %v5569 = vld [vmem:[%s5568] ss:$2 sm:$0xff]
        %s5570 = scalar_lea.vmem [#allocation2], 88
        %v5571 = vld [vmem:[%s5570] ss:$2 sm:$0xff]
        %s5572 = scalar_lea.vmem [#allocation2], 104
        %v5573 = vld [vmem:[%s5572] ss:$2 sm:$0xff]
        %s5574 = scalar_lea.vmem [#allocation2], 120
        %v5575 = vld [vmem:[%s5574] ss:$2 sm:$0xff]
        %s5576 = scalar_lea.vmem [#allocation2], 136
        %v5577 = vld [vmem:[%s5576] ss:$2 sm:$0xff]
        %s5578 = scalar_lea.vmem [#allocation2], 152
        %v5579 = vld [vmem:[%s5578] ss:$2 sm:$0xff]
        %s5580 = scalar_lea.vmem [#allocation2], 168
        %v5581 = vld [vmem:[%s5580] ss:$2 sm:$0xff]
        %s5582 = scalar_lea.vmem [#allocation2], 184
        %v5583 = vld [vmem:[%s5582] ss:$2 sm:$0xff]
        %s5584 = scalar_lea.vmem [#allocation2], 200
        %v5585 = vld [vmem:[%s5584] ss:$2 sm:$0xff]
        %s5586 = scalar_lea.vmem [#allocation2], 216
        %v5587 = vld [vmem:[%s5586] ss:$2 sm:$0xff]
        %s5588 = scalar_lea.vmem [#allocation2], 232
        %v5589 = vld [vmem:[%s5588] ss:$2 sm:$0xff]
        %s5590 = scalar_lea.vmem [#allocation2], 248
        %v5591 = vld [vmem:[%s5590] ss:$2 sm:$0xff]
        %s5592 = scalar_lea.vmem [#allocation2], 264
        %v5593 = vld [vmem:[%s5592] ss:$2 sm:$0xff]
        %s5594 = scalar_lea.vmem [#allocation2], 280
        %v5595 = vld [vmem:[%s5594] ss:$2 sm:$0xff]
        %s5596 = scalar_lea.vmem [#allocation2], 296
        %v5597 = vld [vmem:[%s5596] ss:$2 sm:$0xff]
        %s5598 = scalar_lea.vmem [#allocation2], 312
        %v5599 = vld [vmem:[%s5598] ss:$2 sm:$0xff]
        %s5600 = scalar_lea.vmem [#allocation2], 328
        %v5601 = vld [vmem:[%s5600] ss:$2 sm:$0xff]
        %s5602 = scalar_lea.vmem [#allocation2], 344
        %v5603 = vld [vmem:[%s5602] ss:$2 sm:$0xff]
        %s5604 = scalar_lea.vmem [#allocation2], 360
        %v5605 = vld [vmem:[%s5604] ss:$2 sm:$0xff]
        %s5606 = scalar_lea.vmem [#allocation2], 376
        %v5607 = vld [vmem:[%s5606] ss:$2 sm:$0xff]
        %s5608 = scalar_lea.vmem [#allocation2], 392
        %v5609 = vld [vmem:[%s5608] ss:$2 sm:$0xff]
        %s5610 = scalar_lea.vmem [#allocation2], 408
        %v5611 = vld [vmem:[%s5610] ss:$2 sm:$0xff]
        %s5612 = scalar_lea.vmem [#allocation2], 424
        %v5613 = vld [vmem:[%s5612] ss:$2 sm:$0xff]
        %s5614 = scalar_lea.vmem [#allocation2], 440
        %v5615 = vld [vmem:[%s5614] ss:$2 sm:$0xff]
        %s5616 = scalar_lea.vmem [#allocation2], 456
        %v5617 = vld [vmem:[%s5616] ss:$2 sm:$0xff]
        %s5618 = scalar_lea.vmem [#allocation2], 472
        %v5619 = vld [vmem:[%s5618] ss:$2 sm:$0xff]
        %s5620 = scalar_lea.vmem [#allocation2], 488
        %v5621 = vld [vmem:[%s5620] ss:$2 sm:$0xff]
        %s5622 = scalar_lea.vmem [#allocation2], 504
        %v5623 = vld [vmem:[%s5622] ss:$2 sm:$0xff]
        %s5624 = scalar_lea.vmem [#allocation2], 520
        %v5625 = vld [vmem:[%s5624] ss:$2 sm:$0xff]
        %s5626 = scalar_lea.vmem [#allocation2], 536
        %v5627 = vld [vmem:[%s5626] ss:$2 sm:$0xff]
        %s5628 = scalar_lea.vmem [#allocation2], 552
        %v5629 = vld [vmem:[%s5628] ss:$2 sm:$0xff]
        %v5630 = vmax.f32 %v5528, %v5563
        %v5631 = vmax.f32 %v5529, %v5565
        %v5632 = vmax.f32 %v5530, %v5567
        %v5633 = vmax.f32 %v5531, %v5569
        %v5634 = vmax.f32 %v5532, %v5571
        %v5635 = vmax.f32 %v5533, %v5573
        %v5636 = vmax.f32 %v5534, %v5575
        %v5637 = vmax.f32 %v5535, %v5577
        %v5638 = vmax.f32 %v5536, %v5579
        %v5639 = vmax.f32 %v5537, %v5581
        %v5640 = vmax.f32 %v5538, %v5583
        %v5641 = vmax.f32 %v5539, %v5585
        %v5642 = vmax.f32 %v5540, %v5587
        %v5643 = vmax.f32 %v5541, %v5589
        %v5644 = vmax.f32 %v5542, %v5591
        %v5645 = vmax.f32 %v5543, %v5593
        %v5646 = vmax.f32 %v5544, %v5595
        %v5647 = vmax.f32 %v5545, %v5597
        %v5648 = vmax.f32 %v5546, %v5599
        %v5649 = vmax.f32 %v5547, %v5601
        %v5650 = vmax.f32 %v5548, %v5603
        %v5651 = vmax.f32 %v5549, %v5605
        %v5652 = vmax.f32 %v5550, %v5607
        %v5653 = vmax.f32 %v5551, %v5609
        %v5654 = vmax.f32 %v5552, %v5611
        %v5655 = vmax.f32 %v5553, %v5613
        %v5656 = vmax.f32 %v5554, %v5615
        %v5657 = vmax.f32 %v5555, %v5617
        %v5658 = vmax.f32 %v5556, %v5619
        %v5659 = vmax.f32 %v5557, %v5621
        %v5660 = vmax.f32 %v5558, %v5623
        %v5661 = vmax.f32 %v5559, %v5625
        %v5662 = vmax.f32 %v5560, %v5627
        %v5663 = vmax.f32 %v5561, %v5629
        %s5664 = scalar_lea.vmem [#allocation2], 25
        %v5665 = vld [vmem:[%s5664] ss:$2 sm:$0xff]
        %s5666 = scalar_lea.vmem [#allocation2], 41
        %v5667 = vld [vmem:[%s5666] ss:$2 sm:$0xff]
        %s5668 = scalar_lea.vmem [#allocation2], 57
        %v5669 = vld [vmem:[%s5668] ss:$2 sm:$0xff]
        %s5670 = scalar_lea.vmem [#allocation2], 73
        %v5671 = vld [vmem:[%s5670] ss:$2 sm:$0xff]
        %s5672 = scalar_lea.vmem [#allocation2], 89
        %v5673 = vld [vmem:[%s5672] ss:$2 sm:$0xff]
        %s5674 = scalar_lea.vmem [#allocation2], 105
        %v5675 = vld [vmem:[%s5674] ss:$2 sm:$0xff]
        %s5676 = scalar_lea.vmem [#allocation2], 121
        %v5677 = vld [vmem:[%s5676] ss:$2 sm:$0xff]
        %s5678 = scalar_lea.vmem [#allocation2], 137
        %v5679 = vld [vmem:[%s5678] ss:$2 sm:$0xff]
        %s5680 = scalar_lea.vmem [#allocation2], 153
        %v5681 = vld [vmem:[%s5680] ss:$2 sm:$0xff]
        %s5682 = scalar_lea.vmem [#allocation2], 169
        %v5683 = vld [vmem:[%s5682] ss:$2 sm:$0xff]
        %s5684 = scalar_lea.vmem [#allocation2], 185
        %v5685 = vld [vmem:[%s5684] ss:$2 sm:$0xff]
        %s5686 = scalar_lea.vmem [#allocation2], 201
        %v5687 = vld [vmem:[%s5686] ss:$2 sm:$0xff]
        %s5688 = scalar_lea.vmem [#allocation2], 217
        %v5689 = vld [vmem:[%s5688] ss:$2 sm:$0xff]
        %s5690 = scalar_lea.vmem [#allocation2], 233
        %v5691 = vld [vmem:[%s5690] ss:$2 sm:$0xff]
        %s5692 = scalar_lea.vmem [#allocation2], 249
        %v5693 = vld [vmem:[%s5692] ss:$2 sm:$0xff]
        %s5694 = scalar_lea.vmem [#allocation2], 265
        %v5695 = vld [vmem:[%s5694] ss:$2 sm:$0xff]
        %s5696 = scalar_lea.vmem [#allocation2], 281
        %v5697 = vld [vmem:[%s5696] ss:$2 sm:$0xff]
        %s5698 = scalar_lea.vmem [#allocation2], 297
        %v5699 = vld [vmem:[%s5698] ss:$2 sm:$0xff]
        %s5700 = scalar_lea.vmem [#allocation2], 313
        %v5701 = vld [vmem:[%s5700] ss:$2 sm:$0xff]
        %s5702 = scalar_lea.vmem [#allocation2], 329
        %v5703 = vld [vmem:[%s5702] ss:$2 sm:$0xff]
        %s5704 = scalar_lea.vmem [#allocation2], 345
        %v5705 = vld [vmem:[%s5704] ss:$2 sm:$0xff]
        %s5706 = scalar_lea.vmem [#allocation2], 361
        %v5707 = vld [vmem:[%s5706] ss:$2 sm:$0xff]
        %s5708 = scalar_lea.vmem [#allocation2], 377
        %v5709 = vld [vmem:[%s5708] ss:$2 sm:$0xff]
        %s5710 = scalar_lea.vmem [#allocation2], 393
        %v5711 = vld [vmem:[%s5710] ss:$2 sm:$0xff]
        %s5712 = scalar_lea.vmem [#allocation2], 409
        %v5713 = vld [vmem:[%s5712] ss:$2 sm:$0xff]
        %s5714 = scalar_lea.vmem [#allocation2], 425
        %v5715 = vld [vmem:[%s5714] ss:$2 sm:$0xff]
        %s5716 = scalar_lea.vmem [#allocation2], 441
        %v5717 = vld [vmem:[%s5716] ss:$2 sm:$0xff]
        %s5718 = scalar_lea.vmem [#allocation2], 457
        %v5719 = vld [vmem:[%s5718] ss:$2 sm:$0xff]
        %s5720 = scalar_lea.vmem [#allocation2], 473
        %v5721 = vld [vmem:[%s5720] ss:$2 sm:$0xff]
        %s5722 = scalar_lea.vmem [#allocation2], 489
        %v5723 = vld [vmem:[%s5722] ss:$2 sm:$0xff]
        %s5724 = scalar_lea.vmem [#allocation2], 505
        %v5725 = vld [vmem:[%s5724] ss:$2 sm:$0xff]
        %s5726 = scalar_lea.vmem [#allocation2], 521
        %v5727 = vld [vmem:[%s5726] ss:$2 sm:$0xff]
        %s5728 = scalar_lea.vmem [#allocation2], 537
        %v5729 = vld [vmem:[%s5728] ss:$2 sm:$0xff]
        %s5730 = scalar_lea.vmem [#allocation2], 553
        %v5731 = vld [vmem:[%s5730] ss:$2 sm:$0xff]
        %v5732 = vmax.f32 %v5630, %v5665
        %v5733 = vmax.f32 %v5631, %v5667
        %v5734 = vmax.f32 %v5632, %v5669
        %v5735 = vmax.f32 %v5633, %v5671
        %v5736 = vmax.f32 %v5634, %v5673
        %v5737 = vmax.f32 %v5635, %v5675
        %v5738 = vmax.f32 %v5636, %v5677
        %v5739 = vmax.f32 %v5637, %v5679
        %v5740 = vmax.f32 %v5638, %v5681
        %v5741 = vmax.f32 %v5639, %v5683
        %v5742 = vmax.f32 %v5640, %v5685
        %v5743 = vmax.f32 %v5641, %v5687
        %v5744 = vmax.f32 %v5642, %v5689
        %v5745 = vmax.f32 %v5643, %v5691
        %v5746 = vmax.f32 %v5644, %v5693
        %v5747 = vmax.f32 %v5645, %v5695
        %v5748 = vmax.f32 %v5646, %v5697
        %v5749 = vmax.f32 %v5647, %v5699
        %v5750 = vmax.f32 %v5648, %v5701
        %v5751 = vmax.f32 %v5649, %v5703
        %v5752 = vmax.f32 %v5650, %v5705
        %v5753 = vmax.f32 %v5651, %v5707
        %v5754 = vmax.f32 %v5652, %v5709
        %v5755 = vmax.f32 %v5653, %v5711
        %v5756 = vmax.f32 %v5654, %v5713
        %v5757 = vmax.f32 %v5655, %v5715
        %v5758 = vmax.f32 %v5656, %v5717
        %v5759 = vmax.f32 %v5657, %v5719
        %v5760 = vmax.f32 %v5658, %v5721
        %v5761 = vmax.f32 %v5659, %v5723
        %v5762 = vmax.f32 %v5660, %v5725
        %v5763 = vmax.f32 %v5661, %v5727
        %v5764 = vmax.f32 %v5662, %v5729
        %v5765 = vmax.f32 %v5663, %v5731
        %s5766 = scalar_lea.vmem [#allocation2], 26
        %v5767 = vld [vmem:[%s5766] ss:$2 sm:$0xff]
        %s5768 = scalar_lea.vmem [#allocation2], 42
        %v5769 = vld [vmem:[%s5768] ss:$2 sm:$0xff]
        %s5770 = scalar_lea.vmem [#allocation2], 58
        %v5771 = vld [vmem:[%s5770] ss:$2 sm:$0xff]
        %s5772 = scalar_lea.vmem [#allocation2], 74
        %v5773 = vld [vmem:[%s5772] ss:$2 sm:$0xff]
        %s5774 = scalar_lea.vmem [#allocation2], 90
        %v5775 = vld [vmem:[%s5774] ss:$2 sm:$0xff]
        %s5776 = scalar_lea.vmem [#allocation2], 106
        %v5777 = vld [vmem:[%s5776] ss:$2 sm:$0xff]
        %s5778 = scalar_lea.vmem [#allocation2], 122
        %v5779 = vld [vmem:[%s5778] ss:$2 sm:$0xff]
        %s5780 = scalar_lea.vmem [#allocation2], 138
        %v5781 = vld [vmem:[%s5780] ss:$2 sm:$0xff]
        %s5782 = scalar_lea.vmem [#allocation2], 154
        %v5783 = vld [vmem:[%s5782] ss:$2 sm:$0xff]
        %s5784 = scalar_lea.vmem [#allocation2], 170
        %v5785 = vld [vmem:[%s5784] ss:$2 sm:$0xff]
        %s5786 = scalar_lea.vmem [#allocation2], 186
        %v5787 = vld [vmem:[%s5786] ss:$2 sm:$0xff]
        %s5788 = scalar_lea.vmem [#allocation2], 202
        %v5789 = vld [vmem:[%s5788] ss:$2 sm:$0xff]
        %s5790 = scalar_lea.vmem [#allocation2], 218
        %v5791 = vld [vmem:[%s5790] ss:$2 sm:$0xff]
        %s5792 = scalar_lea.vmem [#allocation2], 234
        %v5793 = vld [vmem:[%s5792] ss:$2 sm:$0xff]
        %s5794 = scalar_lea.vmem [#allocation2], 250
        %v5795 = vld [vmem:[%s5794] ss:$2 sm:$0xff]
        %s5796 = scalar_lea.vmem [#allocation2], 266
        %v5797 = vld [vmem:[%s5796] ss:$2 sm:$0xff]
        %s5798 = scalar_lea.vmem [#allocation2], 282
        %v5799 = vld [vmem:[%s5798] ss:$2 sm:$0xff]
        %s5800 = scalar_lea.vmem [#allocation2], 298
        %v5801 = vld [vmem:[%s5800] ss:$2 sm:$0xff]
        %s5802 = scalar_lea.vmem [#allocation2], 314
        %v5803 = vld [vmem:[%s5802] ss:$2 sm:$0xff]
        %s5804 = scalar_lea.vmem [#allocation2], 330
        %v5805 = vld [vmem:[%s5804] ss:$2 sm:$0xff]
        %s5806 = scalar_lea.vmem [#allocation2], 346
        %v5807 = vld [vmem:[%s5806] ss:$2 sm:$0xff]
        %s5808 = scalar_lea.vmem [#allocation2], 362
        %v5809 = vld [vmem:[%s5808] ss:$2 sm:$0xff]
        %s5810 = scalar_lea.vmem [#allocation2], 378
        %v5811 = vld [vmem:[%s5810] ss:$2 sm:$0xff]
        %s5812 = scalar_lea.vmem [#allocation2], 394
        %v5813 = vld [vmem:[%s5812] ss:$2 sm:$0xff]
        %s5814 = scalar_lea.vmem [#allocation2], 410
        %v5815 = vld [vmem:[%s5814] ss:$2 sm:$0xff]
        %s5816 = scalar_lea.vmem [#allocation2], 426
        %v5817 = vld [vmem:[%s5816] ss:$2 sm:$0xff]
        %s5818 = scalar_lea.vmem [#allocation2], 442
        %v5819 = vld [vmem:[%s5818] ss:$2 sm:$0xff]
        %s5820 = scalar_lea.vmem [#allocation2], 458
        %v5821 = vld [vmem:[%s5820] ss:$2 sm:$0xff]
        %s5822 = scalar_lea.vmem [#allocation2], 474
        %v5823 = vld [vmem:[%s5822] ss:$2 sm:$0xff]
        %s5824 = scalar_lea.vmem [#allocation2], 490
        %v5825 = vld [vmem:[%s5824] ss:$2 sm:$0xff]
        %s5826 = scalar_lea.vmem [#allocation2], 506
        %v5827 = vld [vmem:[%s5826] ss:$2 sm:$0xff]
        %s5828 = scalar_lea.vmem [#allocation2], 522
        %v5829 = vld [vmem:[%s5828] ss:$2 sm:$0xff]
        %s5830 = scalar_lea.vmem [#allocation2], 538
        %v5831 = vld [vmem:[%s5830] ss:$2 sm:$0xff]
        %s5832 = scalar_lea.vmem [#allocation2], 554
        %v5833 = vld [vmem:[%s5832] ss:$2 sm:$0xff]
        %v5834 = vmax.f32 %v5732, %v5767
        %v5835 = vmax.f32 %v5733, %v5769
        %v5836 = vmax.f32 %v5734, %v5771
        %v5837 = vmax.f32 %v5735, %v5773
        %v5838 = vmax.f32 %v5736, %v5775
        %v5839 = vmax.f32 %v5737, %v5777
        %v5840 = vmax.f32 %v5738, %v5779
        %v5841 = vmax.f32 %v5739, %v5781
        %v5842 = vmax.f32 %v5740, %v5783
        %v5843 = vmax.f32 %v5741, %v5785
        %v5844 = vmax.f32 %v5742, %v5787
        %v5845 = vmax.f32 %v5743, %v5789
        %v5846 = vmax.f32 %v5744, %v5791
        %v5847 = vmax.f32 %v5745, %v5793
        %v5848 = vmax.f32 %v5746, %v5795
        %v5849 = vmax.f32 %v5747, %v5797
        %v5850 = vmax.f32 %v5748, %v5799
        %v5851 = vmax.f32 %v5749, %v5801
        %v5852 = vmax.f32 %v5750, %v5803
        %v5853 = vmax.f32 %v5751, %v5805
        %v5854 = vmax.f32 %v5752, %v5807
        %v5855 = vmax.f32 %v5753, %v5809
        %v5856 = vmax.f32 %v5754, %v5811
        %v5857 = vmax.f32 %v5755, %v5813
        %v5858 = vmax.f32 %v5756, %v5815
        %v5859 = vmax.f32 %v5757, %v5817
        %v5860 = vmax.f32 %v5758, %v5819
        %v5861 = vmax.f32 %v5759, %v5821
        %v5862 = vmax.f32 %v5760, %v5823
        %v5863 = vmax.f32 %v5761, %v5825
        %v5864 = vmax.f32 %v5762, %v5827
        %v5865 = vmax.f32 %v5763, %v5829
        %v5866 = vmax.f32 %v5764, %v5831
        %v5867 = vmax.f32 %v5765, %v5833
        %s5868 = scalar_lea.vmem [#allocation2], 544
        %v5869 = vld [vmem:[%s5868] ss:$2 sm:$0xff]
        %s5870 = scalar_lea.vmem [#allocation2], 560
        %v5871 = vld [vmem:[%s5870] ss:$2 sm:$0xff]
        %s5872 = scalar_lea.vmem [#allocation2], 576
        %v5873 = vld [vmem:[%s5872] ss:$2 sm:$0xff]
        %v5874 = vmax.f32 %v5834, %v5297
        %v5875 = vmax.f32 %v5835, %v5299
        %v5876 = vmax.f32 %v5836, %v5301
        %v5877 = vmax.f32 %v5837, %v5303
        %v5878 = vmax.f32 %v5838, %v5305
        %v5879 = vmax.f32 %v5839, %v5307
        %v5880 = vmax.f32 %v5840, %v5309
        %v5881 = vmax.f32 %v5841, %v5311
        %v5882 = vmax.f32 %v5842, %v5313
        %v5883 = vmax.f32 %v5843, %v5315
        %v5884 = vmax.f32 %v5844, %v5317
        %v5885 = vmax.f32 %v5845, %v5319
        %v5886 = vmax.f32 %v5846, %v5321
        %v5887 = vmax.f32 %v5847, %v5323
        %v5888 = vmax.f32 %v5848, %v5325
        %v5889 = vmax.f32 %v5849, %v5327
        %v5890 = vmax.f32 %v5850, %v5329
        %v5891 = vmax.f32 %v5851, %v5331
        %v5892 = vmax.f32 %v5852, %v5333
        %v5893 = vmax.f32 %v5853, %v5335
        %v5894 = vmax.f32 %v5854, %v5337
        %v5895 = vmax.f32 %v5855, %v5339
        %v5896 = vmax.f32 %v5856, %v5341
        %v5897 = vmax.f32 %v5857, %v5343
        %v5898 = vmax.f32 %v5858, %v5345
        %v5899 = vmax.f32 %v5859, %v5347
        %v5900 = vmax.f32 %v5860, %v5349
        %v5901 = vmax.f32 %v5861, %v5351
        %v5902 = vmax.f32 %v5862, %v5353
        %v5903 = vmax.f32 %v5863, %v5355
        %v5904 = vmax.f32 %v5864, %v5357
        %v5905 = vmax.f32 %v5865, %v5869
        %v5906 = vmax.f32 %v5866, %v5871
        %v5907 = vmax.f32 %v5867, %v5873
        %s5908 = scalar_lea.vmem [#allocation2], 545
        %v5909 = vld [vmem:[%s5908] ss:$2 sm:$0xff]
        %s5910 = scalar_lea.vmem [#allocation2], 561
        %v5911 = vld [vmem:[%s5910] ss:$2 sm:$0xff]
        %s5912 = scalar_lea.vmem [#allocation2], 577
        %v5913 = vld [vmem:[%s5912] ss:$2 sm:$0xff]
        %v5914 = vmax.f32 %v5874, %v5365
        %v5915 = vmax.f32 %v5875, %v5367
        %v5916 = vmax.f32 %v5876, %v5369
        %v5917 = vmax.f32 %v5877, %v5371
        %v5918 = vmax.f32 %v5878, %v5373
        %v5919 = vmax.f32 %v5879, %v5375
        %v5920 = vmax.f32 %v5880, %v5377
        %v5921 = vmax.f32 %v5881, %v5379
        %v5922 = vmax.f32 %v5882, %v5381
        %v5923 = vmax.f32 %v5883, %v5383
        %v5924 = vmax.f32 %v5884, %v5385
        %v5925 = vmax.f32 %v5885, %v5387
        %v5926 = vmax.f32 %v5886, %v5389
        %v5927 = vmax.f32 %v5887, %v5391
        %v5928 = vmax.f32 %v5888, %v5393
        %v5929 = vmax.f32 %v5889, %v5395
        %v5930 = vmax.f32 %v5890, %v5397
        %v5931 = vmax.f32 %v5891, %v5399
        %v5932 = vmax.f32 %v5892, %v5401
        %v5933 = vmax.f32 %v5893, %v5403
        %v5934 = vmax.f32 %v5894, %v5405
        %v5935 = vmax.f32 %v5895, %v5407
        %v5936 = vmax.f32 %v5896, %v5409
        %v5937 = vmax.f32 %v5897, %v5411
        %v5938 = vmax.f32 %v5898, %v5413
        %v5939 = vmax.f32 %v5899, %v5415
        %v5940 = vmax.f32 %v5900, %v5417
        %v5941 = vmax.f32 %v5901, %v5419
        %v5942 = vmax.f32 %v5902, %v5421
        %v5943 = vmax.f32 %v5903, %v5423
        %v5944 = vmax.f32 %v5904, %v5425
        %v5945 = vmax.f32 %v5905, %v5909
        %v5946 = vmax.f32 %v5906, %v5911
        %v5947 = vmax.f32 %v5907, %v5913
        %s5948 = scalar_lea.vmem [#allocation2], 546
        %v5949 = vld [vmem:[%s5948] ss:$2 sm:$0xff]
        %s5950 = scalar_lea.vmem [#allocation2], 562
        %v5951 = vld [vmem:[%s5950] ss:$2 sm:$0xff]
        %s5952 = scalar_lea.vmem [#allocation2], 578
        %v5953 = vld [vmem:[%s5952] ss:$2 sm:$0xff]
        %v5954 = vmax.f32 %v5914, %v5467
        %v5955 = vmax.f32 %v5915, %v5469
        %v5956 = vmax.f32 %v5916, %v5471
        %v5957 = vmax.f32 %v5917, %v5473
        %v5958 = vmax.f32 %v5918, %v5475
        %v5959 = vmax.f32 %v5919, %v5477
        %v5960 = vmax.f32 %v5920, %v5479
        %v5961 = vmax.f32 %v5921, %v5481
        %v5962 = vmax.f32 %v5922, %v5483
        %v5963 = vmax.f32 %v5923, %v5485
        %v5964 = vmax.f32 %v5924, %v5487
        %v5965 = vmax.f32 %v5925, %v5489
        %v5966 = vmax.f32 %v5926, %v5491
        %v5967 = vmax.f32 %v5927, %v5493
        %v5968 = vmax.f32 %v5928, %v5495
        %v5969 = vmax.f32 %v5929, %v5497
        %v5970 = vmax.f32 %v5930, %v5499
        %v5971 = vmax.f32 %v5931, %v5501
        %v5972 = vmax.f32 %v5932, %v5503
        %v5973 = vmax.f32 %v5933, %v5505
        %v5974 = vmax.f32 %v5934, %v5507
        %v5975 = vmax.f32 %v5935, %v5509
        %v5976 = vmax.f32 %v5936, %v5511
        %v5977 = vmax.f32 %v5937, %v5513
        %v5978 = vmax.f32 %v5938, %v5515
        %v5979 = vmax.f32 %v5939, %v5517
        %v5980 = vmax.f32 %v5940, %v5519
        %v5981 = vmax.f32 %v5941, %v5521
        %v5982 = vmax.f32 %v5942, %v5523
        %v5983 = vmax.f32 %v5943, %v5525
        %v5984 = vmax.f32 %v5944, %v5527
        %v5985 = vmax.f32 %v5945, %v5949
        %v5986 = vmax.f32 %v5946, %v5951
        %v5987 = vmax.f32 %v5947, %v5953
        %v5988 = vpack.c.bf16 %v5955, %v5954
        %v5989 = vpack.c.bf16 %v5957, %v5956
        %v5990 = vpack.c.bf16 %v5959, %v5958
        %v5991 = vpack.c.bf16 %v5961, %v5960
        %v5992 = vpack.c.bf16 %v5963, %v5962
        %v5993 = vpack.c.bf16 %v5965, %v5964
        %v5994 = vpack.c.bf16 %v5967, %v5966
        %v5995 = vpack.c.bf16 %v5969, %v5968
        %v5996 = vpack.c.bf16 %v5971, %v5970
        %v5997 = vpack.c.bf16 %v5973, %v5972
        %v5998 = vpack.c.bf16 %v5975, %v5974
        %v5999 = vpack.c.bf16 %v5977, %v5976
        %v6000 = vpack.c.bf16 %v5979, %v5978
        %v6001 = vpack.c.bf16 %v5980, %v5980
        %v6002 = vld [vmem:[%s5] sm:$0xf]
        %v6003 = vld [vmem:[%s5 + $0x4] sm:$0xf]
        %v6004 = vld [vmem:[%s5 + $0x8] sm:$0xf]
        %v6005 = vld [vmem:[%s5 + $0xc] sm:$0x3]
        %v6006 = vpack.c.bf16 %v5981, %v5980
        %s6007 = scalar_lea.vmem %s5, 16
        %v6008 = vld [vmem:[%s6007] sm:$0xf]
        %v6009 = vld [vmem:[%s6007 + $0x4] sm:$0xf]
        %v6010 = vld [vmem:[%s6007 + $0x8] sm:$0xf]
        %v6011 = vld [vmem:[%s6007 + $0xc] sm:$0x3]
        %vm6012 = vsmask.f32 7424
        %v6014 = vshrl.u32 %v5988, 16
        %v6016 = vshll.u32 %v5988, 16
        %v6018 = vrot.slane %v6016, 1
        %v6019 = vor.u32 %v6014, %v6018
        %v6021 = vshll.u32 %v5989, 16
        %v6023 = vrot.slane %v6021, 1
        %v6024 = vsel %vm6012, %v6019, %v6023
        %v6025 = vshrl.u32 %v5989, 16
        %v6027 = vor.u32 %v6025, %v6023
        %v6029 = vshll.u32 %v5990, 16
        %v6031 = vrot.slane %v6029, 1
        %v6032 = vsel %vm6012, %v6027, %v6031
        %v6033 = vshrl.u32 %v5990, 16
        %v6035 = vor.u32 %v6033, %v6031
        %v6037 = vshll.u32 %v5991, 16
        %v6039 = vrot.slane %v6037, 1
        %v6040 = vsel %vm6012, %v6035, %v6039
        %v6041 = vshrl.u32 %v5991, 16
        %v6043 = vor.u32 %v6041, %v6039
        %v6045 = vshll.u32 %v5992, 16
        %v6047 = vrot.slane %v6045, 1
        %v6048 = vsel %vm6012, %v6043, %v6047
        %v6049 = vshrl.u32 %v5992, 16
        %v6051 = vor.u32 %v6049, %v6047
        %v6053 = vshll.u32 %v5993, 16
        %v6055 = vrot.slane %v6053, 1
        %v6056 = vsel %vm6012, %v6051, %v6055
        %v6057 = vshrl.u32 %v5993, 16
        %v6059 = vor.u32 %v6057, %v6055
        %v6061 = vshll.u32 %v5994, 16
        %v6063 = vrot.slane %v6061, 1
        %v6064 = vsel %vm6012, %v6059, %v6063
        %v6065 = vshrl.u32 %v5994, 16
        %v6067 = vor.u32 %v6065, %v6063
        %v6069 = vshll.u32 %v5995, 16
        %v6071 = vrot.slane %v6069, 1
        %v6072 = vsel %vm6012, %v6067, %v6071
        %v6073 = vshrl.u32 %v5995, 16
        %v6075 = vor.u32 %v6073, %v6071
        %v6077 = vshll.u32 %v5996, 16
        %v6079 = vrot.slane %v6077, 1
        %v6080 = vsel %vm6012, %v6075, %v6079
        %v6081 = vshrl.u32 %v5996, 16
        %v6083 = vor.u32 %v6081, %v6079
        %v6085 = vshll.u32 %v5997, 16
        %v6087 = vrot.slane %v6085, 1
        %v6088 = vsel %vm6012, %v6083, %v6087
        %v6089 = vshrl.u32 %v5997, 16
        %v6091 = vor.u32 %v6089, %v6087
        %v6093 = vshll.u32 %v5998, 16
        %v6095 = vrot.slane %v6093, 1
        %v6096 = vsel %vm6012, %v6091, %v6095
        %v6097 = vshrl.u32 %v5998, 16
        %v6099 = vor.u32 %v6097, %v6095
        %v6101 = vshll.u32 %v5999, 16
        %v6103 = vrot.slane %v6101, 1
        %v6104 = vsel %vm6012, %v6099, %v6103
        %v6105 = vshrl.u32 %v5999, 16
        %v6107 = vor.u32 %v6105, %v6103
        %v6109 = vshll.u32 %v6000, 16
        %v6111 = vrot.slane %v6109, 1
        %v6112 = vsel %vm6012, %v6107, %v6111
        %v6113 = vshrl.u32 %v6000, 16
        %v6115 = vor.u32 %v6113, %v6111
        %v6117 = vshll.u32 %v6006, 16
        %v6119 = vrot.slane %v6117, 1
        %v6120 = vsel %vm6012, %v6115, %v6119
        %v6121 = vshrl.u32 %v6006, 16
        %v6123 = vor.u32 %v6121, %v6119
        %v6128 = vunpack.c.l.b16 %v6008
        %v6129 = vunpack.c.l.b16 %v6009
        %v6130 = vunpack.c.l.b16 %v6010
        %v6131 = vunpack.c.l.b16 %v6011
        %v6132 = vpack.c.b16 %v6129, %v6128
        %v6133 = vpack.c.b16 %v6131, %v6130
        %v6136 = vsel %vm5215, %v6024, 0
        %v6139 = vsel %vm5215, %v6032, 0
        %v6142 = vsel %vm5215, %v6040, 0
        %v6145 = vsel %vm5215, %v6048, 0
        %v6148 = vsel %vm5215, %v6056, 0
        %v6151 = vsel %vm5215, %v6064, 0
        %v6154 = vsel %vm5215, %v6072, 0
        %v6157 = vsel %vm5215, %v6080, 0
        %v6160 = vsel %vm5215, %v6088, 0
        %v6163 = vsel %vm5215, %v6096, 0
        %v6166 = vsel %vm5215, %v6104, 0
        %v6169 = vsel %vm5215, %v6112, 0
        %v6172 = vsel %vm5215, %v6120, 0
        %v6175 = vsel %vm5215, %v6123, 0
        %vm6177 = vcmask 1045504
        %v6179 = vsel %vm6177, %v6133, 0
        %6181 = vmatpush.bf16.msra.mxu0 0
        %6182 = vmatpush.bf16.msra.mxu0 0
        %6183 = vmatpush.bf16.msra.mxu0 0
        %6184 = vmatpush.bf16.msra.mxu0 0
        %6185 = vmatpush.bf16.msra.mxu0 0
        %6186 = vmatpush.bf16.msra.mxu0 0
        %6187 = vmatpush.bf16.msra.mxu0 %v6179
        %6188 = vmatpush.bf16.msra.mxu0 %v6132
        %6189 = vmatmul.bf16.gmra.mxu0 %v6136
        %v6190 = vpop.f32.mrf.mxu0
        %v6191 = vadd.f32 0.0, %v6190
        %v6192 = vpop.f32.mrf.mxu0
        %v6193 = vadd.f32 0.0, %v6192
        %6194 = vmatmul.bf16.gmra.mxu0 %v6139
        %v6195 = vpop.f32.mrf.mxu0
        %v6196 = vadd.f32 0.0, %v6195
        %v6197 = vpop.f32.mrf.mxu0
        %v6198 = vadd.f32 0.0, %v6197
        %6199 = vmatmul.bf16.gmra.mxu0 %v6142
        %v6200 = vpop.f32.mrf.mxu0
        %v6201 = vadd.f32 0.0, %v6200
        %v6202 = vpop.f32.mrf.mxu0
        %v6203 = vadd.f32 0.0, %v6202
        %6204 = vmatmul.bf16.gmra.mxu0 %v6145
        %v6205 = vpop.f32.mrf.mxu0
        %v6206 = vadd.f32 0.0, %v6205
        %v6207 = vpop.f32.mrf.mxu0
        %v6208 = vadd.f32 0.0, %v6207
        %6209 = vmatmul.bf16.gmra.mxu0 %v6148
        %v6210 = vpop.f32.mrf.mxu0
        %v6211 = vadd.f32 0.0, %v6210
        %v6212 = vpop.f32.mrf.mxu0
        %v6213 = vadd.f32 0.0, %v6212
        %6214 = vmatmul.bf16.gmra.mxu0 %v6151
        %v6215 = vpop.f32.mrf.mxu0
        %v6216 = vadd.f32 0.0, %v6215
        %v6217 = vpop.f32.mrf.mxu0
        %v6218 = vadd.f32 0.0, %v6217
        %6219 = vmatmul.bf16.gmra.mxu0 %v6154
        %v6220 = vpop.f32.mrf.mxu0
        %v6221 = vadd.f32 0.0, %v6220
        %v6222 = vpop.f32.mrf.mxu0
        %v6223 = vadd.f32 0.0, %v6222
        %6224 = vmatmul.bf16.gmra.mxu0 %v6157
        %v6225 = vpop.f32.mrf.mxu0
        %v6226 = vadd.f32 0.0, %v6225
        %v6227 = vpop.f32.mrf.mxu0
        %v6228 = vadd.f32 0.0, %v6227
        %6229 = vmatmul.bf16.gmra.mxu0 %v6160
        %v6230 = vpop.f32.mrf.mxu0
        %v6231 = vadd.f32 0.0, %v6230
        %v6232 = vpop.f32.mrf.mxu0
        %v6233 = vadd.f32 0.0, %v6232
        %6234 = vmatmul.bf16.gmra.mxu0 %v6163
        %v6235 = vpop.f32.mrf.mxu0
        %v6236 = vadd.f32 0.0, %v6235
        %v6237 = vpop.f32.mrf.mxu0
        %v6238 = vadd.f32 0.0, %v6237
        %6239 = vmatmul.bf16.gmra.mxu0 %v6166
        %v6240 = vpop.f32.mrf.mxu0
        %v6241 = vadd.f32 0.0, %v6240
        %v6242 = vpop.f32.mrf.mxu0
        %v6243 = vadd.f32 0.0, %v6242
        %6244 = vmatmul.bf16.gmra.mxu0 %v6169
        %v6245 = vpop.f32.mrf.mxu0
        %v6246 = vadd.f32 0.0, %v6245
        %v6247 = vpop.f32.mrf.mxu0
        %v6248 = vadd.f32 0.0, %v6247
        %6249 = vmatmul.bf16.gmra.mxu0 %v6172
        %v6250 = vpop.f32.mrf.mxu0
        %v6251 = vadd.f32 0.0, %v6250
        %v6252 = vpop.f32.mrf.mxu0
        %v6253 = vadd.f32 0.0, %v6252
        %6254 = vmatmul.bf16.gmra.mxu0 %v6175
        %v6255 = vpop.f32.mrf.mxu0
        %v6256 = vadd.f32 0.0, %v6255
        %v6257 = vpop.f32.mrf.mxu0
        %6258 = vdwg.mxu0
        %v6263 = vunpack.c.l.b16 %v6002
        %v6264 = vunpack.c.l.b16 %v6003
        %v6265 = vunpack.c.l.b16 %v6004
        %v6266 = vunpack.c.l.b16 %v6005
        %v6267 = vpack.c.b16 %v6264, %v6263
        %v6268 = vpack.c.b16 %v6266, %v6265
        %v6270 = vsel %vm5215, %v5988, 0
        %v6272 = vsel %vm5215, %v5989, 0
        %v6274 = vsel %vm5215, %v5990, 0
        %v6276 = vsel %vm5215, %v5991, 0
        %v6278 = vsel %vm5215, %v5992, 0
        %v6280 = vsel %vm5215, %v5993, 0
        %v6282 = vsel %vm5215, %v5994, 0
        %v6284 = vsel %vm5215, %v5995, 0
        %v6286 = vsel %vm5215, %v5996, 0
        %v6288 = vsel %vm5215, %v5997, 0
        %v6290 = vsel %vm5215, %v5998, 0
        %v6292 = vsel %vm5215, %v5999, 0
        %v6294 = vsel %vm5215, %v6000, 0
        %v6297 = vsel %vm5215, %v6001, 0
        %v6300 = vsel %vm6177, %v6268, 0
        %6302 = vmatpush.bf16.msra.mxu0 0
        %6303 = vmatpush.bf16.msra.mxu0 0
        %6304 = vmatpush.bf16.msra.mxu0 0
        %6305 = vmatpush.bf16.msra.mxu0 0
        %6306 = vmatpush.bf16.msra.mxu0 0
        %6307 = vmatpush.bf16.msra.mxu0 0
        %6308 = vmatpush.bf16.msra.mxu0 %v6300
        %6309 = vmatpush.bf16.msra.mxu0 %v6267
        %6310 = vmatmul.bf16.gmra.mxu0 %v6270
        %v6311 = vpop.f32.mrf.mxu0
        %v6312 = vadd.f32 %v6191, %v6311
        %v6313 = vpop.f32.mrf.mxu0
        %v6314 = vadd.f32 %v6193, %v6313
        %6315 = vmatmul.bf16.gmra.mxu0 %v6272
        %v6316 = vpop.f32.mrf.mxu0
        %v6317 = vadd.f32 %v6196, %v6316
        %v6318 = vpop.f32.mrf.mxu0
        %v6319 = vadd.f32 %v6198, %v6318
        %6320 = vmatmul.bf16.gmra.mxu0 %v6274
        %v6321 = vpop.f32.mrf.mxu0
        %v6322 = vadd.f32 %v6201, %v6321
        %v6323 = vpop.f32.mrf.mxu0
        %v6324 = vadd.f32 %v6203, %v6323
        %6325 = vmatmul.bf16.gmra.mxu0 %v6276
        %v6326 = vpop.f32.mrf.mxu0
        %v6327 = vadd.f32 %v6206, %v6326
        %v6328 = vpop.f32.mrf.mxu0
        %v6329 = vadd.f32 %v6208, %v6328
        %6330 = vmatmul.bf16.gmra.mxu0 %v6278
        %v6331 = vpop.f32.mrf.mxu0
        %v6332 = vadd.f32 %v6211, %v6331
        %v6333 = vpop.f32.mrf.mxu0
        %v6334 = vadd.f32 %v6213, %v6333
        %6335 = vmatmul.bf16.gmra.mxu0 %v6280
        %v6336 = vpop.f32.mrf.mxu0
        %v6337 = vadd.f32 %v6216, %v6336
        %v6338 = vpop.f32.mrf.mxu0
        %v6339 = vadd.f32 %v6218, %v6338
        %6340 = vmatmul.bf16.gmra.mxu0 %v6282
        %v6341 = vpop.f32.mrf.mxu0
        %v6342 = vadd.f32 %v6221, %v6341
        %v6343 = vpop.f32.mrf.mxu0
        %v6344 = vadd.f32 %v6223, %v6343
        %6345 = vmatmul.bf16.gmra.mxu0 %v6284
        %v6346 = vpop.f32.mrf.mxu0
        %v6347 = vadd.f32 %v6226, %v6346
        %v6348 = vpop.f32.mrf.mxu0
        %v6349 = vadd.f32 %v6228, %v6348
        %6350 = vmatmul.bf16.gmra.mxu0 %v6286
        %v6351 = vpop.f32.mrf.mxu0
        %v6352 = vadd.f32 %v6231, %v6351
        %v6353 = vpop.f32.mrf.mxu0
        %v6354 = vadd.f32 %v6233, %v6353
        %6355 = vmatmul.bf16.gmra.mxu0 %v6288
        %v6356 = vpop.f32.mrf.mxu0
        %v6357 = vadd.f32 %v6236, %v6356
        %v6358 = vpop.f32.mrf.mxu0
        %v6359 = vadd.f32 %v6238, %v6358
        %6360 = vmatmul.bf16.gmra.mxu0 %v6290
        %v6361 = vpop.f32.mrf.mxu0
        %v6362 = vadd.f32 %v6241, %v6361
        %v6363 = vpop.f32.mrf.mxu0
        %v6364 = vadd.f32 %v6243, %v6363
        %6365 = vmatmul.bf16.gmra.mxu0 %v6292
        %v6366 = vpop.f32.mrf.mxu0
        %v6367 = vadd.f32 %v6246, %v6366
        %v6368 = vpop.f32.mrf.mxu0
        %v6369 = vadd.f32 %v6248, %v6368
        %6370 = vmatmul.bf16.gmra.mxu0 %v6294
        %v6371 = vpop.f32.mrf.mxu0
        %v6372 = vadd.f32 %v6251, %v6371
        %v6373 = vpop.f32.mrf.mxu0
        %v6374 = vadd.f32 %v6253, %v6373
        %6375 = vmatmul.bf16.gmra.mxu0 %v6297
        %v6376 = vpop.f32.mrf.mxu0
        %v6377 = vadd.f32 %v6256, %v6376
        %v6378 = vpop.f32.mrf.mxu0
        %6379 = vdwg.mxu0
        %s6380 = scalar_lea.vmem %s5, 32
        %v6381 = vld [vmem:[%s6380] sm:$0xf]
        %v6382 = vld [vmem:[%s6380 + $0x4] sm:$0xf]
        %v6383 = vld [vmem:[%s6380 + $0x8] sm:$0xf]
        %v6384 = vld [vmem:[%s6380 + $0xc] sm:$0x3]
        %vm6399 = vcmask 1046528
        %v6400 = vrot.slane %v5988, 1
        %v6401 = vrot.slane %v5989, 1
        %v6402 = vsel %vm6399, %v6400, %v6401
        %v6403 = vrot.slane %v5990, 1
        %v6404 = vsel %vm6399, %v6401, %v6403
        %v6405 = vrot.slane %v5991, 1
        %v6406 = vsel %vm6399, %v6403, %v6405
        %v6407 = vrot.slane %v5992, 1
        %v6408 = vsel %vm6399, %v6405, %v6407
        %v6409 = vrot.slane %v5993, 1
        %v6410 = vsel %vm6399, %v6407, %v6409
        %v6411 = vrot.slane %v5994, 1
        %v6412 = vsel %vm6399, %v6409, %v6411
        %v6413 = vrot.slane %v5995, 1
        %v6414 = vsel %vm6399, %v6411, %v6413
        %v6415 = vrot.slane %v5996, 1
        %v6416 = vsel %vm6399, %v6413, %v6415
        %v6417 = vrot.slane %v5997, 1
        %v6418 = vsel %vm6399, %v6415, %v6417
        %v6419 = vrot.slane %v5998, 1
        %v6420 = vsel %vm6399, %v6417, %v6419
        %v6421 = vrot.slane %v5999, 1
        %v6422 = vsel %vm6399, %v6419, %v6421
        %v6423 = vrot.slane %v6000, 1
        %v6424 = vsel %vm6399, %v6421, %v6423
        %v6425 = vrot.slane %v6006, 1
        %v6426 = vsel %vm6399, %v6423, %v6425
        %v6431 = vunpack.c.l.b16 %v6381
        %v6432 = vunpack.c.l.b16 %v6382
        %v6433 = vunpack.c.l.b16 %v6383
        %v6434 = vunpack.c.l.b16 %v6384
        %v6435 = vpack.c.b16 %v6432, %v6431
        %v6436 = vpack.c.b16 %v6434, %v6433
        %v6439 = vsel %vm5215, %v6402, 0
        %v6442 = vsel %vm5215, %v6404, 0
        %v6445 = vsel %vm5215, %v6406, 0
        %v6448 = vsel %vm5215, %v6408, 0
        %v6451 = vsel %vm5215, %v6410, 0
        %v6454 = vsel %vm5215, %v6412, 0
        %v6457 = vsel %vm5215, %v6414, 0
        %v6460 = vsel %vm5215, %v6416, 0
        %v6463 = vsel %vm5215, %v6418, 0
        %v6466 = vsel %vm5215, %v6420, 0
        %v6469 = vsel %vm5215, %v6422, 0
        %v6472 = vsel %vm5215, %v6424, 0
        %v6475 = vsel %vm5215, %v6426, 0
        %v6478 = vsel %vm5215, %v6425, 0
        %v6481 = vsel %vm6177, %v6436, 0
        %6483 = vmatpush.bf16.msra.mxu0 0
        %6484 = vmatpush.bf16.msra.mxu0 0
        %6485 = vmatpush.bf16.msra.mxu0 0
        %6486 = vmatpush.bf16.msra.mxu0 0
        %6487 = vmatpush.bf16.msra.mxu0 0
        %6488 = vmatpush.bf16.msra.mxu0 0
        %6489 = vmatpush.bf16.msra.mxu0 %v6481
        %6490 = vmatpush.bf16.msra.mxu0 %v6435
        %6491 = vmatmul.bf16.gmra.mxu0 %v6439
        %v6492 = vpop.f32.mrf.mxu0
        %v6493 = vadd.f32 0.0, %v6492
        %v6494 = vpop.f32.mrf.mxu0
        %v6495 = vadd.f32 0.0, %v6494
        %6496 = vmatmul.bf16.gmra.mxu0 %v6442
        %v6497 = vpop.f32.mrf.mxu0
        %v6498 = vadd.f32 0.0, %v6497
        %v6499 = vpop.f32.mrf.mxu0
        %v6500 = vadd.f32 0.0, %v6499
        %6501 = vmatmul.bf16.gmra.mxu0 %v6445
        %v6502 = vpop.f32.mrf.mxu0
        %v6503 = vadd.f32 0.0, %v6502
        %v6504 = vpop.f32.mrf.mxu0
        %v6505 = vadd.f32 0.0, %v6504
        %6506 = vmatmul.bf16.gmra.mxu0 %v6448
        %v6507 = vpop.f32.mrf.mxu0
        %v6508 = vadd.f32 0.0, %v6507
        %v6509 = vpop.f32.mrf.mxu0
        %v6510 = vadd.f32 0.0, %v6509
        %6511 = vmatmul.bf16.gmra.mxu0 %v6451
        %v6512 = vpop.f32.mrf.mxu0
        %v6513 = vadd.f32 0.0, %v6512
        %v6514 = vpop.f32.mrf.mxu0
        %v6515 = vadd.f32 0.0, %v6514
        %6516 = vmatmul.bf16.gmra.mxu0 %v6454
        %v6517 = vpop.f32.mrf.mxu0
        %v6518 = vadd.f32 0.0, %v6517
        %v6519 = vpop.f32.mrf.mxu0
        %v6520 = vadd.f32 0.0, %v6519
        %6521 = vmatmul.bf16.gmra.mxu0 %v6457
        %v6522 = vpop.f32.mrf.mxu0
        %v6523 = vadd.f32 0.0, %v6522
        %v6524 = vpop.f32.mrf.mxu0
        %v6525 = vadd.f32 0.0, %v6524
        %6526 = vmatmul.bf16.gmra.mxu0 %v6460
        %v6527 = vpop.f32.mrf.mxu0
        %v6528 = vadd.f32 0.0, %v6527
        %v6529 = vpop.f32.mrf.mxu0
        %v6530 = vadd.f32 0.0, %v6529
        %6531 = vmatmul.bf16.gmra.mxu0 %v6463
        %v6532 = vpop.f32.mrf.mxu0
        %v6533 = vadd.f32 0.0, %v6532
        %v6534 = vpop.f32.mrf.mxu0
        %v6535 = vadd.f32 0.0, %v6534
        %6536 = vmatmul.bf16.gmra.mxu0 %v6466
        %v6537 = vpop.f32.mrf.mxu0
        %v6538 = vadd.f32 0.0, %v6537
        %v6539 = vpop.f32.mrf.mxu0
        %v6540 = vadd.f32 0.0, %v6539
        %6541 = vmatmul.bf16.gmra.mxu0 %v6469
        %v6542 = vpop.f32.mrf.mxu0
        %v6543 = vadd.f32 0.0, %v6542
        %v6544 = vpop.f32.mrf.mxu0
        %v6545 = vadd.f32 0.0, %v6544
        %6546 = vmatmul.bf16.gmra.mxu0 %v6472
        %v6547 = vpop.f32.mrf.mxu0
        %v6548 = vadd.f32 0.0, %v6547
        %v6549 = vpop.f32.mrf.mxu0
        %v6550 = vadd.f32 0.0, %v6549
        %6551 = vmatmul.bf16.gmra.mxu0 %v6475
        %v6552 = vpop.f32.mrf.mxu0
        %v6553 = vadd.f32 0.0, %v6552
        %v6554 = vpop.f32.mrf.mxu0
        %v6555 = vadd.f32 0.0, %v6554
        %6556 = vmatmul.bf16.gmra.mxu0 %v6478
        %v6557 = vpop.f32.mrf.mxu0
        %v6558 = vadd.f32 0.0, %v6557
        %v6559 = vpop.f32.mrf.mxu0
        %6560 = vdwg.mxu0
        %v6561 = vadd.f32 %v6312, %v6493
        %v6562 = vadd.f32 %v6314, %v6495
        %v6563 = vadd.f32 %v6317, %v6498
        %v6564 = vadd.f32 %v6319, %v6500
        %v6565 = vadd.f32 %v6322, %v6503
        %v6566 = vadd.f32 %v6324, %v6505
        %v6567 = vadd.f32 %v6327, %v6508
        %v6568 = vadd.f32 %v6329, %v6510
        %v6569 = vadd.f32 %v6332, %v6513
        %v6570 = vadd.f32 %v6334, %v6515
        %v6571 = vadd.f32 %v6337, %v6518
        %v6572 = vadd.f32 %v6339, %v6520
        %v6573 = vadd.f32 %v6342, %v6523
        %v6574 = vadd.f32 %v6344, %v6525
        %v6575 = vadd.f32 %v6347, %v6528
        %v6576 = vadd.f32 %v6349, %v6530
        %v6577 = vadd.f32 %v6352, %v6533
        %v6578 = vadd.f32 %v6354, %v6535
        %v6579 = vadd.f32 %v6357, %v6538
        %v6580 = vadd.f32 %v6359, %v6540
        %v6581 = vadd.f32 %v6362, %v6543
        %v6582 = vadd.f32 %v6364, %v6545
        %v6583 = vadd.f32 %v6367, %v6548
        %v6584 = vadd.f32 %v6369, %v6550
        %v6585 = vadd.f32 %v6372, %v6553
        %v6586 = vadd.f32 %v6374, %v6555
        %v6587 = vadd.f32 %v6377, %v6558
        %v6588 = vpack.c.bf16 %v5958, %v5957
        %v6589 = vpack.c.bf16 %v5960, %v5959
        %v6590 = vpack.c.bf16 %v5962, %v5961
        %v6591 = vpack.c.bf16 %v5964, %v5963
        %v6592 = vpack.c.bf16 %v5966, %v5965
        %v6593 = vpack.c.bf16 %v5968, %v5967
        %v6594 = vpack.c.bf16 %v5970, %v5969
        %v6595 = vpack.c.bf16 %v5972, %v5971
        %v6596 = vpack.c.bf16 %v5974, %v5973
        %v6597 = vpack.c.bf16 %v5976, %v5975
        %v6598 = vpack.c.bf16 %v5978, %v5977
        %v6599 = vpack.c.bf16 %v5980, %v5979
        %v6600 = vpack.c.bf16 %v5982, %v5981
        %v6601 = vpack.c.bf16 %v5983, %v5983
        %s6602 = scalar_lea.vmem %s5, 48
        %v6603 = vld [vmem:[%s6602] sm:$0xf]
        %v6604 = vld [vmem:[%s6602 + $0x4] sm:$0xf]
        %v6605 = vld [vmem:[%s6602 + $0x8] sm:$0xf]
        %v6606 = vld [vmem:[%s6602 + $0xc] sm:$0x3]
        %v6611 = vunpack.c.l.b16 %v6603
        %v6612 = vunpack.c.l.b16 %v6604
        %v6613 = vunpack.c.l.b16 %v6605
        %v6614 = vunpack.c.l.b16 %v6606
        %v6615 = vpack.c.b16 %v6612, %v6611
        %v6616 = vpack.c.b16 %v6614, %v6613
        %v6619 = vsel %vm5215, %v6588, 0
        %v6622 = vsel %vm5215, %v6589, 0
        %v6625 = vsel %vm5215, %v6590, 0
        %v6628 = vsel %vm5215, %v6591, 0
        %v6631 = vsel %vm5215, %v6592, 0
        %v6634 = vsel %vm5215, %v6593, 0
        %v6637 = vsel %vm5215, %v6594, 0
        %v6640 = vsel %vm5215, %v6595, 0
        %v6643 = vsel %vm5215, %v6596, 0
        %v6646 = vsel %vm5215, %v6597, 0
        %v6649 = vsel %vm5215, %v6598, 0
        %v6652 = vsel %vm5215, %v6599, 0
        %v6655 = vsel %vm5215, %v6600, 0
        %v6658 = vsel %vm5215, %v6601, 0
        %v6661 = vsel %vm6177, %v6616, 0
        %6663 = vmatpush.bf16.msra.mxu0 0
        %6664 = vmatpush.bf16.msra.mxu0 0
        %6665 = vmatpush.bf16.msra.mxu0 0
        %6666 = vmatpush.bf16.msra.mxu0 0
        %6667 = vmatpush.bf16.msra.mxu0 0
        %6668 = vmatpush.bf16.msra.mxu0 0
        %6669 = vmatpush.bf16.msra.mxu0 %v6661
        %6670 = vmatpush.bf16.msra.mxu0 %v6615
        %6671 = vmatmul.bf16.gmra.mxu0 %v6619
        %v6672 = vpop.f32.mrf.mxu0
        %v6673 = vadd.f32 0.0, %v6672
        %v6674 = vpop.f32.mrf.mxu0
        %v6675 = vadd.f32 0.0, %v6674
        %6676 = vmatmul.bf16.gmra.mxu0 %v6622
        %v6677 = vpop.f32.mrf.mxu0
        %v6678 = vadd.f32 0.0, %v6677
        %v6679 = vpop.f32.mrf.mxu0
        %v6680 = vadd.f32 0.0, %v6679
        %6681 = vmatmul.bf16.gmra.mxu0 %v6625
        %v6682 = vpop.f32.mrf.mxu0
        %v6683 = vadd.f32 0.0, %v6682
        %v6684 = vpop.f32.mrf.mxu0
        %v6685 = vadd.f32 0.0, %v6684
        %6686 = vmatmul.bf16.gmra.mxu0 %v6628
        %v6687 = vpop.f32.mrf.mxu0
        %v6688 = vadd.f32 0.0, %v6687
        %v6689 = vpop.f32.mrf.mxu0
        %v6690 = vadd.f32 0.0, %v6689
        %6691 = vmatmul.bf16.gmra.mxu0 %v6631
        %v6692 = vpop.f32.mrf.mxu0
        %v6693 = vadd.f32 0.0, %v6692
        %v6694 = vpop.f32.mrf.mxu0
        %v6695 = vadd.f32 0.0, %v6694
        %6696 = vmatmul.bf16.gmra.mxu0 %v6634
        %v6697 = vpop.f32.mrf.mxu0
        %v6698 = vadd.f32 0.0, %v6697
        %v6699 = vpop.f32.mrf.mxu0
        %v6700 = vadd.f32 0.0, %v6699
        %6701 = vmatmul.bf16.gmra.mxu0 %v6637
        %v6702 = vpop.f32.mrf.mxu0
        %v6703 = vadd.f32 0.0, %v6702
        %v6704 = vpop.f32.mrf.mxu0
        %v6705 = vadd.f32 0.0, %v6704
        %6706 = vmatmul.bf16.gmra.mxu0 %v6640
        %v6707 = vpop.f32.mrf.mxu0
        %v6708 = vadd.f32 0.0, %v6707
        %v6709 = vpop.f32.mrf.mxu0
        %v6710 = vadd.f32 0.0, %v6709
        %6711 = vmatmul.bf16.gmra.mxu0 %v6643
        %v6712 = vpop.f32.mrf.mxu0
        %v6713 = vadd.f32 0.0, %v6712
        %v6714 = vpop.f32.mrf.mxu0
        %v6715 = vadd.f32 0.0, %v6714
        %6716 = vmatmul.bf16.gmra.mxu0 %v6646
        %v6717 = vpop.f32.mrf.mxu0
        %v6718 = vadd.f32 0.0, %v6717
        %v6719 = vpop.f32.mrf.mxu0
        %v6720 = vadd.f32 0.0, %v6719
        %6721 = vmatmul.bf16.gmra.mxu0 %v6649
        %v6722 = vpop.f32.mrf.mxu0
        %v6723 = vadd.f32 0.0, %v6722
        %v6724 = vpop.f32.mrf.mxu0
        %v6725 = vadd.f32 0.0, %v6724
        %6726 = vmatmul.bf16.gmra.mxu0 %v6652
        %v6727 = vpop.f32.mrf.mxu0
        %v6728 = vadd.f32 0.0, %v6727
        %v6729 = vpop.f32.mrf.mxu0
        %v6730 = vadd.f32 0.0, %v6729
        %6731 = vmatmul.bf16.gmra.mxu0 %v6655
        %v6732 = vpop.f32.mrf.mxu0
        %v6733 = vadd.f32 0.0, %v6732
        %v6734 = vpop.f32.mrf.mxu0
        %v6735 = vadd.f32 0.0, %v6734
        %6736 = vmatmul.bf16.gmra.mxu0 %v6658
        %v6737 = vpop.f32.mrf.mxu0
        %v6738 = vadd.f32 0.0, %v6737
        %v6739 = vpop.f32.mrf.mxu0
        %6740 = vdwg.mxu0
        %v6741 = vadd.f32 %v6561, %v6673
        %v6742 = vadd.f32 %v6562, %v6675
        %v6743 = vadd.f32 %v6563, %v6678
        %v6744 = vadd.f32 %v6564, %v6680
        %v6745 = vadd.f32 %v6565, %v6683
        %v6746 = vadd.f32 %v6566, %v6685
        %v6747 = vadd.f32 %v6567, %v6688
        %v6748 = vadd.f32 %v6568, %v6690
        %v6749 = vadd.f32 %v6569, %v6693
        %v6750 = vadd.f32 %v6570, %v6695
        %v6751 = vadd.f32 %v6571, %v6698
        %v6752 = vadd.f32 %v6572, %v6700
        %v6753 = vadd.f32 %v6573, %v6703
        %v6754 = vadd.f32 %v6574, %v6705
        %v6755 = vadd.f32 %v6575, %v6708
        %v6756 = vadd.f32 %v6576, %v6710
        %v6757 = vadd.f32 %v6577, %v6713
        %v6758 = vadd.f32 %v6578, %v6715
        %v6759 = vadd.f32 %v6579, %v6718
        %v6760 = vadd.f32 %v6580, %v6720
        %v6761 = vadd.f32 %v6581, %v6723
        %v6762 = vadd.f32 %v6582, %v6725
        %v6763 = vadd.f32 %v6583, %v6728
        %v6764 = vadd.f32 %v6584, %v6730
        %v6765 = vadd.f32 %v6585, %v6733
        %v6766 = vadd.f32 %v6586, %v6735
        %v6767 = vadd.f32 %v6587, %v6738
        %v6768 = vpack.c.bf16 %v5984, %v5983
        %s6769 = scalar_lea.vmem %s5, 64
        %v6770 = vld [vmem:[%s6769] sm:$0xf]
        %v6771 = vld [vmem:[%s6769 + $0x4] sm:$0xf]
        %v6772 = vld [vmem:[%s6769 + $0x8] sm:$0xf]
        %v6773 = vld [vmem:[%s6769 + $0xc] sm:$0x3]
        %v6774 = vshrl.u32 %v6588, 16
        %v6776 = vshll.u32 %v6588, 16
        %v6778 = vrot.slane %v6776, 1
        %v6779 = vor.u32 %v6774, %v6778
        %v6780 = vshll.u32 %v6589, 16
        %v6782 = vrot.slane %v6780, 1
        %v6783 = vsel %vm6012, %v6779, %v6782
        %v6784 = vshrl.u32 %v6589, 16
        %v6786 = vor.u32 %v6784, %v6782
        %v6787 = vshll.u32 %v6590, 16
        %v6789 = vrot.slane %v6787, 1
        %v6790 = vsel %vm6012, %v6786, %v6789
        %v6791 = vshrl.u32 %v6590, 16
        %v6793 = vor.u32 %v6791, %v6789
        %v6794 = vshll.u32 %v6591, 16
        %v6796 = vrot.slane %v6794, 1
        %v6797 = vsel %vm6012, %v6793, %v6796
        %v6798 = vshrl.u32 %v6591, 16
        %v6800 = vor.u32 %v6798, %v6796
        %v6801 = vshll.u32 %v6592, 16
        %v6803 = vrot.slane %v6801, 1
        %v6804 = vsel %vm6012, %v6800, %v6803
        %v6805 = vshrl.u32 %v6592, 16
        %v6807 = vor.u32 %v6805, %v6803
        %v6808 = vshll.u32 %v6593, 16
        %v6810 = vrot.slane %v6808, 1
        %v6811 = vsel %vm6012, %v6807, %v6810
        %v6812 = vshrl.u32 %v6593, 16
        %v6814 = vor.u32 %v6812, %v6810
        %v6815 = vshll.u32 %v6594, 16
        %v6817 = vrot.slane %v6815, 1
        %v6818 = vsel %vm6012, %v6814, %v6817
        %v6819 = vshrl.u32 %v6594, 16
        %v6821 = vor.u32 %v6819, %v6817
        %v6822 = vshll.u32 %v6595, 16
        %v6824 = vrot.slane %v6822, 1
        %v6825 = vsel %vm6012, %v6821, %v6824
        %v6826 = vshrl.u32 %v6595, 16
        %v6828 = vor.u32 %v6826, %v6824
        %v6829 = vshll.u32 %v6596, 16
        %v6831 = vrot.slane %v6829, 1
        %v6832 = vsel %vm6012, %v6828, %v6831
        %v6833 = vshrl.u32 %v6596, 16
        %v6835 = vor.u32 %v6833, %v6831
        %v6836 = vshll.u32 %v6597, 16
        %v6838 = vrot.slane %v6836, 1
        %v6839 = vsel %vm6012, %v6835, %v6838
        %v6840 = vshrl.u32 %v6597, 16
        %v6842 = vor.u32 %v6840, %v6838
        %v6843 = vshll.u32 %v6598, 16
        %v6845 = vrot.slane %v6843, 1
        %v6846 = vsel %vm6012, %v6842, %v6845
        %v6847 = vshrl.u32 %v6598, 16
        %v6849 = vor.u32 %v6847, %v6845
        %v6850 = vshll.u32 %v6599, 16
        %v6852 = vrot.slane %v6850, 1
        %v6853 = vsel %vm6012, %v6849, %v6852
        %v6854 = vshrl.u32 %v6599, 16
        %v6856 = vor.u32 %v6854, %v6852
        %v6857 = vshll.u32 %v6600, 16
        %v6859 = vrot.slane %v6857, 1
        %v6860 = vsel %vm6012, %v6856, %v6859
        %v6861 = vshrl.u32 %v6600, 16
        %v6863 = vor.u32 %v6861, %v6859
        %v6865 = vshll.u32 %v6768, 16
        %v6867 = vrot.slane %v6865, 1
        %v6868 = vsel %vm6012, %v6863, %v6867
        %v6869 = vshrl.u32 %v6768, 16
        %v6871 = vor.u32 %v6869, %v6867
        %v6876 = vunpack.c.l.b16 %v6770
        %v6877 = vunpack.c.l.b16 %v6771
        %v6878 = vunpack.c.l.b16 %v6772
        %v6879 = vunpack.c.l.b16 %v6773
        %v6880 = vpack.c.b16 %v6877, %v6876
        %v6881 = vpack.c.b16 %v6879, %v6878
        %v6884 = vsel %vm5215, %v6783, 0
        %v6887 = vsel %vm5215, %v6790, 0
        %v6890 = vsel %vm5215, %v6797, 0
        %v6893 = vsel %vm5215, %v6804, 0
        %v6896 = vsel %vm5215, %v6811, 0
        %v6899 = vsel %vm5215, %v6818, 0
        %v6902 = vsel %vm5215, %v6825, 0
        %v6905 = vsel %vm5215, %v6832, 0
        %v6908 = vsel %vm5215, %v6839, 0
        %v6911 = vsel %vm5215, %v6846, 0
        %v6914 = vsel %vm5215, %v6853, 0
        %v6917 = vsel %vm5215, %v6860, 0
        %v6920 = vsel %vm5215, %v6868, 0
        %v6923 = vsel %vm5215, %v6871, 0
        %v6926 = vsel %vm6177, %v6881, 0
        %6928 = vmatpush.bf16.msra.mxu0 0
        %6929 = vmatpush.bf16.msra.mxu0 0
        %6930 = vmatpush.bf16.msra.mxu0 0
        %6931 = vmatpush.bf16.msra.mxu0 0
        %6932 = vmatpush.bf16.msra.mxu0 0
        %6933 = vmatpush.bf16.msra.mxu0 0
        %6934 = vmatpush.bf16.msra.mxu0 %v6926
        %6935 = vmatpush.bf16.msra.mxu0 %v6880
        %6936 = vmatmul.bf16.gmra.mxu0 %v6884
        %v6937 = vpop.f32.mrf.mxu0
        %v6938 = vadd.f32 0.0, %v6937
        %v6939 = vpop.f32.mrf.mxu0
        %v6940 = vadd.f32 0.0, %v6939
        %6941 = vmatmul.bf16.gmra.mxu0 %v6887
        %v6942 = vpop.f32.mrf.mxu0
        %v6943 = vadd.f32 0.0, %v6942
        %v6944 = vpop.f32.mrf.mxu0
        %v6945 = vadd.f32 0.0, %v6944
        %6946 = vmatmul.bf16.gmra.mxu0 %v6890
        %v6947 = vpop.f32.mrf.mxu0
        %v6948 = vadd.f32 0.0, %v6947
        %v6949 = vpop.f32.mrf.mxu0
        %v6950 = vadd.f32 0.0, %v6949
        %6951 = vmatmul.bf16.gmra.mxu0 %v6893
        %v6952 = vpop.f32.mrf.mxu0
        %v6953 = vadd.f32 0.0, %v6952
        %v6954 = vpop.f32.mrf.mxu0
        %v6955 = vadd.f32 0.0, %v6954
        %6956 = vmatmul.bf16.gmra.mxu0 %v6896
        %v6957 = vpop.f32.mrf.mxu0
        %v6958 = vadd.f32 0.0, %v6957
        %v6959 = vpop.f32.mrf.mxu0
        %v6960 = vadd.f32 0.0, %v6959
        %6961 = vmatmul.bf16.gmra.mxu0 %v6899
        %v6962 = vpop.f32.mrf.mxu0
        %v6963 = vadd.f32 0.0, %v6962
        %v6964 = vpop.f32.mrf.mxu0
        %v6965 = vadd.f32 0.0, %v6964
        %6966 = vmatmul.bf16.gmra.mxu0 %v6902
        %v6967 = vpop.f32.mrf.mxu0
        %v6968 = vadd.f32 0.0, %v6967
        %v6969 = vpop.f32.mrf.mxu0
        %v6970 = vadd.f32 0.0, %v6969
        %6971 = vmatmul.bf16.gmra.mxu0 %v6905
        %v6972 = vpop.f32.mrf.mxu0
        %v6973 = vadd.f32 0.0, %v6972
        %v6974 = vpop.f32.mrf.mxu0
        %v6975 = vadd.f32 0.0, %v6974
        %6976 = vmatmul.bf16.gmra.mxu0 %v6908
        %v6977 = vpop.f32.mrf.mxu0
        %v6978 = vadd.f32 0.0, %v6977
        %v6979 = vpop.f32.mrf.mxu0
        %v6980 = vadd.f32 0.0, %v6979
        %6981 = vmatmul.bf16.gmra.mxu0 %v6911
        %v6982 = vpop.f32.mrf.mxu0
        %v6983 = vadd.f32 0.0, %v6982
        %v6984 = vpop.f32.mrf.mxu0
        %v6985 = vadd.f32 0.0, %v6984
        %6986 = vmatmul.bf16.gmra.mxu0 %v6914
        %v6987 = vpop.f32.mrf.mxu0
        %v6988 = vadd.f32 0.0, %v6987
        %v6989 = vpop.f32.mrf.mxu0
        %v6990 = vadd.f32 0.0, %v6989
        %6991 = vmatmul.bf16.gmra.mxu0 %v6917
        %v6992 = vpop.f32.mrf.mxu0
        %v6993 = vadd.f32 0.0, %v6992
        %v6994 = vpop.f32.mrf.mxu0
        %v6995 = vadd.f32 0.0, %v6994
        %6996 = vmatmul.bf16.gmra.mxu0 %v6920
        %v6997 = vpop.f32.mrf.mxu0
        %v6998 = vadd.f32 0.0, %v6997
        %v6999 = vpop.f32.mrf.mxu0
        %v7000 = vadd.f32 0.0, %v6999
        %7001 = vmatmul.bf16.gmra.mxu0 %v6923
        %v7002 = vpop.f32.mrf.mxu0
        %v7003 = vadd.f32 0.0, %v7002
        %v7004 = vpop.f32.mrf.mxu0
        %7005 = vdwg.mxu0
        %v7006 = vadd.f32 %v6741, %v6938
        %v7007 = vadd.f32 %v6742, %v6940
        %v7008 = vadd.f32 %v6743, %v6943
        %v7009 = vadd.f32 %v6744, %v6945
        %v7010 = vadd.f32 %v6745, %v6948
        %v7011 = vadd.f32 %v6746, %v6950
        %v7012 = vadd.f32 %v6747, %v6953
        %v7013 = vadd.f32 %v6748, %v6955
        %v7014 = vadd.f32 %v6749, %v6958
        %v7015 = vadd.f32 %v6750, %v6960
        %v7016 = vadd.f32 %v6751, %v6963
        %v7017 = vadd.f32 %v6752, %v6965
        %v7018 = vadd.f32 %v6753, %v6968
        %v7019 = vadd.f32 %v6754, %v6970
        %v7020 = vadd.f32 %v6755, %v6973
        %v7021 = vadd.f32 %v6756, %v6975
        %v7022 = vadd.f32 %v6757, %v6978
        %v7023 = vadd.f32 %v6758, %v6980
        %v7024 = vadd.f32 %v6759, %v6983
        %v7025 = vadd.f32 %v6760, %v6985
        %v7026 = vadd.f32 %v6761, %v6988
        %v7027 = vadd.f32 %v6762, %v6990
        %v7028 = vadd.f32 %v6763, %v6993
        %v7029 = vadd.f32 %v6764, %v6995
        %v7030 = vadd.f32 %v6765, %v6998
        %v7031 = vadd.f32 %v6766, %v7000
        %v7032 = vadd.f32 %v6767, %v7003
        %s7033 = scalar_lea.vmem %s5, 80
        %v7034 = vld [vmem:[%s7033] sm:$0xf]
        %v7035 = vld [vmem:[%s7033 + $0x4] sm:$0xf]
        %v7036 = vld [vmem:[%s7033 + $0x8] sm:$0xf]
        %v7037 = vld [vmem:[%s7033 + $0xc] sm:$0x3]
        %v7052 = vrot.slane %v6588, 1
        %v7053 = vrot.slane %v6589, 1
        %v7054 = vsel %vm6399, %v7052, %v7053
        %v7055 = vrot.slane %v6590, 1
        %v7056 = vsel %vm6399, %v7053, %v7055
        %v7057 = vrot.slane %v6591, 1
        %v7058 = vsel %vm6399, %v7055, %v7057
        %v7059 = vrot.slane %v6592, 1
        %v7060 = vsel %vm6399, %v7057, %v7059
        %v7061 = vrot.slane %v6593, 1
        %v7062 = vsel %vm6399, %v7059, %v7061
        %v7063 = vrot.slane %v6594, 1
        %v7064 = vsel %vm6399, %v7061, %v7063
        %v7065 = vrot.slane %v6595, 1
        %v7066 = vsel %vm6399, %v7063, %v7065
        %v7067 = vrot.slane %v6596, 1
        %v7068 = vsel %vm6399, %v7065, %v7067
        %v7069 = vrot.slane %v6597, 1
        %v7070 = vsel %vm6399, %v7067, %v7069
        %v7071 = vrot.slane %v6598, 1
        %v7072 = vsel %vm6399, %v7069, %v7071
        %v7073 = vrot.slane %v6599, 1
        %v7074 = vsel %vm6399, %v7071, %v7073
        %v7075 = vrot.slane %v6600, 1
        %v7076 = vsel %vm6399, %v7073, %v7075
        %v7077 = vrot.slane %v6768, 1
        %v7078 = vsel %vm6399, %v7075, %v7077
        %v7083 = vunpack.c.l.b16 %v7034
        %v7084 = vunpack.c.l.b16 %v7035
        %v7085 = vunpack.c.l.b16 %v7036
        %v7086 = vunpack.c.l.b16 %v7037
        %v7087 = vpack.c.b16 %v7084, %v7083
        %v7088 = vpack.c.b16 %v7086, %v7085
        %v7091 = vsel %vm5215, %v7054, 0
        %v7094 = vsel %vm5215, %v7056, 0
        %v7097 = vsel %vm5215, %v7058, 0
        %v7100 = vsel %vm5215, %v7060, 0
        %v7103 = vsel %vm5215, %v7062, 0
        %v7106 = vsel %vm5215, %v7064, 0
        %v7109 = vsel %vm5215, %v7066, 0
        %v7112 = vsel %vm5215, %v7068, 0
        %v7115 = vsel %vm5215, %v7070, 0
        %v7118 = vsel %vm5215, %v7072, 0
        %v7121 = vsel %vm5215, %v7074, 0
        %v7124 = vsel %vm5215, %v7076, 0
        %v7127 = vsel %vm5215, %v7078, 0
        %v7130 = vsel %vm5215, %v7077, 0
        %v7133 = vsel %vm6177, %v7088, 0
        %7135 = vmatpush.bf16.msra.mxu0 0
        %7136 = vmatpush.bf16.msra.mxu0 0
        %7137 = vmatpush.bf16.msra.mxu0 0
        %7138 = vmatpush.bf16.msra.mxu0 0
        %7139 = vmatpush.bf16.msra.mxu0 0
        %7140 = vmatpush.bf16.msra.mxu0 0
        %7141 = vmatpush.bf16.msra.mxu0 %v7133
        %7142 = vmatpush.bf16.msra.mxu0 %v7087
        %7143 = vmatmul.bf16.gmra.mxu0 %v7091
        %v7144 = vpop.f32.mrf.mxu0
        %v7145 = vadd.f32 0.0, %v7144
        %v7146 = vpop.f32.mrf.mxu0
        %v7147 = vadd.f32 0.0, %v7146
        %7148 = vmatmul.bf16.gmra.mxu0 %v7094
        %v7149 = vpop.f32.mrf.mxu0
        %v7150 = vadd.f32 0.0, %v7149
        %v7151 = vpop.f32.mrf.mxu0
        %v7152 = vadd.f32 0.0, %v7151
        %7153 = vmatmul.bf16.gmra.mxu0 %v7097
        %v7154 = vpop.f32.mrf.mxu0
        %v7155 = vadd.f32 0.0, %v7154
        %v7156 = vpop.f32.mrf.mxu0
        %v7157 = vadd.f32 0.0, %v7156
        %7158 = vmatmul.bf16.gmra.mxu0 %v7100
        %v7159 = vpop.f32.mrf.mxu0
        %v7160 = vadd.f32 0.0, %v7159
        %v7161 = vpop.f32.mrf.mxu0
        %v7162 = vadd.f32 0.0, %v7161
        %7163 = vmatmul.bf16.gmra.mxu0 %v7103
        %v7164 = vpop.f32.mrf.mxu0
        %v7165 = vadd.f32 0.0, %v7164
        %v7166 = vpop.f32.mrf.mxu0
        %v7167 = vadd.f32 0.0, %v7166
        %7168 = vmatmul.bf16.gmra.mxu0 %v7106
        %v7169 = vpop.f32.mrf.mxu0
        %v7170 = vadd.f32 0.0, %v7169
        %v7171 = vpop.f32.mrf.mxu0
        %v7172 = vadd.f32 0.0, %v7171
        %7173 = vmatmul.bf16.gmra.mxu0 %v7109
        %v7174 = vpop.f32.mrf.mxu0
        %v7175 = vadd.f32 0.0, %v7174
        %v7176 = vpop.f32.mrf.mxu0
        %v7177 = vadd.f32 0.0, %v7176
        %7178 = vmatmul.bf16.gmra.mxu0 %v7112
        %v7179 = vpop.f32.mrf.mxu0
        %v7180 = vadd.f32 0.0, %v7179
        %v7181 = vpop.f32.mrf.mxu0
        %v7182 = vadd.f32 0.0, %v7181
        %7183 = vmatmul.bf16.gmra.mxu0 %v7115
        %v7184 = vpop.f32.mrf.mxu0
        %v7185 = vadd.f32 0.0, %v7184
        %v7186 = vpop.f32.mrf.mxu0
        %v7187 = vadd.f32 0.0, %v7186
        %7188 = vmatmul.bf16.gmra.mxu0 %v7118
        %v7189 = vpop.f32.mrf.mxu0
        %v7190 = vadd.f32 0.0, %v7189
        %v7191 = vpop.f32.mrf.mxu0
        %v7192 = vadd.f32 0.0, %v7191
        %7193 = vmatmul.bf16.gmra.mxu0 %v7121
        %v7194 = vpop.f32.mrf.mxu0
        %v7195 = vadd.f32 0.0, %v7194
        %v7196 = vpop.f32.mrf.mxu0
        %v7197 = vadd.f32 0.0, %v7196
        %7198 = vmatmul.bf16.gmra.mxu0 %v7124
        %v7199 = vpop.f32.mrf.mxu0
        %v7200 = vadd.f32 0.0, %v7199
        %v7201 = vpop.f32.mrf.mxu0
        %v7202 = vadd.f32 0.0, %v7201
        %7203 = vmatmul.bf16.gmra.mxu0 %v7127
        %v7204 = vpop.f32.mrf.mxu0
        %v7205 = vadd.f32 0.0, %v7204
        %v7206 = vpop.f32.mrf.mxu0
        %v7207 = vadd.f32 0.0, %v7206
        %7208 = vmatmul.bf16.gmra.mxu0 %v7130
        %v7209 = vpop.f32.mrf.mxu0
        %v7210 = vadd.f32 0.0, %v7209
        %v7211 = vpop.f32.mrf.mxu0
        %7212 = vdwg.mxu0
        %v7213 = vadd.f32 %v7006, %v7145
        %v7214 = vadd.f32 %v7007, %v7147
        %v7215 = vadd.f32 %v7008, %v7150
        %v7216 = vadd.f32 %v7009, %v7152
        %v7217 = vadd.f32 %v7010, %v7155
        %v7218 = vadd.f32 %v7011, %v7157
        %v7219 = vadd.f32 %v7012, %v7160
        %v7220 = vadd.f32 %v7013, %v7162
        %v7221 = vadd.f32 %v7014, %v7165
        %v7222 = vadd.f32 %v7015, %v7167
        %v7223 = vadd.f32 %v7016, %v7170
        %v7224 = vadd.f32 %v7017, %v7172
        %v7225 = vadd.f32 %v7018, %v7175
        %v7226 = vadd.f32 %v7019, %v7177
        %v7227 = vadd.f32 %v7020, %v7180
        %v7228 = vadd.f32 %v7021, %v7182
        %v7229 = vadd.f32 %v7022, %v7185
        %v7230 = vadd.f32 %v7023, %v7187
        %v7231 = vadd.f32 %v7024, %v7190
        %v7232 = vadd.f32 %v7025, %v7192
        %v7233 = vadd.f32 %v7026, %v7195
        %v7234 = vadd.f32 %v7027, %v7197
        %v7235 = vadd.f32 %v7028, %v7200
        %v7236 = vadd.f32 %v7029, %v7202
        %v7237 = vadd.f32 %v7030, %v7205
        %v7238 = vadd.f32 %v7031, %v7207
        %v7239 = vadd.f32 %v7032, %v7210
        %v7240 = vpack.c.bf16 %v5983, %v5982
        %v7241 = vpack.c.bf16 %v5985, %v5984
        %v7242 = vpack.c.bf16 %v5986, %v5986
        %s7243 = scalar_lea.vmem %s5, 96
        %v7244 = vld [vmem:[%s7243] sm:$0xf]
        %v7245 = vld [vmem:[%s7243 + $0x4] sm:$0xf]
        %v7246 = vld [vmem:[%s7243 + $0x8] sm:$0xf]
        %v7247 = vld [vmem:[%s7243 + $0xc] sm:$0x3]
        %v7252 = vunpack.c.l.b16 %v7244
        %v7253 = vunpack.c.l.b16 %v7245
        %v7254 = vunpack.c.l.b16 %v7246
        %v7255 = vunpack.c.l.b16 %v7247
        %v7256 = vpack.c.b16 %v7253, %v7252
        %v7257 = vpack.c.b16 %v7255, %v7254
        %v7259 = vsel %vm5215, %v6006, 0
        %v7262 = vsel %vm5215, %v7240, 0
        %v7265 = vsel %vm5215, %v7241, 0
        %v7268 = vsel %vm5215, %v7242, 0
        %v7271 = vsel %vm6177, %v7257, 0
        %7273 = vmatpush.bf16.msra.mxu0 0
        %7274 = vmatpush.bf16.msra.mxu0 0
        %7275 = vmatpush.bf16.msra.mxu0 0
        %7276 = vmatpush.bf16.msra.mxu0 0
        %7277 = vmatpush.bf16.msra.mxu0 0
        %7278 = vmatpush.bf16.msra.mxu0 0
        %7279 = vmatpush.bf16.msra.mxu0 %v7271
        %7280 = vmatpush.bf16.msra.mxu0 %v7256
        %7281 = vmatmul.bf16.gmra.mxu0 %v6276
        %v7282 = vpop.f32.mrf.mxu0
        %v7283 = vadd.f32 0.0, %v7282
        %v7284 = vpop.f32.mrf.mxu0
        %v7285 = vadd.f32 0.0, %v7284
        %7286 = vmatmul.bf16.gmra.mxu0 %v6278
        %v7287 = vpop.f32.mrf.mxu0
        %v7288 = vadd.f32 0.0, %v7287
        %v7289 = vpop.f32.mrf.mxu0
        %v7290 = vadd.f32 0.0, %v7289
        %7291 = vmatmul.bf16.gmra.mxu0 %v6280
        %v7292 = vpop.f32.mrf.mxu0
        %v7293 = vadd.f32 0.0, %v7292
        %v7294 = vpop.f32.mrf.mxu0
        %v7295 = vadd.f32 0.0, %v7294
        %7296 = vmatmul.bf16.gmra.mxu0 %v6282
        %v7297 = vpop.f32.mrf.mxu0
        %v7298 = vadd.f32 0.0, %v7297
        %v7299 = vpop.f32.mrf.mxu0
        %v7300 = vadd.f32 0.0, %v7299
        %7301 = vmatmul.bf16.gmra.mxu0 %v6284
        %v7302 = vpop.f32.mrf.mxu0
        %v7303 = vadd.f32 0.0, %v7302
        %v7304 = vpop.f32.mrf.mxu0
        %v7305 = vadd.f32 0.0, %v7304
        %7306 = vmatmul.bf16.gmra.mxu0 %v6286
        %v7307 = vpop.f32.mrf.mxu0
        %v7308 = vadd.f32 0.0, %v7307
        %v7309 = vpop.f32.mrf.mxu0
        %v7310 = vadd.f32 0.0, %v7309
        %7311 = vmatmul.bf16.gmra.mxu0 %v6288
        %v7312 = vpop.f32.mrf.mxu0
        %v7313 = vadd.f32 0.0, %v7312
        %v7314 = vpop.f32.mrf.mxu0
        %v7315 = vadd.f32 0.0, %v7314
        %7316 = vmatmul.bf16.gmra.mxu0 %v6290
        %v7317 = vpop.f32.mrf.mxu0
        %v7318 = vadd.f32 0.0, %v7317
        %v7319 = vpop.f32.mrf.mxu0
        %v7320 = vadd.f32 0.0, %v7319
        %7321 = vmatmul.bf16.gmra.mxu0 %v6292
        %v7322 = vpop.f32.mrf.mxu0
        %v7323 = vadd.f32 0.0, %v7322
        %v7324 = vpop.f32.mrf.mxu0
        %v7325 = vadd.f32 0.0, %v7324
        %7326 = vmatmul.bf16.gmra.mxu0 %v6294
        %v7327 = vpop.f32.mrf.mxu0
        %v7328 = vadd.f32 0.0, %v7327
        %v7329 = vpop.f32.mrf.mxu0
        %v7330 = vadd.f32 0.0, %v7329
        %7331 = vmatmul.bf16.gmra.mxu0 %v7259
        %v7332 = vpop.f32.mrf.mxu0
        %v7333 = vadd.f32 0.0, %v7332
        %v7334 = vpop.f32.mrf.mxu0
        %v7335 = vadd.f32 0.0, %v7334
        %7336 = vmatmul.bf16.gmra.mxu0 %v7262
        %v7337 = vpop.f32.mrf.mxu0
        %v7338 = vadd.f32 0.0, %v7337
        %v7339 = vpop.f32.mrf.mxu0
        %v7340 = vadd.f32 0.0, %v7339
        %7341 = vmatmul.bf16.gmra.mxu0 %v7265
        %v7342 = vpop.f32.mrf.mxu0
        %v7343 = vadd.f32 0.0, %v7342
        %v7344 = vpop.f32.mrf.mxu0
        %v7345 = vadd.f32 0.0, %v7344
        %7346 = vmatmul.bf16.gmra.mxu0 %v7268
        %v7347 = vpop.f32.mrf.mxu0
        %v7348 = vadd.f32 0.0, %v7347
        %v7349 = vpop.f32.mrf.mxu0
        %7350 = vdwg.mxu0
        %v7351 = vadd.f32 %v7213, %v7283
        %v7352 = vadd.f32 %v7214, %v7285
        %v7353 = vadd.f32 %v7215, %v7288
        %v7354 = vadd.f32 %v7216, %v7290
        %v7355 = vadd.f32 %v7217, %v7293
        %v7356 = vadd.f32 %v7218, %v7295
        %v7357 = vadd.f32 %v7219, %v7298
        %v7358 = vadd.f32 %v7220, %v7300
        %v7359 = vadd.f32 %v7221, %v7303
        %v7360 = vadd.f32 %v7222, %v7305
        %v7361 = vadd.f32 %v7223, %v7308
        %v7362 = vadd.f32 %v7224, %v7310
        %v7363 = vadd.f32 %v7225, %v7313
        %v7364 = vadd.f32 %v7226, %v7315
        %v7365 = vadd.f32 %v7227, %v7318
        %v7366 = vadd.f32 %v7228, %v7320
        %v7367 = vadd.f32 %v7229, %v7323
        %v7368 = vadd.f32 %v7230, %v7325
        %v7369 = vadd.f32 %v7231, %v7328
        %v7370 = vadd.f32 %v7232, %v7330
        %v7371 = vadd.f32 %v7233, %v7333
        %v7372 = vadd.f32 %v7234, %v7335
        %v7373 = vadd.f32 %v7235, %v7338
        %v7374 = vadd.f32 %v7236, %v7340
        %v7375 = vadd.f32 %v7237, %v7343
        %v7376 = vadd.f32 %v7238, %v7345
        %v7377 = vadd.f32 %v7239, %v7348
        %v7378 = vpack.c.bf16 %v5987, %v5986
        %s7379 = scalar_lea.vmem %s5, 112
        %v7380 = vld [vmem:[%s7379] sm:$0xf]
        %v7381 = vld [vmem:[%s7379 + $0x4] sm:$0xf]
        %v7382 = vld [vmem:[%s7379 + $0x8] sm:$0xf]
        %v7383 = vld [vmem:[%s7379 + $0xc] sm:$0x3]
        %v7384 = vshll.u32 %v7240, 16
        %v7386 = vrot.slane %v7384, 1
        %v7387 = vsel %vm6012, %v6123, %v7386
        %v7388 = vshrl.u32 %v7240, 16
        %v7390 = vor.u32 %v7388, %v7386
        %v7391 = vshll.u32 %v7241, 16
        %v7393 = vrot.slane %v7391, 1
        %v7394 = vsel %vm6012, %v7390, %v7393
        %v7395 = vshrl.u32 %v7241, 16
        %v7397 = vor.u32 %v7395, %v7393
        %v7399 = vshll.u32 %v7378, 16
        %v7401 = vrot.slane %v7399, 1
        %v7402 = vsel %vm6012, %v7397, %v7401
        %v7403 = vshrl.u32 %v7378, 16
        %v7405 = vor.u32 %v7403, %v7401
        %v7410 = vunpack.c.l.b16 %v7380
        %v7411 = vunpack.c.l.b16 %v7381
        %v7412 = vunpack.c.l.b16 %v7382
        %v7413 = vunpack.c.l.b16 %v7383
        %v7414 = vpack.c.b16 %v7411, %v7410
        %v7415 = vpack.c.b16 %v7413, %v7412
        %v7418 = vsel %vm5215, %v7387, 0
        %v7421 = vsel %vm5215, %v7394, 0
        %v7424 = vsel %vm5215, %v7402, 0
        %v7427 = vsel %vm5215, %v7405, 0
        %v7430 = vsel %vm6177, %v7415, 0
        %7432 = vmatpush.bf16.msra.mxu0 0
        %7433 = vmatpush.bf16.msra.mxu0 0
        %7434 = vmatpush.bf16.msra.mxu0 0
        %7435 = vmatpush.bf16.msra.mxu0 0
        %7436 = vmatpush.bf16.msra.mxu0 0
        %7437 = vmatpush.bf16.msra.mxu0 0
        %7438 = vmatpush.bf16.msra.mxu0 %v7430
        %7439 = vmatpush.bf16.msra.mxu0 %v7414
        %7440 = vmatmul.bf16.gmra.mxu0 %v6145
        %v7441 = vpop.f32.mrf.mxu0
        %v7442 = vadd.f32 0.0, %v7441
        %v7443 = vpop.f32.mrf.mxu0
        %v7444 = vadd.f32 0.0, %v7443
        %7445 = vmatmul.bf16.gmra.mxu0 %v6148
        %v7446 = vpop.f32.mrf.mxu0
        %v7447 = vadd.f32 0.0, %v7446
        %v7448 = vpop.f32.mrf.mxu0
        %v7449 = vadd.f32 0.0, %v7448
        %7450 = vmatmul.bf16.gmra.mxu0 %v6151
        %v7451 = vpop.f32.mrf.mxu0
        %v7452 = vadd.f32 0.0, %v7451
        %v7453 = vpop.f32.mrf.mxu0
        %v7454 = vadd.f32 0.0, %v7453
        %7455 = vmatmul.bf16.gmra.mxu0 %v6154
        %v7456 = vpop.f32.mrf.mxu0
        %v7457 = vadd.f32 0.0, %v7456
        %v7458 = vpop.f32.mrf.mxu0
        %v7459 = vadd.f32 0.0, %v7458
        %7460 = vmatmul.bf16.gmra.mxu0 %v6157
        %v7461 = vpop.f32.mrf.mxu0
        %v7462 = vadd.f32 0.0, %v7461
        %v7463 = vpop.f32.mrf.mxu0
        %v7464 = vadd.f32 0.0, %v7463
        %7465 = vmatmul.bf16.gmra.mxu0 %v6160
        %v7466 = vpop.f32.mrf.mxu0
        %v7467 = vadd.f32 0.0, %v7466
        %v7468 = vpop.f32.mrf.mxu0
        %v7469 = vadd.f32 0.0, %v7468
        %7470 = vmatmul.bf16.gmra.mxu0 %v6163
        %v7471 = vpop.f32.mrf.mxu0
        %v7472 = vadd.f32 0.0, %v7471
        %v7473 = vpop.f32.mrf.mxu0
        %v7474 = vadd.f32 0.0, %v7473
        %7475 = vmatmul.bf16.gmra.mxu0 %v6166
        %v7476 = vpop.f32.mrf.mxu0
        %v7477 = vadd.f32 0.0, %v7476
        %v7478 = vpop.f32.mrf.mxu0
        %v7479 = vadd.f32 0.0, %v7478
        %7480 = vmatmul.bf16.gmra.mxu0 %v6169
        %v7481 = vpop.f32.mrf.mxu0
        %v7482 = vadd.f32 0.0, %v7481
        %v7483 = vpop.f32.mrf.mxu0
        %v7484 = vadd.f32 0.0, %v7483
        %7485 = vmatmul.bf16.gmra.mxu0 %v6172
        %v7486 = vpop.f32.mrf.mxu0
        %v7487 = vadd.f32 0.0, %v7486
        %v7488 = vpop.f32.mrf.mxu0
        %v7489 = vadd.f32 0.0, %v7488
        %7490 = vmatmul.bf16.gmra.mxu0 %v7418
        %v7491 = vpop.f32.mrf.mxu0
        %v7492 = vadd.f32 0.0, %v7491
        %v7493 = vpop.f32.mrf.mxu0
        %v7494 = vadd.f32 0.0, %v7493
        %7495 = vmatmul.bf16.gmra.mxu0 %v7421
        %v7496 = vpop.f32.mrf.mxu0
        %v7497 = vadd.f32 0.0, %v7496
        %v7498 = vpop.f32.mrf.mxu0
        %v7499 = vadd.f32 0.0, %v7498
        %7500 = vmatmul.bf16.gmra.mxu0 %v7424
        %v7501 = vpop.f32.mrf.mxu0
        %v7502 = vadd.f32 0.0, %v7501
        %v7503 = vpop.f32.mrf.mxu0
        %v7504 = vadd.f32 0.0, %v7503
        %7505 = vmatmul.bf16.gmra.mxu0 %v7427
        %v7506 = vpop.f32.mrf.mxu0
        %v7507 = vadd.f32 0.0, %v7506
        %v7508 = vpop.f32.mrf.mxu0
        %7509 = vdwg.mxu0
        %v7510 = vadd.f32 %v7351, %v7442
        %v7511 = vadd.f32 %v7352, %v7444
        %v7512 = vadd.f32 %v7353, %v7447
        %v7513 = vadd.f32 %v7354, %v7449
        %v7514 = vadd.f32 %v7355, %v7452
        %v7515 = vadd.f32 %v7356, %v7454
        %v7516 = vadd.f32 %v7357, %v7457
        %v7517 = vadd.f32 %v7358, %v7459
        %v7518 = vadd.f32 %v7359, %v7462
        %v7519 = vadd.f32 %v7360, %v7464
        %v7520 = vadd.f32 %v7361, %v7467
        %v7521 = vadd.f32 %v7362, %v7469
        %v7522 = vadd.f32 %v7363, %v7472
        %v7523 = vadd.f32 %v7364, %v7474
        %v7524 = vadd.f32 %v7365, %v7477
        %v7525 = vadd.f32 %v7366, %v7479
        %v7526 = vadd.f32 %v7367, %v7482
        %v7527 = vadd.f32 %v7368, %v7484
        %v7528 = vadd.f32 %v7369, %v7487
        %v7529 = vadd.f32 %v7370, %v7489
        %v7530 = vadd.f32 %v7371, %v7492
        %v7531 = vadd.f32 %v7372, %v7494
        %v7532 = vadd.f32 %v7373, %v7497
        %v7533 = vadd.f32 %v7374, %v7499
        %v7534 = vadd.f32 %v7375, %v7502
        %v7535 = vadd.f32 %v7376, %v7504
        %v7536 = vadd.f32 %v7377, %v7507
        %s7537 = scalar_lea.vmem %s5, 128
        %v7538 = vld [vmem:[%s7537] sm:$0xf]
        %v7539 = vld [vmem:[%s7537 + $0x4] sm:$0xf]
        %v7540 = vld [vmem:[%s7537 + $0x8] sm:$0xf]
        %v7541 = vld [vmem:[%s7537 + $0xc] sm:$0x3]
        %v7545 = vrot.slane %v7240, 1
        %v7546 = vsel %vm6399, %v6425, %v7545
        %v7547 = vrot.slane %v7241, 1
        %v7548 = vsel %vm6399, %v7545, %v7547
        %v7549 = vrot.slane %v7378, 1
        %v7550 = vsel %vm6399, %v7547, %v7549
        %v7555 = vunpack.c.l.b16 %v7538
        %v7556 = vunpack.c.l.b16 %v7539
        %v7557 = vunpack.c.l.b16 %v7540
        %v7558 = vunpack.c.l.b16 %v7541
        %v7559 = vpack.c.b16 %v7556, %v7555
        %v7560 = vpack.c.b16 %v7558, %v7557
        %v7563 = vsel %vm5215, %v7546, 0
        %v7566 = vsel %vm5215, %v7548, 0
        %v7569 = vsel %vm5215, %v7550, 0
        %v7572 = vsel %vm5215, %v7549, 0
        %v7575 = vsel %vm6177, %v7560, 0
        %7577 = vmatpush.bf16.msra.mxu0 0
        %7578 = vmatpush.bf16.msra.mxu0 0
        %7579 = vmatpush.bf16.msra.mxu0 0
        %7580 = vmatpush.bf16.msra.mxu0 0
        %7581 = vmatpush.bf16.msra.mxu0 0
        %7582 = vmatpush.bf16.msra.mxu0 0
        %7583 = vmatpush.bf16.msra.mxu0 %v7575
        %7584 = vmatpush.bf16.msra.mxu0 %v7559
        %7585 = vmatmul.bf16.gmra.mxu0 %v6448
        %v7586 = vpop.f32.mrf.mxu0
        %v7587 = vadd.f32 0.0, %v7586
        %v7588 = vpop.f32.mrf.mxu0
        %v7589 = vadd.f32 0.0, %v7588
        %7590 = vmatmul.bf16.gmra.mxu0 %v6451
        %v7591 = vpop.f32.mrf.mxu0
        %v7592 = vadd.f32 0.0, %v7591
        %v7593 = vpop.f32.mrf.mxu0
        %v7594 = vadd.f32 0.0, %v7593
        %7595 = vmatmul.bf16.gmra.mxu0 %v6454
        %v7596 = vpop.f32.mrf.mxu0
        %v7597 = vadd.f32 0.0, %v7596
        %v7598 = vpop.f32.mrf.mxu0
        %v7599 = vadd.f32 0.0, %v7598
        %7600 = vmatmul.bf16.gmra.mxu0 %v6457
        %v7601 = vpop.f32.mrf.mxu0
        %v7602 = vadd.f32 0.0, %v7601
        %v7603 = vpop.f32.mrf.mxu0
        %v7604 = vadd.f32 0.0, %v7603
        %7605 = vmatmul.bf16.gmra.mxu0 %v6460
        %v7606 = vpop.f32.mrf.mxu0
        %v7607 = vadd.f32 0.0, %v7606
        %v7608 = vpop.f32.mrf.mxu0
        %v7609 = vadd.f32 0.0, %v7608
        %7610 = vmatmul.bf16.gmra.mxu0 %v6463
        %v7611 = vpop.f32.mrf.mxu0
        %v7612 = vadd.f32 0.0, %v7611
        %v7613 = vpop.f32.mrf.mxu0
        %v7614 = vadd.f32 0.0, %v7613
        %7615 = vmatmul.bf16.gmra.mxu0 %v6466
        %v7616 = vpop.f32.mrf.mxu0
        %v7617 = vadd.f32 0.0, %v7616
        %v7618 = vpop.f32.mrf.mxu0
        %v7619 = vadd.f32 0.0, %v7618
        %7620 = vmatmul.bf16.gmra.mxu0 %v6469
        %v7621 = vpop.f32.mrf.mxu0
        %v7622 = vadd.f32 0.0, %v7621
        %v7623 = vpop.f32.mrf.mxu0
        %v7624 = vadd.f32 0.0, %v7623
        %7625 = vmatmul.bf16.gmra.mxu0 %v6472
        %v7626 = vpop.f32.mrf.mxu0
        %v7627 = vadd.f32 0.0, %v7626
        %v7628 = vpop.f32.mrf.mxu0
        %v7629 = vadd.f32 0.0, %v7628
        %7630 = vmatmul.bf16.gmra.mxu0 %v6475
        %v7631 = vpop.f32.mrf.mxu0
        %v7632 = vadd.f32 0.0, %v7631
        %v7633 = vpop.f32.mrf.mxu0
        %v7634 = vadd.f32 0.0, %v7633
        %7635 = vmatmul.bf16.gmra.mxu0 %v7563
        %v7636 = vpop.f32.mrf.mxu0
        %v7637 = vadd.f32 0.0, %v7636
        %v7638 = vpop.f32.mrf.mxu0
        %v7639 = vadd.f32 0.0, %v7638
        %7640 = vmatmul.bf16.gmra.mxu0 %v7566
        %v7641 = vpop.f32.mrf.mxu0
        %v7642 = vadd.f32 0.0, %v7641
        %v7643 = vpop.f32.mrf.mxu0
        %v7644 = vadd.f32 0.0, %v7643
        %7645 = vmatmul.bf16.gmra.mxu0 %v7569
        %v7646 = vpop.f32.mrf.mxu0
        %v7647 = vadd.f32 0.0, %v7646
        %v7648 = vpop.f32.mrf.mxu0
        %v7649 = vadd.f32 0.0, %v7648
        %7650 = vmatmul.bf16.gmra.mxu0 %v7572
        %v7651 = vpop.f32.mrf.mxu0
        %v7652 = vadd.f32 0.0, %v7651
        %v7653 = vpop.f32.mrf.mxu0
        %7654 = vdwg.mxu0
        %v7655 = vadd.f32 %v7510, %v7587
        %v7656 = vadd.f32 %v7511, %v7589
        %v7657 = vadd.f32 %v7512, %v7592
        %v7658 = vadd.f32 %v7513, %v7594
        %v7659 = vadd.f32 %v7514, %v7597
        %v7660 = vadd.f32 %v7515, %v7599
        %v7661 = vadd.f32 %v7516, %v7602
        %v7662 = vadd.f32 %v7517, %v7604
        %v7663 = vadd.f32 %v7518, %v7607
        %v7664 = vadd.f32 %v7519, %v7609
        %v7665 = vadd.f32 %v7520, %v7612
        %v7666 = vadd.f32 %v7521, %v7614
        %v7667 = vadd.f32 %v7522, %v7617
        %v7668 = vadd.f32 %v7523, %v7619
        %v7669 = vadd.f32 %v7524, %v7622
        %v7670 = vadd.f32 %v7525, %v7624
        %v7671 = vadd.f32 %v7526, %v7627
        %v7672 = vadd.f32 %v7527, %v7629
        %v7673 = vadd.f32 %v7528, %v7632
        %v7674 = vadd.f32 %v7529, %v7634
        %v7675 = vadd.f32 %v7530, %v7637
        %v7676 = vadd.f32 %v7531, %v7639
        %v7677 = vadd.f32 %v7532, %v7642
        %v7678 = vadd.f32 %v7533, %v7644
        %v7679 = vadd.f32 %v7534, %v7647
        %v7680 = vadd.f32 %v7535, %v7649
        %v7681 = vadd.f32 %v7536, %v7652
        %v7682 = vld [vmem:[%s6] sm:$0x1]
        %v7684 = vperm.slane %v7682, 0
        %v7686 = vadd.f32 %v7655, %v7684
        %v7687 = vadd.f32 %v7656, %v7684
        %v7688 = vadd.f32 %v7657, %v7684
        %v7689 = vadd.f32 %v7658, %v7684
        %v7690 = vadd.f32 %v7659, %v7684
        %v7691 = vadd.f32 %v7660, %v7684
        %v7692 = vadd.f32 %v7661, %v7684
        %v7693 = vadd.f32 %v7662, %v7684
        %v7694 = vadd.f32 %v7663, %v7684
        %v7695 = vadd.f32 %v7664, %v7684
        %v7696 = vadd.f32 %v7665, %v7684
        %v7697 = vadd.f32 %v7666, %v7684
        %v7698 = vadd.f32 %v7667, %v7684
        %v7699 = vadd.f32 %v7668, %v7684
        %v7700 = vadd.f32 %v7669, %v7684
        %v7701 = vadd.f32 %v7670, %v7684
        %v7702 = vadd.f32 %v7671, %v7684
        %v7703 = vadd.f32 %v7672, %v7684
        %v7704 = vadd.f32 %v7673, %v7684
        %v7705 = vadd.f32 %v7674, %v7684
        %v7706 = vadd.f32 %v7675, %v7684
        %v7707 = vadd.f32 %v7676, %v7684
        %v7708 = vadd.f32 %v7677, %v7684
        %v7709 = vadd.f32 %v7678, %v7684
        %v7710 = vadd.f32 %v7679, %v7684
        %v7711 = vadd.f32 %v7680, %v7684
        %v7712 = vadd.f32 %v7681, %v7684
        %v7713 = vld [vmem:[%s7] sm:$0x1]
        %vm7714 = vcmp.ge.f32.partialorder %v7686, 0.0
        %vm7715 = vcmp.ge.f32.partialorder %v7687, 0.0
        %vm7716 = vcmp.ge.f32.partialorder %v7688, 0.0
        %vm7717 = vcmp.ge.f32.partialorder %v7689, 0.0
        %vm7718 = vcmp.ge.f32.partialorder %v7690, 0.0
        %vm7719 = vcmp.ge.f32.partialorder %v7691, 0.0
        %vm7720 = vcmp.ge.f32.partialorder %v7692, 0.0
        %vm7721 = vcmp.ge.f32.partialorder %v7693, 0.0
        %vm7722 = vcmp.ge.f32.partialorder %v7694, 0.0
        %vm7723 = vcmp.ge.f32.partialorder %v7695, 0.0
        %vm7724 = vcmp.ge.f32.partialorder %v7696, 0.0
        %vm7725 = vcmp.ge.f32.partialorder %v7697, 0.0
        %vm7726 = vcmp.ge.f32.partialorder %v7698, 0.0
        %vm7727 = vcmp.ge.f32.partialorder %v7699, 0.0
        %vm7728 = vcmp.ge.f32.partialorder %v7700, 0.0
        %vm7729 = vcmp.ge.f32.partialorder %v7701, 0.0
        %vm7730 = vcmp.ge.f32.partialorder %v7702, 0.0
        %vm7731 = vcmp.ge.f32.partialorder %v7703, 0.0
        %vm7732 = vcmp.ge.f32.partialorder %v7704, 0.0
        %vm7733 = vcmp.ge.f32.partialorder %v7705, 0.0
        %vm7734 = vcmp.ge.f32.partialorder %v7706, 0.0
        %vm7735 = vcmp.ge.f32.partialorder %v7707, 0.0
        %vm7736 = vcmp.ge.f32.partialorder %v7708, 0.0
        %vm7737 = vcmp.ge.f32.partialorder %v7709, 0.0
        %vm7738 = vcmp.ge.f32.partialorder %v7710, 0.0
        %vm7739 = vcmp.ge.f32.partialorder %v7711, 0.0
        %vm7740 = vcmp.ge.f32.partialorder %v7712, 0.0
        %v7742 = vperm.slane %v7713, 0
        %v7744 = vmul.f32 %v7742, %v7686
        %v7745 = vmul.f32 %v7742, %v7687
        %v7746 = vmul.f32 %v7742, %v7688
        %v7747 = vmul.f32 %v7742, %v7689
        %v7748 = vmul.f32 %v7742, %v7690
        %v7749 = vmul.f32 %v7742, %v7691
        %v7750 = vmul.f32 %v7742, %v7692
        %v7751 = vmul.f32 %v7742, %v7693
        %v7752 = vmul.f32 %v7742, %v7694
        %v7753 = vmul.f32 %v7742, %v7695
        %v7754 = vmul.f32 %v7742, %v7696
        %v7755 = vmul.f32 %v7742, %v7697
        %v7756 = vmul.f32 %v7742, %v7698
        %v7757 = vmul.f32 %v7742, %v7699
        %v7758 = vmul.f32 %v7742, %v7700
        %v7759 = vmul.f32 %v7742, %v7701
        %v7760 = vmul.f32 %v7742, %v7702
        %v7761 = vmul.f32 %v7742, %v7703
        %v7762 = vmul.f32 %v7742, %v7704
        %v7763 = vmul.f32 %v7742, %v7705
        %v7764 = vmul.f32 %v7742, %v7706
        %v7765 = vmul.f32 %v7742, %v7707
        %v7766 = vmul.f32 %v7742, %v7708
        %v7767 = vmul.f32 %v7742, %v7709
        %v7768 = vmul.f32 %v7742, %v7710
        %v7769 = vmul.f32 %v7742, %v7711
        %v7770 = vmul.f32 %v7742, %v7712
        %v7771 = vsel %vm7714, %v7686, %v7744
        %v7772 = vsel %vm7715, %v7687, %v7745
        %v7773 = vsel %vm7716, %v7688, %v7746
        %v7774 = vsel %vm7717, %v7689, %v7747
        %v7775 = vsel %vm7718, %v7690, %v7748
        %v7776 = vsel %vm7719, %v7691, %v7749
        %v7777 = vsel %vm7720, %v7692, %v7750
        %v7778 = vsel %vm7721, %v7693, %v7751
        %v7779 = vsel %vm7722, %v7694, %v7752
        %v7780 = vsel %vm7723, %v7695, %v7753
        %v7781 = vsel %vm7724, %v7696, %v7754
        %v7782 = vsel %vm7725, %v7697, %v7755
        %v7783 = vsel %vm7726, %v7698, %v7756
        %v7784 = vsel %vm7727, %v7699, %v7757
        %v7785 = vsel %vm7728, %v7700, %v7758
        %v7786 = vsel %vm7729, %v7701, %v7759
        %v7787 = vsel %vm7730, %v7702, %v7760
        %v7788 = vsel %vm7731, %v7703, %v7761
        %v7789 = vsel %vm7732, %v7704, %v7762
        %v7790 = vsel %vm7733, %v7705, %v7763
        %v7791 = vsel %vm7734, %v7706, %v7764
        %v7792 = vsel %vm7735, %v7707, %v7765
        %v7793 = vsel %vm7736, %v7708, %v7766
        %v7794 = vsel %vm7737, %v7709, %v7767
        %v7795 = vsel %vm7738, %v7710, %v7768
        %v7796 = vsel %vm7739, %v7711, %v7769
        %v7797 = vsel %vm7740, %v7712, %v7770
        %vm7798 = vcmask 392192
        %7799 = vst.msk [vmem:[#allocation3] sm:$0xff] %vm7798, %v7771
        %7800 = vst.msk [vmem:[#allocation3 + $0x8] sm:$0xff] %vm7798, %v7772
        %7801 = vst.msk [vmem:[#allocation3 + $0x10] sm:$0xff] %vm7798, %v7773
        %7802 = vst.msk [vmem:[#allocation3 + $0x18] sm:$0xff] %vm7798, %v7774
        %7803 = vst.msk [vmem:[#allocation3 + $0x20] sm:$0xff] %vm7798, %v7775
        %7804 = vst.msk [vmem:[#allocation3 + $0x28] sm:$0xff] %vm7798, %v7776
        %7805 = vst.msk [vmem:[#allocation3 + $0x30] sm:$0xff] %vm7798, %v7777
        %7806 = vst.msk [vmem:[#allocation3 + $0x38] sm:$0xff] %vm7798, %v7778
        %7807 = vst.msk [vmem:[#allocation3 + $0x40] sm:$0xff] %vm7798, %v7779
        %7808 = vst.msk [vmem:[#allocation3 + $0x48] sm:$0xff] %vm7798, %v7780
        %7809 = vst.msk [vmem:[#allocation3 + $0x50] sm:$0xff] %vm7798, %v7781
        %7810 = vst.msk [vmem:[#allocation3 + $0x58] sm:$0xff] %vm7798, %v7782
        %7811 = vst.msk [vmem:[#allocation3 + $0x60] sm:$0xff] %vm7798, %v7783
        %7812 = vst.msk [vmem:[#allocation3 + $0x68] sm:$0xff] %vm7798, %v7784
        %7813 = vst.msk [vmem:[#allocation3 + $0x70] sm:$0xff] %vm7798, %v7785
        %7814 = vst.msk [vmem:[#allocation3 + $0x78] sm:$0xff] %vm7798, %v7786
        %7815 = vst.msk [vmem:[#allocation3 + $0x80] sm:$0xff] %vm7798, %v7787
        %7816 = vst.msk [vmem:[#allocation3 + $0x88] sm:$0xff] %vm7798, %v7788
        %7817 = vst.msk [vmem:[#allocation3 + $0x90] sm:$0xff] %vm7798, %v7789
        %7818 = vst.msk [vmem:[#allocation3 + $0x98] sm:$0xff] %vm7798, %v7790
        %7819 = vst.msk [vmem:[#allocation3 + $0xa0] sm:$0xff] %vm7798, %v7791
        %7820 = vst.msk [vmem:[#allocation3 + $0xa8] sm:$0xff] %vm7798, %v7792
        %7821 = vst.msk [vmem:[#allocation3 + $0xb0] sm:$0xff] %vm7798, %v7793
        %7822 = vst.msk [vmem:[#allocation3 + $0xb8] sm:$0xff] %vm7798, %v7794
        %7823 = vst.msk [vmem:[#allocation3 + $0xc0] sm:$0xff] %vm7798, %v7795
        %7824 = vst.msk [vmem:[#allocation3 + $0xc8] sm:$0xff] %vm7798, %v7796
        %7825 = vst.msk [vmem:[#allocation3 + $0xd0] sm:$0xff] %vm7798, %v7797
        %7826 = vst.msk [vmem:[#allocation3 + $0xd8] sm:$0xff] %vm7798, -inf
        %7827 = vst.msk [vmem:[#allocation3 + $0xe0] sm:$0xff] %vm7798, -inf
        %7828 = vst.msk [vmem:[#allocation3 + $0xe8] sm:$0xff] %vm7798, -inf
        %7829 = vst.msk [vmem:[#allocation3 + $0xf0] sm:$0xff] %vm7798, -inf
        %7830 = vst.msk [vmem:[#allocation3 + $0xf8] sm:$0xff] %vm7798, -inf
        %7831 = vst.msk [vmem:[#allocation3 + $0x100] sm:$0xff] %vm7798, -inf
        %v7832 = vld [vmem:[#allocation3] ss:$2 sm:$0xff]
        %s7833 = scalar_lea.vmem [#allocation3], 16
        %v7834 = vld [vmem:[%s7833] ss:$2 sm:$0xff]
        %s7835 = scalar_lea.vmem [#allocation3], 32
        %v7836 = vld [vmem:[%s7835] ss:$2 sm:$0xff]
        %s7837 = scalar_lea.vmem [#allocation3], 48
        %v7838 = vld [vmem:[%s7837] ss:$2 sm:$0xff]
        %s7839 = scalar_lea.vmem [#allocation3], 64
        %v7840 = vld [vmem:[%s7839] ss:$2 sm:$0xff]
        %s7841 = scalar_lea.vmem [#allocation3], 80
        %v7842 = vld [vmem:[%s7841] ss:$2 sm:$0xff]
        %s7843 = scalar_lea.vmem [#allocation3], 96
        %v7844 = vld [vmem:[%s7843] ss:$2 sm:$0xff]
        %s7845 = scalar_lea.vmem [#allocation3], 112
        %v7846 = vld [vmem:[%s7845] ss:$2 sm:$0xff]
        %s7847 = scalar_lea.vmem [#allocation3], 128
        %v7848 = vld [vmem:[%s7847] ss:$2 sm:$0xff]
        %s7849 = scalar_lea.vmem [#allocation3], 144
        %v7850 = vld [vmem:[%s7849] ss:$2 sm:$0xff]
        %s7851 = scalar_lea.vmem [#allocation3], 160
        %v7852 = vld [vmem:[%s7851] ss:$2 sm:$0xff]
        %s7853 = scalar_lea.vmem [#allocation3], 176
        %v7854 = vld [vmem:[%s7853] ss:$2 sm:$0xff]
        %s7855 = scalar_lea.vmem [#allocation3], 192
        %v7856 = vld [vmem:[%s7855] ss:$2 sm:$0xff]
        %s7857 = scalar_lea.vmem [#allocation3], 1
        %v7858 = vld [vmem:[%s7857] ss:$2 sm:$0xff]
        %s7859 = scalar_lea.vmem [#allocation3], 17
        %v7860 = vld [vmem:[%s7859] ss:$2 sm:$0xff]
        %s7861 = scalar_lea.vmem [#allocation3], 33
        %v7862 = vld [vmem:[%s7861] ss:$2 sm:$0xff]
        %s7863 = scalar_lea.vmem [#allocation3], 49
        %v7864 = vld [vmem:[%s7863] ss:$2 sm:$0xff]
        %s7865 = scalar_lea.vmem [#allocation3], 65
        %v7866 = vld [vmem:[%s7865] ss:$2 sm:$0xff]
        %s7867 = scalar_lea.vmem [#allocation3], 81
        %v7868 = vld [vmem:[%s7867] ss:$2 sm:$0xff]
        %s7869 = scalar_lea.vmem [#allocation3], 97
        %v7870 = vld [vmem:[%s7869] ss:$2 sm:$0xff]
        %s7871 = scalar_lea.vmem [#allocation3], 113
        %v7872 = vld [vmem:[%s7871] ss:$2 sm:$0xff]
        %s7873 = scalar_lea.vmem [#allocation3], 129
        %v7874 = vld [vmem:[%s7873] ss:$2 sm:$0xff]
        %s7875 = scalar_lea.vmem [#allocation3], 145
        %v7876 = vld [vmem:[%s7875] ss:$2 sm:$0xff]
        %s7877 = scalar_lea.vmem [#allocation3], 161
        %v7878 = vld [vmem:[%s7877] ss:$2 sm:$0xff]
        %s7879 = scalar_lea.vmem [#allocation3], 177
        %v7880 = vld [vmem:[%s7879] ss:$2 sm:$0xff]
        %s7881 = scalar_lea.vmem [#allocation3], 193
        %v7882 = vld [vmem:[%s7881] ss:$2 sm:$0xff]
        %v7883 = vmax.f32 %v7832, %v7858
        %v7884 = vmax.f32 %v7834, %v7860
        %v7885 = vmax.f32 %v7836, %v7862
        %v7886 = vmax.f32 %v7838, %v7864
        %v7887 = vmax.f32 %v7840, %v7866
        %v7888 = vmax.f32 %v7842, %v7868
        %v7889 = vmax.f32 %v7844, %v7870
        %v7890 = vmax.f32 %v7846, %v7872
        %v7891 = vmax.f32 %v7848, %v7874
        %v7892 = vmax.f32 %v7850, %v7876
        %v7893 = vmax.f32 %v7852, %v7878
        %v7894 = vmax.f32 %v7854, %v7880
        %v7895 = vmax.f32 %v7856, %v7882
        %s7896 = scalar_lea.vmem [#allocation3], 2
        %v7897 = vld [vmem:[%s7896] ss:$2 sm:$0xff]
        %s7898 = scalar_lea.vmem [#allocation3], 18
        %v7899 = vld [vmem:[%s7898] ss:$2 sm:$0xff]
        %s7900 = scalar_lea.vmem [#allocation3], 34
        %v7901 = vld [vmem:[%s7900] ss:$2 sm:$0xff]
        %s7902 = scalar_lea.vmem [#allocation3], 50
        %v7903 = vld [vmem:[%s7902] ss:$2 sm:$0xff]
        %s7904 = scalar_lea.vmem [#allocation3], 66
        %v7905 = vld [vmem:[%s7904] ss:$2 sm:$0xff]
        %s7906 = scalar_lea.vmem [#allocation3], 82
        %v7907 = vld [vmem:[%s7906] ss:$2 sm:$0xff]
        %s7908 = scalar_lea.vmem [#allocation3], 98
        %v7909 = vld [vmem:[%s7908] ss:$2 sm:$0xff]
        %s7910 = scalar_lea.vmem [#allocation3], 114
        %v7911 = vld [vmem:[%s7910] ss:$2 sm:$0xff]
        %s7912 = scalar_lea.vmem [#allocation3], 130
        %v7913 = vld [vmem:[%s7912] ss:$2 sm:$0xff]
        %s7914 = scalar_lea.vmem [#allocation3], 146
        %v7915 = vld [vmem:[%s7914] ss:$2 sm:$0xff]
        %s7916 = scalar_lea.vmem [#allocation3], 162
        %v7917 = vld [vmem:[%s7916] ss:$2 sm:$0xff]
        %s7918 = scalar_lea.vmem [#allocation3], 178
        %v7919 = vld [vmem:[%s7918] ss:$2 sm:$0xff]
        %s7920 = scalar_lea.vmem [#allocation3], 194
        %v7921 = vld [vmem:[%s7920] ss:$2 sm:$0xff]
        %v7922 = vmax.f32 %v7883, %v7897
        %v7923 = vmax.f32 %v7884, %v7899
        %v7924 = vmax.f32 %v7885, %v7901
        %v7925 = vmax.f32 %v7886, %v7903
        %v7926 = vmax.f32 %v7887, %v7905
        %v7927 = vmax.f32 %v7888, %v7907
        %v7928 = vmax.f32 %v7889, %v7909
        %v7929 = vmax.f32 %v7890, %v7911
        %v7930 = vmax.f32 %v7891, %v7913
        %v7931 = vmax.f32 %v7892, %v7915
        %v7932 = vmax.f32 %v7893, %v7917
        %v7933 = vmax.f32 %v7894, %v7919
        %v7934 = vmax.f32 %v7895, %v7921
        %s7935 = scalar_lea.vmem [#allocation3], 24
        %v7936 = vld [vmem:[%s7935] ss:$2 sm:$0xff]
        %s7937 = scalar_lea.vmem [#allocation3], 40
        %v7938 = vld [vmem:[%s7937] ss:$2 sm:$0xff]
        %s7939 = scalar_lea.vmem [#allocation3], 56
        %v7940 = vld [vmem:[%s7939] ss:$2 sm:$0xff]
        %s7941 = scalar_lea.vmem [#allocation3], 72
        %v7942 = vld [vmem:[%s7941] ss:$2 sm:$0xff]
        %s7943 = scalar_lea.vmem [#allocation3], 88
        %v7944 = vld [vmem:[%s7943] ss:$2 sm:$0xff]
        %s7945 = scalar_lea.vmem [#allocation3], 104
        %v7946 = vld [vmem:[%s7945] ss:$2 sm:$0xff]
        %s7947 = scalar_lea.vmem [#allocation3], 120
        %v7948 = vld [vmem:[%s7947] ss:$2 sm:$0xff]
        %s7949 = scalar_lea.vmem [#allocation3], 136
        %v7950 = vld [vmem:[%s7949] ss:$2 sm:$0xff]
        %s7951 = scalar_lea.vmem [#allocation3], 152
        %v7952 = vld [vmem:[%s7951] ss:$2 sm:$0xff]
        %s7953 = scalar_lea.vmem [#allocation3], 168
        %v7954 = vld [vmem:[%s7953] ss:$2 sm:$0xff]
        %s7955 = scalar_lea.vmem [#allocation3], 184
        %v7956 = vld [vmem:[%s7955] ss:$2 sm:$0xff]
        %s7957 = scalar_lea.vmem [#allocation3], 200
        %v7958 = vld [vmem:[%s7957] ss:$2 sm:$0xff]
        %s7959 = scalar_lea.vmem [#allocation3], 216
        %v7960 = vld [vmem:[%s7959] ss:$2 sm:$0xff]
        %v7961 = vmax.f32 %v7922, %v7936
        %v7962 = vmax.f32 %v7923, %v7938
        %v7963 = vmax.f32 %v7924, %v7940
        %v7964 = vmax.f32 %v7925, %v7942
        %v7965 = vmax.f32 %v7926, %v7944
        %v7966 = vmax.f32 %v7927, %v7946
        %v7967 = vmax.f32 %v7928, %v7948
        %v7968 = vmax.f32 %v7929, %v7950
        %v7969 = vmax.f32 %v7930, %v7952
        %v7970 = vmax.f32 %v7931, %v7954
        %v7971 = vmax.f32 %v7932, %v7956
        %v7972 = vmax.f32 %v7933, %v7958
        %v7973 = vmax.f32 %v7934, %v7960
        %s7974 = scalar_lea.vmem [#allocation3], 25
        %v7975 = vld [vmem:[%s7974] ss:$2 sm:$0xff]
        %s7976 = scalar_lea.vmem [#allocation3], 41
        %v7977 = vld [vmem:[%s7976] ss:$2 sm:$0xff]
        %s7978 = scalar_lea.vmem [#allocation3], 57
        %v7979 = vld [vmem:[%s7978] ss:$2 sm:$0xff]
        %s7980 = scalar_lea.vmem [#allocation3], 73
        %v7981 = vld [vmem:[%s7980] ss:$2 sm:$0xff]
        %s7982 = scalar_lea.vmem [#allocation3], 89
        %v7983 = vld [vmem:[%s7982] ss:$2 sm:$0xff]
        %s7984 = scalar_lea.vmem [#allocation3], 105
        %v7985 = vld [vmem:[%s7984] ss:$2 sm:$0xff]
        %s7986 = scalar_lea.vmem [#allocation3], 121
        %v7987 = vld [vmem:[%s7986] ss:$2 sm:$0xff]
        %s7988 = scalar_lea.vmem [#allocation3], 137
        %v7989 = vld [vmem:[%s7988] ss:$2 sm:$0xff]
        %s7990 = scalar_lea.vmem [#allocation3], 153
        %v7991 = vld [vmem:[%s7990] ss:$2 sm:$0xff]
        %s7992 = scalar_lea.vmem [#allocation3], 169
        %v7993 = vld [vmem:[%s7992] ss:$2 sm:$0xff]
        %s7994 = scalar_lea.vmem [#allocation3], 185
        %v7995 = vld [vmem:[%s7994] ss:$2 sm:$0xff]
        %s7996 = scalar_lea.vmem [#allocation3], 201
        %v7997 = vld [vmem:[%s7996] ss:$2 sm:$0xff]
        %s7998 = scalar_lea.vmem [#allocation3], 217
        %v7999 = vld [vmem:[%s7998] ss:$2 sm:$0xff]
        %v8000 = vmax.f32 %v7961, %v7975
        %v8001 = vmax.f32 %v7962, %v7977
        %v8002 = vmax.f32 %v7963, %v7979
        %v8003 = vmax.f32 %v7964, %v7981
        %v8004 = vmax.f32 %v7965, %v7983
        %v8005 = vmax.f32 %v7966, %v7985
        %v8006 = vmax.f32 %v7967, %v7987
        %v8007 = vmax.f32 %v7968, %v7989
        %v8008 = vmax.f32 %v7969, %v7991
        %v8009 = vmax.f32 %v7970, %v7993
        %v8010 = vmax.f32 %v7971, %v7995
        %v8011 = vmax.f32 %v7972, %v7997
        %v8012 = vmax.f32 %v7973, %v7999
        %s8013 = scalar_lea.vmem [#allocation3], 26
        %v8014 = vld [vmem:[%s8013] ss:$2 sm:$0xff]
        %s8015 = scalar_lea.vmem [#allocation3], 42
        %v8016 = vld [vmem:[%s8015] ss:$2 sm:$0xff]
        %s8017 = scalar_lea.vmem [#allocation3], 58
        %v8018 = vld [vmem:[%s8017] ss:$2 sm:$0xff]
        %s8019 = scalar_lea.vmem [#allocation3], 74
        %v8020 = vld [vmem:[%s8019] ss:$2 sm:$0xff]
        %s8021 = scalar_lea.vmem [#allocation3], 90
        %v8022 = vld [vmem:[%s8021] ss:$2 sm:$0xff]
        %s8023 = scalar_lea.vmem [#allocation3], 106
        %v8024 = vld [vmem:[%s8023] ss:$2 sm:$0xff]
        %s8025 = scalar_lea.vmem [#allocation3], 122
        %v8026 = vld [vmem:[%s8025] ss:$2 sm:$0xff]
        %s8027 = scalar_lea.vmem [#allocation3], 138
        %v8028 = vld [vmem:[%s8027] ss:$2 sm:$0xff]
        %s8029 = scalar_lea.vmem [#allocation3], 154
        %v8030 = vld [vmem:[%s8029] ss:$2 sm:$0xff]
        %s8031 = scalar_lea.vmem [#allocation3], 170
        %v8032 = vld [vmem:[%s8031] ss:$2 sm:$0xff]
        %s8033 = scalar_lea.vmem [#allocation3], 186
        %v8034 = vld [vmem:[%s8033] ss:$2 sm:$0xff]
        %s8035 = scalar_lea.vmem [#allocation3], 202
        %v8036 = vld [vmem:[%s8035] ss:$2 sm:$0xff]
        %s8037 = scalar_lea.vmem [#allocation3], 218
        %v8038 = vld [vmem:[%s8037] ss:$2 sm:$0xff]
        %v8039 = vmax.f32 %v8000, %v8014
        %v8040 = vmax.f32 %v8001, %v8016
        %v8041 = vmax.f32 %v8002, %v8018
        %v8042 = vmax.f32 %v8003, %v8020
        %v8043 = vmax.f32 %v8004, %v8022
        %v8044 = vmax.f32 %v8005, %v8024
        %v8045 = vmax.f32 %v8006, %v8026
        %v8046 = vmax.f32 %v8007, %v8028
        %v8047 = vmax.f32 %v8008, %v8030
        %v8048 = vmax.f32 %v8009, %v8032
        %v8049 = vmax.f32 %v8010, %v8034
        %v8050 = vmax.f32 %v8011, %v8036
        %v8051 = vmax.f32 %v8012, %v8038
        %s8052 = scalar_lea.vmem [#allocation3], 208
        %v8053 = vld [vmem:[%s8052] ss:$2 sm:$0xff]
        %s8054 = scalar_lea.vmem [#allocation3], 224
        %v8055 = vld [vmem:[%s8054] ss:$2 sm:$0xff]
        %s8056 = scalar_lea.vmem [#allocation3], 240
        %v8057 = vld [vmem:[%s8056] ss:$2 sm:$0xff]
        %v8058 = vmax.f32 %v8039, %v7838
        %v8059 = vmax.f32 %v8040, %v7840
        %v8060 = vmax.f32 %v8041, %v7842
        %v8061 = vmax.f32 %v8042, %v7844
        %v8062 = vmax.f32 %v8043, %v7846
        %v8063 = vmax.f32 %v8044, %v7848
        %v8064 = vmax.f32 %v8045, %v7850
        %v8065 = vmax.f32 %v8046, %v7852
        %v8066 = vmax.f32 %v8047, %v7854
        %v8067 = vmax.f32 %v8048, %v7856
        %v8068 = vmax.f32 %v8049, %v8053
        %v8069 = vmax.f32 %v8050, %v8055
        %v8070 = vmax.f32 %v8051, %v8057
        %s8071 = scalar_lea.vmem [#allocation3], 209
        %v8072 = vld [vmem:[%s8071] ss:$2 sm:$0xff]
        %s8073 = scalar_lea.vmem [#allocation3], 225
        %v8074 = vld [vmem:[%s8073] ss:$2 sm:$0xff]
        %s8075 = scalar_lea.vmem [#allocation3], 241
        %v8076 = vld [vmem:[%s8075] ss:$2 sm:$0xff]
        %v8077 = vmax.f32 %v8058, %v7864
        %v8078 = vmax.f32 %v8059, %v7866
        %v8079 = vmax.f32 %v8060, %v7868
        %v8080 = vmax.f32 %v8061, %v7870
        %v8081 = vmax.f32 %v8062, %v7872
        %v8082 = vmax.f32 %v8063, %v7874
        %v8083 = vmax.f32 %v8064, %v7876
        %v8084 = vmax.f32 %v8065, %v7878
        %v8085 = vmax.f32 %v8066, %v7880
        %v8086 = vmax.f32 %v8067, %v7882
        %v8087 = vmax.f32 %v8068, %v8072
        %v8088 = vmax.f32 %v8069, %v8074
        %v8089 = vmax.f32 %v8070, %v8076
        %s8090 = scalar_lea.vmem [#allocation3], 210
        %v8091 = vld [vmem:[%s8090] ss:$2 sm:$0xff]
        %s8092 = scalar_lea.vmem [#allocation3], 226
        %v8093 = vld [vmem:[%s8092] ss:$2 sm:$0xff]
        %s8094 = scalar_lea.vmem [#allocation3], 242
        %v8095 = vld [vmem:[%s8094] ss:$2 sm:$0xff]
        %v8096 = vmax.f32 %v8077, %v7903
        %v8097 = vmax.f32 %v8078, %v7905
        %v8098 = vmax.f32 %v8079, %v7907
        %v8099 = vmax.f32 %v8080, %v7909
        %v8100 = vmax.f32 %v8081, %v7911
        %v8101 = vmax.f32 %v8082, %v7913
        %v8102 = vmax.f32 %v8083, %v7915
        %v8103 = vmax.f32 %v8084, %v7917
        %v8104 = vmax.f32 %v8085, %v7919
        %v8105 = vmax.f32 %v8086, %v7921
        %v8106 = vmax.f32 %v8087, %v8091
        %v8107 = vmax.f32 %v8088, %v8093
        %v8108 = vmax.f32 %v8089, %v8095
        %v8109 = vpack.c.bf16 %v8097, %v8096
        %v8110 = vpack.c.bf16 %v8099, %v8098
        %v8111 = vpack.c.bf16 %v8101, %v8100
        %v8112 = vpack.c.bf16 %v8103, %v8102
        %v8113 = vpack.c.bf16 %v8104, %v8104
        %v8114 = vld [vmem:[%s8] sm:$0xf]
        %v8115 = vld [vmem:[%s8 + $0x4] sm:$0xf]
        %v8116 = vld [vmem:[%s8 + $0x8] sm:$0xf]
        %v8117 = vld [vmem:[%s8 + $0xc] sm:$0xf]
        %v8118 = vld [vmem:[%s8 + $0x10] sm:$0xf]
        %v8119 = vld [vmem:[%s8 + $0x14] sm:$0xf]
        %v8120 = vpack.c.bf16 %v8105, %v8104
        %s8121 = scalar_lea.vmem %s8, 24
        %v8122 = vld [vmem:[%s8121] sm:$0xf]
        %v8123 = vld [vmem:[%s8121 + $0x4] sm:$0xf]
        %v8124 = vld [vmem:[%s8121 + $0x8] sm:$0xf]
        %v8125 = vld [vmem:[%s8121 + $0xc] sm:$0xf]
        %v8126 = vld [vmem:[%s8121 + $0x10] sm:$0xf]
        %v8127 = vld [vmem:[%s8121 + $0x14] sm:$0xf]
        %v8129 = vshrl.u32 %v8109, 16
        %v8131 = vshll.u32 %v8109, 16
        %v8133 = vrot.slane %v8131, 1
        %v8134 = vor.u32 %v8129, %v8133
        %v8136 = vshll.u32 %v8110, 16
        %v8138 = vrot.slane %v8136, 1
        %v8139 = vsel %vm6012, %v8134, %v8138
        %v8140 = vshrl.u32 %v8110, 16
        %v8142 = vor.u32 %v8140, %v8138
        %v8144 = vshll.u32 %v8111, 16
        %v8146 = vrot.slane %v8144, 1
        %v8147 = vsel %vm6012, %v8142, %v8146
        %v8148 = vshrl.u32 %v8111, 16
        %v8150 = vor.u32 %v8148, %v8146
        %v8152 = vshll.u32 %v8112, 16
        %v8154 = vrot.slane %v8152, 1
        %v8155 = vsel %vm6012, %v8150, %v8154
        %v8156 = vshrl.u32 %v8112, 16
        %v8158 = vor.u32 %v8156, %v8154
        %v8160 = vshll.u32 %v8120, 16
        %v8162 = vrot.slane %v8160, 1
        %v8163 = vsel %vm6012, %v8158, %v8162
        %v8164 = vshrl.u32 %v8120, 16
        %v8166 = vor.u32 %v8164, %v8162
        %v8173 = vunpack.c.l.b16 %v8122
        %v8174 = vunpack.c.l.b16 %v8123
        %v8175 = vunpack.c.l.b16 %v8124
        %v8176 = vunpack.c.l.b16 %v8125
        %v8177 = vunpack.c.l.b16 %v8126
        %v8178 = vunpack.c.l.b16 %v8127
        %v8179 = vpack.c.b16 %v8174, %v8173
        %v8180 = vpack.c.b16 %v8176, %v8175
        %v8181 = vpack.c.b16 %v8178, %v8177
        %v8186 = vsel %vm7798, %v8139, 0
        %v8189 = vsel %vm7798, %v8147, 0
        %v8192 = vsel %vm7798, %v8155, 0
        %v8195 = vsel %vm7798, %v8163, 0
        %v8198 = vsel %vm7798, %v8166, 0
        %8200 = vmatpush.bf16.msra.mxu0 0
        %8201 = vmatpush.bf16.msra.mxu0 0
        %8202 = vmatpush.bf16.msra.mxu0 0
        %8203 = vmatpush.bf16.msra.mxu0 0
        %8204 = vmatpush.bf16.msra.mxu0 0
        %8205 = vmatpush.bf16.msra.mxu0 %v8181
        %8206 = vmatpush.bf16.msra.mxu0 %v8180
        %8207 = vmatpush.bf16.msra.mxu0 %v8179
        %8208 = vmatmul.bf16.gmra.mxu0 %v8186
        %v8209 = vpop.f32.mrf.mxu0
        %v8210 = vadd.f32 0.0, %v8209
        %v8211 = vpop.f32.mrf.mxu0
        %8212 = vmatmul.bf16.gmra.mxu0 %v8189
        %v8213 = vpop.f32.mrf.mxu0
        %v8214 = vpop.f32.mrf.mxu0
        %v8215 = vadd.f32 0.0, %v8214
        %8216 = vmatmul.bf16.gmra.mxu0 %v8192
        %v8217 = vpop.f32.mrf.mxu0
        %v8218 = vpop.f32.mrf.mxu0
        %8219 = vmatmul.bf16.gmra.mxu0 %v8195
        %v8220 = vpop.f32.mrf.mxu0
        %v8221 = vadd.f32 0.0, %v8220
        %v8222 = vpop.f32.mrf.mxu0
        %8223 = vmatmul.bf16.gmra.mxu0 %v8198
        %v8224 = vpop.f32.mrf.mxu0
        %v8225 = vpop.f32.mrf.mxu0
        %8226 = vdwg.mxu0
        %v8233 = vunpack.c.l.b16 %v8114
        %v8234 = vunpack.c.l.b16 %v8115
        %v8235 = vunpack.c.l.b16 %v8116
        %v8236 = vunpack.c.l.b16 %v8117
        %v8237 = vunpack.c.l.b16 %v8118
        %v8238 = vunpack.c.l.b16 %v8119
        %v8239 = vpack.c.b16 %v8234, %v8233
        %v8240 = vpack.c.b16 %v8236, %v8235
        %v8241 = vpack.c.b16 %v8238, %v8237
        %v8245 = vsel %vm7798, %v8109, 0
        %v8247 = vsel %vm7798, %v8110, 0
        %v8249 = vsel %vm7798, %v8111, 0
        %v8251 = vsel %vm7798, %v8112, 0
        %v8254 = vsel %vm7798, %v8113, 0
        %8256 = vmatpush.bf16.msra.mxu0 0
        %8257 = vmatpush.bf16.msra.mxu0 0
        %8258 = vmatpush.bf16.msra.mxu0 0
        %8259 = vmatpush.bf16.msra.mxu0 0
        %8260 = vmatpush.bf16.msra.mxu0 0
        %8261 = vmatpush.bf16.msra.mxu0 %v8241
        %8262 = vmatpush.bf16.msra.mxu0 %v8240
        %8263 = vmatpush.bf16.msra.mxu0 %v8239
        %8264 = vmatmul.bf16.gmra.mxu0 %v8245
        %v8265 = vpop.f32.mrf.mxu0
        %v8266 = vadd.f32 %v8210, %v8265
        %v8267 = vpop.f32.mrf.mxu0
        %8268 = vmatmul.bf16.gmra.mxu0 %v8247
        %v8269 = vpop.f32.mrf.mxu0
        %v8270 = vpop.f32.mrf.mxu0
        %v8271 = vadd.f32 %v8215, %v8270
        %8272 = vmatmul.bf16.gmra.mxu0 %v8249
        %v8273 = vpop.f32.mrf.mxu0
        %v8274 = vpop.f32.mrf.mxu0
        %8275 = vmatmul.bf16.gmra.mxu0 %v8251
        %v8276 = vpop.f32.mrf.mxu0
        %v8277 = vadd.f32 %v8221, %v8276
        %v8278 = vpop.f32.mrf.mxu0
        %8279 = vmatmul.bf16.gmra.mxu0 %v8254
        %v8280 = vpop.f32.mrf.mxu0
        %v8281 = vpop.f32.mrf.mxu0
        %8282 = vdwg.mxu0
        %v8283 = vpack.c.bf16 %v8100, %v8099
        %v8284 = vpack.c.bf16 %v8102, %v8101
        %v8285 = vpack.c.bf16 %v8104, %v8103
        %v8286 = vpack.c.bf16 %v8106, %v8105
        %v8287 = vpack.c.bf16 %v8107, %v8107
        %s8288 = scalar_lea.vmem %s8, 48
        %v8289 = vld [vmem:[%s8288] sm:$0xf]
        %v8290 = vld [vmem:[%s8288 + $0x4] sm:$0xf]
        %v8291 = vld [vmem:[%s8288 + $0x8] sm:$0xf]
        %v8292 = vld [vmem:[%s8288 + $0xc] sm:$0xf]
        %v8293 = vld [vmem:[%s8288 + $0x10] sm:$0xf]
        %v8294 = vld [vmem:[%s8288 + $0x14] sm:$0xf]
        %v8301 = vunpack.c.l.b16 %v8289
        %v8302 = vunpack.c.l.b16 %v8290
        %v8303 = vunpack.c.l.b16 %v8291
        %v8304 = vunpack.c.l.b16 %v8292
        %v8305 = vunpack.c.l.b16 %v8293
        %v8306 = vunpack.c.l.b16 %v8294
        %v8307 = vpack.c.b16 %v8302, %v8301
        %v8308 = vpack.c.b16 %v8304, %v8303
        %v8309 = vpack.c.b16 %v8306, %v8305
        %v8314 = vsel %vm7798, %v8283, 0
        %v8317 = vsel %vm7798, %v8284, 0
        %v8320 = vsel %vm7798, %v8285, 0
        %v8323 = vsel %vm7798, %v8286, 0
        %v8326 = vsel %vm7798, %v8287, 0
        %8328 = vmatpush.bf16.msra.mxu0 0
        %8329 = vmatpush.bf16.msra.mxu0 0
        %8330 = vmatpush.bf16.msra.mxu0 0
        %8331 = vmatpush.bf16.msra.mxu0 0
        %8332 = vmatpush.bf16.msra.mxu0 0
        %8333 = vmatpush.bf16.msra.mxu0 %v8309
        %8334 = vmatpush.bf16.msra.mxu0 %v8308
        %8335 = vmatpush.bf16.msra.mxu0 %v8307
        %8336 = vmatmul.bf16.gmra.mxu0 %v8314
        %v8337 = vpop.f32.mrf.mxu0
        %v8338 = vadd.f32 0.0, %v8337
        %v8339 = vpop.f32.mrf.mxu0
        %8340 = vmatmul.bf16.gmra.mxu0 %v8317
        %v8341 = vpop.f32.mrf.mxu0
        %v8342 = vpop.f32.mrf.mxu0
        %v8343 = vadd.f32 0.0, %v8342
        %8344 = vmatmul.bf16.gmra.mxu0 %v8320
        %v8345 = vpop.f32.mrf.mxu0
        %v8346 = vpop.f32.mrf.mxu0
        %8347 = vmatmul.bf16.gmra.mxu0 %v8323
        %v8348 = vpop.f32.mrf.mxu0
        %v8349 = vadd.f32 0.0, %v8348
        %v8350 = vpop.f32.mrf.mxu0
        %8351 = vmatmul.bf16.gmra.mxu0 %v8326
        %v8352 = vpop.f32.mrf.mxu0
        %v8353 = vpop.f32.mrf.mxu0
        %8354 = vdwg.mxu0
        %v8355 = vadd.f32 %v8266, %v8338
        %v8356 = vadd.f32 %v8271, %v8343
        %v8357 = vadd.f32 %v8277, %v8349
        %v8358 = vpack.c.bf16 %v8108, %v8107
        %s8359 = scalar_lea.vmem %s8, 72
        %v8360 = vld [vmem:[%s8359] sm:$0xf]
        %v8361 = vld [vmem:[%s8359 + $0x4] sm:$0xf]
        %v8362 = vld [vmem:[%s8359 + $0x8] sm:$0xf]
        %v8363 = vld [vmem:[%s8359 + $0xc] sm:$0xf]
        %v8364 = vld [vmem:[%s8359 + $0x10] sm:$0xf]
        %v8365 = vld [vmem:[%s8359 + $0x14] sm:$0xf]
        %v8366 = vshrl.u32 %v8283, 16
        %v8368 = vshll.u32 %v8283, 16
        %v8370 = vrot.slane %v8368, 1
        %v8371 = vor.u32 %v8366, %v8370
        %v8372 = vshll.u32 %v8284, 16
        %v8374 = vrot.slane %v8372, 1
        %v8375 = vsel %vm6012, %v8371, %v8374
        %v8376 = vshrl.u32 %v8284, 16
        %v8378 = vor.u32 %v8376, %v8374
        %v8379 = vshll.u32 %v8285, 16
        %v8381 = vrot.slane %v8379, 1
        %v8382 = vsel %vm6012, %v8378, %v8381
        %v8383 = vshrl.u32 %v8285, 16
        %v8385 = vor.u32 %v8383, %v8381
        %v8386 = vshll.u32 %v8286, 16
        %v8388 = vrot.slane %v8386, 1
        %v8389 = vsel %vm6012, %v8385, %v8388
        %v8390 = vshrl.u32 %v8286, 16
        %v8392 = vor.u32 %v8390, %v8388
        %v8394 = vshll.u32 %v8358, 16
        %v8396 = vrot.slane %v8394, 1
        %v8397 = vsel %vm6012, %v8392, %v8396
        %v8398 = vshrl.u32 %v8358, 16
        %v8400 = vor.u32 %v8398, %v8396
        %v8407 = vunpack.c.l.b16 %v8360
        %v8408 = vunpack.c.l.b16 %v8361
        %v8409 = vunpack.c.l.b16 %v8362
        %v8410 = vunpack.c.l.b16 %v8363
        %v8411 = vunpack.c.l.b16 %v8364
        %v8412 = vunpack.c.l.b16 %v8365
        %v8413 = vpack.c.b16 %v8408, %v8407
        %v8414 = vpack.c.b16 %v8410, %v8409
        %v8415 = vpack.c.b16 %v8412, %v8411
        %v8420 = vsel %vm7798, %v8375, 0
        %v8423 = vsel %vm7798, %v8382, 0
        %v8426 = vsel %vm7798, %v8389, 0
        %v8429 = vsel %vm7798, %v8397, 0
        %v8432 = vsel %vm7798, %v8400, 0
        %8434 = vmatpush.bf16.msra.mxu0 0
        %8435 = vmatpush.bf16.msra.mxu0 0
        %8436 = vmatpush.bf16.msra.mxu0 0
        %8437 = vmatpush.bf16.msra.mxu0 0
        %8438 = vmatpush.bf16.msra.mxu0 0
        %8439 = vmatpush.bf16.msra.mxu0 %v8415
        %8440 = vmatpush.bf16.msra.mxu0 %v8414
        %8441 = vmatpush.bf16.msra.mxu0 %v8413
        %8442 = vmatmul.bf16.gmra.mxu0 %v8420
        %v8443 = vpop.f32.mrf.mxu0
        %v8444 = vadd.f32 0.0, %v8443
        %v8445 = vpop.f32.mrf.mxu0
        %8446 = vmatmul.bf16.gmra.mxu0 %v8423
        %v8447 = vpop.f32.mrf.mxu0
        %v8448 = vpop.f32.mrf.mxu0
        %v8449 = vadd.f32 0.0, %v8448
        %8450 = vmatmul.bf16.gmra.mxu0 %v8426
        %v8451 = vpop.f32.mrf.mxu0
        %v8452 = vpop.f32.mrf.mxu0
        %8453 = vmatmul.bf16.gmra.mxu0 %v8429
        %v8454 = vpop.f32.mrf.mxu0
        %v8455 = vadd.f32 0.0, %v8454
        %v8456 = vpop.f32.mrf.mxu0
        %8457 = vmatmul.bf16.gmra.mxu0 %v8432
        %v8458 = vpop.f32.mrf.mxu0
        %v8459 = vpop.f32.mrf.mxu0
        %8460 = vdwg.mxu0
        %v8461 = vadd.f32 %v8355, %v8444
        %v8462 = vadd.f32 %v8356, %v8449
        %v8463 = vadd.f32 %v8357, %v8455
        %v8464 = vld [vmem:[%s9] sm:$0x1]
        %v8466 = vperm.slane %v8464, 0
        %v8468 = vadd.f32 %v8461, %v8466
        %v8469 = vadd.f32 %v8462, %v8466
        %v8470 = vadd.f32 %v8463, %v8466
        %v8471 = vld [vmem:[%s10] sm:$0x1]
        %vm8472 = vcmp.ge.f32.partialorder %v8468, 0.0
        %vm8473 = vcmp.ge.f32.partialorder %v8469, 0.0
        %vm8474 = vcmp.ge.f32.partialorder %v8470, 0.0
        %v8476 = vperm.slane %v8471, 0
        %v8478 = vmul.f32 %v8476, %v8468
        %v8479 = vmul.f32 %v8476, %v8469
        %v8480 = vmul.f32 %v8476, %v8470
        %v8481 = vsel %vm8472, %v8468, %v8478
        %v8482 = vsel %vm8473, %v8469, %v8479
        %v8483 = vsel %vm8474, %v8470, %v8480
        %v8484 = vpack.c.bf16 %v8481, %v8481
        %v8485 = vld [vmem:[%s11] sm:$0xf]
        %v8486 = vld [vmem:[%s11 + $0x4] sm:$0xf]
        %v8487 = vld [vmem:[%s11 + $0x8] sm:$0xf]
        %v8488 = vld [vmem:[%s11 + $0xc] sm:$0xf]
        %v8489 = vld [vmem:[%s11 + $0x10] sm:$0xf]
        %v8490 = vld [vmem:[%s11 + $0x14] sm:$0xf]
        %v8491 = vld [vmem:[%s11 + $0x18] sm:$0xf]
        %v8492 = vld [vmem:[%s11 + $0x1c] sm:$0xf]
        %s8493 = scalar_lea.vmem %s11, 32
        %v8494 = vld [vmem:[%s8493] sm:$0xf]
        %v8495 = vld [vmem:[%s8493 + $0x4] sm:$0xf]
        %v8496 = vld [vmem:[%s8493 + $0x8] sm:$0xf]
        %v8497 = vld [vmem:[%s8493 + $0xc] sm:$0xf]
        %v8498 = vld [vmem:[%s8493 + $0x10] sm:$0xf]
        %v8499 = vld [vmem:[%s8493 + $0x14] sm:$0xf]
        %v8500 = vld [vmem:[%s8493 + $0x18] sm:$0xf]
        %v8501 = vld [vmem:[%s8493 + $0x1c] sm:$0xf]
        %v8503 = vshrl.u32 %v8484, 16
        %v8513 = vunpack.c.l.b16 %v8494
        %v8514 = vunpack.c.l.b16 %v8495
        %v8515 = vunpack.c.l.b16 %v8496
        %v8516 = vunpack.c.l.b16 %v8497
        %v8517 = vunpack.c.l.b16 %v8498
        %v8518 = vunpack.c.l.b16 %v8499
        %v8519 = vunpack.c.l.b16 %v8500
        %v8520 = vunpack.c.l.b16 %v8501
        %v8521 = vpack.c.b16 %v8514, %v8513
        %v8522 = vpack.c.b16 %v8516, %v8515
        %v8523 = vpack.c.b16 %v8518, %v8517
        %v8524 = vpack.c.b16 %v8520, %v8519
        %vm8529 = vcmask 523264
        %v8531 = vsel %vm8529, %v8503, 0
        %8533 = vmatpush.bf16.msra.mxu0 0
        %8534 = vmatpush.bf16.msra.mxu0 0
        %8535 = vmatpush.bf16.msra.mxu0 0
        %8536 = vmatpush.bf16.msra.mxu0 0
        %8537 = vmatpush.bf16.msra.mxu0 %v8524
        %8538 = vmatpush.bf16.msra.mxu0 %v8523
        %8539 = vmatpush.bf16.msra.mxu0 %v8522
        %8540 = vmatpush.bf16.msra.mxu0 %v8521
        %8541 = vmatmul.bf16.gmra.mxu0 %v8531
        %v8542 = vpop.f32.mrf.mxu0
        %v8543 = vadd.f32 0.0, %v8542
        %v8544 = vpop.f32.mrf.mxu0
        %8545 = vdwg.mxu0
        %v8554 = vunpack.c.l.b16 %v8485
        %v8555 = vunpack.c.l.b16 %v8486
        %v8556 = vunpack.c.l.b16 %v8487
        %v8557 = vunpack.c.l.b16 %v8488
        %v8558 = vunpack.c.l.b16 %v8489
        %v8559 = vunpack.c.l.b16 %v8490
        %v8560 = vunpack.c.l.b16 %v8491
        %v8561 = vunpack.c.l.b16 %v8492
        %v8562 = vpack.c.b16 %v8555, %v8554
        %v8563 = vpack.c.b16 %v8557, %v8556
        %v8564 = vpack.c.b16 %v8559, %v8558
        %v8565 = vpack.c.b16 %v8561, %v8560
        %v8570 = vsel %vm8529, %v8484, 0
        %8572 = vmatpush.bf16.msra.mxu0 0
        %8573 = vmatpush.bf16.msra.mxu0 0
        %8574 = vmatpush.bf16.msra.mxu0 0
        %8575 = vmatpush.bf16.msra.mxu0 0
        %8576 = vmatpush.bf16.msra.mxu0 %v8565
        %8577 = vmatpush.bf16.msra.mxu0 %v8564
        %8578 = vmatpush.bf16.msra.mxu0 %v8563
        %8579 = vmatpush.bf16.msra.mxu0 %v8562
        %8580 = vmatmul.bf16.gmra.mxu0 %v8570
        %v8581 = vpop.f32.mrf.mxu0
        %v8582 = vadd.f32 %v8543, %v8581
        %v8583 = vpop.f32.mrf.mxu0
        %8584 = vdwg.mxu0
        %s8585 = scalar_lea.vmem %s11, 64
        %v8586 = vld [vmem:[%s8585] sm:$0xf]
        %v8587 = vld [vmem:[%s8585 + $0x4] sm:$0xf]
        %v8588 = vld [vmem:[%s8585 + $0x8] sm:$0xf]
        %v8589 = vld [vmem:[%s8585 + $0xc] sm:$0xf]
        %v8590 = vld [vmem:[%s8585 + $0x10] sm:$0xf]
        %v8591 = vld [vmem:[%s8585 + $0x14] sm:$0xf]
        %v8592 = vld [vmem:[%s8585 + $0x18] sm:$0xf]
        %v8593 = vld [vmem:[%s8585 + $0x1c] sm:$0xf]
        %v8595 = vrot.slane %v8484, 1
        %v8604 = vunpack.c.l.b16 %v8586
        %v8605 = vunpack.c.l.b16 %v8587
        %v8606 = vunpack.c.l.b16 %v8588
        %v8607 = vunpack.c.l.b16 %v8589
        %v8608 = vunpack.c.l.b16 %v8590
        %v8609 = vunpack.c.l.b16 %v8591
        %v8610 = vunpack.c.l.b16 %v8592
        %v8611 = vunpack.c.l.b16 %v8593
        %v8612 = vpack.c.b16 %v8605, %v8604
        %v8613 = vpack.c.b16 %v8607, %v8606
        %v8614 = vpack.c.b16 %v8609, %v8608
        %v8615 = vpack.c.b16 %v8611, %v8610
        %v8621 = vsel %vm8529, %v8595, 0
        %8623 = vmatpush.bf16.msra.mxu0 0
        %8624 = vmatpush.bf16.msra.mxu0 0
        %8625 = vmatpush.bf16.msra.mxu0 0
        %8626 = vmatpush.bf16.msra.mxu0 0
        %8627 = vmatpush.bf16.msra.mxu0 %v8615
        %8628 = vmatpush.bf16.msra.mxu0 %v8614
        %8629 = vmatpush.bf16.msra.mxu0 %v8613
        %8630 = vmatpush.bf16.msra.mxu0 %v8612
        %8631 = vmatmul.bf16.gmra.mxu0 %v8621
        %v8632 = vpop.f32.mrf.mxu0
        %v8633 = vadd.f32 0.0, %v8632
        %v8634 = vpop.f32.mrf.mxu0
        %8635 = vdwg.mxu0
        %v8636 = vadd.f32 %v8582, %v8633
        %v8637 = vpack.c.bf16 %v8482, %v8482
        %s8638 = scalar_lea.vmem %s11, 96
        %v8639 = vld [vmem:[%s8638] sm:$0xf]
        %v8640 = vld [vmem:[%s8638 + $0x4] sm:$0xf]
        %v8641 = vld [vmem:[%s8638 + $0x8] sm:$0xf]
        %v8642 = vld [vmem:[%s8638 + $0xc] sm:$0xf]
        %v8643 = vld [vmem:[%s8638 + $0x10] sm:$0xf]
        %v8644 = vld [vmem:[%s8638 + $0x14] sm:$0xf]
        %v8645 = vld [vmem:[%s8638 + $0x18] sm:$0xf]
        %v8646 = vld [vmem:[%s8638 + $0x1c] sm:$0xf]
        %v8655 = vunpack.c.l.b16 %v8639
        %v8656 = vunpack.c.l.b16 %v8640
        %v8657 = vunpack.c.l.b16 %v8641
        %v8658 = vunpack.c.l.b16 %v8642
        %v8659 = vunpack.c.l.b16 %v8643
        %v8660 = vunpack.c.l.b16 %v8644
        %v8661 = vunpack.c.l.b16 %v8645
        %v8662 = vunpack.c.l.b16 %v8646
        %v8663 = vpack.c.b16 %v8656, %v8655
        %v8664 = vpack.c.b16 %v8658, %v8657
        %v8665 = vpack.c.b16 %v8660, %v8659
        %v8666 = vpack.c.b16 %v8662, %v8661
        %v8672 = vsel %vm8529, %v8637, 0
        %8674 = vmatpush.bf16.msra.mxu0 0
        %8675 = vmatpush.bf16.msra.mxu0 0
        %8676 = vmatpush.bf16.msra.mxu0 0
        %8677 = vmatpush.bf16.msra.mxu0 0
        %8678 = vmatpush.bf16.msra.mxu0 %v8666
        %8679 = vmatpush.bf16.msra.mxu0 %v8665
        %8680 = vmatpush.bf16.msra.mxu0 %v8664
        %8681 = vmatpush.bf16.msra.mxu0 %v8663
        %8682 = vmatmul.bf16.gmra.mxu0 %v8672
        %v8683 = vpop.f32.mrf.mxu0
        %v8684 = vadd.f32 0.0, %v8683
        %v8685 = vpop.f32.mrf.mxu0
        %8686 = vdwg.mxu0
        %v8687 = vadd.f32 %v8636, %v8684
        %s8688 = scalar_lea.vmem %s11, 128
        %v8689 = vld [vmem:[%s8688] sm:$0xf]
        %v8690 = vld [vmem:[%s8688 + $0x4] sm:$0xf]
        %v8691 = vld [vmem:[%s8688 + $0x8] sm:$0xf]
        %v8692 = vld [vmem:[%s8688 + $0xc] sm:$0xf]
        %v8693 = vld [vmem:[%s8688 + $0x10] sm:$0xf]
        %v8694 = vld [vmem:[%s8688 + $0x14] sm:$0xf]
        %v8695 = vld [vmem:[%s8688 + $0x18] sm:$0xf]
        %v8696 = vld [vmem:[%s8688 + $0x1c] sm:$0xf]
        %v8697 = vshrl.u32 %v8637, 16
        %v8707 = vunpack.c.l.b16 %v8689
        %v8708 = vunpack.c.l.b16 %v8690
        %v8709 = vunpack.c.l.b16 %v8691
        %v8710 = vunpack.c.l.b16 %v8692
        %v8711 = vunpack.c.l.b16 %v8693
        %v8712 = vunpack.c.l.b16 %v8694
        %v8713 = vunpack.c.l.b16 %v8695
        %v8714 = vunpack.c.l.b16 %v8696
        %v8715 = vpack.c.b16 %v8708, %v8707
        %v8716 = vpack.c.b16 %v8710, %v8709
        %v8717 = vpack.c.b16 %v8712, %v8711
        %v8718 = vpack.c.b16 %v8714, %v8713
        %v8724 = vsel %vm8529, %v8697, 0
        %8726 = vmatpush.bf16.msra.mxu0 0
        %8727 = vmatpush.bf16.msra.mxu0 0
        %8728 = vmatpush.bf16.msra.mxu0 0
        %8729 = vmatpush.bf16.msra.mxu0 0
        %8730 = vmatpush.bf16.msra.mxu0 %v8718
        %8731 = vmatpush.bf16.msra.mxu0 %v8717
        %8732 = vmatpush.bf16.msra.mxu0 %v8716
        %8733 = vmatpush.bf16.msra.mxu0 %v8715
        %8734 = vmatmul.bf16.gmra.mxu0 %v8724
        %v8735 = vpop.f32.mrf.mxu0
        %v8736 = vadd.f32 0.0, %v8735
        %v8737 = vpop.f32.mrf.mxu0
        %8738 = vdwg.mxu0
        %v8739 = vadd.f32 %v8687, %v8736
        %s8740 = scalar_lea.vmem %s11, 160
        %v8741 = vld [vmem:[%s8740] sm:$0xf]
        %v8742 = vld [vmem:[%s8740 + $0x4] sm:$0xf]
        %v8743 = vld [vmem:[%s8740 + $0x8] sm:$0xf]
        %v8744 = vld [vmem:[%s8740 + $0xc] sm:$0xf]
        %v8745 = vld [vmem:[%s8740 + $0x10] sm:$0xf]
        %v8746 = vld [vmem:[%s8740 + $0x14] sm:$0xf]
        %v8747 = vld [vmem:[%s8740 + $0x18] sm:$0xf]
        %v8748 = vld [vmem:[%s8740 + $0x1c] sm:$0xf]
        %v8750 = vrot.slane %v8637, 1
        %v8759 = vunpack.c.l.b16 %v8741
        %v8760 = vunpack.c.l.b16 %v8742
        %v8761 = vunpack.c.l.b16 %v8743
        %v8762 = vunpack.c.l.b16 %v8744
        %v8763 = vunpack.c.l.b16 %v8745
        %v8764 = vunpack.c.l.b16 %v8746
        %v8765 = vunpack.c.l.b16 %v8747
        %v8766 = vunpack.c.l.b16 %v8748
        %v8767 = vpack.c.b16 %v8760, %v8759
        %v8768 = vpack.c.b16 %v8762, %v8761
        %v8769 = vpack.c.b16 %v8764, %v8763
        %v8770 = vpack.c.b16 %v8766, %v8765
        %v8776 = vsel %vm8529, %v8750, 0
        %8778 = vmatpush.bf16.msra.mxu0 0
        %8779 = vmatpush.bf16.msra.mxu0 0
        %8780 = vmatpush.bf16.msra.mxu0 0
        %8781 = vmatpush.bf16.msra.mxu0 0
        %8782 = vmatpush.bf16.msra.mxu0 %v8770
        %8783 = vmatpush.bf16.msra.mxu0 %v8769
        %8784 = vmatpush.bf16.msra.mxu0 %v8768
        %8785 = vmatpush.bf16.msra.mxu0 %v8767
        %8786 = vmatmul.bf16.gmra.mxu0 %v8776
        %v8787 = vpop.f32.mrf.mxu0
        %v8788 = vadd.f32 0.0, %v8787
        %v8789 = vpop.f32.mrf.mxu0
        %8790 = vdwg.mxu0
        %v8791 = vadd.f32 %v8739, %v8788
        %v8792 = vpack.c.bf16 %v8483, %v8483
        %s8793 = scalar_lea.vmem %s11, 192
        %v8794 = vld [vmem:[%s8793] sm:$0xf]
        %v8795 = vld [vmem:[%s8793 + $0x4] sm:$0xf]
        %v8796 = vld [vmem:[%s8793 + $0x8] sm:$0xf]
        %v8797 = vld [vmem:[%s8793 + $0xc] sm:$0xf]
        %v8798 = vld [vmem:[%s8793 + $0x10] sm:$0xf]
        %v8799 = vld [vmem:[%s8793 + $0x14] sm:$0xf]
        %v8800 = vld [vmem:[%s8793 + $0x18] sm:$0xf]
        %v8801 = vld [vmem:[%s8793 + $0x1c] sm:$0xf]
        %v8810 = vunpack.c.l.b16 %v8794
        %v8811 = vunpack.c.l.b16 %v8795
        %v8812 = vunpack.c.l.b16 %v8796
        %v8813 = vunpack.c.l.b16 %v8797
        %v8814 = vunpack.c.l.b16 %v8798
        %v8815 = vunpack.c.l.b16 %v8799
        %v8816 = vunpack.c.l.b16 %v8800
        %v8817 = vunpack.c.l.b16 %v8801
        %v8818 = vpack.c.b16 %v8811, %v8810
        %v8819 = vpack.c.b16 %v8813, %v8812
        %v8820 = vpack.c.b16 %v8815, %v8814
        %v8821 = vpack.c.b16 %v8817, %v8816
        %v8827 = vsel %vm8529, %v8792, 0
        %8829 = vmatpush.bf16.msra.mxu0 0
        %8830 = vmatpush.bf16.msra.mxu0 0
        %8831 = vmatpush.bf16.msra.mxu0 0
        %8832 = vmatpush.bf16.msra.mxu0 0
        %8833 = vmatpush.bf16.msra.mxu0 %v8821
        %8834 = vmatpush.bf16.msra.mxu0 %v8820
        %8835 = vmatpush.bf16.msra.mxu0 %v8819
        %8836 = vmatpush.bf16.msra.mxu0 %v8818
        %8837 = vmatmul.bf16.gmra.mxu0 %v8827
        %v8838 = vpop.f32.mrf.mxu0
        %v8839 = vadd.f32 0.0, %v8838
        %v8840 = vpop.f32.mrf.mxu0
        %8841 = vdwg.mxu0
        %v8842 = vadd.f32 %v8791, %v8839
        %s8843 = scalar_lea.vmem %s11, 224
        %v8844 = vld [vmem:[%s8843] sm:$0xf]
        %v8845 = vld [vmem:[%s8843 + $0x4] sm:$0xf]
        %v8846 = vld [vmem:[%s8843 + $0x8] sm:$0xf]
        %v8847 = vld [vmem:[%s8843 + $0xc] sm:$0xf]
        %v8848 = vld [vmem:[%s8843 + $0x10] sm:$0xf]
        %v8849 = vld [vmem:[%s8843 + $0x14] sm:$0xf]
        %v8850 = vld [vmem:[%s8843 + $0x18] sm:$0xf]
        %v8851 = vld [vmem:[%s8843 + $0x1c] sm:$0xf]
        %v8852 = vshrl.u32 %v8792, 16
        %v8862 = vunpack.c.l.b16 %v8844
        %v8863 = vunpack.c.l.b16 %v8845
        %v8864 = vunpack.c.l.b16 %v8846
        %v8865 = vunpack.c.l.b16 %v8847
        %v8866 = vunpack.c.l.b16 %v8848
        %v8867 = vunpack.c.l.b16 %v8849
        %v8868 = vunpack.c.l.b16 %v8850
        %v8869 = vunpack.c.l.b16 %v8851
        %v8870 = vpack.c.b16 %v8863, %v8862
        %v8871 = vpack.c.b16 %v8865, %v8864
        %v8872 = vpack.c.b16 %v8867, %v8866
        %v8873 = vpack.c.b16 %v8869, %v8868
        %v8879 = vsel %vm8529, %v8852, 0
        %8881 = vmatpush.bf16.msra.mxu0 0
        %8882 = vmatpush.bf16.msra.mxu0 0
        %8883 = vmatpush.bf16.msra.mxu0 0
        %8884 = vmatpush.bf16.msra.mxu0 0
        %8885 = vmatpush.bf16.msra.mxu0 %v8873
        %8886 = vmatpush.bf16.msra.mxu0 %v8872
        %8887 = vmatpush.bf16.msra.mxu0 %v8871
        %8888 = vmatpush.bf16.msra.mxu0 %v8870
        %8889 = vmatmul.bf16.gmra.mxu0 %v8879
        %v8890 = vpop.f32.mrf.mxu0
        %v8891 = vadd.f32 0.0, %v8890
        %v8892 = vpop.f32.mrf.mxu0
        %8893 = vdwg.mxu0
        %v8894 = vadd.f32 %v8842, %v8891
        %s8895 = scalar_lea.vmem %s11, 256
        %v8896 = vld [vmem:[%s8895] sm:$0xf]
        %v8897 = vld [vmem:[%s8895 + $0x4] sm:$0xf]
        %v8898 = vld [vmem:[%s8895 + $0x8] sm:$0xf]
        %v8899 = vld [vmem:[%s8895 + $0xc] sm:$0xf]
        %v8900 = vld [vmem:[%s8895 + $0x10] sm:$0xf]
        %v8901 = vld [vmem:[%s8895 + $0x14] sm:$0xf]
        %v8902 = vld [vmem:[%s8895 + $0x18] sm:$0xf]
        %v8903 = vld [vmem:[%s8895 + $0x1c] sm:$0xf]
        %v8905 = vrot.slane %v8792, 1
        %v8914 = vunpack.c.l.b16 %v8896
        %v8915 = vunpack.c.l.b16 %v8897
        %v8916 = vunpack.c.l.b16 %v8898
        %v8917 = vunpack.c.l.b16 %v8899
        %v8918 = vunpack.c.l.b16 %v8900
        %v8919 = vunpack.c.l.b16 %v8901
        %v8920 = vunpack.c.l.b16 %v8902
        %v8921 = vunpack.c.l.b16 %v8903
        %v8922 = vpack.c.b16 %v8915, %v8914
        %v8923 = vpack.c.b16 %v8917, %v8916
        %v8924 = vpack.c.b16 %v8919, %v8918
        %v8925 = vpack.c.b16 %v8921, %v8920
        %v8931 = vsel %vm8529, %v8905, 0
        %8933 = vmatpush.bf16.msra.mxu0 0
        %8934 = vmatpush.bf16.msra.mxu0 0
        %8935 = vmatpush.bf16.msra.mxu0 0
        %8936 = vmatpush.bf16.msra.mxu0 0
        %8937 = vmatpush.bf16.msra.mxu0 %v8925
        %8938 = vmatpush.bf16.msra.mxu0 %v8924
        %8939 = vmatpush.bf16.msra.mxu0 %v8923
        %8940 = vmatpush.bf16.msra.mxu0 %v8922
        %8941 = vmatmul.bf16.gmra.mxu0 %v8931
        %v8942 = vpop.f32.mrf.mxu0
        %v8943 = vadd.f32 0.0, %v8942
        %v8944 = vpop.f32.mrf.mxu0
        %8945 = vdwg.mxu0
        %v8946 = vadd.f32 %v8894, %v8943
        %v8947 = vld [vmem:[%s12] sm:$0x1]
        %v8948 = vadd.f32 %v8946, %v8947
        %v8949 = vld [vmem:[%s13] sm:$0x1]
        %vm8950 = vcmp.ge.f32.partialorder %v8948, 0.0
        %v8951 = vmul.f32 %v8949, %v8948
        %v8952 = vsel %vm8950, %v8948, %v8951
        %v8953 = vpack.c.bf16 %v8952, %v8952
        %v8954 = vld [vmem:[%s14] sm:$0xf]
        %v8955 = vld [vmem:[%s14 + $0x4] sm:$0xf]
        %v8956 = vld [vmem:[%s14 + $0x8] sm:$0xf]
        %v8957 = vld [vmem:[%s14 + $0xc] sm:$0xf]
        %v8958 = vld [vmem:[%s14 + $0x10] sm:$0xf]
        %v8959 = vld [vmem:[%s14 + $0x14] sm:$0xf]
        %v8960 = vld [vmem:[%s14 + $0x18] sm:$0xf]
        %v8961 = vld [vmem:[%s14 + $0x1c] sm:$0xf]
        %v8962 = vld [vmem:[%s14 + $0x20] sm:$0xf]
        %v8963 = vld [vmem:[%s14 + $0x24] sm:$0xf]
        %v8964 = vld [vmem:[%s14 + $0x28] sm:$0xf]
        %v8965 = vld [vmem:[%s14 + $0x2c] sm:$0xf]
        %v8966 = vld [vmem:[%s14 + $0x30] sm:$0xf]
        %v8967 = vld [vmem:[%s14 + $0x34] sm:$0xf]
        %v8968 = vld [vmem:[%s14 + $0x38] sm:$0xf]
        %v8969 = vld [vmem:[%s14 + $0x3c] sm:$0xf]
        %v8970 = vld [vmem:[%s15] sm:$0x1]
        %v8987 = vunpack.c.l.b16 %v8954
        %v8988 = vunpack.c.l.b16 %v8955
        %v8989 = vunpack.c.l.b16 %v8956
        %v8990 = vunpack.c.l.b16 %v8957
        %v8991 = vunpack.c.l.b16 %v8958
        %v8992 = vunpack.c.l.b16 %v8959
        %v8993 = vunpack.c.l.b16 %v8960
        %v8994 = vunpack.c.l.b16 %v8961
        %v8995 = vunpack.c.l.b16 %v8962
        %v8996 = vunpack.c.l.b16 %v8963
        %v8997 = vunpack.c.l.b16 %v8964
        %v8998 = vunpack.c.l.b16 %v8965
        %v8999 = vunpack.c.l.b16 %v8966
        %v9000 = vunpack.c.l.b16 %v8967
        %v9001 = vunpack.c.l.b16 %v8968
        %v9002 = vunpack.c.l.b16 %v8969
        %v9003 = vpack.c.b16 %v8988, %v8987
        %v9004 = vpack.c.b16 %v8990, %v8989
        %v9005 = vpack.c.b16 %v8992, %v8991
        %v9006 = vpack.c.b16 %v8994, %v8993
        %v9007 = vpack.c.b16 %v8996, %v8995
        %v9008 = vpack.c.b16 %v8998, %v8997
        %v9009 = vpack.c.b16 %v9000, %v8999
        %v9010 = vpack.c.b16 %v9002, %v9001
        %9019 = vmatpush.bf16.msra.mxu0 %v9010
        %9020 = vmatpush.bf16.msra.mxu0 %v9009
        %9021 = vmatpush.bf16.msra.mxu0 %v9008
        %9022 = vmatpush.bf16.msra.mxu0 %v9007
        %9023 = vmatpush.bf16.msra.mxu0 %v9006
        %9024 = vmatpush.bf16.msra.mxu0 %v9005
        %9025 = vmatpush.bf16.msra.mxu0 %v9004
        %9026 = vmatpush.bf16.msra.mxu0 %v9003
        %9027 = vmatmul.bf16.gmra.mxu0 %v8953
        %v9028 = vpop.f32.mrf.mxu0
        %v9029 = vadd.f32 %v8970, %v9028
        %v9030 = vpop.f32.mrf.mxu0
        %9031 = vdwg.mxu0
        %vm9032 = vcmask 8192
        %v9033 = vsel %vm9032, %v9029, -inf
        %9034 = vmax.xlane.f32.xlu0 %v9033
        %v9035 = vpop.xlane.xlu0 %9034
        %v9036 = vsub.f32 %v9029, %v9035
        %v9037 = vmul.f32 %v9036, 1.442695
        %v9038 = vpow.pop %v9037
        %v9039 = vsel %vm9032, %v9038, 0.0
        %9040 = vadd.xlane.f32.xlu0 %v9039
        %v9041 = vpop.xlane.xlu0 %9040
        %v9042 = vrcp.pop %v9041
        %v9043 = vmul.f32 %v9041, %v9042
        %v9044 = vsub.f32 1.0, %v9043
        %v9045 = vmul.f32 %v9042, %v9044
        %v9046 = vadd.f32 %v9042, %v9045
        %vm9047 = vweird.f32 %v9041
        %vm9048 = vweird.f32 %v9042
        %vm9049 = vmor %vm9047, %vm9048
        %v9050 = vsel %vm9049, %v9042, %v9046
        %v9051 = vand.u32 2147483647, %v9041
        %vm9052 = vcmp.eq.f32.partialorder %v9051, 8.507059e+37
        %v9053 = vand.u32 %v9041, 2147483648
        %v9054 = vor.u32 1.1754944e-38, %v9053
        %v9055 = vsel %vm9052, %v9054, %v9050
        %v9056 = vmul.f32 %v9038, %v9055
        %9057 = vst.msk [vmem:[%s554] sm:$0x1] %vm9032, %v9056
        %9059 = vrot.lane.b32.xlu0 %v9029, 126
        %v9060 = vpop.permute.xlu0 %9059
        %vm9062 = vcmask 24576
        %9063 = vst.msk [vmem:[%s541] sm:$0x1] %vm9062, %v9060
        %s9064 = sand.u32 %s381, 1
        %s9065 = scalar_lea.sflag [#allocation5], %s9064
        %s9066 = sand.u32 %s381, 1
        %s9067 = scalar_lea.vmem [#allocation4], %s9066
        %p9068 = scmp.lt.s32.totalorder %s32, 3
        %s9069 = scalar_select %p9068, %s32, 3
        %s9070 = scalar_lea.vmem %s17, %s9069
        // Predicated region
        $region85: #{rnet_forward.1} parent=83 // pred_check
          %p9071 = pneg %p391
        $region86: #{rnet_forward.1} parent=83 // pred_check_branch
          %9073 = sbr.rel (%p9071) target = $region88
        $region87: #{rnet_forward.1} parent=83 // pred_region
          %9075 = vsyncadd %s9065, 0
          %s9076 = scalar_lea.hbm %s16, %s32
          %s9078 = sshll.u32 %s9067, 4
          %s9079 = int_to_ptr.vmem [resolvable:$true] %s9078
          %s9080 = sshll.u32 %s9076, 4
          %s9081 = int_to_ptr.hbm [resolvable:$true] %s9080
          %9083 = dma.vmem_to_hbm [thread:$0]  %s9079, 16, %s9081, %s9065
        $region88: #{rnet_forward.1} parent=83 // pred_fallthru
          _
        // Predicated region
        $region89: #{rnet_forward.1} parent=83 // pred_check
          %p9084 = pneg %p417
        $region90: #{rnet_forward.1} parent=83 // pred_check_branch
          %9086 = sbr.rel (%p9084) target = $region92
        $region91: #{rnet_forward.1} parent=83 // pred_region
          _
        $region92: #{rnet_forward.1} parent=83 // pred_fallthru
          _
      $region84: #{rnet_forward.1} parent=5 // pred_fallthru
        _
      %p9087 = scmp.le.s32.totalorder 2, %s27
      // Predicated region
      $region93: #{rnet_forward.1} parent=5 // pred_check
        %p9088 = pneg %p9087
      $region94: #{rnet_forward.1} parent=5 // pred_check_branch
        %9090 = sbr.rel (%p9088) target = $region96
      $region95: #{rnet_forward.1} parent=5 // pred_region
        %s9091 = ssub.s32 %s27, 2
        // Predicated region
        $region97: #{rnet_forward.1} parent=95 // pred_check
          %p9092 = pneg %p397
        $region98: #{rnet_forward.1} parent=95 // pred_check_branch
          %9094 = sbr.rel (%p9092) target = $region100
        $region99: #{rnet_forward.1} parent=95 // pred_region
          %s9095 = sand.u32 %s382, 1
          %s9096 = scalar_lea.sflag [#allocation5], %s9095
          %s9097 = sand.u32 %s382, 1
          %s9098 = scalar_lea.vmem [#allocation4], %s9097
          %9100 = dma.done %s9096, 16
        $region100: #{rnet_forward.1} parent=95 // pred_fallthru
          _
        // Predicated region
        $region101: #{rnet_forward.1} parent=95 // pred_check
          %p9101 = pneg %p423
        $region102: #{rnet_forward.1} parent=95 // pred_check_branch
          %9103 = sbr.rel (%p9101) target = $region104
        $region103: #{rnet_forward.1} parent=95 // pred_region
          %p9104 = scmp.lt.s32.totalorder %s33, 3
          %s9105 = scalar_select %p9104, %s33, 3
          %s9106 = scalar_lea.vmem %s17, %s9105
        $region104: #{rnet_forward.1} parent=95 // pred_fallthru
          _
      $region96: #{rnet_forward.1} parent=5 // pred_fallthru
        _
    $region6: #{rnet_forward.1} parent=1 // loop_footer
      %s31 = sadd.s32 1, %s27
    $region7: #{rnet_forward.1} parent=1 // loop_footer_branch
      %26 = sbr.rel target = $region3
    $region8: #{rnet_forward.1} parent=1 // loop_exit
      _
    %9107 = vsyncpa [#allocation5], 1
    %s9108 = scalar_lea.sflag [#allocation5], 1
    %9109 = vsyncpa %s9108, 1

</llo_original>
